<compile_context>
chip_gen: v7x
topology: tpu7x:2x2x1
jax: 0.10.0
libtpu: 0.0.40
codegen_flags: <defaults>
</compile_context>

<pallas_src>
import jax
import jax.numpy as jnp
from jax.experimental import pallas as pl
from jax.experimental.pallas import tpu as pltpu

# ---- module hyper-parameters (from __init__) --------------------------------
SIGMAS = (0.5, 1.0, 2.0, 4.0, 8.0)      # gaussian_sigmas
DATA_RANGE = 1.0
K1, K2 = 0.01, 0.03
ALPHA = 0.84
FILTER_SIZE = int(4 * SIGMAS[-1] + 1)   # 33
PAD = int(2 * SIGMAS[-1])               # 16
C1 = (K1 * DATA_RANGE) ** 2
C2 = (K2 * DATA_RANGE) ** 2
N_CH = 3
N_SIG = len(SIGMAS)

_CONV_TILE = 224          # banded tile -> contraction K = 224 + 2*PAD = 256
_DENSE_MAX_H = 256        # exact dense (H,H) vertical operator up to this H
_DENSE_MAX_W = 512        # dense (W,W) horizontal operator up to this W (aligned K)
_LANE_STACK_MAX_W = 256   # below this, batch the vertical pass along lanes

# PyTorch grouped conv (groups=3, weight (15,1,33,33)): output channel m
# convolves input channel m // 5 with mask m, whose sigma is SIGMAS[m // 3].
# Unique (channel, sigma_idx) keys + multiplicity of each cs term in
# PIcs = cs.prod(dim=1), grouped by channel so channel work is hoisted.
_key_mult = {}
for _m in range(N_CH * N_SIG):
    _k = (_m // N_SIG, _m // 3)
    _key_mult[_k] = _key_mult.get(_k, 0) + 1
N_KEYS = len(_key_mult)                                   # 7 unique keys, mults sum to 15
CH_KEYS = tuple(
    (c, tuple((si, m) for (cc, si), m in sorted(_key_mult.items()) if cc == c))
    for c in range(N_CH))
LM_KEY = (N_CH - 1, N_SIG - 1)   # l[:,-1]*l[:,-2]*l[:,-3] = l(ch2, sigma8)^3 (upstream quirk)


# ---- deterministic parameter setup (g_masks equivalent) ----------------------
def _gauss_1d(size, sigma):
    coords = jnp.arange(size, dtype=jnp.float32) - (size // 2)
    g = jnp.exp(-(coords ** 2) / (2.0 * sigma ** 2))
    return g / jnp.sum(g)


def _same_band(k1d, n):
    """Dense 'same' conv operator: A[i, j] = k[j - i + PAD], zero outside band."""
    i = jnp.arange(n)[:, None]
    j = jnp.arange(n)[None, :]
    d = j - i + PAD
    valid = (d >= 0) & (d < FILTER_SIZE)
    return jnp.where(valid, k1d[jnp.clip(d, 0, FILTER_SIZE - 1)], 0.0).astype(jnp.float32)


def _band_tile(k1d, t):
    """Canonical banded-Toeplitz tile: B[p, q] = k[q - p], shape (t, t + 2*PAD).

    Output row r0+p of a 'same' zero-padded conv reads inputs (r0-PAD)+q, so
    every interior row tile uses this SAME matrix; edge tiles use static
    row/column slices of it (the zero band reproduces the zero padding).
    """
    p = jnp.arange(t)[:, None]
    q = jnp.arange(t + 2 * PAD)[None, :]
    d = q - p
    valid = (d >= 0) & (d < FILTER_SIZE)
    return jnp.where(valid, k1d[jnp.clip(d, 0, FILTER_SIZE - 1)], 0.0).astype(jnp.float32)


# ---- Pallas kernel (built with static shape/layout config closed over) ------
def _build_kernel(*, h, w, lane_stack, h_banded, w_banded, sh, sw, th, tw):
    f32 = jnp.float32

    def kernel(x_ref, y_ref, ah_ref, aw_ref, out_ref, slab_ref, mid_ref):
        # x_ref, y_ref : (3, H, W) per-batch tiles
        # ah_ref       : (5, H, H) dense or (5, TH, TH+2*PAD) canonical band tile
        # aw_ref       : (5, W, W) dense or (5, TW+2*PAD, TW) canonical band tile
        # out_ref      : (1, 1) per-batch partial sum of the mixed loss map
        # slab_ref/mid_ref : persistent VMEM scratch slabs (stacked conv I/O)

        # -- separable 'same' Gaussian conv passes (banded Toeplitz matmuls) --
        def v_pass_ref(ncols, si):
            """mid[:, :ncols] = vertical conv of slab[:, :ncols] (sigma si)."""
            if h_banded:
                for r0 in range(0, h, th):
                    r1 = min(r0 + th, h)
                    j0, j1 = max(0, r0 - PAD), min(h, r1 + PAD)
                    b = ah_ref[si, 0:r1 - r0, j0 - (r0 - PAD):j1 - (r0 - PAD)]
                    mid_ref[r0:r1, 0:ncols] = jnp.dot(
                        b, slab_ref[j0:j1, 0:ncols], preferred_element_type=f32)
            else:
                mid_ref[0:h, 0:ncols] = jnp.dot(
                    ah_ref[si], slab_ref[0:h, 0:ncols], preferred_element_type=f32)

        def h_pass_ref(nrows, si):
            """mid[:nrows, :] = horizontal conv of slab[:nrows, :] (sigma si)."""
            if w_banded:
                # TODO(synk): 128-align this contraction window (zero-extended
                # operator band) to avoid unaligned lane slices when W > 512.
                for c0 in range(0, w, tw):
                    c1 = min(c0 + tw, w)
                    j0, j1 = max(0, c0 - PAD), min(w, c1 + PAD)
                    b = aw_ref[si, j0 - (c0 - PAD):j1 - (c0 - PAD), 0:c1 - c0]
                    mid_ref[0:nrows, c0:c1] = jnp.dot(
                        slab_ref[0:nrows, j0:j1], b, preferred_element_type=f32)
            else:
                mid_ref[0:nrows, 0:w] = jnp.dot(
                    slab_ref[0:nrows, 0:w], aw_ref[si], preferred_element_type=f32)

        def v_pass_val(v, si):
            """Vertical conv of an (H, W) value (sigma si) -> value."""
            if h_banded:
                rows = []
                for r0 in range(0, h, th):
                    r1 = min(r0 + th, h)
                    j0, j1 = max(0, r0 - PAD), min(h, r1 + PAD)
                    b = ah_ref[si, 0:r1 - r0, j0 - (r0 - PAD):j1 - (r0 - PAD)]
                    rows.append(jnp.dot(b, v[j0:j1, :], preferred_element_type=f32))
                return jnp.concatenate(rows, axis=0)
            return jnp.dot(ah_ref[si], v, preferred_element_type=f32)

        def h_pass_val(v, si):
            """Horizontal conv of an (H, W) value -> value (dense-W path only)."""
            return jnp.dot(v, aw_ref[si], preferred_element_type=f32)

        # -- stacked-slab plumbing (written once per channel, reused per sigma) --
        def load_slab(maps):
            nm = len(maps)
            if lane_stack:
                for k in range(nm):
                    slab_ref[0:h, k * sw:k * sw + w] = maps[k]
            else:
                for k in range(nm):
                    slab_ref[k * sh:k * sh + h, 0:w] = maps[k]
            return nm

        def conv_slab(nm, si):
            # Gap rows/cols of the padded stripes (when H % 8 / W % 128 != 0)
            # hold stale data; both conv passes keep rows/columns independent,
            # so that garbage never reaches the per-map slices read back here.
            if lane_stack:
                v_pass_ref(nm * sw, si)
                return [h_pass_val(mid_ref[0:h, k * sw:k * sw + w], si)
                        for k in range(nm)]
            h_pass_ref(nm * sh, si)
            return [v_pass_val(mid_ref[k * sh:k * sh + h, 0:w], si)
                    for k in range(nm)]

        # -- fused stats: channel-major, per-channel products hoisted ----------
        pi_cs = None      # cs.prod(dim=1)
        l_lm = None       # l for (channel 2, sigma 8) -> lM = l_lm^3
        for c, sig_list in CH_KEYS:
            xc = x_ref[c]
            yc = y_ref[c]
            nm = load_slab([xc, yc, xc * xc, yc * yc, xc * yc])
            for si, mult in sig_list:
                mux, muy, ex2, ey2, exy = conv_slab(nm, si)
                sx2 = ex2 - mux * mux
                sy2 = ey2 - muy * muy
                sxy = exy - mux * muy
                l_m = (2.0 * mux * muy + C1) * pl.reciprocal(
                    mux * mux + muy * muy + C1, approx=True)
                cs_m = (2.0 * sxy + C2) * pl.reciprocal(
                    sx2 + sy2 + C2, approx=True)
                cs_p = cs_m
                for _ in range(mult - 1):                 # explicit product, no pow
                    cs_p = cs_p * cs_m
                pi_cs = cs_p if pi_cs is None else pi_cs * cs_p
                if (c, si) == LM_KEY:
                    l_lm = l_m

        loss_ms_ssim = 1.0 - (l_lm * l_lm * l_lm) * pi_cs

        # gaussian_l1: sigma_max smoothing of |x - y| per channel, channel mean.
        nm = load_slab([jnp.abs(x_ref[c] - y_ref[c]) for c in range(N_CH)])
        g = conv_slab(nm, N_SIG - 1)
        gl1 = (g[0] + g[1] + g[2]) * (1.0 / N_CH)

        loss_mix = (ALPHA * loss_ms_ssim
                    + ((1.0 - ALPHA) / DATA_RANGE) * gl1)

        # In-kernel reduction: per-batch partial sum; final mean is tiny JAX glue.
        out_ref[...] = jnp.sum(jnp.sum(loss_mix, axis=1, keepdims=True),
                               axis=0, keepdims=True)

    return kernel


# ---- wrapper -----------------------------------------------------------------
@jax.jit
def ms_ssim_l1_loss(x, y):
    """x, y: (N, 3, H, W) float32 NCHW. Returns the scalar loss (== forward)."""
    n, c, h, w = x.shape
    assert c == N_CH, "groups=3 grouped conv implies 3 input channels"
    x = x.astype(jnp.float32)
    y = y.astype(jnp.float32)

    # Static layout / tiling decisions.
    lane_stack = w < _LANE_STACK_MAX_W
    h_banded = h > _DENSE_MAX_H
    w_banded = w > _DENSE_MAX_W
    th = _CONV_TILE
    tw = _CONV_TILE
    sh = -(-h // 8) * 8          # per-map row stride (sublane aligned)
    sw = -(-w // 128) * 128      # per-map lane stride (lane aligned)

    # Per-sigma 'same' separable-conv operators.
    g1d = [_gauss_1d(FILTER_SIZE, s) for s in SIGMAS]
    if h_banded:
        a_h = jnp.stack([_band_tile(g, th) for g in g1d])        # (5, TH, TH+2*PAD)
    else:
        a_h = jnp.stack([_same_band(g, h) for g in g1d])         # (5, H, H)
    if w_banded:
        a_w = jnp.stack([_band_tile(g, tw).T for g in g1d])      # (5, TW+2*PAD, TW)
    else:
        a_w = jnp.stack([_same_band(g, w).T for g in g1d])       # (5, W, W)

    slab_shape = (h, 5 * sw) if lane_stack else (5 * sh, w)

    kernel = _build_kernel(h=h, w=w, lane_stack=lane_stack, h_banded=h_banded,
                           w_banded=w_banded, sh=sh, sw=sw, th=th, tw=tw)

    # Generation-aware VMEM limit (v7x has 64 MiB per TensorCore).
    try:
        vmem_cap = int(pltpu.get_tpu_info().vmem_capacity_bytes)
    except Exception:
        vmem_cap = 64 * 1024 * 1024
    op_bytes = 2 * 4 * (int(a_h.size) + int(a_w.size))           # double-buffered operators
    slab_bytes = 2 * 4 * slab_shape[0] * slab_shape[1]           # stack slab + mid slab
    img_bytes = 2 * 2 * N_CH * h * w * 4                         # x, y double-buffered
    live_bytes = 14 * h * w * 4                                  # live (H, W) temporaries
    vmem_est = int(1.25 * (op_bytes + slab_bytes + img_bytes + live_bytes))
    vmem_limit = int(min(0.9 * vmem_cap, max(64 * 1024 * 1024, vmem_est)))

    # Advisory cost estimate.
    kh = (th + 2 * PAD) if h_banded else h
    kw = (tw + 2 * PAD) if w_banded else w
    n_maps = 5 * N_KEYS + N_CH                                   # 38 convolved maps / image
    cost = pl.CostEstimate(
        flops=2 * n * n_maps * h * w * (kh + kw),
        transcendentals=2 * n * N_KEYS * h * w,
        bytes_accessed=n * 2 * N_CH * h * w * 4
        + (int(a_h.size) + int(a_w.size)) * 4 + n * 4)

    # TODO(synk): add a halo-overlapped row-tile grid axis (also 'parallel') so
    # v7x's two TensorCores split small/odd batches and huge images tile in H.
    partial = pl.pallas_call(
        kernel,
        out_shape=jax.ShapeDtypeStruct((n, 1, 1), jnp.float32),
        grid=(n,),
        in_specs=[
            pl.BlockSpec((None, N_CH, h, w), lambda i: (i, 0, 0, 0)),
            pl.BlockSpec((None, N_CH, h, w), lambda i: (i, 0, 0, 0)),
            pl.BlockSpec(a_h.shape, lambda i: (0, 0, 0)),
            pl.BlockSpec(a_w.shape, lambda i: (0, 0, 0)),
        ],
        out_specs=pl.BlockSpec((None, 1, 1), lambda i: (i, 0, 0)),
        scratch_shapes=[
            pltpu.VMEM(slab_shape, jnp.float32),   # stacked conv-input slab
            pltpu.VMEM(slab_shape, jnp.float32),   # mid (after first conv pass)
        ],
        compiler_params=pltpu.CompilerParams(
            dimension_semantics=("parallel",),
            vmem_limit_bytes=vmem_limit),
        cost_estimate=cost,
    )(x, y, a_h, a_w)

    # Final scalar reduction (loss_mix.mean()) — trivial glue, done in JAX.
    return jnp.sum(partial) / (n * h * w)


# ---- pure-JAX reference (direct transcription of the PyTorch forward) --------
@jax.jit
def _reference_loss(x, y):
    g1 = [_gauss_1d(FILTER_SIZE, s) for s in SIGMAS]
    g2 = [jnp.outer(g, g) for g in g1]
    masks = jnp.stack([g2[m // 3] for m in range(N_CH * N_SIG)])[:, None, :, :]

    def conv(t, wgt, groups):
        return jax.lax.conv_general_dilated(
            t, wgt, window_strides=(1, 1), padding=((PAD, PAD), (PAD, PAD)),
            dimension_numbers=("NCHW", "OIHW", "NCHW"),
            feature_group_count=groups, precision=jax.lax.Precision.HIGHEST)

    mux = conv(x, masks, N_CH)
    muy = conv(y, masks, N_CH)
    mux2, muy2, muxy = mux * mux, muy * muy, mux * muy
    sx2 = conv(x * x, masks, N_CH) - mux2
    sy2 = conv(y * y, masks, N_CH) - muy2
    sxy = conv(x * y, masks, N_CH) - muxy
    l_map = (2 * muxy + C1) / (mux2 + muy2 + C1)
    cs = (2 * sxy + C2) / (sx2 + sy2 + C2)
    l_m = l_map[:, -1] * l_map[:, -2] * l_map[:, -3]
    pi_cs = jnp.prod(cs, axis=1)
    loss_ms_ssim = 1.0 - l_m * pi_cs
    gl1 = jnp.mean(conv(jnp.abs(x - y), masks[-N_CH:], N_CH), axis=1)
    loss_mix = ALPHA * loss_ms_ssim + (1.0 - ALPHA) * gl1 / DATA_RANGE
    return jnp.mean(loss_mix)


if __name__ == "__main__":
    key = jax.random.PRNGKey(0)
    kx, ky = jax.random.split(key)
    # NCHW, 3 channels required by groups=3
    x = jax.random.uniform(kx, (2, 3, 16, 16), dtype=jnp.float32)
    y = jax.random.uniform(ky, (2, 3, 16, 16), dtype=jnp.float32)

    loss = jax.block_until_ready(ms_ssim_l1_loss(x, y))
    ref = jax.block_until_ready(_reference_loss(x, y))

    assert loss.shape == () and bool(jnp.isfinite(loss))
    # approx reciprocals (~1e-4 rel) are the only intended deviation.
    assert abs(float(loss) - float(ref)) <= 2e-3 + 5e-3 * abs(float(ref)), \
        (float(loss), float(ref))
    print("KERNEL_OK")
</pallas_src>

<mosaic_0001>
module attributes {stable_mosaic.version = 11 : i64} {
  func.func @kernel(%arg0: i32, %arg1: memref<1x3x16x16xf32, #tpu.memory_space<vmem>>, %arg2: memref<1x3x16x16xf32, #tpu.memory_space<vmem>>, %arg3: memref<5x16x16xf32, #tpu.memory_space<vmem>>, %arg4: memref<5x16x16xf32, #tpu.memory_space<vmem>>, %arg5: memref<1x1x1xf32, #tpu.memory_space<vmem>>, %arg6: memref<16x640xf32, #tpu.memory_space<vmem>>, %arg7: memref<16x640xf32, #tpu.memory_space<vmem>>) attributes {dimension_semantics = [#tpu.dimension_semantics<parallel>], iteration_bounds = array<i64: 2>, scalar_prefetch = 0 : i64, scratch_operands = 2 : i64, tpu.core_type = #tpu.core_type<tc>, window_params = [{transform_indices = @transform_0, window_bounds = array<i64: 1, 3, 16, 16>}, {transform_indices = @transform_1, window_bounds = array<i64: 1, 3, 16, 16>}, {pipeline_mode = #tpu.pipeline_mode<synchronous>, transform_indices = @transform_2, window_bounds = array<i64: 5, 16, 16>}, {pipeline_mode = #tpu.pipeline_mode<synchronous>, transform_indices = @transform_3, window_bounds = array<i64: 5, 16, 16>}, {transform_indices = @transform_4, window_bounds = array<i64: 1, 1, 1>}]} {
    %c0 = arith.constant 0 : index
    %c0_0 = arith.constant 0 : index
    %c0_1 = arith.constant 0 : index
    %c0_2 = arith.constant 0 : index
    %0 = vector.load %arg1[%c0, %c0_0, %c0_1, %c0_2] : memref<1x3x16x16xf32, #tpu.memory_space<vmem>>, vector<1x1x16x16xf32>
    %1 = vector.shape_cast %0 : vector<1x1x16x16xf32> to vector<16x16xf32>
    %c0_3 = arith.constant 0 : index
    %c0_4 = arith.constant 0 : index
    %c0_5 = arith.constant 0 : index
    %c0_6 = arith.constant 0 : index
    %2 = vector.load %arg2[%c0_3, %c0_4, %c0_5, %c0_6] : memref<1x3x16x16xf32, #tpu.memory_space<vmem>>, vector<1x1x16x16xf32>
    %3 = vector.shape_cast %2 : vector<1x1x16x16xf32> to vector<16x16xf32>
    %4 = arith.mulf %1, %1 : vector<16x16xf32>
    %5 = arith.mulf %3, %3 : vector<16x16xf32>
    %6 = arith.mulf %1, %3 : vector<16x16xf32>
    %c0_7 = arith.constant 0 : index
    %c0_8 = arith.constant 0 : index
    %7 = vector.load %arg6[%c0_7, %c0_8] : memref<16x640xf32, #tpu.memory_space<vmem>>, vector<16x16xf32>
    tpu.vector_store %arg6[%c0_7, %c0_8], %1 {strides = array<i32>} : memref<16x640xf32, #tpu.memory_space<vmem>>, vector<16x16xf32>,
    %c0_9 = arith.constant 0 : index
    %c128 = arith.constant 128 : index
    %8 = vector.load %arg6[%c0_9, %c128] : memref<16x640xf32, #tpu.memory_space<vmem>>, vector<16x16xf32>
    tpu.vector_store %arg6[%c0_9, %c128], %3 {strides = array<i32>} : memref<16x640xf32, #tpu.memory_space<vmem>>, vector<16x16xf32>,
    %c0_10 = arith.constant 0 : index
    %c256 = arith.constant 256 : index
    %9 = vector.load %arg6[%c0_10, %c256] : memref<16x640xf32, #tpu.memory_space<vmem>>, vector<16x16xf32>
    tpu.vector_store %arg6[%c0_10, %c256], %4 {strides = array<i32>} : memref<16x640xf32, #tpu.memory_space<vmem>>, vector<16x16xf32>,
    %c0_11 = arith.constant 0 : index
    %c384 = arith.constant 384 : index
    %10 = vector.load %arg6[%c0_11, %c384] : memref<16x640xf32, #tpu.memory_space<vmem>>, vector<16x16xf32>
    tpu.vector_store %arg6[%c0_11, %c384], %5 {strides = array<i32>} : memref<16x640xf32, #tpu.memory_space<vmem>>, vector<16x16xf32>,
    %c0_12 = arith.constant 0 : index
    %c512 = arith.constant 512 : index
    %11 = vector.load %arg6[%c0_12, %c512] : memref<16x640xf32, #tpu.memory_space<vmem>>, vector<16x16xf32>
    tpu.vector_store %arg6[%c0_12, %c512], %6 {strides = array<i32>} : memref<16x640xf32, #tpu.memory_space<vmem>>, vector<16x16xf32>,
    %c0_13 = arith.constant 0 : index
    %c0_14 = arith.constant 0 : index
    %c0_15 = arith.constant 0 : index
    %12 = vector.load %arg3[%c0_13, %c0_14, %c0_15] : memref<5x16x16xf32, #tpu.memory_space<vmem>>, vector<1x16x16xf32>
    %13 = vector.shape_cast %12 : vector<1x16x16xf32> to vector<16x16xf32>
    %c0_16 = arith.constant 0 : index
    %c0_17 = arith.constant 0 : index
    %14 = vector.load %arg6[%c0_16, %c0_17] : memref<16x640xf32, #tpu.memory_space<vmem>>, vector<16x640xf32>
    %cst = arith.constant dense<0.000000e+00> : vector<16x640xf32>
    %15 = tpu.matmul %13, %14, %cst {dimension_numbers = #tpu.dot_dimension_numbers<[1], [0], [0], [1], [0, 0, 1, 1], [], []>} : vector<16x16xf32>, vector<16x640xf32>, vector<16x640xf32> -> vector<16x640xf32>
    %c0_18 = arith.constant 0 : index
    %c0_19 = arith.constant 0 : index
    %16 = vector.load %arg7[%c0_18, %c0_19] : memref<16x640xf32, #tpu.memory_space<vmem>>, vector<16x640xf32>
    tpu.vector_store %arg7[%c0_18, %c0_19], %15 {strides = array<i32>} : memref<16x640xf32, #tpu.memory_space<vmem>>, vector<16x640xf32>,
    %c0_20 = arith.constant 0 : index
    %c0_21 = arith.constant 0 : index
    %17 = vector.load %arg7[%c0_20, %c0_21] : memref<16x640xf32, #tpu.memory_space<vmem>>, vector<16x16xf32>
    %c0_22 = arith.constant 0 : index
    %c0_23 = arith.constant 0 : index
    %c0_24 = arith.constant 0 : index
    %18 = vector.load %arg4[%c0_22, %c0_23, %c0_24] : memref<5x16x16xf32, #tpu.memory_space<vmem>>, vector<1x16x16xf32>
    %19 = vector.shape_cast %18 : vector<1x16x16xf32> to vector<16x16xf32>
    %cst_25 = arith.constant dense<0.000000e+00> : vector<16x16xf32>
    %20 = tpu.matmul %17, %19, %cst_25 {dimension_numbers = #tpu.dot_dimension_numbers<[1], [0], [0], [1], [0, 0, 1, 1], [], []>} : vector<16x16xf32>, vector<16x16xf32>, vector<16x16xf32> -> vector<16x16xf32>
    %c0_26 = arith.constant 0 : index
    %c128_27 = arith.constant 128 : index
    %21 = vector.load %arg7[%c0_26, %c128_27] : memref<16x640xf32, #tpu.memory_space<vmem>>, vector<16x16xf32>
    %c0_28 = arith.constant 0 : index
    %c0_29 = arith.constant 0 : index
    %c0_30 = arith.constant 0 : index
    %22 = vector.load %arg4[%c0_28, %c0_29, %c0_30] : memref<5x16x16xf32, #tpu.memory_space<vmem>>, vector<1x16x16xf32>
    %23 = vector.shape_cast %22 : vector<1x16x16xf32> to vector<16x16xf32>
    %cst_31 = arith.constant dense<0.000000e+00> : vector<16x16xf32>
    %24 = tpu.matmul %21, %23, %cst_31 {dimension_numbers = #tpu.dot_dimension_numbers<[1], [0], [0], [1], [0, 0, 1, 1], [], []>} : vector<16x16xf32>, vector<16x16xf32>, vector<16x16xf32> -> vector<16x16xf32>
    %c0_32 = arith.constant 0 : index
    %c256_33 = arith.constant 256 : index
    %25 = vector.load %arg7[%c0_32, %c256_33] : memref<16x640xf32, #tpu.memory_space<vmem>>, vector<16x16xf32>
    %c0_34 = arith.constant 0 : index
    %c0_35 = arith.constant 0 : index
    %c0_36 = arith.constant 0 : index
    %26 = vector.load %arg4[%c0_34, %c0_35, %c0_36] : memref<5x16x16xf32, #tpu.memory_space<vmem>>, vector<1x16x16xf32>
    %27 = vector.shape_cast %26 : vector<1x16x16xf32> to vector<16x16xf32>
    %cst_37 = arith.constant dense<0.000000e+00> : vector<16x16xf32>
    %28 = tpu.matmul %25, %27, %cst_37 {dimension_numbers = #tpu.dot_dimension_numbers<[1], [0], [0], [1], [0, 0, 1, 1], [], []>} : vector<16x16xf32>, vector<16x16xf32>, vector<16x16xf32> -> vector<16x16xf32>
    %c0_38 = arith.constant 0 : index
    %c384_39 = arith.constant 384 : index
    %29 = vector.load %arg7[%c0_38, %c384_39] : memref<16x640xf32, #tpu.memory_space<vmem>>, vector<16x16xf32>
    %c0_40 = arith.constant 0 : index
    %c0_41 = arith.constant 0 : index
    %c0_42 = arith.constant 0 : index
    %30 = vector.load %arg4[%c0_40, %c0_41, %c0_42] : memref<5x16x16xf32, #tpu.memory_space<vmem>>, vector<1x16x16xf32>
    %31 = vector.shape_cast %30 : vector<1x16x16xf32> to vector<16x16xf32>
    %cst_43 = arith.constant dense<0.000000e+00> : vector<16x16xf32>
    %32 = tpu.matmul %29, %31, %cst_43 {dimension_numbers = #tpu.dot_dimension_numbers<[1], [0], [0], [1], [0, 0, 1, 1], [], []>} : vector<16x16xf32>, vector<16x16xf32>, vector<16x16xf32> -> vector<16x16xf32>
    %c0_44 = arith.constant 0 : index
    %c512_45 = arith.constant 512 : index
    %33 = vector.load %arg7[%c0_44, %c512_45] : memref<16x640xf32, #tpu.memory_space<vmem>>, vector<16x16xf32>
    %c0_46 = arith.constant 0 : index
    %c0_47 = arith.constant 0 : index
    %c0_48 = arith.constant 0 : index
    %34 = vector.load %arg4[%c0_46, %c0_47, %c0_48] : memref<5x16x16xf32, #tpu.memory_space<vmem>>, vector<1x16x16xf32>
    %35 = vector.shape_cast %34 : vector<1x16x16xf32> to vector<16x16xf32>
    %cst_49 = arith.constant dense<0.000000e+00> : vector<16x16xf32>
    %36 = tpu.matmul %33, %35, %cst_49 {dimension_numbers = #tpu.dot_dimension_numbers<[1], [0], [0], [1], [0, 0, 1, 1], [], []>} : vector<16x16xf32>, vector<16x16xf32>, vector<16x16xf32> -> vector<16x16xf32>
    %37 = arith.mulf %20, %20 : vector<16x16xf32>
    %38 = arith.subf %28, %37 : vector<16x16xf32>
    %39 = arith.mulf %24, %24 : vector<16x16xf32>
    %40 = arith.subf %32, %39 : vector<16x16xf32>
    %41 = arith.mulf %20, %24 : vector<16x16xf32>
    %42 = arith.subf %36, %41 : vector<16x16xf32>
    %cst_50 = arith.constant 2.000000e+00 : f32
    %43 = vector.broadcast %cst_50 : f32 to vector<16x16xf32>
    %44 = arith.mulf %43, %42 : vector<16x16xf32>
    %cst_51 = arith.constant 8.99999984E-4 : f32
    %45 = vector.broadcast %cst_51 : f32 to vector<16x16xf32>
    %46 = arith.addf %44, %45 : vector<16x16xf32>
    %47 = arith.addf %38, %40 : vector<16x16xf32>
    %cst_52 = arith.constant 8.99999984E-4 : f32
    %48 = vector.broadcast %cst_52 : f32 to vector<16x16xf32>
    %49 = arith.addf %47, %48 : vector<16x16xf32>
    %50 = tpu.reciprocal %49 {approx = true} : vector<16x16xf32> -> vector<16x16xf32>
    %51 = arith.mulf %46, %50 : vector<16x16xf32>
    %52 = arith.mulf %51, %51 : vector<16x16xf32>
    %53 = arith.mulf %52, %51 : vector<16x16xf32>
    %c1 = arith.constant 1 : index
    %c0_53 = arith.constant 0 : index
    %c0_54 = arith.constant 0 : index
    %54 = vector.load %arg3[%c1, %c0_53, %c0_54] : memref<5x16x16xf32, #tpu.memory_space<vmem>>, vector<1x16x16xf32>
    %55 = vector.shape_cast %54 : vector<1x16x16xf32> to vector<16x16xf32>
    %c0_55 = arith.constant 0 : index
    %c0_56 = arith.constant 0 : index
    %56 = vector.load %arg6[%c0_55, %c0_56] : memref<16x640xf32, #tpu.memory_space<vmem>>, vector<16x640xf32>
    %cst_57 = arith.constant dense<0.000000e+00> : vector<16x640xf32>
    %57 = tpu.matmul %55, %56, %cst_57 {dimension_numbers = #tpu.dot_dimension_numbers<[1], [0], [0], [1], [0, 0, 1, 1], [], []>} : vector<16x16xf32>, vector<16x640xf32>, vector<16x640xf32> -> vector<16x640xf32>
    %c0_58 = arith.constant 0 : index
    %c0_59 = arith.constant 0 : index
    %58 = vector.load %arg7[%c0_58, %c0_59] : memref<16x640xf32, #tpu.memory_space<vmem>>, vector<16x640xf32>
    tpu.vector_store %arg7[%c0_58, %c0_59], %57 {strides = array<i32>} : memref<16x640xf32, #tpu.memory_space<vmem>>, vector<16x640xf32>,
    %c0_60 = arith.constant 0 : index
    %c0_61 = arith.constant 0 : index
    %59 = vector.load %arg7[%c0_60, %c0_61] : memref<16x640xf32, #tpu.memory_space<vmem>>, vector<16x16xf32>
    %c1_62 = arith.constant 1 : index
    %c0_63 = arith.constant 0 : index
    %c0_64 = arith.constant 0 : index
    %60 = vector.load %arg4[%c1_62, %c0_63, %c0_64] : memref<5x16x16xf32, #tpu.memory_space<vmem>>, vector<1x16x16xf32>
    %61 = vector.shape_cast %60 : vector<1x16x16xf32> to vector<16x16xf32>
    %cst_65 = arith.constant dense<0.000000e+00> : vector<16x16xf32>
    %62 = tpu.matmul %59, %61, %cst_65 {dimension_numbers = #tpu.dot_dimension_numbers<[1], [0], [0], [1], [0, 0, 1, 1], [], []>} : vector<16x16xf32>, vector<16x16xf32>, vector<16x16xf32> -> vector<16x16xf32>
    %c0_66 = arith.constant 0 : index
    %c128_67 = arith.constant 128 : index
    %63 = vector.load %arg7[%c0_66, %c128_67] : memref<16x640xf32, #tpu.memory_space<vmem>>, vector<16x16xf32>
    %c1_68 = arith.constant 1 : index
    %c0_69 = arith.constant 0 : index
    %c0_70 = arith.constant 0 : index
    %64 = vector.load %arg4[%c1_68, %c0_69, %c0_70] : memref<5x16x16xf32, #tpu.memory_space<vmem>>, vector<1x16x16xf32>
    %65 = vector.shape_cast %64 : vector<1x16x16xf32> to vector<16x16xf32>
    %cst_71 = arith.constant dense<0.000000e+00> : vector<16x16xf32>
    %66 = tpu.matmul %63, %65, %cst_71 {dimension_numbers = #tpu.dot_dimension_numbers<[1], [0], [0], [1], [0, 0, 1, 1], [], []>} : vector<16x16xf32>, vector<16x16xf32>, vector<16x16xf32> -> vector<16x16xf32>
    %c0_72 = arith.constant 0 : index
    %c256_73 = arith.constant 256 : index
    %67 = vector.load %arg7[%c0_72, %c256_73] : memref<16x640xf32, #tpu.memory_space<vmem>>, vector<16x16xf32>
    %c1_74 = arith.constant 1 : index
    %c0_75 = arith.constant 0 : index
    %c0_76 = arith.constant 0 : index
    %68 = vector.load %arg4[%c1_74, %c0_75, %c0_76] : memref<5x16x16xf32, #tpu.memory_space<vmem>>, vector<1x16x16xf32>
    %69 = vector.shape_cast %68 : vector<1x16x16xf32> to vector<16x16xf32>
    %cst_77 = arith.constant dense<0.000000e+00> : vector<16x16xf32>
    %70 = tpu.matmul %67, %69, %cst_77 {dimension_numbers = #tpu.dot_dimension_numbers<[1], [0], [0], [1], [0, 0, 1, 1], [], []>} : vector<16x16xf32>, vector<16x16xf32>, vector<16x16xf32> -> vector<16x16xf32>
    %c0_78 = arith.constant 0 : index
    %c384_79 = arith.constant 384 : index
    %71 = vector.load %arg7[%c0_78, %c384_79] : memref<16x640xf32, #tpu.memory_space<vmem>>, vector<16x16xf32>
    %c1_80 = arith.constant 1 : index
    %c0_81 = arith.constant 0 : index
    %c0_82 = arith.constant 0 : index
    %72 = vector.load %arg4[%c1_80, %c0_81, %c0_82] : memref<5x16x16xf32, #tpu.memory_space<vmem>>, vector<1x16x16xf32>
    %73 = vector.shape_cast %72 : vector<1x16x16xf32> to vector<16x16xf32>
    %cst_83 = arith.constant dense<0.000000e+00> : vector<16x16xf32>
    %74 = tpu.matmul %71, %73, %cst_83 {dimension_numbers = #tpu.dot_dimension_numbers<[1], [0], [0], [1], [0, 0, 1, 1], [], []>} : vector<16x16xf32>, vector<16x16xf32>, vector<16x16xf32> -> vector<16x16xf32>
    %c0_84 = arith.constant 0 : index
    %c512_85 = arith.constant 512 : index
    %75 = vector.load %arg7[%c0_84, %c512_85] : memref<16x640xf32, #tpu.memory_space<vmem>>, vector<16x16xf32>
    %c1_86 = arith.constant 1 : index
    %c0_87 = arith.constant 0 : index
    %c0_88 = arith.constant 0 : index
    %76 = vector.load %arg4[%c1_86, %c0_87, %c0_88] : memref<5x16x16xf32, #tpu.memory_space<vmem>>, vector<1x16x16xf32>
    %77 = vector.shape_cast %76 : vector<1x16x16xf32> to vector<16x16xf32>
    %cst_89 = arith.constant dense<0.000000e+00> : vector<16x16xf32>
    %78 = tpu.matmul %75, %77, %cst_89 {dimension_numbers = #tpu.dot_dimension_numbers<[1], [0], [0], [1], [0, 0, 1, 1], [], []>} : vector<16x16xf32>, vector<16x16xf32>, vector<16x16xf32> -> vector<16x16xf32>
    %79 = arith.mulf %62, %62 : vector<16x16xf32>
    %80 = arith.subf %70, %79 : vector<16x16xf32>
    %81 = arith.mulf %66, %66 : vector<16x16xf32>
    %82 = arith.subf %74, %81 : vector<16x16xf32>
    %83 = arith.mulf %62, %66 : vector<16x16xf32>
    %84 = arith.subf %78, %83 : vector<16x16xf32>
    %cst_90 = arith.constant 2.000000e+00 : f32
    %85 = vector.broadcast %cst_90 : f32 to vector<16x16xf32>
    %86 = arith.mulf %85, %84 : vector<16x16xf32>
    %cst_91 = arith.constant 8.99999984E-4 : f32
    %87 = vector.broadcast %cst_91 : f32 to vector<16x16xf32>
    %88 = arith.addf %86, %87 : vector<16x16xf32>
    %89 = arith.addf %80, %82 : vector<16x16xf32>
    %cst_92 = arith.constant 8.99999984E-4 : f32
    %90 = vector.broadcast %cst_92 : f32 to vector<16x16xf32>
    %91 = arith.addf %89, %90 : vector<16x16xf32>
    %92 = tpu.reciprocal %91 {approx = true} : vector<16x16xf32> -> vector<16x16xf32>
    %93 = arith.mulf %88, %92 : vector<16x16xf32>
    %94 = arith.mulf %93, %93 : vector<16x16xf32>
    %95 = arith.mulf %53, %94 : vector<16x16xf32>
    %c0_93 = arith.constant 0 : index
    %c1_94 = arith.constant 1 : index
    %c0_95 = arith.constant 0 : index
    %c0_96 = arith.constant 0 : index
    %96 = vector.load %arg1[%c0_93, %c1_94, %c0_95, %c0_96] : memref<1x3x16x16xf32, #tpu.memory_space<vmem>>, vector<1x1x16x16xf32>
    %97 = vector.shape_cast %96 : vector<1x1x16x16xf32> to vector<16x16xf32>
    %c0_97 = arith.constant 0 : index
    %c1_98 = arith.constant 1 : index
    %c0_99 = arith.constant 0 : index
    %c0_100 = arith.constant 0 : index
    %98 = vector.load %arg2[%c0_97, %c1_98, %c0_99, %c0_100] : memref<1x3x16x16xf32, #tpu.memory_space<vmem>>, vector<1x1x16x16xf32>
    %99 = vector.shape_cast %98 : vector<1x1x16x16xf32> to vector<16x16xf32>
    %100 = arith.mulf %97, %97 : vector<16x16xf32>
    %101 = arith.mulf %99, %99 : vector<16x16xf32>
    %102 = arith.mulf %97, %99 : vector<16x16xf32>
    %c0_101 = arith.constant 0 : index
    %c0_102 = arith.constant 0 : index
    %103 = vector.load %arg6[%c0_101, %c0_102] : memref<16x640xf32, #tpu.memory_space<vmem>>, vector<16x16xf32>
    tpu.vector_store %arg6[%c0_101, %c0_102], %97 {strides = array<i32>} : memref<16x640xf32, #tpu.memory_space<vmem>>, vector<16x16xf32>,
    %c0_103 = arith.constant 0 : index
    %c128_104 = arith.constant 128 : index
    %104 = vector.load %arg6[%c0_103, %c128_104] : memref<16x640xf32, #tpu.memory_space<vmem>>, vector<16x16xf32>
    tpu.vector_store %arg6[%c0_103, %c128_104], %99 {strides = array<i32>} : memref<16x640xf32, #tpu.memory_space<vmem>>, vector<16x16xf32>,
    %c0_105 = arith.constant 0 : index
    %c256_106 = arith.constant 256 : index
    %105 = vector.load %arg6[%c0_105, %c256_106] : memref<16x640xf32, #tpu.memory_space<vmem>>, vector<16x16xf32>
    tpu.vector_store %arg6[%c0_105, %c256_106], %100 {strides = array<i32>} : memref<16x640xf32, #tpu.memory_space<vmem>>, vector<16x16xf32>,
    %c0_107 = arith.constant 0 : index
    %c384_108 = arith.constant 384 : index
    %106 = vector.load %arg6[%c0_107, %c384_108] : memref<16x640xf32, #tpu.memory_space<vmem>>, vector<16x16xf32>
    tpu.vector_store %arg6[%c0_107, %c384_108], %101 {strides = array<i32>} : memref<16x640xf32, #tpu.memory_space<vmem>>, vector<16x16xf32>,
    %c0_109 = arith.constant 0 : index
    %c512_110 = arith.constant 512 : index
    %107 = vector.load %arg6[%c0_109, %c512_110] : memref<16x640xf32, #tpu.memory_space<vmem>>, vector<16x16xf32>
    tpu.vector_store %arg6[%c0_109, %c512_110], %102 {strides = array<i32>} : memref<16x640xf32, #tpu.memory_space<vmem>>, vector<16x16xf32>,
    %c1_111 = arith.constant 1 : index
    %c0_112 = arith.constant 0 : index
    %c0_113 = arith.constant 0 : index
    %108 = vector.load %arg3[%c1_111, %c0_112, %c0_113] : memref<5x16x16xf32, #tpu.memory_space<vmem>>, vector<1x16x16xf32>
    %109 = vector.shape_cast %108 : vector<1x16x16xf32> to vector<16x16xf32>
    %c0_114 = arith.constant 0 : index
    %c0_115 = arith.constant 0 : index
    %110 = vector.load %arg6[%c0_114, %c0_115] : memref<16x640xf32, #tpu.memory_space<vmem>>, vector<16x640xf32>
    %cst_116 = arith.constant dense<0.000000e+00> : vector<16x640xf32>
    %111 = tpu.matmul %109, %110, %cst_116 {dimension_numbers = #tpu.dot_dimension_numbers<[1], [0], [0], [1], [0, 0, 1, 1], [], []>} : vector<16x16xf32>, vector<16x640xf32>, vector<16x640xf32> -> vector<16x640xf32>
    %c0_117 = arith.constant 0 : index
    %c0_118 = arith.constant 0 : index
    %112 = vector.load %arg7[%c0_117, %c0_118] : memref<16x640xf32, #tpu.memory_space<vmem>>, vector<16x640xf32>
    tpu.vector_store %arg7[%c0_117, %c0_118], %111 {strides = array<i32>} : memref<16x640xf32, #tpu.memory_space<vmem>>, vector<16x640xf32>,
    %c0_119 = arith.constant 0 : index
    %c0_120 = arith.constant 0 : index
    %113 = vector.load %arg7[%c0_119, %c0_120] : memref<16x640xf32, #tpu.memory_space<vmem>>, vector<16x16xf32>
    %c1_121 = arith.constant 1 : index
    %c0_122 = arith.constant 0 : index
    %c0_123 = arith.constant 0 : index
    %114 = vector.load %arg4[%c1_121, %c0_122, %c0_123] : memref<5x16x16xf32, #tpu.memory_space<vmem>>, vector<1x16x16xf32>
    %115 = vector.shape_cast %114 : vector<1x16x16xf32> to vector<16x16xf32>
    %cst_124 = arith.constant dense<0.000000e+00> : vector<16x16xf32>
    %116 = tpu.matmul %113, %115, %cst_124 {dimension_numbers = #tpu.dot_dimension_numbers<[1], [0], [0], [1], [0, 0, 1, 1], [], []>} : vector<16x16xf32>, vector<16x16xf32>, vector<16x16xf32> -> vector<16x16xf32>
    %c0_125 = arith.constant 0 : index
    %c128_126 = arith.constant 128 : index
    %117 = vector.load %arg7[%c0_125, %c128_126] : memref<16x640xf32, #tpu.memory_space<vmem>>, vector<16x16xf32>
    %c1_127 = arith.constant 1 : index
    %c0_128 = arith.constant 0 : index
    %c0_129 = arith.constant 0 : index
    %118 = vector.load %arg4[%c1_127, %c0_128, %c0_129] : memref<5x16x16xf32, #tpu.memory_space<vmem>>, vector<1x16x16xf32>
    %119 = vector.shape_cast %118 : vector<1x16x16xf32> to vector<16x16xf32>
    %cst_130 = arith.constant dense<0.000000e+00> : vector<16x16xf32>
    %120 = tpu.matmul %117, %119, %cst_130 {dimension_numbers = #tpu.dot_dimension_numbers<[1], [0], [0], [1], [0, 0, 1, 1], [], []>} : vector<16x16xf32>, vector<16x16xf32>, vector<16x16xf32> -> vector<16x16xf32>
    %c0_131 = arith.constant 0 : index
    %c256_132 = arith.constant 256 : index
    %121 = vector.load %arg7[%c0_131, %c256_132] : memref<16x640xf32, #tpu.memory_space<vmem>>, vector<16x16xf32>
    %c1_133 = arith.constant 1 : index
    %c0_134 = arith.constant 0 : index
    %c0_135 = arith.constant 0 : index
    %122 = vector.load %arg4[%c1_133, %c0_134, %c0_135] : memref<5x16x16xf32, #tpu.memory_space<vmem>>, vector<1x16x16xf32>
    %123 = vector.shape_cast %122 : vector<1x16x16xf32> to vector<16x16xf32>
    %cst_136 = arith.constant dense<0.000000e+00> : vector<16x16xf32>
    %124 = tpu.matmul %121, %123, %cst_136 {dimension_numbers = #tpu.dot_dimension_numbers<[1], [0], [0], [1], [0, 0, 1, 1], [], []>} : vector<16x16xf32>, vector<16x16xf32>, vector<16x16xf32> -> vector<16x16xf32>
    %c0_137 = arith.constant 0 : index
    %c384_138 = arith.constant 384 : index
    %125 = vector.load %arg7[%c0_137, %c384_138] : memref<16x640xf32, #tpu.memory_space<vmem>>, vector<16x16xf32>
    %c1_139 = arith.constant 1 : index
    %c0_140 = arith.constant 0 : index
    %c0_141 = arith.constant 0 : index
    %126 = vector.load %arg4[%c1_139, %c0_140, %c0_141] : memref<5x16x16xf32, #tpu.memory_space<vmem>>, vector<1x16x16xf32>
    %127 = vector.shape_cast %126 : vector<1x16x16xf32> to vector<16x16xf32>
    %cst_142 = arith.constant dense<0.000000e+00> : vector<16x16xf32>
    %128 = tpu.matmul %125, %127, %cst_142 {dimension_numbers = #tpu.dot_dimension_numbers<[1], [0], [0], [1], [0, 0, 1, 1], [], []>} : vector<16x16xf32>, vector<16x16xf32>, vector<16x16xf32> -> vector<16x16xf32>
    %c0_143 = arith.constant 0 : index
    %c512_144 = arith.constant 512 : index
    %129 = vector.load %arg7[%c0_143, %c512_144] : memref<16x640xf32, #tpu.memory_space<vmem>>, vector<16x16xf32>
    %c1_145 = arith.constant 1 : index
    %c0_146 = arith.constant 0 : index
    %c0_147 = arith.constant 0 : index
    %130 = vector.load %arg4[%c1_145, %c0_146, %c0_147] : memref<5x16x16xf32, #tpu.memory_space<vmem>>, vector<1x16x16xf32>
    %131 = vector.shape_cast %130 : vector<1x16x16xf32> to vector<16x16xf32>
    %cst_148 = arith.constant dense<0.000000e+00> : vector<16x16xf32>
    %132 = tpu.matmul %129, %131, %cst_148 {dimension_numbers = #tpu.dot_dimension_numbers<[1], [0], [0], [1], [0, 0, 1, 1], [], []>} : vector<16x16xf32>, vector<16x16xf32>, vector<16x16xf32> -> vector<16x16xf32>
    %133 = arith.mulf %116, %116 : vector<16x16xf32>
    %134 = arith.subf %124, %133 : vector<16x16xf32>
    %135 = arith.mulf %120, %120 : vector<16x16xf32>
    %136 = arith.subf %128, %135 : vector<16x16xf32>
    %137 = arith.mulf %116, %120 : vector<16x16xf32>
    %138 = arith.subf %132, %137 : vector<16x16xf32>
    %cst_149 = arith.constant 2.000000e+00 : f32
    %139 = vector.broadcast %cst_149 : f32 to vector<16x16xf32>
    %140 = arith.mulf %139, %138 : vector<16x16xf32>
    %cst_150 = arith.constant 8.99999984E-4 : f32
    %141 = vector.broadcast %cst_150 : f32 to vector<16x16xf32>
    %142 = arith.addf %140, %141 : vector<16x16xf32>
    %143 = arith.addf %134, %136 : vector<16x16xf32>
    %cst_151 = arith.constant 8.99999984E-4 : f32
    %144 = vector.broadcast %cst_151 : f32 to vector<16x16xf32>
    %145 = arith.addf %143, %144 : vector<16x16xf32>
    %146 = tpu.reciprocal %145 {approx = true} : vector<16x16xf32> -> vector<16x16xf32>
    %147 = arith.mulf %142, %146 : vector<16x16xf32>
    %148 = arith.mulf %95, %147 : vector<16x16xf32>
    %c2 = arith.constant 2 : index
    %c0_152 = arith.constant 0 : index
    %c0_153 = arith.constant 0 : index
    %149 = vector.load %arg3[%c2, %c0_152, %c0_153] : memref<5x16x16xf32, #tpu.memory_space<vmem>>, vector<1x16x16xf32>
    %150 = vector.shape_cast %149 : vector<1x16x16xf32> to vector<16x16xf32>
    %c0_154 = arith.constant 0 : index
    %c0_155 = arith.constant 0 : index
    %151 = vector.load %arg6[%c0_154, %c0_155] : memref<16x640xf32, #tpu.memory_space<vmem>>, vector<16x640xf32>
    %cst_156 = arith.constant dense<0.000000e+00> : vector<16x640xf32>
    %152 = tpu.matmul %150, %151, %cst_156 {dimension_numbers = #tpu.dot_dimension_numbers<[1], [0], [0], [1], [0, 0, 1, 1], [], []>} : vector<16x16xf32>, vector<16x640xf32>, vector<16x640xf32> -> vector<16x640xf32>
    %c0_157 = arith.constant 0 : index
    %c0_158 = arith.constant 0 : index
    %153 = vector.load %arg7[%c0_157, %c0_158] : memref<16x640xf32, #tpu.memory_space<vmem>>, vector<16x640xf32>
    tpu.vector_store %arg7[%c0_157, %c0_158], %152 {strides = array<i32>} : memref<16x640xf32, #tpu.memory_space<vmem>>, vector<16x640xf32>,
    %c0_159 = arith.constant 0 : index
    %c0_160 = arith.constant 0 : index
    %154 = vector.load %arg7[%c0_159, %c0_160] : memref<16x640xf32, #tpu.memory_space<vmem>>, vector<16x16xf32>
    %c2_161 = arith.constant 2 : index
    %c0_162 = arith.constant 0 : index
    %c0_163 = arith.constant 0 : index
    %155 = vector.load %arg4[%c2_161, %c0_162, %c0_163] : memref<5x16x16xf32, #tpu.memory_space<vmem>>, vector<1x16x16xf32>
    %156 = vector.shape_cast %155 : vector<1x16x16xf32> to vector<16x16xf32>
    %cst_164 = arith.constant dense<0.000000e+00> : vector<16x16xf32>
    %157 = tpu.matmul %154, %156, %cst_164 {dimension_numbers = #tpu.dot_dimension_numbers<[1], [0], [0], [1], [0, 0, 1, 1], [], []>} : vector<16x16xf32>, vector<16x16xf32>, vector<16x16xf32> -> vector<16x16xf32>
    %c0_165 = arith.constant 0 : index
    %c128_166 = arith.constant 128 : index
    %158 = vector.load %arg7[%c0_165, %c128_166] : memref<16x640xf32, #tpu.memory_space<vmem>>, vector<16x16xf32>
    %c2_167 = arith.constant 2 : index
    %c0_168 = arith.constant 0 : index
    %c0_169 = arith.constant 0 : index
    %159 = vector.load %arg4[%c2_167, %c0_168, %c0_169] : memref<5x16x16xf32, #tpu.memory_space<vmem>>, vector<1x16x16xf32>
    %160 = vector.shape_cast %159 : vector<1x16x16xf32> to vector<16x16xf32>
    %cst_170 = arith.constant dense<0.000000e+00> : vector<16x16xf32>
    %161 = tpu.matmul %158, %160, %cst_170 {dimension_numbers = #tpu.dot_dimension_numbers<[1], [0], [0], [1], [0, 0, 1, 1], [], []>} : vector<16x16xf32>, vector<16x16xf32>, vector<16x16xf32> -> vector<16x16xf32>
    %c0_171 = arith.constant 0 : index
    %c256_172 = arith.constant 256 : index
    %162 = vector.load %arg7[%c0_171, %c256_172] : memref<16x640xf32, #tpu.memory_space<vmem>>, vector<16x16xf32>
    %c2_173 = arith.constant 2 : index
    %c0_174 = arith.constant 0 : index
    %c0_175 = arith.constant 0 : index
    %163 = vector.load %arg4[%c2_173, %c0_174, %c0_175] : memref<5x16x16xf32, #tpu.memory_space<vmem>>, vector<1x16x16xf32>
    %164 = vector.shape_cast %163 : vector<1x16x16xf32> to vector<16x16xf32>
    %cst_176 = arith.constant dense<0.000000e+00> : vector<16x16xf32>
    %165 = tpu.matmul %162, %164, %cst_176 {dimension_numbers = #tpu.dot_dimension_numbers<[1], [0], [0], [1], [0, 0, 1, 1], [], []>} : vector<16x16xf32>, vector<16x16xf32>, vector<16x16xf32> -> vector<16x16xf32>
    %c0_177 = arith.constant 0 : index
    %c384_178 = arith.constant 384 : index
    %166 = vector.load %arg7[%c0_177, %c384_178] : memref<16x640xf32, #tpu.memory_space<vmem>>, vector<16x16xf32>
    %c2_179 = arith.constant 2 : index
    %c0_180 = arith.constant 0 : index
    %c0_181 = arith.constant 0 : index
    %167 = vector.load %arg4[%c2_179, %c0_180, %c0_181] : memref<5x16x16xf32, #tpu.memory_space<vmem>>, vector<1x16x16xf32>
    %168 = vector.shape_cast %167 : vector<1x16x16xf32> to vector<16x16xf32>
    %cst_182 = arith.constant dense<0.000000e+00> : vector<16x16xf32>
    %169 = tpu.matmul %166, %168, %cst_182 {dimension_numbers = #tpu.dot_dimension_numbers<[1], [0], [0], [1], [0, 0, 1, 1], [], []>} : vector<16x16xf32>, vector<16x16xf32>, vector<16x16xf32> -> vector<16x16xf32>
    %c0_183 = arith.constant 0 : index
    %c512_184 = arith.constant 512 : index
    %170 = vector.load %arg7[%c0_183, %c512_184] : memref<16x640xf32, #tpu.memory_space<vmem>>, vector<16x16xf32>
    %c2_185 = arith.constant 2 : index
    %c0_186 = arith.constant 0 : index
    %c0_187 = arith.constant 0 : index
    %171 = vector.load %arg4[%c2_185, %c0_186, %c0_187] : memref<5x16x16xf32, #tpu.memory_space<vmem>>, vector<1x16x16xf32>
    %172 = vector.shape_cast %171 : vector<1x16x16xf32> to vector<16x16xf32>
    %cst_188 = arith.constant dense<0.000000e+00> : vector<16x16xf32>
    %173 = tpu.matmul %170, %172, %cst_188 {dimension_numbers = #tpu.dot_dimension_numbers<[1], [0], [0], [1], [0, 0, 1, 1], [], []>} : vector<16x16xf32>, vector<16x16xf32>, vector<16x16xf32> -> vector<16x16xf32>
    %174 = arith.mulf %157, %157 : vector<16x16xf32>
    %175 = arith.subf %165, %174 : vector<16x16xf32>
    %176 = arith.mulf %161, %161 : vector<16x16xf32>
    %177 = arith.subf %169, %176 : vector<16x16xf32>
    %178 = arith.mulf %157, %161 : vector<16x16xf32>
    %179 = arith.subf %173, %178 : vector<16x16xf32>
    %cst_189 = arith.constant 2.000000e+00 : f32
    %180 = vector.broadcast %cst_189 : f32 to vector<16x16xf32>
    %181 = arith.mulf %180, %179 : vector<16x16xf32>
    %cst_190 = arith.constant 8.99999984E-4 : f32
    %182 = vector.broadcast %cst_190 : f32 to vector<16x16xf32>
    %183 = arith.addf %181, %182 : vector<16x16xf32>
    %184 = arith.addf %175, %177 : vector<16x16xf32>
    %cst_191 = arith.constant 8.99999984E-4 : f32
    %185 = vector.broadcast %cst_191 : f32 to vector<16x16xf32>
    %186 = arith.addf %184, %185 : vector<16x16xf32>
    %187 = tpu.reciprocal %186 {approx = true} : vector<16x16xf32> -> vector<16x16xf32>
    %188 = arith.mulf %183, %187 : vector<16x16xf32>
    %189 = arith.mulf %188, %188 : vector<16x16xf32>
    %190 = arith.mulf %189, %188 : vector<16x16xf32>
    %191 = arith.mulf %148, %190 : vector<16x16xf32>
    %c3 = arith.constant 3 : index
    %c0_192 = arith.constant 0 : index
    %c0_193 = arith.constant 0 : index
    %192 = vector.load %arg3[%c3, %c0_192, %c0_193] : memref<5x16x16xf32, #tpu.memory_space<vmem>>, vector<1x16x16xf32>
    %193 = vector.shape_cast %192 : vector<1x16x16xf32> to vector<16x16xf32>
    %c0_194 = arith.constant 0 : index
    %c0_195 = arith.constant 0 : index
    %194 = vector.load %arg6[%c0_194, %c0_195] : memref<16x640xf32, #tpu.memory_space<vmem>>, vector<16x640xf32>
    %cst_196 = arith.constant dense<0.000000e+00> : vector<16x640xf32>
    %195 = tpu.matmul %193, %194, %cst_196 {dimension_numbers = #tpu.dot_dimension_numbers<[1], [0], [0], [1], [0, 0, 1, 1], [], []>} : vector<16x16xf32>, vector<16x640xf32>, vector<16x640xf32> -> vector<16x640xf32>
    %c0_197 = arith.constant 0 : index
    %c0_198 = arith.constant 0 : index
    %196 = vector.load %arg7[%c0_197, %c0_198] : memref<16x640xf32, #tpu.memory_space<vmem>>, vector<16x640xf32>
    tpu.vector_store %arg7[%c0_197, %c0_198], %195 {strides = array<i32>} : memref<16x640xf32, #tpu.memory_space<vmem>>, vector<16x640xf32>,
    %c0_199 = arith.constant 0 : index
    %c0_200 = arith.constant 0 : index
    %197 = vector.load %arg7[%c0_199, %c0_200] : memref<16x640xf32, #tpu.memory_space<vmem>>, vector<16x16xf32>
    %c3_201 = arith.constant 3 : index
    %c0_202 = arith.constant 0 : index
    %c0_203 = arith.constant 0 : index
    %198 = vector.load %arg4[%c3_201, %c0_202, %c0_203] : memref<5x16x16xf32, #tpu.memory_space<vmem>>, vector<1x16x16xf32>
    %199 = vector.shape_cast %198 : vector<1x16x16xf32> to vector<16x16xf32>
    %cst_204 = arith.constant dense<0.000000e+00> : vector<16x16xf32>
    %200 = tpu.matmul %197, %199, %cst_204 {dimension_numbers = #tpu.dot_dimension_numbers<[1], [0], [0], [1], [0, 0, 1, 1], [], []>} : vector<16x16xf32>, vector<16x16xf32>, vector<16x16xf32> -> vector<16x16xf32>
    %c0_205 = arith.constant 0 : index
    %c128_206 = arith.constant 128 : index
    %201 = vector.load %arg7[%c0_205, %c128_206] : memref<16x640xf32, #tpu.memory_space<vmem>>, vector<16x16xf32>
    %c3_207 = arith.constant 3 : index
    %c0_208 = arith.constant 0 : index
    %c0_209 = arith.constant 0 : index
    %202 = vector.load %arg4[%c3_207, %c0_208, %c0_209] : memref<5x16x16xf32, #tpu.memory_space<vmem>>, vector<1x16x16xf32>
    %203 = vector.shape_cast %202 : vector<1x16x16xf32> to vector<16x16xf32>
    %cst_210 = arith.constant dense<0.000000e+00> : vector<16x16xf32>
    %204 = tpu.matmul %201, %203, %cst_210 {dimension_numbers = #tpu.dot_dimension_numbers<[1], [0], [0], [1], [0, 0, 1, 1], [], []>} : vector<16x16xf32>, vector<16x16xf32>, vector<16x16xf32> -> vector<16x16xf32>
    %c0_211 = arith.constant 0 : index
    %c256_212 = arith.constant 256 : index
    %205 = vector.load %arg7[%c0_211, %c256_212] : memref<16x640xf32, #tpu.memory_space<vmem>>, vector<16x16xf32>
    %c3_213 = arith.constant 3 : index
    %c0_214 = arith.constant 0 : index
    %c0_215 = arith.constant 0 : index
    %206 = vector.load %arg4[%c3_213, %c0_214, %c0_215] : memref<5x16x16xf32, #tpu.memory_space<vmem>>, vector<1x16x16xf32>
    %207 = vector.shape_cast %206 : vector<1x16x16xf32> to vector<16x16xf32>
    %cst_216 = arith.constant dense<0.000000e+00> : vector<16x16xf32>
    %208 = tpu.matmul %205, %207, %cst_216 {dimension_numbers = #tpu.dot_dimension_numbers<[1], [0], [0], [1], [0, 0, 1, 1], [], []>} : vector<16x16xf32>, vector<16x16xf32>, vector<16x16xf32> -> vector<16x16xf32>
    %c0_217 = arith.constant 0 : index
    %c384_218 = arith.constant 384 : index
    %209 = vector.load %arg7[%c0_217, %c384_218] : memref<16x640xf32, #tpu.memory_space<vmem>>, vector<16x16xf32>
    %c3_219 = arith.constant 3 : index
    %c0_220 = arith.constant 0 : index
    %c0_221 = arith.constant 0 : index
    %210 = vector.load %arg4[%c3_219, %c0_220, %c0_221] : memref<5x16x16xf32, #tpu.memory_space<vmem>>, vector<1x16x16xf32>
    %211 = vector.shape_cast %210 : vector<1x16x16xf32> to vector<16x16xf32>
    %cst_222 = arith.constant dense<0.000000e+00> : vector<16x16xf32>
    %212 = tpu.matmul %209, %211, %cst_222 {dimension_numbers = #tpu.dot_dimension_numbers<[1], [0], [0], [1], [0, 0, 1, 1], [], []>} : vector<16x16xf32>, vector<16x16xf32>, vector<16x16xf32> -> vector<16x16xf32>
    %c0_223 = arith.constant 0 : index
    %c512_224 = arith.constant 512 : index
    %213 = vector.load %arg7[%c0_223, %c512_224] : memref<16x640xf32, #tpu.memory_space<vmem>>, vector<16x16xf32>
    %c3_225 = arith.constant 3 : index
    %c0_226 = arith.constant 0 : index
    %c0_227 = arith.constant 0 : index
    %214 = vector.load %arg4[%c3_225, %c0_226, %c0_227] : memref<5x16x16xf32, #tpu.memory_space<vmem>>, vector<1x16x16xf32>
    %215 = vector.shape_cast %214 : vector<1x16x16xf32> to vector<16x16xf32>
    %cst_228 = arith.constant dense<0.000000e+00> : vector<16x16xf32>
    %216 = tpu.matmul %213, %215, %cst_228 {dimension_numbers = #tpu.dot_dimension_numbers<[1], [0], [0], [1], [0, 0, 1, 1], [], []>} : vector<16x16xf32>, vector<16x16xf32>, vector<16x16xf32> -> vector<16x16xf32>
    %217 = arith.mulf %200, %200 : vector<16x16xf32>
    %218 = arith.subf %208, %217 : vector<16x16xf32>
    %219 = arith.mulf %204, %204 : vector<16x16xf32>
    %220 = arith.subf %212, %219 : vector<16x16xf32>
    %221 = arith.mulf %200, %204 : vector<16x16xf32>
    %222 = arith.subf %216, %221 : vector<16x16xf32>
    %cst_229 = arith.constant 2.000000e+00 : f32
    %223 = vector.broadcast %cst_229 : f32 to vector<16x16xf32>
    %224 = arith.mulf %223, %222 : vector<16x16xf32>
    %cst_230 = arith.constant 8.99999984E-4 : f32
    %225 = vector.broadcast %cst_230 : f32 to vector<16x16xf32>
    %226 = arith.addf %224, %225 : vector<16x16xf32>
    %227 = arith.addf %218, %220 : vector<16x16xf32>
    %cst_231 = arith.constant 8.99999984E-4 : f32
    %228 = vector.broadcast %cst_231 : f32 to vector<16x16xf32>
    %229 = arith.addf %227, %228 : vector<16x16xf32>
    %230 = tpu.reciprocal %229 {approx = true} : vector<16x16xf32> -> vector<16x16xf32>
    %231 = arith.mulf %226, %230 : vector<16x16xf32>
    %232 = arith.mulf %191, %231 : vector<16x16xf32>
    %c0_232 = arith.constant 0 : index
    %c2_233 = arith.constant 2 : index
    %c0_234 = arith.constant 0 : index
    %c0_235 = arith.constant 0 : index
    %233 = vector.load %arg1[%c0_232, %c2_233, %c0_234, %c0_235] : memref<1x3x16x16xf32, #tpu.memory_space<vmem>>, vector<1x1x16x16xf32>
    %234 = vector.shape_cast %233 : vector<1x1x16x16xf32> to vector<16x16xf32>
    %c0_236 = arith.constant 0 : index
    %c2_237 = arith.constant 2 : index
    %c0_238 = arith.constant 0 : index
    %c0_239 = arith.constant 0 : index
    %235 = vector.load %arg2[%c0_236, %c2_237, %c0_238, %c0_239] : memref<1x3x16x16xf32, #tpu.memory_space<vmem>>, vector<1x1x16x16xf32>
    %236 = vector.shape_cast %235 : vector<1x1x16x16xf32> to vector<16x16xf32>
    %237 = arith.mulf %234, %234 : vector<16x16xf32>
    %238 = arith.mulf %236, %236 : vector<16x16xf32>
    %239 = arith.mulf %234, %236 : vector<16x16xf32>
    %c0_240 = arith.constant 0 : index
    %c0_241 = arith.constant 0 : index
    %240 = vector.load %arg6[%c0_240, %c0_241] : memref<16x640xf32, #tpu.memory_space<vmem>>, vector<16x16xf32>
    tpu.vector_store %arg6[%c0_240, %c0_241], %234 {strides = array<i32>} : memref<16x640xf32, #tpu.memory_space<vmem>>, vector<16x16xf32>,
    %c0_242 = arith.constant 0 : index
    %c128_243 = arith.constant 128 : index
    %241 = vector.load %arg6[%c0_242, %c128_243] : memref<16x640xf32, #tpu.memory_space<vmem>>, vector<16x16xf32>
    tpu.vector_store %arg6[%c0_242, %c128_243], %236 {strides = array<i32>} : memref<16x640xf32, #tpu.memory_space<vmem>>, vector<16x16xf32>,
    %c0_244 = arith.constant 0 : index
    %c256_245 = arith.constant 256 : index
    %242 = vector.load %arg6[%c0_244, %c256_245] : memref<16x640xf32, #tpu.memory_space<vmem>>, vector<16x16xf32>
    tpu.vector_store %arg6[%c0_244, %c256_245], %237 {strides = array<i32>} : memref<16x640xf32, #tpu.memory_space<vmem>>, vector<16x16xf32>,
    %c0_246 = arith.constant 0 : index
    %c384_247 = arith.constant 384 : index
    %243 = vector.load %arg6[%c0_246, %c384_247] : memref<16x640xf32, #tpu.memory_space<vmem>>, vector<16x16xf32>
    tpu.vector_store %arg6[%c0_246, %c384_247], %238 {strides = array<i32>} : memref<16x640xf32, #tpu.memory_space<vmem>>, vector<16x16xf32>,
    %c0_248 = arith.constant 0 : index
    %c512_249 = arith.constant 512 : index
    %244 = vector.load %arg6[%c0_248, %c512_249] : memref<16x640xf32, #tpu.memory_space<vmem>>, vector<16x16xf32>
    tpu.vector_store %arg6[%c0_248, %c512_249], %239 {strides = array<i32>} : memref<16x640xf32, #tpu.memory_space<vmem>>, vector<16x16xf32>,
    %c3_250 = arith.constant 3 : index
    %c0_251 = arith.constant 0 : index
    %c0_252 = arith.constant 0 : index
    %245 = vector.load %arg3[%c3_250, %c0_251, %c0_252] : memref<5x16x16xf32, #tpu.memory_space<vmem>>, vector<1x16x16xf32>
    %246 = vector.shape_cast %245 : vector<1x16x16xf32> to vector<16x16xf32>
    %c0_253 = arith.constant 0 : index
    %c0_254 = arith.constant 0 : index
    %247 = vector.load %arg6[%c0_253, %c0_254] : memref<16x640xf32, #tpu.memory_space<vmem>>, vector<16x640xf32>
    %cst_255 = arith.constant dense<0.000000e+00> : vector<16x640xf32>
    %248 = tpu.matmul %246, %247, %cst_255 {dimension_numbers = #tpu.dot_dimension_numbers<[1], [0], [0], [1], [0, 0, 1, 1], [], []>} : vector<16x16xf32>, vector<16x640xf32>, vector<16x640xf32> -> vector<16x640xf32>
    %c0_256 = arith.constant 0 : index
    %c0_257 = arith.constant 0 : index
    %249 = vector.load %arg7[%c0_256, %c0_257] : memref<16x640xf32, #tpu.memory_space<vmem>>, vector<16x640xf32>
    tpu.vector_store %arg7[%c0_256, %c0_257], %248 {strides = array<i32>} : memref<16x640xf32, #tpu.memory_space<vmem>>, vector<16x640xf32>,
    %c0_258 = arith.constant 0 : index
    %c0_259 = arith.constant 0 : index
    %250 = vector.load %arg7[%c0_258, %c0_259] : memref<16x640xf32, #tpu.memory_space<vmem>>, vector<16x16xf32>
    %c3_260 = arith.constant 3 : index
    %c0_261 = arith.constant 0 : index
    %c0_262 = arith.constant 0 : index
    %251 = vector.load %arg4[%c3_260, %c0_261, %c0_262] : memref<5x16x16xf32, #tpu.memory_space<vmem>>, vector<1x16x16xf32>
    %252 = vector.shape_cast %251 : vector<1x16x16xf32> to vector<16x16xf32>
    %cst_263 = arith.constant dense<0.000000e+00> : vector<16x16xf32>
    %253 = tpu.matmul %250, %252, %cst_263 {dimension_numbers = #tpu.dot_dimension_numbers<[1], [0], [0], [1], [0, 0, 1, 1], [], []>} : vector<16x16xf32>, vector<16x16xf32>, vector<16x16xf32> -> vector<16x16xf32>
    %c0_264 = arith.constant 0 : index
    %c128_265 = arith.constant 128 : index
    %254 = vector.load %arg7[%c0_264, %c128_265] : memref<16x640xf32, #tpu.memory_space<vmem>>, vector<16x16xf32>
    %c3_266 = arith.constant 3 : index
    %c0_267 = arith.constant 0 : index
    %c0_268 = arith.constant 0 : index
    %255 = vector.load %arg4[%c3_266, %c0_267, %c0_268] : memref<5x16x16xf32, #tpu.memory_space<vmem>>, vector<1x16x16xf32>
    %256 = vector.shape_cast %255 : vector<1x16x16xf32> to vector<16x16xf32>
    %cst_269 = arith.constant dense<0.000000e+00> : vector<16x16xf32>
    %257 = tpu.matmul %254, %256, %cst_269 {dimension_numbers = #tpu.dot_dimension_numbers<[1], [0], [0], [1], [0, 0, 1, 1], [], []>} : vector<16x16xf32>, vector<16x16xf32>, vector<16x16xf32> -> vector<16x16xf32>
    %c0_270 = arith.constant 0 : index
    %c256_271 = arith.constant 256 : index
    %258 = vector.load %arg7[%c0_270, %c256_271] : memref<16x640xf32, #tpu.memory_space<vmem>>, vector<16x16xf32>
    %c3_272 = arith.constant 3 : index
    %c0_273 = arith.constant 0 : index
    %c0_274 = arith.constant 0 : index
    %259 = vector.load %arg4[%c3_272, %c0_273, %c0_274] : memref<5x16x16xf32, #tpu.memory_space<vmem>>, vector<1x16x16xf32>
    %260 = vector.shape_cast %259 : vector<1x16x16xf32> to vector<16x16xf32>
    %cst_275 = arith.constant dense<0.000000e+00> : vector<16x16xf32>
    %261 = tpu.matmul %258, %260, %cst_275 {dimension_numbers = #tpu.dot_dimension_numbers<[1], [0], [0], [1], [0, 0, 1, 1], [], []>} : vector<16x16xf32>, vector<16x16xf32>, vector<16x16xf32> -> vector<16x16xf32>
    %c0_276 = arith.constant 0 : index
    %c384_277 = arith.constant 384 : index
    %262 = vector.load %arg7[%c0_276, %c384_277] : memref<16x640xf32, #tpu.memory_space<vmem>>, vector<16x16xf32>
    %c3_278 = arith.constant 3 : index
    %c0_279 = arith.constant 0 : index
    %c0_280 = arith.constant 0 : index
    %263 = vector.load %arg4[%c3_278, %c0_279, %c0_280] : memref<5x16x16xf32, #tpu.memory_space<vmem>>, vector<1x16x16xf32>
    %264 = vector.shape_cast %263 : vector<1x16x16xf32> to vector<16x16xf32>
    %cst_281 = arith.constant dense<0.000000e+00> : vector<16x16xf32>
    %265 = tpu.matmul %262, %264, %cst_281 {dimension_numbers = #tpu.dot_dimension_numbers<[1], [0], [0], [1], [0, 0, 1, 1], [], []>} : vector<16x16xf32>, vector<16x16xf32>, vector<16x16xf32> -> vector<16x16xf32>
    %c0_282 = arith.constant 0 : index
    %c512_283 = arith.constant 512 : index
    %266 = vector.load %arg7[%c0_282, %c512_283] : memref<16x640xf32, #tpu.memory_space<vmem>>, vector<16x16xf32>
    %c3_284 = arith.constant 3 : index
    %c0_285 = arith.constant 0 : index
    %c0_286 = arith.constant 0 : index
    %267 = vector.load %arg4[%c3_284, %c0_285, %c0_286] : memref<5x16x16xf32, #tpu.memory_space<vmem>>, vector<1x16x16xf32>
    %268 = vector.shape_cast %267 : vector<1x16x16xf32> to vector<16x16xf32>
    %cst_287 = arith.constant dense<0.000000e+00> : vector<16x16xf32>
    %269 = tpu.matmul %266, %268, %cst_287 {dimension_numbers = #tpu.dot_dimension_numbers<[1], [0], [0], [1], [0, 0, 1, 1], [], []>} : vector<16x16xf32>, vector<16x16xf32>, vector<16x16xf32> -> vector<16x16xf32>
    %270 = arith.mulf %253, %253 : vector<16x16xf32>
    %271 = arith.subf %261, %270 : vector<16x16xf32>
    %272 = arith.mulf %257, %257 : vector<16x16xf32>
    %273 = arith.subf %265, %272 : vector<16x16xf32>
    %274 = arith.mulf %253, %257 : vector<16x16xf32>
    %275 = arith.subf %269, %274 : vector<16x16xf32>
    %cst_288 = arith.constant 2.000000e+00 : f32
    %276 = vector.broadcast %cst_288 : f32 to vector<16x16xf32>
    %277 = arith.mulf %276, %275 : vector<16x16xf32>
    %cst_289 = arith.constant 8.99999984E-4 : f32
    %278 = vector.broadcast %cst_289 : f32 to vector<16x16xf32>
    %279 = arith.addf %277, %278 : vector<16x16xf32>
    %280 = arith.addf %271, %273 : vector<16x16xf32>
    %cst_290 = arith.constant 8.99999984E-4 : f32
    %281 = vector.broadcast %cst_290 : f32 to vector<16x16xf32>
    %282 = arith.addf %280, %281 : vector<16x16xf32>
    %283 = tpu.reciprocal %282 {approx = true} : vector<16x16xf32> -> vector<16x16xf32>
    %284 = arith.mulf %279, %283 : vector<16x16xf32>
    %285 = arith.mulf %284, %284 : vector<16x16xf32>
    %286 = arith.mulf %232, %285 : vector<16x16xf32>
    %c4 = arith.constant 4 : index
    %c0_291 = arith.constant 0 : index
    %c0_292 = arith.constant 0 : index
    %287 = vector.load %arg3[%c4, %c0_291, %c0_292] : memref<5x16x16xf32, #tpu.memory_space<vmem>>, vector<1x16x16xf32>
    %288 = vector.shape_cast %287 : vector<1x16x16xf32> to vector<16x16xf32>
    %c0_293 = arith.constant 0 : index
    %c0_294 = arith.constant 0 : index
    %289 = vector.load %arg6[%c0_293, %c0_294] : memref<16x640xf32, #tpu.memory_space<vmem>>, vector<16x640xf32>
    %cst_295 = arith.constant dense<0.000000e+00> : vector<16x640xf32>
    %290 = tpu.matmul %288, %289, %cst_295 {dimension_numbers = #tpu.dot_dimension_numbers<[1], [0], [0], [1], [0, 0, 1, 1], [], []>} : vector<16x16xf32>, vector<16x640xf32>, vector<16x640xf32> -> vector<16x640xf32>
    %c0_296 = arith.constant 0 : index
    %c0_297 = arith.constant 0 : index
    %291 = vector.load %arg7[%c0_296, %c0_297] : memref<16x640xf32, #tpu.memory_space<vmem>>, vector<16x640xf32>
    tpu.vector_store %arg7[%c0_296, %c0_297], %290 {strides = array<i32>} : memref<16x640xf32, #tpu.memory_space<vmem>>, vector<16x640xf32>,
    %c0_298 = arith.constant 0 : index
    %c0_299 = arith.constant 0 : index
    %292 = vector.load %arg7[%c0_298, %c0_299] : memref<16x640xf32, #tpu.memory_space<vmem>>, vector<16x16xf32>
    %c4_300 = arith.constant 4 : index
    %c0_301 = arith.constant 0 : index
    %c0_302 = arith.constant 0 : index
    %293 = vector.load %arg4[%c4_300, %c0_301, %c0_302] : memref<5x16x16xf32, #tpu.memory_space<vmem>>, vector<1x16x16xf32>
    %294 = vector.shape_cast %293 : vector<1x16x16xf32> to vector<16x16xf32>
    %cst_303 = arith.constant dense<0.000000e+00> : vector<16x16xf32>
    %295 = tpu.matmul %292, %294, %cst_303 {dimension_numbers = #tpu.dot_dimension_numbers<[1], [0], [0], [1], [0, 0, 1, 1], [], []>} : vector<16x16xf32>, vector<16x16xf32>, vector<16x16xf32> -> vector<16x16xf32>
    %c0_304 = arith.constant 0 : index
    %c128_305 = arith.constant 128 : index
    %296 = vector.load %arg7[%c0_304, %c128_305] : memref<16x640xf32, #tpu.memory_space<vmem>>, vector<16x16xf32>
    %c4_306 = arith.constant 4 : index
    %c0_307 = arith.constant 0 : index
    %c0_308 = arith.constant 0 : index
    %297 = vector.load %arg4[%c4_306, %c0_307, %c0_308] : memref<5x16x16xf32, #tpu.memory_space<vmem>>, vector<1x16x16xf32>
    %298 = vector.shape_cast %297 : vector<1x16x16xf32> to vector<16x16xf32>
    %cst_309 = arith.constant dense<0.000000e+00> : vector<16x16xf32>
    %299 = tpu.matmul %296, %298, %cst_309 {dimension_numbers = #tpu.dot_dimension_numbers<[1], [0], [0], [1], [0, 0, 1, 1], [], []>} : vector<16x16xf32>, vector<16x16xf32>, vector<16x16xf32> -> vector<16x16xf32>
    %c0_310 = arith.constant 0 : index
    %c256_311 = arith.constant 256 : index
    %300 = vector.load %arg7[%c0_310, %c256_311] : memref<16x640xf32, #tpu.memory_space<vmem>>, vector<16x16xf32>
    %c4_312 = arith.constant 4 : index
    %c0_313 = arith.constant 0 : index
    %c0_314 = arith.constant 0 : index
    %301 = vector.load %arg4[%c4_312, %c0_313, %c0_314] : memref<5x16x16xf32, #tpu.memory_space<vmem>>, vector<1x16x16xf32>
    %302 = vector.shape_cast %301 : vector<1x16x16xf32> to vector<16x16xf32>
    %cst_315 = arith.constant dense<0.000000e+00> : vector<16x16xf32>
    %303 = tpu.matmul %300, %302, %cst_315 {dimension_numbers = #tpu.dot_dimension_numbers<[1], [0], [0], [1], [0, 0, 1, 1], [], []>} : vector<16x16xf32>, vector<16x16xf32>, vector<16x16xf32> -> vector<16x16xf32>
    %c0_316 = arith.constant 0 : index
    %c384_317 = arith.constant 384 : index
    %304 = vector.load %arg7[%c0_316, %c384_317] : memref<16x640xf32, #tpu.memory_space<vmem>>, vector<16x16xf32>
    %c4_318 = arith.constant 4 : index
    %c0_319 = arith.constant 0 : index
    %c0_320 = arith.constant 0 : index
    %305 = vector.load %arg4[%c4_318, %c0_319, %c0_320] : memref<5x16x16xf32, #tpu.memory_space<vmem>>, vector<1x16x16xf32>
    %306 = vector.shape_cast %305 : vector<1x16x16xf32> to vector<16x16xf32>
    %cst_321 = arith.constant dense<0.000000e+00> : vector<16x16xf32>
    %307 = tpu.matmul %304, %306, %cst_321 {dimension_numbers = #tpu.dot_dimension_numbers<[1], [0], [0], [1], [0, 0, 1, 1], [], []>} : vector<16x16xf32>, vector<16x16xf32>, vector<16x16xf32> -> vector<16x16xf32>
    %c0_322 = arith.constant 0 : index
    %c512_323 = arith.constant 512 : index
    %308 = vector.load %arg7[%c0_322, %c512_323] : memref<16x640xf32, #tpu.memory_space<vmem>>, vector<16x16xf32>
    %c4_324 = arith.constant 4 : index
    %c0_325 = arith.constant 0 : index
    %c0_326 = arith.constant 0 : index
    %309 = vector.load %arg4[%c4_324, %c0_325, %c0_326] : memref<5x16x16xf32, #tpu.memory_space<vmem>>, vector<1x16x16xf32>
    %310 = vector.shape_cast %309 : vector<1x16x16xf32> to vector<16x16xf32>
    %cst_327 = arith.constant dense<0.000000e+00> : vector<16x16xf32>
    %311 = tpu.matmul %308, %310, %cst_327 {dimension_numbers = #tpu.dot_dimension_numbers<[1], [0], [0], [1], [0, 0, 1, 1], [], []>} : vector<16x16xf32>, vector<16x16xf32>, vector<16x16xf32> -> vector<16x16xf32>
    %312 = arith.mulf %295, %295 : vector<16x16xf32>
    %313 = arith.subf %303, %312 : vector<16x16xf32>
    %314 = arith.mulf %299, %299 : vector<16x16xf32>
    %315 = arith.subf %307, %314 : vector<16x16xf32>
    %316 = arith.mulf %295, %299 : vector<16x16xf32>
    %317 = arith.subf %311, %316 : vector<16x16xf32>
    %cst_328 = arith.constant 2.000000e+00 : f32
    %318 = vector.broadcast %cst_328 : f32 to vector<16x16xf32>
    %319 = arith.mulf %318, %295 : vector<16x16xf32>
    %320 = arith.mulf %319, %299 : vector<16x16xf32>
    %cst_329 = arith.constant 9.99999974E-5 : f32
    %321 = vector.broadcast %cst_329 : f32 to vector<16x16xf32>
    %322 = arith.addf %320, %321 : vector<16x16xf32>
    %323 = arith.mulf %295, %295 : vector<16x16xf32>
    %324 = arith.mulf %299, %299 : vector<16x16xf32>
    %325 = arith.addf %323, %324 : vector<16x16xf32>
    %cst_330 = arith.constant 9.99999974E-5 : f32
    %326 = vector.broadcast %cst_330 : f32 to vector<16x16xf32>
    %327 = arith.addf %325, %326 : vector<16x16xf32>
    %328 = tpu.reciprocal %327 {approx = true} : vector<16x16xf32> -> vector<16x16xf32>
    %329 = arith.mulf %322, %328 : vector<16x16xf32>
    %cst_331 = arith.constant 2.000000e+00 : f32
    %330 = vector.broadcast %cst_331 : f32 to vector<16x16xf32>
    %331 = arith.mulf %330, %317 : vector<16x16xf32>
    %cst_332 = arith.constant 8.99999984E-4 : f32
    %332 = vector.broadcast %cst_332 : f32 to vector<16x16xf32>
    %333 = arith.addf %331, %332 : vector<16x16xf32>
    %334 = arith.addf %313, %315 : vector<16x16xf32>
    %cst_333 = arith.constant 8.99999984E-4 : f32
    %335 = vector.broadcast %cst_333 : f32 to vector<16x16xf32>
    %336 = arith.addf %334, %335 : vector<16x16xf32>
    %337 = tpu.reciprocal %336 {approx = true} : vector<16x16xf32> -> vector<16x16xf32>
    %338 = arith.mulf %333, %337 : vector<16x16xf32>
    %339 = arith.mulf %338, %338 : vector<16x16xf32>
    %340 = arith.mulf %339, %338 : vector<16x16xf32>
    %341 = arith.mulf %286, %340 : vector<16x16xf32>
    %342 = arith.mulf %329, %329 : vector<16x16xf32>
    %343 = arith.mulf %342, %329 : vector<16x16xf32>
    %344 = arith.mulf %343, %341 : vector<16x16xf32>
    %cst_334 = arith.constant 1.000000e+00 : f32
    %345 = vector.broadcast %cst_334 : f32 to vector<16x16xf32>
    %346 = arith.subf %345, %344 : vector<16x16xf32>
    %c0_335 = arith.constant 0 : index
    %c0_336 = arith.constant 0 : index
    %c0_337 = arith.constant 0 : index
    %c0_338 = arith.constant 0 : index
    %347 = vector.load %arg1[%c0_335, %c0_336, %c0_337, %c0_338] : memref<1x3x16x16xf32, #tpu.memory_space<vmem>>, vector<1x1x16x16xf32>
    %348 = vector.shape_cast %347 : vector<1x1x16x16xf32> to vector<16x16xf32>
    %c0_339 = arith.constant 0 : index
    %c0_340 = arith.constant 0 : index
    %c0_341 = arith.constant 0 : index
    %c0_342 = arith.constant 0 : index
    %349 = vector.load %arg2[%c0_339, %c0_340, %c0_341, %c0_342] : memref<1x3x16x16xf32, #tpu.memory_space<vmem>>, vector<1x1x16x16xf32>
    %350 = vector.shape_cast %349 : vector<1x1x16x16xf32> to vector<16x16xf32>
    %351 = arith.subf %348, %350 : vector<16x16xf32>
    %352 = math.absf %351 : vector<16x16xf32>
    %c0_343 = arith.constant 0 : index
    %c1_344 = arith.constant 1 : index
    %c0_345 = arith.constant 0 : index
    %c0_346 = arith.constant 0 : index
    %353 = vector.load %arg1[%c0_343, %c1_344, %c0_345, %c0_346] : memref<1x3x16x16xf32, #tpu.memory_space<vmem>>, vector<1x1x16x16xf32>
    %354 = vector.shape_cast %353 : vector<1x1x16x16xf32> to vector<16x16xf32>
    %c0_347 = arith.constant 0 : index
    %c1_348 = arith.constant 1 : index
    %c0_349 = arith.constant 0 : index
    %c0_350 = arith.constant 0 : index
    %355 = vector.load %arg2[%c0_347, %c1_348, %c0_349, %c0_350] : memref<1x3x16x16xf32, #tpu.memory_space<vmem>>, vector<1x1x16x16xf32>
    %356 = vector.shape_cast %355 : vector<1x1x16x16xf32> to vector<16x16xf32>
    %357 = arith.subf %354, %356 : vector<16x16xf32>
    %358 = math.absf %357 : vector<16x16xf32>
    %c0_351 = arith.constant 0 : index
    %c2_352 = arith.constant 2 : index
    %c0_353 = arith.constant 0 : index
    %c0_354 = arith.constant 0 : index
    %359 = vector.load %arg1[%c0_351, %c2_352, %c0_353, %c0_354] : memref<1x3x16x16xf32, #tpu.memory_space<vmem>>, vector<1x1x16x16xf32>
    %360 = vector.shape_cast %359 : vector<1x1x16x16xf32> to vector<16x16xf32>
    %c0_355 = arith.constant 0 : index
    %c2_356 = arith.constant 2 : index
    %c0_357 = arith.constant 0 : index
    %c0_358 = arith.constant 0 : index
    %361 = vector.load %arg2[%c0_355, %c2_356, %c0_357, %c0_358] : memref<1x3x16x16xf32, #tpu.memory_space<vmem>>, vector<1x1x16x16xf32>
    %362 = vector.shape_cast %361 : vector<1x1x16x16xf32> to vector<16x16xf32>
    %363 = arith.subf %360, %362 : vector<16x16xf32>
    %364 = math.absf %363 : vector<16x16xf32>
    %c0_359 = arith.constant 0 : index
    %c0_360 = arith.constant 0 : index
    %365 = vector.load %arg6[%c0_359, %c0_360] : memref<16x640xf32, #tpu.memory_space<vmem>>, vector<16x16xf32>
    tpu.vector_store %arg6[%c0_359, %c0_360], %352 {strides = array<i32>} : memref<16x640xf32, #tpu.memory_space<vmem>>, vector<16x16xf32>,
    %c0_361 = arith.constant 0 : index
    %c128_362 = arith.constant 128 : index
    %366 = vector.load %arg6[%c0_361, %c128_362] : memref<16x640xf32, #tpu.memory_space<vmem>>, vector<16x16xf32>
    tpu.vector_store %arg6[%c0_361, %c128_362], %358 {strides = array<i32>} : memref<16x640xf32, #tpu.memory_space<vmem>>, vector<16x16xf32>,
    %c0_363 = arith.constant 0 : index
    %c256_364 = arith.constant 256 : index
    %367 = vector.load %arg6[%c0_363, %c256_364] : memref<16x640xf32, #tpu.memory_space<vmem>>, vector<16x16xf32>
    tpu.vector_store %arg6[%c0_363, %c256_364], %364 {strides = array<i32>} : memref<16x640xf32, #tpu.memory_space<vmem>>, vector<16x16xf32>,
    %c4_365 = arith.constant 4 : index
    %c0_366 = arith.constant 0 : index
    %c0_367 = arith.constant 0 : index
    %368 = vector.load %arg3[%c4_365, %c0_366, %c0_367] : memref<5x16x16xf32, #tpu.memory_space<vmem>>, vector<1x16x16xf32>
    %369 = vector.shape_cast %368 : vector<1x16x16xf32> to vector<16x16xf32>
    %c0_368 = arith.constant 0 : index
    %c0_369 = arith.constant 0 : index
    %370 = vector.load %arg6[%c0_368, %c0_369] : memref<16x640xf32, #tpu.memory_space<vmem>>, vector<16x384xf32>
    %cst_370 = arith.constant dense<0.000000e+00> : vector<16x384xf32>
    %371 = tpu.matmul %369, %370, %cst_370 {dimension_numbers = #tpu.dot_dimension_numbers<[1], [0], [0], [1], [0, 0, 1, 1], [], []>} : vector<16x16xf32>, vector<16x384xf32>, vector<16x384xf32> -> vector<16x384xf32>
    %c0_371 = arith.constant 0 : index
    %c0_372 = arith.constant 0 : index
    %372 = vector.load %arg7[%c0_371, %c0_372] : memref<16x640xf32, #tpu.memory_space<vmem>>, vector<16x384xf32>
    tpu.vector_store %arg7[%c0_371, %c0_372], %371 {strides = array<i32>} : memref<16x640xf32, #tpu.memory_space<vmem>>, vector<16x384xf32>,
    %c0_373 = arith.constant 0 : index
    %c0_374 = arith.constant 0 : index
    %373 = vector.load %arg7[%c0_373, %c0_374] : memref<16x640xf32, #tpu.memory_space<vmem>>, vector<16x16xf32>
    %c4_375 = arith.constant 4 : index
    %c0_376 = arith.constant 0 : index
    %c0_377 = arith.constant 0 : index
    %374 = vector.load %arg4[%c4_375, %c0_376, %c0_377] : memref<5x16x16xf32, #tpu.memory_space<vmem>>, vector<1x16x16xf32>
    %375 = vector.shape_cast %374 : vector<1x16x16xf32> to vector<16x16xf32>
    %cst_378 = arith.constant dense<0.000000e+00> : vector<16x16xf32>
    %376 = tpu.matmul %373, %375, %cst_378 {dimension_numbers = #tpu.dot_dimension_numbers<[1], [0], [0], [1], [0, 0, 1, 1], [], []>} : vector<16x16xf32>, vector<16x16xf32>, vector<16x16xf32> -> vector<16x16xf32>
    %c0_379 = arith.constant 0 : index
    %c128_380 = arith.constant 128 : index
    %377 = vector.load %arg7[%c0_379, %c128_380] : memref<16x640xf32, #tpu.memory_space<vmem>>, vector<16x16xf32>
    %c4_381 = arith.constant 4 : index
    %c0_382 = arith.constant 0 : index
    %c0_383 = arith.constant 0 : index
    %378 = vector.load %arg4[%c4_381, %c0_382, %c0_383] : memref<5x16x16xf32, #tpu.memory_space<vmem>>, vector<1x16x16xf32>
    %379 = vector.shape_cast %378 : vector<1x16x16xf32> to vector<16x16xf32>
    %cst_384 = arith.constant dense<0.000000e+00> : vector<16x16xf32>
    %380 = tpu.matmul %377, %379, %cst_384 {dimension_numbers = #tpu.dot_dimension_numbers<[1], [0], [0], [1], [0, 0, 1, 1], [], []>} : vector<16x16xf32>, vector<16x16xf32>, vector<16x16xf32> -> vector<16x16xf32>
    %c0_385 = arith.constant 0 : index
    %c256_386 = arith.constant 256 : index
    %381 = vector.load %arg7[%c0_385, %c256_386] : memref<16x640xf32, #tpu.memory_space<vmem>>, vector<16x16xf32>
    %c4_387 = arith.constant 4 : index
    %c0_388 = arith.constant 0 : index
    %c0_389 = arith.constant 0 : index
    %382 = vector.load %arg4[%c4_387, %c0_388, %c0_389] : memref<5x16x16xf32, #tpu.memory_space<vmem>>, vector<1x16x16xf32>
    %383 = vector.shape_cast %382 : vector<1x16x16xf32> to vector<16x16xf32>
    %cst_390 = arith.constant dense<0.000000e+00> : vector<16x16xf32>
    %384 = tpu.matmul %381, %383, %cst_390 {dimension_numbers = #tpu.dot_dimension_numbers<[1], [0], [0], [1], [0, 0, 1, 1], [], []>} : vector<16x16xf32>, vector<16x16xf32>, vector<16x16xf32> -> vector<16x16xf32>
    %385 = arith.addf %376, %380 : vector<16x16xf32>
    %386 = arith.addf %385, %384 : vector<16x16xf32>
    %cst_391 = arith.constant 0.333333343 : f32
    %387 = vector.broadcast %cst_391 : f32 to vector<16x16xf32>
    %388 = arith.mulf %386, %387 : vector<16x16xf32>
    %cst_392 = arith.constant 0.839999973 : f32
    %389 = vector.broadcast %cst_392 : f32 to vector<16x16xf32>
    %390 = arith.mulf %389, %346 : vector<16x16xf32>
    %cst_393 = arith.constant 1.600000e-01 : f32
    %391 = vector.broadcast %cst_393 : f32 to vector<16x16xf32>
    %392 = arith.mulf %391, %388 : vector<16x16xf32>
    %393 = arith.addf %390, %392 : vector<16x16xf32>
    %cst_394 = arith.constant dense<0.000000e+00> : vector<16xf32>
    %394 = vector.multi_reduction <add>, %393, %cst_394 [1] : vector<16x16xf32> to vector<16xf32>
    %395 = vector.shape_cast %394 : vector<16xf32> to vector<16x1xf32>
    %cst_395 = arith.constant dense<0.000000e+00> : vector<1xf32>
    %396 = vector.multi_reduction <add>, %395, %cst_395 [0] : vector<16x1xf32> to vector<1xf32>
    %397 = vector.shape_cast %396 : vector<1xf32> to vector<1x1xf32>
    %c0_396 = arith.constant 0 : index
    %c0_397 = arith.constant 0 : index
    %c0_398 = arith.constant 0 : index
    %398 = vector.load %arg5[%c0_396, %c0_397, %c0_398] : memref<1x1x1xf32, #tpu.memory_space<vmem>>, vector<1x1x1xf32>
    %399 = vector.shape_cast %398 : vector<1x1x1xf32> to vector<1x1xf32>
    %400 = vector.shape_cast %397 : vector<1x1xf32> to vector<1x1x1xf32>
    tpu.vector_store %arg5[%c0_396, %c0_397, %c0_398], %400 {strides = array<i32>} : memref<1x1x1xf32, #tpu.memory_space<vmem>>, vector<1x1x1xf32>,
    return
  }
  func.func @transform_0(%arg0: i32) -> (i32, i32, i32, i32) {
    %c0_i32 = arith.constant 0 : i32
    %c0_i32_0 = arith.constant 0 : i32
    %c0_i32_1 = arith.constant 0 : i32
    %c0_i32_2 = arith.constant 0 : i32
    return %arg0, %c0_i32, %c0_i32_0, %c0_i32_1 : i32, i32, i32, i32
  }
  func.func @transform_1(%arg0: i32) -> (i32, i32, i32, i32) {
    %c0_i32 = arith.constant 0 : i32
    %c0_i32_0 = arith.constant 0 : i32
    %c0_i32_1 = arith.constant 0 : i32
    %c0_i32_2 = arith.constant 0 : i32
    return %arg0, %c0_i32, %c0_i32_0, %c0_i32_1 : i32, i32, i32, i32
  }
  func.func @transform_2(%arg0: i32) -> (i32, i32, i32) {
    %c0_i32 = arith.constant 0 : i32
    %c0_i32_0 = arith.constant 0 : i32
    %c0_i32_1 = arith.constant 0 : i32
    %c0_i32_2 = arith.constant 0 : i32
    return %c0_i32, %c0_i32_0, %c0_i32_1 : i32, i32, i32
  }
  func.func @transform_3(%arg0: i32) -> (i32, i32, i32) {
    %c0_i32 = arith.constant 0 : i32
    %c0_i32_0 = arith.constant 0 : i32
    %c0_i32_1 = arith.constant 0 : i32
    %c0_i32_2 = arith.constant 0 : i32
    return %c0_i32, %c0_i32_0, %c0_i32_1 : i32, i32, i32
  }
  func.func @transform_4(%arg0: i32) -> (i32, i32, i32) {
    %c0_i32 = arith.constant 0 : i32
    %c0_i32_0 = arith.constant 0 : i32
    %c0_i32_1 = arith.constant 0 : i32
    return %arg0, %c0_i32, %c0_i32_0 : i32, i32, i32
  }
}

</mosaic_0001>

<llo_original>
// kernel: ms_ssim_l1_loss.1
$region0: #{ms_ssim_l1_loss.1}
  #allocation0 [shape = 'u32[]', space=smem, size = 0x4, offset = 0x4, fixed_abs, tag = 'smem constant byte address 0x4 - core index']
  #allocation1 [shape = 'u32[144,128]{1,0:T(1,128)}', space=vmem, size = 0x12000, scoped, tag = 'internal scratch']
  #allocation2 [shape = 'f32[16,640]{1,0:T(8,128)}', space=vmem, size = 0xa000, scoped, tag = 'scratch operand']
  #allocation3 [shape = 'f32[16,640]{1,0:T(8,128)}', space=vmem, size = 0xa000, scoped, tag = 'scratch operand']
  %s0 = inlined_call_operand.vmem [shape: f32[2,3,16,16], index: 0, kind: input, shape index: {}]
  %s1 = inlined_call_operand.vmem [shape: f32[2,3,16,16], index: 1, kind: input, shape index: {}]
  %s2 = inlined_call_operand.vmem [shape: f32[5,16,16], index: 2, kind: input, shape index: {}]
  %s3 = inlined_call_operand.vmem [shape: f32[5,16,16], index: 3, kind: input, shape index: {}]
  %s4 = inlined_call_operand.vmem [shape: f32[2,1,1], index: 4, kind: output, shape index: {}]
  %s5 = sld [smem:[#allocation0]]
  $region49: #{ms_ssim_l1_loss.1} parent=0
    _
  %s7 = ssub.s32 1, %s5
  %s8 = scalar_select 0, %s7, %s5
  loop: start=0, step=1, limit=4
  $region2: #{ms_ssim_l1_loss.1} parent=0 // loop_pre_header
    _
  $region3: #{ms_ssim_l1_loss.1} parent=0 // loop_header
    %s10 = sphi 0, %s14
    %p11 = scmp.ge.s32.totalorder %s10, 4
    %s20 = sphi 0, %s22
    %s23 = sphi 0, %s20
    %s24 = sphi 0, %s23
    %s40 = sphi 0, %s24
    %s46 = sphi 0, %s48
    %s49 = sphi 0, %s46
    %s50 = sphi 0, %s49
    %s66 = sphi 0, %s50
    %s70 = sphi 0, %s70
    %s72 = sphi 0, %s70
    %s73 = sphi 0, %s72
    %s87 = sphi 0, %s73
    %s91 = sphi 0, %s91
    %s93 = sphi 0, %s91
    %s94 = sphi 0, %s93
    %s108 = sphi 0, %s94
    %s114 = sphi 0, %s116
    %s117 = sphi 0, %s114
    %s118 = sphi 0, %s117
    %s134 = sphi 0, %s118
  $region4: #{ms_ssim_l1_loss.1} parent=0 // loop_header_branch
    %13 = sbr.rel (%p11) target = $region8
  $region5: #{ms_ssim_l1_loss.1} parent=0 // loop_body
    %s15 = ssub.s32 %s10, 1
    %s16 = ssub.s32 %s10, 2
    %s17 = sadd.s32 %s10, 1
    %s18 = ssub.s32 %s10, %s17
    %p19 = scmp.eq.s32.totalorder %s18, 0
    %s21 = sadd.s32 %s20, 1
    %s22 = scalar_select %p19, %s20, %s21
    %p25 = pneg %p19
    %p26 = scmp.eq.s32.totalorder %s10, 1
    %p27 = por %p25, %p26
    %p28 = scmp.ne.s32.totalorder %s20, %s23
    %p29 = scmp.eq.s32.totalorder %s10, 0
    %p30 = por %p28, %p29
    %p31 = scmp.ne.s32.totalorder %s20, %s23
    %p32 = scmp.eq.s32.totalorder %s15, 1
    %p33 = por %p31, %p32
    %p34 = scmp.ne.s32.totalorder %s23, %s24
    %p35 = scmp.eq.s32.totalorder %s15, 0
    %p36 = por %p34, %p35
    %p37 = scmp.ne.s32.totalorder %s23, %s24
    %p38 = scmp.eq.s32.totalorder %s16, 1
    %p39 = por %p37, %p38
    %p41 = scmp.ne.s32.totalorder %s24, %s40
    %p42 = scmp.eq.s32.totalorder %s16, 0
    %p43 = por %p41, %p42
    %s44 = ssub.s32 %s10, %s17
    %p45 = scmp.eq.s32.totalorder %s44, 0
    %s47 = sadd.s32 %s46, 1
    %s48 = scalar_select %p45, %s46, %s47
    %p51 = pneg %p45
    %p52 = scmp.eq.s32.totalorder %s10, 1
    %p53 = por %p51, %p52
    %p54 = scmp.ne.s32.totalorder %s46, %s49
    %p55 = scmp.eq.s32.totalorder %s10, 0
    %p56 = por %p54, %p55
    %p57 = scmp.ne.s32.totalorder %s46, %s49
    %p58 = scmp.eq.s32.totalorder %s15, 1
    %p59 = por %p57, %p58
    %p60 = scmp.ne.s32.totalorder %s49, %s50
    %p61 = scmp.eq.s32.totalorder %s15, 0
    %p62 = por %p60, %p61
    %p63 = scmp.ne.s32.totalorder %s49, %s50
    %p64 = scmp.eq.s32.totalorder %s16, 1
    %p65 = por %p63, %p64
    %p67 = scmp.ne.s32.totalorder %s50, %s66
    %p68 = scmp.eq.s32.totalorder %s16, 0
    %p69 = por %p67, %p68
    %s71 = sadd.s32 %s70, 1
    %p74 = scmp.eq.s32.totalorder %s10, 1
    %p75 = scmp.ne.s32.totalorder %s70, %s72
    %p76 = scmp.eq.s32.totalorder %s10, 0
    %p77 = por %p75, %p76
    %p78 = scmp.ne.s32.totalorder %s70, %s72
    %p79 = scmp.eq.s32.totalorder %s15, 1
    %p80 = por %p78, %p79
    %p81 = scmp.ne.s32.totalorder %s72, %s73
    %p82 = scmp.eq.s32.totalorder %s15, 0
    %p83 = por %p81, %p82
    %p84 = scmp.ne.s32.totalorder %s72, %s73
    %p85 = scmp.eq.s32.totalorder %s16, 1
    %p86 = por %p84, %p85
    %p88 = scmp.ne.s32.totalorder %s73, %s87
    %p89 = scmp.eq.s32.totalorder %s16, 0
    %p90 = por %p88, %p89
    %s92 = sadd.s32 %s91, 1
    %p95 = scmp.eq.s32.totalorder %s10, 1
    %p96 = scmp.ne.s32.totalorder %s91, %s93
    %p97 = scmp.eq.s32.totalorder %s10, 0
    %p98 = por %p96, %p97
    %p99 = scmp.ne.s32.totalorder %s91, %s93
    %p100 = scmp.eq.s32.totalorder %s15, 1
    %p101 = por %p99, %p100
    %p102 = scmp.ne.s32.totalorder %s93, %s94
    %p103 = scmp.eq.s32.totalorder %s15, 0
    %p104 = por %p102, %p103
    %p105 = scmp.ne.s32.totalorder %s93, %s94
    %p106 = scmp.eq.s32.totalorder %s16, 1
    %p107 = por %p105, %p106
    %p109 = scmp.ne.s32.totalorder %s94, %s108
    %p110 = scmp.eq.s32.totalorder %s16, 0
    %p111 = por %p109, %p110
    %s112 = ssub.s32 %s10, %s17
    %p113 = scmp.eq.s32.totalorder %s112, 0
    %s115 = sadd.s32 %s114, 1
    %s116 = scalar_select %p113, %s114, %s115
    %p119 = pneg %p113
    %p120 = scmp.eq.s32.totalorder %s10, 1
    %p121 = por %p119, %p120
    %p122 = scmp.ne.s32.totalorder %s114, %s117
    %p123 = scmp.eq.s32.totalorder %s10, 0
    %p124 = por %p122, %p123
    %p125 = scmp.ne.s32.totalorder %s114, %s117
    %p126 = scmp.eq.s32.totalorder %s15, 1
    %p127 = por %p125, %p126
    %p128 = scmp.ne.s32.totalorder %s117, %s118
    %p129 = scmp.eq.s32.totalorder %s15, 0
    %p130 = por %p128, %p129
    %p131 = scmp.ne.s32.totalorder %s117, %s118
    %p132 = scmp.eq.s32.totalorder %s16, 1
    %p133 = por %p131, %p132
    %p135 = scmp.ne.s32.totalorder %s118, %s134
    %p136 = scmp.eq.s32.totalorder %s16, 0
    %p137 = por %p135, %p136
    %p138 = scmp.le.s32.totalorder 1, %s10
    %p139 = scmp.lt.s32.totalorder %s10, 3
    %p140 = pnand %p138, %p139
    %p141 = pneg %p140
    // Predicated region
    $region9: #{ms_ssim_l1_loss.1} parent=5 // pred_check
      _
    $region10: #{ms_ssim_l1_loss.1} parent=5 // pred_check_branch
      %143 = sbr.rel (%p140) target = $region12
    $region11: #{ms_ssim_l1_loss.1} parent=5 // pred_region
      %s144 = ssub.s32 %s10, 1
      // Predicated region
      $region13: #{ms_ssim_l1_loss.1} parent=11 // pred_check
        %p145 = pneg %p83
      $region14: #{ms_ssim_l1_loss.1} parent=11 // pred_check_branch
        %147 = sbr.rel (%p145) target = $region16
      $region15: #{ms_ssim_l1_loss.1} parent=11 // pred_region
        _
      $region16: #{ms_ssim_l1_loss.1} parent=11 // pred_fallthru
        _
      // Predicated region
      $region17: #{ms_ssim_l1_loss.1} parent=11 // pred_check
        %p148 = pneg %p104
      $region18: #{ms_ssim_l1_loss.1} parent=11 // pred_check_branch
        %150 = sbr.rel (%p148) target = $region20
      $region19: #{ms_ssim_l1_loss.1} parent=11 // pred_region
        _
      $region20: #{ms_ssim_l1_loss.1} parent=11 // pred_fallthru
        _
    $region12: #{ms_ssim_l1_loss.1} parent=5 // pred_fallthru
      _
    %p151 = scmp.lt.s32.totalorder %s10, 2
    // Predicated region
    $region21: #{ms_ssim_l1_loss.1} parent=5 // pred_check
      %p152 = pneg %p151
    $region22: #{ms_ssim_l1_loss.1} parent=5 // pred_check_branch
      %154 = sbr.rel (%p152) target = $region24
    $region23: #{ms_ssim_l1_loss.1} parent=5 // pred_region
      // Predicated region
      $region25: #{ms_ssim_l1_loss.1} parent=23 // pred_check
        %p155 = pneg %p30
      $region26: #{ms_ssim_l1_loss.1} parent=23 // pred_check_branch
        %157 = sbr.rel (%p155) target = $region28
      $region27: #{ms_ssim_l1_loss.1} parent=23 // pred_region
        %p158 = scmp.lt.s32.totalorder %s10, 1
        %s159 = scalar_select %p158, %s10, 1
        %s160 = smul.addr %s159, 6
        %s161 = smul.addr %s160, 8
        %s162 = scalar_lea.vmem %s0, %s161
      $region28: #{ms_ssim_l1_loss.1} parent=23 // pred_fallthru
        _
      // Predicated region
      $region29: #{ms_ssim_l1_loss.1} parent=23 // pred_check
        %p163 = pneg %p56
      $region30: #{ms_ssim_l1_loss.1} parent=23 // pred_check_branch
        %165 = sbr.rel (%p163) target = $region32
      $region31: #{ms_ssim_l1_loss.1} parent=23 // pred_region
        %p166 = scmp.lt.s32.totalorder %s10, 1
        %s167 = scalar_select %p166, %s10, 1
        %s168 = smul.addr %s167, 6
        %s169 = smul.addr %s168, 8
        %s170 = scalar_lea.vmem %s1, %s169
      $region32: #{ms_ssim_l1_loss.1} parent=23 // pred_fallthru
        _
    $region24: #{ms_ssim_l1_loss.1} parent=5 // pred_fallthru
      _
    %p171 = scmp.le.s32.totalorder 1, %s10
    %p172 = scmp.lt.s32.totalorder %s10, 3
    %p173 = pnand %p171, %p172
    %p174 = pneg %p173
    // Predicated region
    $region33: #{ms_ssim_l1_loss.1} parent=5 // pred_check
      _
    $region34: #{ms_ssim_l1_loss.1} parent=5 // pred_check_branch
      %176 = sbr.rel (%p173) target = $region36
    $region35: #{ms_ssim_l1_loss.1} parent=5 // pred_region
      %s177 = ssub.s32 %s10, 1
      %p178 = scmp.lt.s32.totalorder %s15, 1
      %s179 = scalar_select %p178, %s15, 1
      %s180 = smul.addr %s179, 6
      %s181 = smul.addr %s180, 8
      %s182 = scalar_lea.vmem %s0, %s181
      %p183 = pneg %p36
      %p184 = pneg %p33
      %p185 = scmp.lt.s32.totalorder %s15, 1
      %s186 = scalar_select %p185, %s15, 1
      %s187 = smul.addr %s186, 6
      %s188 = smul.addr %s187, 8
      %s189 = scalar_lea.vmem %s1, %s188
      %p190 = pneg %p62
      %p191 = pneg %p59
      %p192 = pneg %p83
      %p193 = pneg %p80
      %p194 = pneg %p104
      %p195 = pneg %p101
      %p196 = pneg %p130
      %p197 = pneg %p127
      %p198 = scmp.lt.s32.totalorder %s15, 1
      %s199 = scalar_select %p198, %s15, 1
      %s200 = scalar_lea.vmem %s4, %s199
      %p201 = scmp.lt.s32.totalorder %s15, 1
      %s202 = scalar_select %p201, %s15, 1
      %s203 = smul.addr %s202, 6
      %s204 = smul.addr %s203, 8
      %s205 = scalar_lea.vmem %s0, %s204
      %p206 = scmp.lt.s32.totalorder %s15, 1
      %s207 = scalar_select %p206, %s15, 1
      %s208 = smul.addr %s207, 6
      %s209 = smul.addr %s208, 8
      %s210 = scalar_lea.vmem %s1, %s209
      %p211 = scmp.lt.s32.totalorder %s15, 1
      %s212 = scalar_select %p211, %s15, 1
      %s213 = scalar_lea.vmem %s4, %s212
      %v214 = vld [vmem:[%s205] sm:$0xff]
      %v215 = vld [vmem:[%s205 + $0x8] sm:$0xff]
      %v216 = vld [vmem:[%s210] sm:$0xff]
      %v217 = vld [vmem:[%s210 + $0x8] sm:$0xff]
      %v218 = vmul.f32 %v214, %v214
      %v219 = vmul.f32 %v215, %v215
      %v220 = vmul.f32 %v216, %v216
      %v221 = vmul.f32 %v217, %v217
      %v222 = vmul.f32 %v214, %v216
      %v223 = vmul.f32 %v215, %v217
      %vm224 = vcmask 130048
      %225 = vst.msk [vmem:[#allocation2] sm:$0xff] %vm224, %v214
      %226 = vst.msk [vmem:[#allocation2 + $0x28] sm:$0xff] %vm224, %v215
      %227 = vst.msk [vmem:[#allocation2 + $0x8] sm:$0xff] %vm224, %v216
      %228 = vst.msk [vmem:[#allocation2 + $0x30] sm:$0xff] %vm224, %v217
      %229 = vst.msk [vmem:[#allocation2 + $0x10] sm:$0xff] %vm224, %v218
      %230 = vst.msk [vmem:[#allocation2 + $0x38] sm:$0xff] %vm224, %v219
      %231 = vst.msk [vmem:[#allocation2 + $0x18] sm:$0xff] %vm224, %v220
      %232 = vst.msk [vmem:[#allocation2 + $0x40] sm:$0xff] %vm224, %v221
      %233 = vst.msk [vmem:[#allocation2 + $0x20] sm:$0xff] %vm224, %v222
      %234 = vst.msk [vmem:[#allocation2 + $0x48] sm:$0xff] %vm224, %v223
      %v235 = vld [vmem:[%s2] sm:$0xff]
      %v236 = vld [vmem:[%s2 + $0x8] sm:$0xff]
      %v237 = vld [vmem:[#allocation2] sm:$0xff]
      %v238 = vld [vmem:[#allocation2 + $0x8] sm:$0xff]
      %v239 = vld [vmem:[#allocation2 + $0x10] sm:$0xff]
      %v240 = vld [vmem:[#allocation2 + $0x18] sm:$0xff]
      %v241 = vld [vmem:[#allocation2 + $0x20] sm:$0xff]
      %v242 = vld [vmem:[#allocation2 + $0x28] sm:$0xff]
      %v243 = vld [vmem:[#allocation2 + $0x30] sm:$0xff]
      %v244 = vld [vmem:[#allocation2 + $0x38] sm:$0xff]
      %v245 = vld [vmem:[#allocation2 + $0x40] sm:$0xff]
      %v246 = vld [vmem:[#allocation2 + $0x48] sm:$0xff]
      %v248 = vsel %vm224, %v235, 0
      %v251 = vsel %vm224, %v236, 0
      %253 = vmatprep.subr.mxu0 %v238
      %254 = vmatpush1.msra.mxu0 %v237
      %255 = vmatprep.subr.mxu0 %v243
      %256 = vmatpush1.msra.mxu0 %v242
      %257 = vmatprep.subr.mxu0 0.0
      %258 = vmatpush1.msra.mxu0 0.0
      %259 = vmatprep.subr.mxu0 0.0
      %260 = vmatpush1.msra.mxu0 0.0
      %261 = vmatprep.subr.mxu0 0.0
      %262 = vmatpush1.msra.mxu0 0.0
      %263 = vmatprep.subr.mxu0 0.0
      %264 = vmatpush1.msra.mxu0 0.0
      %265 = vmatprep.subr.mxu0 0.0
      %266 = vmatpush1.msra.mxu0 0.0
      %267 = vmatprep.subr.mxu0 0.0
      %268 = vmatpush1.msra.mxu0 0.0
      %269 = vmatprep.subr.mxu0 0.0
      %270 = vmatpush1.msra.mxu0 0.0
      %271 = vmatprep.subr.mxu0 0.0
      %272 = vmatpush1.msra.mxu0 0.0
      %273 = vmatprep.subr.mxu0 0.0
      %274 = vmatpush1.msra.mxu0 0.0
      %275 = vmatprep.subr.mxu0 0.0
      %276 = vmatpush1.msra.mxu0 0.0
      %277 = vmatprep.subr.mxu0 0.0
      %278 = vmatpush1.msra.mxu0 0.0
      %279 = vmatprep.subr.mxu0 0.0
      %280 = vmatpush1.msra.mxu0 0.0
      %281 = vmatprep.subr.mxu0 0.0
      %282 = vmatpush1.msra.mxu0 0.0
      %283 = vmatprep.subr.mxu0 0.0
      %284 = vmatpush1.msra.mxu0 0.0
      %285 = vmatprep.subr.mxu0 0.0
      %286 = vmatpush1.msra.mxu0 0.0
      %287 = vmatprep.subr.mxu0 0.0
      %288 = vmatpush1.msra.mxu0 0.0
      %289 = vmatprep.subr.mxu0 0.0
      %290 = vmatpush1.msra.mxu0 0.0
      %291 = vmatprep.subr.mxu0 0.0
      %292 = vmatpush1.msra.mxu0 0.0
      %293 = vmatprep.subr.mxu0 0.0
      %294 = vmatpush1.msra.mxu0 0.0
      %295 = vmatprep.subr.mxu0 0.0
      %296 = vmatpush1.msra.mxu0 0.0
      %297 = vmatprep.subr.mxu0 0.0
      %298 = vmatpush1.msra.mxu0 0.0
      %299 = vmatprep.subr.mxu0 0.0
      %300 = vmatpush1.msra.mxu0 0.0
      %301 = vmatprep.subr.mxu0 0.0
      %302 = vmatpush1.msra.mxu0 0.0
      %303 = vmatprep.subr.mxu0 0.0
      %304 = vmatpush1.msra.mxu0 0.0
      %305 = vmatprep.subr.mxu0 0.0
      %306 = vmatpush1.msra.mxu0 0.0
      %307 = vmatprep.subr.mxu0 0.0
      %308 = vmatpush1.msra.mxu0 0.0
      %309 = vmatprep.subr.mxu0 0.0
      %310 = vmatpush1.msra.mxu0 0.0
      %311 = vmatprep.subr.mxu0 0.0
      %312 = vmatpush1.msra.mxu0 0.0
      %313 = vmatprep.subr.mxu0 0.0
      %314 = vmatpush1.msra.mxu0 0.0
      %315 = vmatprep.subr.mxu0 0.0
      %316 = vmatpush1.msra.mxu0 0.0
      %317 = vmatprep.mubr.f32.mxu0 0.0
      %318 = vmatmul.mubr.f32.gmra.mrb[0].mxu0 %v248
      %v319 = vpop.f32.mrb[0].mxu0
      %v320 = vadd.f32 0.0, %v319
      %v321 = vpop.f32.mrb[0].mxu0
      %v322 = vadd.f32 0.0, %v321
      %323 = vmatprep.mubr.f32.mxu0 0.0
      %324 = vmatmul.mubr.f32.gmra.mrb[0].mxu0 %v251
      %v325 = vpop.f32.mrb[0].mxu0
      %v326 = vadd.f32 0.0, %v325
      %v327 = vpop.f32.mrb[0].mxu0
      %v328 = vadd.f32 0.0, %v327
      %329 = vdwg.mxu0
      %330 = vmatprep.subr.mxu0 %v240
      %331 = vmatpush1.msra.mxu0 %v239
      %332 = vmatprep.subr.mxu0 %v245
      %333 = vmatpush1.msra.mxu0 %v244
      %334 = vmatprep.subr.mxu0 0.0
      %335 = vmatpush1.msra.mxu0 0.0
      %336 = vmatprep.subr.mxu0 0.0
      %337 = vmatpush1.msra.mxu0 0.0
      %338 = vmatprep.subr.mxu0 0.0
      %339 = vmatpush1.msra.mxu0 0.0
      %340 = vmatprep.subr.mxu0 0.0
      %341 = vmatpush1.msra.mxu0 0.0
      %342 = vmatprep.subr.mxu0 0.0
      %343 = vmatpush1.msra.mxu0 0.0
      %344 = vmatprep.subr.mxu0 0.0
      %345 = vmatpush1.msra.mxu0 0.0
      %346 = vmatprep.subr.mxu0 0.0
      %347 = vmatpush1.msra.mxu0 0.0
      %348 = vmatprep.subr.mxu0 0.0
      %349 = vmatpush1.msra.mxu0 0.0
      %350 = vmatprep.subr.mxu0 0.0
      %351 = vmatpush1.msra.mxu0 0.0
      %352 = vmatprep.subr.mxu0 0.0
      %353 = vmatpush1.msra.mxu0 0.0
      %354 = vmatprep.subr.mxu0 0.0
      %355 = vmatpush1.msra.mxu0 0.0
      %356 = vmatprep.subr.mxu0 0.0
      %357 = vmatpush1.msra.mxu0 0.0
      %358 = vmatprep.subr.mxu0 0.0
      %359 = vmatpush1.msra.mxu0 0.0
      %360 = vmatprep.subr.mxu0 0.0
      %361 = vmatpush1.msra.mxu0 0.0
      %362 = vmatprep.subr.mxu0 0.0
      %363 = vmatpush1.msra.mxu0 0.0
      %364 = vmatprep.subr.mxu0 0.0
      %365 = vmatpush1.msra.mxu0 0.0
      %366 = vmatprep.subr.mxu0 0.0
      %367 = vmatpush1.msra.mxu0 0.0
      %368 = vmatprep.subr.mxu0 0.0
      %369 = vmatpush1.msra.mxu0 0.0
      %370 = vmatprep.subr.mxu0 0.0
      %371 = vmatpush1.msra.mxu0 0.0
      %372 = vmatprep.subr.mxu0 0.0
      %373 = vmatpush1.msra.mxu0 0.0
      %374 = vmatprep.subr.mxu0 0.0
      %375 = vmatpush1.msra.mxu0 0.0
      %376 = vmatprep.subr.mxu0 0.0
      %377 = vmatpush1.msra.mxu0 0.0
      %378 = vmatprep.subr.mxu0 0.0
      %379 = vmatpush1.msra.mxu0 0.0
      %380 = vmatprep.subr.mxu0 0.0
      %381 = vmatpush1.msra.mxu0 0.0
      %382 = vmatprep.subr.mxu0 0.0
      %383 = vmatpush1.msra.mxu0 0.0
      %384 = vmatprep.subr.mxu0 0.0
      %385 = vmatpush1.msra.mxu0 0.0
      %386 = vmatprep.subr.mxu0 0.0
      %387 = vmatpush1.msra.mxu0 0.0
      %388 = vmatprep.subr.mxu0 0.0
      %389 = vmatpush1.msra.mxu0 0.0
      %390 = vmatprep.subr.mxu0 0.0
      %391 = vmatpush1.msra.mxu0 0.0
      %392 = vmatprep.subr.mxu0 0.0
      %393 = vmatpush1.msra.mxu0 0.0
      %394 = vmatprep.mubr.f32.mxu0 0.0
      %395 = vmatmul.mubr.f32.gmra.mrb[0].mxu0 %v248
      %v396 = vpop.f32.mrb[0].mxu0
      %v397 = vadd.f32 0.0, %v396
      %v398 = vpop.f32.mrb[0].mxu0
      %v399 = vadd.f32 0.0, %v398
      %400 = vmatprep.mubr.f32.mxu0 0.0
      %401 = vmatmul.mubr.f32.gmra.mrb[0].mxu0 %v251
      %v402 = vpop.f32.mrb[0].mxu0
      %v403 = vadd.f32 0.0, %v402
      %v404 = vpop.f32.mrb[0].mxu0
      %v405 = vadd.f32 0.0, %v404
      %406 = vdwg.mxu0
      %407 = vmatprep.subr.mxu0 0.0
      %408 = vmatpush1.msra.mxu0 %v241
      %409 = vmatprep.subr.mxu0 0.0
      %410 = vmatpush1.msra.mxu0 %v246
      %411 = vmatprep.subr.mxu0 0.0
      %412 = vmatpush1.msra.mxu0 0.0
      %413 = vmatprep.subr.mxu0 0.0
      %414 = vmatpush1.msra.mxu0 0.0
      %415 = vmatprep.subr.mxu0 0.0
      %416 = vmatpush1.msra.mxu0 0.0
      %417 = vmatprep.subr.mxu0 0.0
      %418 = vmatpush1.msra.mxu0 0.0
      %419 = vmatprep.subr.mxu0 0.0
      %420 = vmatpush1.msra.mxu0 0.0
      %421 = vmatprep.subr.mxu0 0.0
      %422 = vmatpush1.msra.mxu0 0.0
      %423 = vmatprep.subr.mxu0 0.0
      %424 = vmatpush1.msra.mxu0 0.0
      %425 = vmatprep.subr.mxu0 0.0
      %426 = vmatpush1.msra.mxu0 0.0
      %427 = vmatprep.subr.mxu0 0.0
      %428 = vmatpush1.msra.mxu0 0.0
      %429 = vmatprep.subr.mxu0 0.0
      %430 = vmatpush1.msra.mxu0 0.0
      %431 = vmatprep.subr.mxu0 0.0
      %432 = vmatpush1.msra.mxu0 0.0
      %433 = vmatprep.subr.mxu0 0.0
      %434 = vmatpush1.msra.mxu0 0.0
      %435 = vmatprep.subr.mxu0 0.0
      %436 = vmatpush1.msra.mxu0 0.0
      %437 = vmatprep.subr.mxu0 0.0
      %438 = vmatpush1.msra.mxu0 0.0
      %439 = vmatprep.subr.mxu0 0.0
      %440 = vmatpush1.msra.mxu0 0.0
      %441 = vmatprep.subr.mxu0 0.0
      %442 = vmatpush1.msra.mxu0 0.0
      %443 = vmatprep.subr.mxu0 0.0
      %444 = vmatpush1.msra.mxu0 0.0
      %445 = vmatprep.subr.mxu0 0.0
      %446 = vmatpush1.msra.mxu0 0.0
      %447 = vmatprep.subr.mxu0 0.0
      %448 = vmatpush1.msra.mxu0 0.0
      %449 = vmatprep.subr.mxu0 0.0
      %450 = vmatpush1.msra.mxu0 0.0
      %451 = vmatprep.subr.mxu0 0.0
      %452 = vmatpush1.msra.mxu0 0.0
      %453 = vmatprep.subr.mxu0 0.0
      %454 = vmatpush1.msra.mxu0 0.0
      %455 = vmatprep.subr.mxu0 0.0
      %456 = vmatpush1.msra.mxu0 0.0
      %457 = vmatprep.subr.mxu0 0.0
      %458 = vmatpush1.msra.mxu0 0.0
      %459 = vmatprep.subr.mxu0 0.0
      %460 = vmatpush1.msra.mxu0 0.0
      %461 = vmatprep.subr.mxu0 0.0
      %462 = vmatpush1.msra.mxu0 0.0
      %463 = vmatprep.subr.mxu0 0.0
      %464 = vmatpush1.msra.mxu0 0.0
      %465 = vmatprep.subr.mxu0 0.0
      %466 = vmatpush1.msra.mxu0 0.0
      %467 = vmatprep.subr.mxu0 0.0
      %468 = vmatpush1.msra.mxu0 0.0
      %469 = vmatprep.subr.mxu0 0.0
      %470 = vmatpush1.msra.mxu0 0.0
      %471 = vmatprep.mubr.f32.mxu0 0.0
      %472 = vmatmul.mubr.f32.gmra.mrb[0].mxu0 %v248
      %v473 = vpop.f32.mrb[0].mxu0
      %v474 = vadd.f32 0.0, %v473
      %v475 = vpop.f32.mrb[0].mxu0
      %476 = vmatprep.mubr.f32.mxu0 0.0
      %477 = vmatmul.mubr.f32.gmra.mrb[0].mxu0 %v251
      %v478 = vpop.f32.mrb[0].mxu0
      %v479 = vadd.f32 0.0, %v478
      %v480 = vpop.f32.mrb[0].mxu0
      %481 = vdwg.mxu0
      %482 = vst [vmem:[#allocation3] sm:$0xff] %v320
      %483 = vst [vmem:[#allocation3 + $0x8] sm:$0xff] %v322
      %484 = vst [vmem:[#allocation3 + $0x10] sm:$0xff] %v397
      %485 = vst [vmem:[#allocation3 + $0x18] sm:$0xff] %v399
      %486 = vst [vmem:[#allocation3 + $0x20] sm:$0xff] %v474
      %487 = vst [vmem:[#allocation3 + $0x28] sm:$0xff] %v326
      %488 = vst [vmem:[#allocation3 + $0x30] sm:$0xff] %v328
      %489 = vst [vmem:[#allocation3 + $0x38] sm:$0xff] %v403
      %490 = vst [vmem:[#allocation3 + $0x40] sm:$0xff] %v405
      %491 = vst [vmem:[#allocation3 + $0x48] sm:$0xff] %v479
      %v492 = vld [vmem:[#allocation3] sm:$0xff]
      %v493 = vld [vmem:[#allocation3 + $0x28] sm:$0xff]
      %v494 = vld [vmem:[%s3] sm:$0xff]
      %v495 = vld [vmem:[%s3 + $0x8] sm:$0xff]
      %v497 = vsel %vm224, %v492, 0
      %v500 = vsel %vm224, %v493, 0
      %502 = vmatprep.subr.mxu0 0.0
      %503 = vmatpush1.msra.mxu0 %v494
      %504 = vmatprep.subr.mxu0 0.0
      %505 = vmatpush1.msra.mxu0 %v495
      %506 = vmatprep.subr.mxu0 0.0
      %507 = vmatpush1.msra.mxu0 0.0
      %508 = vmatprep.subr.mxu0 0.0
      %509 = vmatpush1.msra.mxu0 0.0
      %510 = vmatprep.subr.mxu0 0.0
      %511 = vmatpush1.msra.mxu0 0.0
      %512 = vmatprep.subr.mxu0 0.0
      %513 = vmatpush1.msra.mxu0 0.0
      %514 = vmatprep.subr.mxu0 0.0
      %515 = vmatpush1.msra.mxu0 0.0
      %516 = vmatprep.subr.mxu0 0.0
      %517 = vmatpush1.msra.mxu0 0.0
      %518 = vmatprep.subr.mxu0 0.0
      %519 = vmatpush1.msra.mxu0 0.0
      %520 = vmatprep.subr.mxu0 0.0
      %521 = vmatpush1.msra.mxu0 0.0
      %522 = vmatprep.subr.mxu0 0.0
      %523 = vmatpush1.msra.mxu0 0.0
      %524 = vmatprep.subr.mxu0 0.0
      %525 = vmatpush1.msra.mxu0 0.0
      %526 = vmatprep.subr.mxu0 0.0
      %527 = vmatpush1.msra.mxu0 0.0
      %528 = vmatprep.subr.mxu0 0.0
      %529 = vmatpush1.msra.mxu0 0.0
      %530 = vmatprep.subr.mxu0 0.0
      %531 = vmatpush1.msra.mxu0 0.0
      %532 = vmatprep.subr.mxu0 0.0
      %533 = vmatpush1.msra.mxu0 0.0
      %534 = vmatprep.subr.mxu0 0.0
      %535 = vmatpush1.msra.mxu0 0.0
      %536 = vmatprep.subr.mxu0 0.0
      %537 = vmatpush1.msra.mxu0 0.0
      %538 = vmatprep.subr.mxu0 0.0
      %539 = vmatpush1.msra.mxu0 0.0
      %540 = vmatprep.subr.mxu0 0.0
      %541 = vmatpush1.msra.mxu0 0.0
      %542 = vmatprep.subr.mxu0 0.0
      %543 = vmatpush1.msra.mxu0 0.0
      %544 = vmatprep.subr.mxu0 0.0
      %545 = vmatpush1.msra.mxu0 0.0
      %546 = vmatprep.subr.mxu0 0.0
      %547 = vmatpush1.msra.mxu0 0.0
      %548 = vmatprep.subr.mxu0 0.0
      %549 = vmatpush1.msra.mxu0 0.0
      %550 = vmatprep.subr.mxu0 0.0
      %551 = vmatpush1.msra.mxu0 0.0
      %552 = vmatprep.subr.mxu0 0.0
      %553 = vmatpush1.msra.mxu0 0.0
      %554 = vmatprep.subr.mxu0 0.0
      %555 = vmatpush1.msra.mxu0 0.0
      %556 = vmatprep.subr.mxu0 0.0
      %557 = vmatpush1.msra.mxu0 0.0
      %558 = vmatprep.subr.mxu0 0.0
      %559 = vmatpush1.msra.mxu0 0.0
      %560 = vmatprep.subr.mxu0 0.0
      %561 = vmatpush1.msra.mxu0 0.0
      %562 = vmatprep.subr.mxu0 0.0
      %563 = vmatpush1.msra.mxu0 0.0
      %564 = vmatprep.subr.mxu0 0.0
      %565 = vmatpush1.msra.mxu0 0.0
      %566 = vmatprep.mubr.f32.mxu0 0.0
      %567 = vmatmul.mubr.f32.gmra.mrb[0].mxu0 %v497
      %v568 = vpop.f32.mrb[0].mxu0
      %v569 = vadd.f32 0.0, %v568
      %v570 = vpop.f32.mrb[0].mxu0
      %571 = vmatprep.mubr.f32.mxu0 0.0
      %572 = vmatmul.mubr.f32.gmra.mrb[0].mxu0 %v500
      %v573 = vpop.f32.mrb[0].mxu0
      %v574 = vadd.f32 0.0, %v573
      %v575 = vpop.f32.mrb[0].mxu0
      %576 = vdwg.mxu0
      %v577 = vld [vmem:[#allocation3 + $0x8] sm:$0xff]
      %v578 = vld [vmem:[#allocation3 + $0x30] sm:$0xff]
      %v580 = vsel %vm224, %v577, 0
      %v583 = vsel %vm224, %v578, 0
      %585 = vmatprep.subr.mxu0 0.0
      %586 = vmatpush1.msra.mxu0 %v494
      %587 = vmatprep.subr.mxu0 0.0
      %588 = vmatpush1.msra.mxu0 %v495
      %589 = vmatprep.subr.mxu0 0.0
      %590 = vmatpush1.msra.mxu0 0.0
      %591 = vmatprep.subr.mxu0 0.0
      %592 = vmatpush1.msra.mxu0 0.0
      %593 = vmatprep.subr.mxu0 0.0
      %594 = vmatpush1.msra.mxu0 0.0
      %595 = vmatprep.subr.mxu0 0.0
      %596 = vmatpush1.msra.mxu0 0.0
      %597 = vmatprep.subr.mxu0 0.0
      %598 = vmatpush1.msra.mxu0 0.0
      %599 = vmatprep.subr.mxu0 0.0
      %600 = vmatpush1.msra.mxu0 0.0
      %601 = vmatprep.subr.mxu0 0.0
      %602 = vmatpush1.msra.mxu0 0.0
      %603 = vmatprep.subr.mxu0 0.0
      %604 = vmatpush1.msra.mxu0 0.0
      %605 = vmatprep.subr.mxu0 0.0
      %606 = vmatpush1.msra.mxu0 0.0
      %607 = vmatprep.subr.mxu0 0.0
      %608 = vmatpush1.msra.mxu0 0.0
      %609 = vmatprep.subr.mxu0 0.0
      %610 = vmatpush1.msra.mxu0 0.0
      %611 = vmatprep.subr.mxu0 0.0
      %612 = vmatpush1.msra.mxu0 0.0
      %613 = vmatprep.subr.mxu0 0.0
      %614 = vmatpush1.msra.mxu0 0.0
      %615 = vmatprep.subr.mxu0 0.0
      %616 = vmatpush1.msra.mxu0 0.0
      %617 = vmatprep.subr.mxu0 0.0
      %618 = vmatpush1.msra.mxu0 0.0
      %619 = vmatprep.subr.mxu0 0.0
      %620 = vmatpush1.msra.mxu0 0.0
      %621 = vmatprep.subr.mxu0 0.0
      %622 = vmatpush1.msra.mxu0 0.0
      %623 = vmatprep.subr.mxu0 0.0
      %624 = vmatpush1.msra.mxu0 0.0
      %625 = vmatprep.subr.mxu0 0.0
      %626 = vmatpush1.msra.mxu0 0.0
      %627 = vmatprep.subr.mxu0 0.0
      %628 = vmatpush1.msra.mxu0 0.0
      %629 = vmatprep.subr.mxu0 0.0
      %630 = vmatpush1.msra.mxu0 0.0
      %631 = vmatprep.subr.mxu0 0.0
      %632 = vmatpush1.msra.mxu0 0.0
      %633 = vmatprep.subr.mxu0 0.0
      %634 = vmatpush1.msra.mxu0 0.0
      %635 = vmatprep.subr.mxu0 0.0
      %636 = vmatpush1.msra.mxu0 0.0
      %637 = vmatprep.subr.mxu0 0.0
      %638 = vmatpush1.msra.mxu0 0.0
      %639 = vmatprep.subr.mxu0 0.0
      %640 = vmatpush1.msra.mxu0 0.0
      %641 = vmatprep.subr.mxu0 0.0
      %642 = vmatpush1.msra.mxu0 0.0
      %643 = vmatprep.subr.mxu0 0.0
      %644 = vmatpush1.msra.mxu0 0.0
      %645 = vmatprep.subr.mxu0 0.0
      %646 = vmatpush1.msra.mxu0 0.0
      %647 = vmatprep.subr.mxu0 0.0
      %648 = vmatpush1.msra.mxu0 0.0
      %649 = vmatprep.mubr.f32.mxu0 0.0
      %650 = vmatmul.mubr.f32.gmra.mrb[0].mxu0 %v580
      %v651 = vpop.f32.mrb[0].mxu0
      %v652 = vadd.f32 0.0, %v651
      %v653 = vpop.f32.mrb[0].mxu0
      %654 = vmatprep.mubr.f32.mxu0 0.0
      %655 = vmatmul.mubr.f32.gmra.mrb[0].mxu0 %v583
      %v656 = vpop.f32.mrb[0].mxu0
      %v657 = vadd.f32 0.0, %v656
      %v658 = vpop.f32.mrb[0].mxu0
      %659 = vdwg.mxu0
      %v660 = vld [vmem:[#allocation3 + $0x10] sm:$0xff]
      %v661 = vld [vmem:[#allocation3 + $0x38] sm:$0xff]
      %v663 = vsel %vm224, %v660, 0
      %v666 = vsel %vm224, %v661, 0
      %668 = vmatprep.subr.mxu0 0.0
      %669 = vmatpush1.msra.mxu0 %v494
      %670 = vmatprep.subr.mxu0 0.0
      %671 = vmatpush1.msra.mxu0 %v495
      %672 = vmatprep.subr.mxu0 0.0
      %673 = vmatpush1.msra.mxu0 0.0
      %674 = vmatprep.subr.mxu0 0.0
      %675 = vmatpush1.msra.mxu0 0.0
      %676 = vmatprep.subr.mxu0 0.0
      %677 = vmatpush1.msra.mxu0 0.0
      %678 = vmatprep.subr.mxu0 0.0
      %679 = vmatpush1.msra.mxu0 0.0
      %680 = vmatprep.subr.mxu0 0.0
      %681 = vmatpush1.msra.mxu0 0.0
      %682 = vmatprep.subr.mxu0 0.0
      %683 = vmatpush1.msra.mxu0 0.0
      %684 = vmatprep.subr.mxu0 0.0
      %685 = vmatpush1.msra.mxu0 0.0
      %686 = vmatprep.subr.mxu0 0.0
      %687 = vmatpush1.msra.mxu0 0.0
      %688 = vmatprep.subr.mxu0 0.0
      %689 = vmatpush1.msra.mxu0 0.0
      %690 = vmatprep.subr.mxu0 0.0
      %691 = vmatpush1.msra.mxu0 0.0
      %692 = vmatprep.subr.mxu0 0.0
      %693 = vmatpush1.msra.mxu0 0.0
      %694 = vmatprep.subr.mxu0 0.0
      %695 = vmatpush1.msra.mxu0 0.0
      %696 = vmatprep.subr.mxu0 0.0
      %697 = vmatpush1.msra.mxu0 0.0
      %698 = vmatprep.subr.mxu0 0.0
      %699 = vmatpush1.msra.mxu0 0.0
      %700 = vmatprep.subr.mxu0 0.0
      %701 = vmatpush1.msra.mxu0 0.0
      %702 = vmatprep.subr.mxu0 0.0
      %703 = vmatpush1.msra.mxu0 0.0
      %704 = vmatprep.subr.mxu0 0.0
      %705 = vmatpush1.msra.mxu0 0.0
      %706 = vmatprep.subr.mxu0 0.0
      %707 = vmatpush1.msra.mxu0 0.0
      %708 = vmatprep.subr.mxu0 0.0
      %709 = vmatpush1.msra.mxu0 0.0
      %710 = vmatprep.subr.mxu0 0.0
      %711 = vmatpush1.msra.mxu0 0.0
      %712 = vmatprep.subr.mxu0 0.0
      %713 = vmatpush1.msra.mxu0 0.0
      %714 = vmatprep.subr.mxu0 0.0
      %715 = vmatpush1.msra.mxu0 0.0
      %716 = vmatprep.subr.mxu0 0.0
      %717 = vmatpush1.msra.mxu0 0.0
      %718 = vmatprep.subr.mxu0 0.0
      %719 = vmatpush1.msra.mxu0 0.0
      %720 = vmatprep.subr.mxu0 0.0
      %721 = vmatpush1.msra.mxu0 0.0
      %722 = vmatprep.subr.mxu0 0.0
      %723 = vmatpush1.msra.mxu0 0.0
      %724 = vmatprep.subr.mxu0 0.0
      %725 = vmatpush1.msra.mxu0 0.0
      %726 = vmatprep.subr.mxu0 0.0
      %727 = vmatpush1.msra.mxu0 0.0
      %728 = vmatprep.subr.mxu0 0.0
      %729 = vmatpush1.msra.mxu0 0.0
      %730 = vmatprep.subr.mxu0 0.0
      %731 = vmatpush1.msra.mxu0 0.0
      %732 = vmatprep.mubr.f32.mxu0 0.0
      %733 = vmatmul.mubr.f32.gmra.mrb[0].mxu0 %v663
      %v734 = vpop.f32.mrb[0].mxu0
      %v735 = vadd.f32 0.0, %v734
      %v736 = vpop.f32.mrb[0].mxu0
      %737 = vmatprep.mubr.f32.mxu0 0.0
      %738 = vmatmul.mubr.f32.gmra.mrb[0].mxu0 %v666
      %v739 = vpop.f32.mrb[0].mxu0
      %v740 = vadd.f32 0.0, %v739
      %v741 = vpop.f32.mrb[0].mxu0
      %742 = vdwg.mxu0
      %v743 = vld [vmem:[#allocation3 + $0x18] sm:$0xff]
      %v744 = vld [vmem:[#allocation3 + $0x40] sm:$0xff]
      %v746 = vsel %vm224, %v743, 0
      %v749 = vsel %vm224, %v744, 0
      %751 = vmatprep.subr.mxu0 0.0
      %752 = vmatpush1.msra.mxu0 %v494
      %753 = vmatprep.subr.mxu0 0.0
      %754 = vmatpush1.msra.mxu0 %v495
      %755 = vmatprep.subr.mxu0 0.0
      %756 = vmatpush1.msra.mxu0 0.0
      %757 = vmatprep.subr.mxu0 0.0
      %758 = vmatpush1.msra.mxu0 0.0
      %759 = vmatprep.subr.mxu0 0.0
      %760 = vmatpush1.msra.mxu0 0.0
      %761 = vmatprep.subr.mxu0 0.0
      %762 = vmatpush1.msra.mxu0 0.0
      %763 = vmatprep.subr.mxu0 0.0
      %764 = vmatpush1.msra.mxu0 0.0
      %765 = vmatprep.subr.mxu0 0.0
      %766 = vmatpush1.msra.mxu0 0.0
      %767 = vmatprep.subr.mxu0 0.0
      %768 = vmatpush1.msra.mxu0 0.0
      %769 = vmatprep.subr.mxu0 0.0
      %770 = vmatpush1.msra.mxu0 0.0
      %771 = vmatprep.subr.mxu0 0.0
      %772 = vmatpush1.msra.mxu0 0.0
      %773 = vmatprep.subr.mxu0 0.0
      %774 = vmatpush1.msra.mxu0 0.0
      %775 = vmatprep.subr.mxu0 0.0
      %776 = vmatpush1.msra.mxu0 0.0
      %777 = vmatprep.subr.mxu0 0.0
      %778 = vmatpush1.msra.mxu0 0.0
      %779 = vmatprep.subr.mxu0 0.0
      %780 = vmatpush1.msra.mxu0 0.0
      %781 = vmatprep.subr.mxu0 0.0
      %782 = vmatpush1.msra.mxu0 0.0
      %783 = vmatprep.subr.mxu0 0.0
      %784 = vmatpush1.msra.mxu0 0.0
      %785 = vmatprep.subr.mxu0 0.0
      %786 = vmatpush1.msra.mxu0 0.0
      %787 = vmatprep.subr.mxu0 0.0
      %788 = vmatpush1.msra.mxu0 0.0
      %789 = vmatprep.subr.mxu0 0.0
      %790 = vmatpush1.msra.mxu0 0.0
      %791 = vmatprep.subr.mxu0 0.0
      %792 = vmatpush1.msra.mxu0 0.0
      %793 = vmatprep.subr.mxu0 0.0
      %794 = vmatpush1.msra.mxu0 0.0
      %795 = vmatprep.subr.mxu0 0.0
      %796 = vmatpush1.msra.mxu0 0.0
      %797 = vmatprep.subr.mxu0 0.0
      %798 = vmatpush1.msra.mxu0 0.0
      %799 = vmatprep.subr.mxu0 0.0
      %800 = vmatpush1.msra.mxu0 0.0
      %801 = vmatprep.subr.mxu0 0.0
      %802 = vmatpush1.msra.mxu0 0.0
      %803 = vmatprep.subr.mxu0 0.0
      %804 = vmatpush1.msra.mxu0 0.0
      %805 = vmatprep.subr.mxu0 0.0
      %806 = vmatpush1.msra.mxu0 0.0
      %807 = vmatprep.subr.mxu0 0.0
      %808 = vmatpush1.msra.mxu0 0.0
      %809 = vmatprep.subr.mxu0 0.0
      %810 = vmatpush1.msra.mxu0 0.0
      %811 = vmatprep.subr.mxu0 0.0
      %812 = vmatpush1.msra.mxu0 0.0
      %813 = vmatprep.subr.mxu0 0.0
      %814 = vmatpush1.msra.mxu0 0.0
      %815 = vmatprep.mubr.f32.mxu0 0.0
      %816 = vmatmul.mubr.f32.gmra.mrb[0].mxu0 %v746
      %v817 = vpop.f32.mrb[0].mxu0
      %v818 = vadd.f32 0.0, %v817
      %v819 = vpop.f32.mrb[0].mxu0
      %820 = vmatprep.mubr.f32.mxu0 0.0
      %821 = vmatmul.mubr.f32.gmra.mrb[0].mxu0 %v749
      %v822 = vpop.f32.mrb[0].mxu0
      %v823 = vadd.f32 0.0, %v822
      %v824 = vpop.f32.mrb[0].mxu0
      %825 = vdwg.mxu0
      %v826 = vld [vmem:[#allocation3 + $0x20] sm:$0xff]
      %v827 = vld [vmem:[#allocation3 + $0x48] sm:$0xff]
      %v829 = vsel %vm224, %v826, 0
      %v832 = vsel %vm224, %v827, 0
      %834 = vmatprep.subr.mxu0 0.0
      %835 = vmatpush1.msra.mxu0 %v494
      %836 = vmatprep.subr.mxu0 0.0
      %837 = vmatpush1.msra.mxu0 %v495
      %838 = vmatprep.subr.mxu0 0.0
      %839 = vmatpush1.msra.mxu0 0.0
      %840 = vmatprep.subr.mxu0 0.0
      %841 = vmatpush1.msra.mxu0 0.0
      %842 = vmatprep.subr.mxu0 0.0
      %843 = vmatpush1.msra.mxu0 0.0
      %844 = vmatprep.subr.mxu0 0.0
      %845 = vmatpush1.msra.mxu0 0.0
      %846 = vmatprep.subr.mxu0 0.0
      %847 = vmatpush1.msra.mxu0 0.0
      %848 = vmatprep.subr.mxu0 0.0
      %849 = vmatpush1.msra.mxu0 0.0
      %850 = vmatprep.subr.mxu0 0.0
      %851 = vmatpush1.msra.mxu0 0.0
      %852 = vmatprep.subr.mxu0 0.0
      %853 = vmatpush1.msra.mxu0 0.0
      %854 = vmatprep.subr.mxu0 0.0
      %855 = vmatpush1.msra.mxu0 0.0
      %856 = vmatprep.subr.mxu0 0.0
      %857 = vmatpush1.msra.mxu0 0.0
      %858 = vmatprep.subr.mxu0 0.0
      %859 = vmatpush1.msra.mxu0 0.0
      %860 = vmatprep.subr.mxu0 0.0
      %861 = vmatpush1.msra.mxu0 0.0
      %862 = vmatprep.subr.mxu0 0.0
      %863 = vmatpush1.msra.mxu0 0.0
      %864 = vmatprep.subr.mxu0 0.0
      %865 = vmatpush1.msra.mxu0 0.0
      %866 = vmatprep.subr.mxu0 0.0
      %867 = vmatpush1.msra.mxu0 0.0
      %868 = vmatprep.subr.mxu0 0.0
      %869 = vmatpush1.msra.mxu0 0.0
      %870 = vmatprep.subr.mxu0 0.0
      %871 = vmatpush1.msra.mxu0 0.0
      %872 = vmatprep.subr.mxu0 0.0
      %873 = vmatpush1.msra.mxu0 0.0
      %874 = vmatprep.subr.mxu0 0.0
      %875 = vmatpush1.msra.mxu0 0.0
      %876 = vmatprep.subr.mxu0 0.0
      %877 = vmatpush1.msra.mxu0 0.0
      %878 = vmatprep.subr.mxu0 0.0
      %879 = vmatpush1.msra.mxu0 0.0
      %880 = vmatprep.subr.mxu0 0.0
      %881 = vmatpush1.msra.mxu0 0.0
      %882 = vmatprep.subr.mxu0 0.0
      %883 = vmatpush1.msra.mxu0 0.0
      %884 = vmatprep.subr.mxu0 0.0
      %885 = vmatpush1.msra.mxu0 0.0
      %886 = vmatprep.subr.mxu0 0.0
      %887 = vmatpush1.msra.mxu0 0.0
      %888 = vmatprep.subr.mxu0 0.0
      %889 = vmatpush1.msra.mxu0 0.0
      %890 = vmatprep.subr.mxu0 0.0
      %891 = vmatpush1.msra.mxu0 0.0
      %892 = vmatprep.subr.mxu0 0.0
      %893 = vmatpush1.msra.mxu0 0.0
      %894 = vmatprep.subr.mxu0 0.0
      %895 = vmatpush1.msra.mxu0 0.0
      %896 = vmatprep.subr.mxu0 0.0
      %897 = vmatpush1.msra.mxu0 0.0
      %898 = vmatprep.mubr.f32.mxu0 0.0
      %899 = vmatmul.mubr.f32.gmra.mrb[0].mxu0 %v829
      %v900 = vpop.f32.mrb[0].mxu0
      %v901 = vadd.f32 0.0, %v900
      %v902 = vpop.f32.mrb[0].mxu0
      %903 = vmatprep.mubr.f32.mxu0 0.0
      %904 = vmatmul.mubr.f32.gmra.mrb[0].mxu0 %v832
      %v905 = vpop.f32.mrb[0].mxu0
      %v906 = vadd.f32 0.0, %v905
      %v907 = vpop.f32.mrb[0].mxu0
      %908 = vdwg.mxu0
      %v909 = vmul.f32 %v569, %v569
      %v910 = vmul.f32 %v574, %v574
      %v911 = vsub.f32 %v735, %v909
      %v912 = vsub.f32 %v740, %v910
      %v913 = vmul.f32 %v652, %v652
      %v914 = vmul.f32 %v657, %v657
      %v915 = vsub.f32 %v818, %v913
      %v916 = vsub.f32 %v823, %v914
      %v917 = vmul.f32 %v569, %v652
      %v918 = vmul.f32 %v574, %v657
      %v919 = vsub.f32 %v901, %v917
      %v920 = vsub.f32 %v906, %v918
      %v921 = vmul.f32 %v919, 2.0
      %v922 = vmul.f32 %v920, 2.0
      %v923 = vadd.f32 %v921, 0.0009
      %v924 = vadd.f32 %v922, 0.0009
      %v925 = vadd.f32 %v911, %v915
      %v926 = vadd.f32 %v912, %v916
      %v927 = vadd.f32 %v925, 0.0009
      %v928 = vadd.f32 %v926, 0.0009
      %v929 = vrcp.pop %v927
      %v930 = vrcp.pop %v928
      %v931 = vmul.f32 %v923, %v929
      %v932 = vmul.f32 %v924, %v930
      %v933 = vmul.f32 %v931, %v931
      %v934 = vmul.f32 %v932, %v932
      %v935 = vmul.f32 %v933, %v931
      %v936 = vmul.f32 %v934, %v932
      %s937 = scalar_lea.vmem %s2, 16
      %v938 = vld [vmem:[%s937] sm:$0xff]
      %v939 = vld [vmem:[%s937 + $0x8] sm:$0xff]
      %v940 = vld [vmem:[#allocation2] sm:$0xff]
      %v941 = vld [vmem:[#allocation2 + $0x8] sm:$0xff]
      %v942 = vld [vmem:[#allocation2 + $0x10] sm:$0xff]
      %v943 = vld [vmem:[#allocation2 + $0x18] sm:$0xff]
      %v944 = vld [vmem:[#allocation2 + $0x20] sm:$0xff]
      %v945 = vld [vmem:[#allocation2 + $0x28] sm:$0xff]
      %v946 = vld [vmem:[#allocation2 + $0x30] sm:$0xff]
      %v947 = vld [vmem:[#allocation2 + $0x38] sm:$0xff]
      %v948 = vld [vmem:[#allocation2 + $0x40] sm:$0xff]
      %v949 = vld [vmem:[#allocation2 + $0x48] sm:$0xff]
      %v951 = vsel %vm224, %v938, 0
      %v954 = vsel %vm224, %v939, 0
      %956 = vmatprep.subr.mxu0 %v941
      %957 = vmatpush1.msra.mxu0 %v940
      %958 = vmatprep.subr.mxu0 %v946
      %959 = vmatpush1.msra.mxu0 %v945
      %960 = vmatprep.subr.mxu0 0.0
      %961 = vmatpush1.msra.mxu0 0.0
      %962 = vmatprep.subr.mxu0 0.0
      %963 = vmatpush1.msra.mxu0 0.0
      %964 = vmatprep.subr.mxu0 0.0
      %965 = vmatpush1.msra.mxu0 0.0
      %966 = vmatprep.subr.mxu0 0.0
      %967 = vmatpush1.msra.mxu0 0.0
      %968 = vmatprep.subr.mxu0 0.0
      %969 = vmatpush1.msra.mxu0 0.0
      %970 = vmatprep.subr.mxu0 0.0
      %971 = vmatpush1.msra.mxu0 0.0
      %972 = vmatprep.subr.mxu0 0.0
      %973 = vmatpush1.msra.mxu0 0.0
      %974 = vmatprep.subr.mxu0 0.0
      %975 = vmatpush1.msra.mxu0 0.0
      %976 = vmatprep.subr.mxu0 0.0
      %977 = vmatpush1.msra.mxu0 0.0
      %978 = vmatprep.subr.mxu0 0.0
      %979 = vmatpush1.msra.mxu0 0.0
      %980 = vmatprep.subr.mxu0 0.0
      %981 = vmatpush1.msra.mxu0 0.0
      %982 = vmatprep.subr.mxu0 0.0
      %983 = vmatpush1.msra.mxu0 0.0
      %984 = vmatprep.subr.mxu0 0.0
      %985 = vmatpush1.msra.mxu0 0.0
      %986 = vmatprep.subr.mxu0 0.0
      %987 = vmatpush1.msra.mxu0 0.0
      %988 = vmatprep.subr.mxu0 0.0
      %989 = vmatpush1.msra.mxu0 0.0
      %990 = vmatprep.subr.mxu0 0.0
      %991 = vmatpush1.msra.mxu0 0.0
      %992 = vmatprep.subr.mxu0 0.0
      %993 = vmatpush1.msra.mxu0 0.0
      %994 = vmatprep.subr.mxu0 0.0
      %995 = vmatpush1.msra.mxu0 0.0
      %996 = vmatprep.subr.mxu0 0.0
      %997 = vmatpush1.msra.mxu0 0.0
      %998 = vmatprep.subr.mxu0 0.0
      %999 = vmatpush1.msra.mxu0 0.0
      %1000 = vmatprep.subr.mxu0 0.0
      %1001 = vmatpush1.msra.mxu0 0.0
      %1002 = vmatprep.subr.mxu0 0.0
      %1003 = vmatpush1.msra.mxu0 0.0
      %1004 = vmatprep.subr.mxu0 0.0
      %1005 = vmatpush1.msra.mxu0 0.0
      %1006 = vmatprep.subr.mxu0 0.0
      %1007 = vmatpush1.msra.mxu0 0.0
      %1008 = vmatprep.subr.mxu0 0.0
      %1009 = vmatpush1.msra.mxu0 0.0
      %1010 = vmatprep.subr.mxu0 0.0
      %1011 = vmatpush1.msra.mxu0 0.0
      %1012 = vmatprep.subr.mxu0 0.0
      %1013 = vmatpush1.msra.mxu0 0.0
      %1014 = vmatprep.subr.mxu0 0.0
      %1015 = vmatpush1.msra.mxu0 0.0
      %1016 = vmatprep.subr.mxu0 0.0
      %1017 = vmatpush1.msra.mxu0 0.0
      %1018 = vmatprep.subr.mxu0 0.0
      %1019 = vmatpush1.msra.mxu0 0.0
      %1020 = vmatprep.mubr.f32.mxu0 0.0
      %1021 = vmatmul.mubr.f32.gmra.mrb[0].mxu0 %v951
      %v1022 = vpop.f32.mrb[0].mxu0
      %v1023 = vadd.f32 0.0, %v1022
      %v1024 = vpop.f32.mrb[0].mxu0
      %v1025 = vadd.f32 0.0, %v1024
      %1026 = vmatprep.mubr.f32.mxu0 0.0
      %1027 = vmatmul.mubr.f32.gmra.mrb[0].mxu0 %v954
      %v1028 = vpop.f32.mrb[0].mxu0
      %v1029 = vadd.f32 0.0, %v1028
      %v1030 = vpop.f32.mrb[0].mxu0
      %v1031 = vadd.f32 0.0, %v1030
      %1032 = vdwg.mxu0
      %1033 = vmatprep.subr.mxu0 %v943
      %1034 = vmatpush1.msra.mxu0 %v942
      %1035 = vmatprep.subr.mxu0 %v948
      %1036 = vmatpush1.msra.mxu0 %v947
      %1037 = vmatprep.subr.mxu0 0.0
      %1038 = vmatpush1.msra.mxu0 0.0
      %1039 = vmatprep.subr.mxu0 0.0
      %1040 = vmatpush1.msra.mxu0 0.0
      %1041 = vmatprep.subr.mxu0 0.0
      %1042 = vmatpush1.msra.mxu0 0.0
      %1043 = vmatprep.subr.mxu0 0.0
      %1044 = vmatpush1.msra.mxu0 0.0
      %1045 = vmatprep.subr.mxu0 0.0
      %1046 = vmatpush1.msra.mxu0 0.0
      %1047 = vmatprep.subr.mxu0 0.0
      %1048 = vmatpush1.msra.mxu0 0.0
      %1049 = vmatprep.subr.mxu0 0.0
      %1050 = vmatpush1.msra.mxu0 0.0
      %1051 = vmatprep.subr.mxu0 0.0
      %1052 = vmatpush1.msra.mxu0 0.0
      %1053 = vmatprep.subr.mxu0 0.0
      %1054 = vmatpush1.msra.mxu0 0.0
      %1055 = vmatprep.subr.mxu0 0.0
      %1056 = vmatpush1.msra.mxu0 0.0
      %1057 = vmatprep.subr.mxu0 0.0
      %1058 = vmatpush1.msra.mxu0 0.0
      %1059 = vmatprep.subr.mxu0 0.0
      %1060 = vmatpush1.msra.mxu0 0.0
      %1061 = vmatprep.subr.mxu0 0.0
      %1062 = vmatpush1.msra.mxu0 0.0
      %1063 = vmatprep.subr.mxu0 0.0
      %1064 = vmatpush1.msra.mxu0 0.0
      %1065 = vmatprep.subr.mxu0 0.0
      %1066 = vmatpush1.msra.mxu0 0.0
      %1067 = vmatprep.subr.mxu0 0.0
      %1068 = vmatpush1.msra.mxu0 0.0
      %1069 = vmatprep.subr.mxu0 0.0
      %1070 = vmatpush1.msra.mxu0 0.0
      %1071 = vmatprep.subr.mxu0 0.0
      %1072 = vmatpush1.msra.mxu0 0.0
      %1073 = vmatprep.subr.mxu0 0.0
      %1074 = vmatpush1.msra.mxu0 0.0
      %1075 = vmatprep.subr.mxu0 0.0
      %1076 = vmatpush1.msra.mxu0 0.0
      %1077 = vmatprep.subr.mxu0 0.0
      %1078 = vmatpush1.msra.mxu0 0.0
      %1079 = vmatprep.subr.mxu0 0.0
      %1080 = vmatpush1.msra.mxu0 0.0
      %1081 = vmatprep.subr.mxu0 0.0
      %1082 = vmatpush1.msra.mxu0 0.0
      %1083 = vmatprep.subr.mxu0 0.0
      %1084 = vmatpush1.msra.mxu0 0.0
      %1085 = vmatprep.subr.mxu0 0.0
      %1086 = vmatpush1.msra.mxu0 0.0
      %1087 = vmatprep.subr.mxu0 0.0
      %1088 = vmatpush1.msra.mxu0 0.0
      %1089 = vmatprep.subr.mxu0 0.0
      %1090 = vmatpush1.msra.mxu0 0.0
      %1091 = vmatprep.subr.mxu0 0.0
      %1092 = vmatpush1.msra.mxu0 0.0
      %1093 = vmatprep.subr.mxu0 0.0
      %1094 = vmatpush1.msra.mxu0 0.0
      %1095 = vmatprep.subr.mxu0 0.0
      %1096 = vmatpush1.msra.mxu0 0.0
      %1097 = vmatprep.mubr.f32.mxu0 0.0
      %1098 = vmatmul.mubr.f32.gmra.mrb[0].mxu0 %v951
      %v1099 = vpop.f32.mrb[0].mxu0
      %v1100 = vadd.f32 0.0, %v1099
      %v1101 = vpop.f32.mrb[0].mxu0
      %v1102 = vadd.f32 0.0, %v1101
      %1103 = vmatprep.mubr.f32.mxu0 0.0
      %1104 = vmatmul.mubr.f32.gmra.mrb[0].mxu0 %v954
      %v1105 = vpop.f32.mrb[0].mxu0
      %v1106 = vadd.f32 0.0, %v1105
      %v1107 = vpop.f32.mrb[0].mxu0
      %v1108 = vadd.f32 0.0, %v1107
      %1109 = vdwg.mxu0
      %1110 = vmatprep.subr.mxu0 0.0
      %1111 = vmatpush1.msra.mxu0 %v944
      %1112 = vmatprep.subr.mxu0 0.0
      %1113 = vmatpush1.msra.mxu0 %v949
      %1114 = vmatprep.subr.mxu0 0.0
      %1115 = vmatpush1.msra.mxu0 0.0
      %1116 = vmatprep.subr.mxu0 0.0
      %1117 = vmatpush1.msra.mxu0 0.0
      %1118 = vmatprep.subr.mxu0 0.0
      %1119 = vmatpush1.msra.mxu0 0.0
      %1120 = vmatprep.subr.mxu0 0.0
      %1121 = vmatpush1.msra.mxu0 0.0
      %1122 = vmatprep.subr.mxu0 0.0
      %1123 = vmatpush1.msra.mxu0 0.0
      %1124 = vmatprep.subr.mxu0 0.0
      %1125 = vmatpush1.msra.mxu0 0.0
      %1126 = vmatprep.subr.mxu0 0.0
      %1127 = vmatpush1.msra.mxu0 0.0
      %1128 = vmatprep.subr.mxu0 0.0
      %1129 = vmatpush1.msra.mxu0 0.0
      %1130 = vmatprep.subr.mxu0 0.0
      %1131 = vmatpush1.msra.mxu0 0.0
      %1132 = vmatprep.subr.mxu0 0.0
      %1133 = vmatpush1.msra.mxu0 0.0
      %1134 = vmatprep.subr.mxu0 0.0
      %1135 = vmatpush1.msra.mxu0 0.0
      %1136 = vmatprep.subr.mxu0 0.0
      %1137 = vmatpush1.msra.mxu0 0.0
      %1138 = vmatprep.subr.mxu0 0.0
      %1139 = vmatpush1.msra.mxu0 0.0
      %1140 = vmatprep.subr.mxu0 0.0
      %1141 = vmatpush1.msra.mxu0 0.0
      %1142 = vmatprep.subr.mxu0 0.0
      %1143 = vmatpush1.msra.mxu0 0.0
      %1144 = vmatprep.subr.mxu0 0.0
      %1145 = vmatpush1.msra.mxu0 0.0
      %1146 = vmatprep.subr.mxu0 0.0
      %1147 = vmatpush1.msra.mxu0 0.0
      %1148 = vmatprep.subr.mxu0 0.0
      %1149 = vmatpush1.msra.mxu0 0.0
      %1150 = vmatprep.subr.mxu0 0.0
      %1151 = vmatpush1.msra.mxu0 0.0
      %1152 = vmatprep.subr.mxu0 0.0
      %1153 = vmatpush1.msra.mxu0 0.0
      %1154 = vmatprep.subr.mxu0 0.0
      %1155 = vmatpush1.msra.mxu0 0.0
      %1156 = vmatprep.subr.mxu0 0.0
      %1157 = vmatpush1.msra.mxu0 0.0
      %1158 = vmatprep.subr.mxu0 0.0
      %1159 = vmatpush1.msra.mxu0 0.0
      %1160 = vmatprep.subr.mxu0 0.0
      %1161 = vmatpush1.msra.mxu0 0.0
      %1162 = vmatprep.subr.mxu0 0.0
      %1163 = vmatpush1.msra.mxu0 0.0
      %1164 = vmatprep.subr.mxu0 0.0
      %1165 = vmatpush1.msra.mxu0 0.0
      %1166 = vmatprep.subr.mxu0 0.0
      %1167 = vmatpush1.msra.mxu0 0.0
      %1168 = vmatprep.subr.mxu0 0.0
      %1169 = vmatpush1.msra.mxu0 0.0
      %1170 = vmatprep.subr.mxu0 0.0
      %1171 = vmatpush1.msra.mxu0 0.0
      %1172 = vmatprep.subr.mxu0 0.0
      %1173 = vmatpush1.msra.mxu0 0.0
      %1174 = vmatprep.mubr.f32.mxu0 0.0
      %1175 = vmatmul.mubr.f32.gmra.mrb[0].mxu0 %v951
      %v1176 = vpop.f32.mrb[0].mxu0
      %v1177 = vadd.f32 0.0, %v1176
      %v1178 = vpop.f32.mrb[0].mxu0
      %1179 = vmatprep.mubr.f32.mxu0 0.0
      %1180 = vmatmul.mubr.f32.gmra.mrb[0].mxu0 %v954
      %v1181 = vpop.f32.mrb[0].mxu0
      %v1182 = vadd.f32 0.0, %v1181
      %v1183 = vpop.f32.mrb[0].mxu0
      %1184 = vdwg.mxu0
      %1185 = vst [vmem:[#allocation3] sm:$0xff] %v1023
      %1186 = vst [vmem:[#allocation3 + $0x8] sm:$0xff] %v1025
      %1187 = vst [vmem:[#allocation3 + $0x10] sm:$0xff] %v1100
      %1188 = vst [vmem:[#allocation3 + $0x18] sm:$0xff] %v1102
      %1189 = vst [vmem:[#allocation3 + $0x20] sm:$0xff] %v1177
      %1190 = vst [vmem:[#allocation3 + $0x28] sm:$0xff] %v1029
      %1191 = vst [vmem:[#allocation3 + $0x30] sm:$0xff] %v1031
      %1192 = vst [vmem:[#allocation3 + $0x38] sm:$0xff] %v1106
      %1193 = vst [vmem:[#allocation3 + $0x40] sm:$0xff] %v1108
      %1194 = vst [vmem:[#allocation3 + $0x48] sm:$0xff] %v1182
      %v1195 = vld [vmem:[#allocation3] sm:$0xff]
      %v1196 = vld [vmem:[#allocation3 + $0x28] sm:$0xff]
      %s1197 = scalar_lea.vmem %s3, 16
      %v1198 = vld [vmem:[%s1197] sm:$0xff]
      %v1199 = vld [vmem:[%s1197 + $0x8] sm:$0xff]
      %v1201 = vsel %vm224, %v1195, 0
      %v1204 = vsel %vm224, %v1196, 0
      %1206 = vmatprep.subr.mxu0 0.0
      %1207 = vmatpush1.msra.mxu0 %v1198
      %1208 = vmatprep.subr.mxu0 0.0
      %1209 = vmatpush1.msra.mxu0 %v1199
      %1210 = vmatprep.subr.mxu0 0.0
      %1211 = vmatpush1.msra.mxu0 0.0
      %1212 = vmatprep.subr.mxu0 0.0
      %1213 = vmatpush1.msra.mxu0 0.0
      %1214 = vmatprep.subr.mxu0 0.0
      %1215 = vmatpush1.msra.mxu0 0.0
      %1216 = vmatprep.subr.mxu0 0.0
      %1217 = vmatpush1.msra.mxu0 0.0
      %1218 = vmatprep.subr.mxu0 0.0
      %1219 = vmatpush1.msra.mxu0 0.0
      %1220 = vmatprep.subr.mxu0 0.0
      %1221 = vmatpush1.msra.mxu0 0.0
      %1222 = vmatprep.subr.mxu0 0.0
      %1223 = vmatpush1.msra.mxu0 0.0
      %1224 = vmatprep.subr.mxu0 0.0
      %1225 = vmatpush1.msra.mxu0 0.0
      %1226 = vmatprep.subr.mxu0 0.0
      %1227 = vmatpush1.msra.mxu0 0.0
      %1228 = vmatprep.subr.mxu0 0.0
      %1229 = vmatpush1.msra.mxu0 0.0
      %1230 = vmatprep.subr.mxu0 0.0
      %1231 = vmatpush1.msra.mxu0 0.0
      %1232 = vmatprep.subr.mxu0 0.0
      %1233 = vmatpush1.msra.mxu0 0.0
      %1234 = vmatprep.subr.mxu0 0.0
      %1235 = vmatpush1.msra.mxu0 0.0
      %1236 = vmatprep.subr.mxu0 0.0
      %1237 = vmatpush1.msra.mxu0 0.0
      %1238 = vmatprep.subr.mxu0 0.0
      %1239 = vmatpush1.msra.mxu0 0.0
      %1240 = vmatprep.subr.mxu0 0.0
      %1241 = vmatpush1.msra.mxu0 0.0
      %1242 = vmatprep.subr.mxu0 0.0
      %1243 = vmatpush1.msra.mxu0 0.0
      %1244 = vmatprep.subr.mxu0 0.0
      %1245 = vmatpush1.msra.mxu0 0.0
      %1246 = vmatprep.subr.mxu0 0.0
      %1247 = vmatpush1.msra.mxu0 0.0
      %1248 = vmatprep.subr.mxu0 0.0
      %1249 = vmatpush1.msra.mxu0 0.0
      %1250 = vmatprep.subr.mxu0 0.0
      %1251 = vmatpush1.msra.mxu0 0.0
      %1252 = vmatprep.subr.mxu0 0.0
      %1253 = vmatpush1.msra.mxu0 0.0
      %1254 = vmatprep.subr.mxu0 0.0
      %1255 = vmatpush1.msra.mxu0 0.0
      %1256 = vmatprep.subr.mxu0 0.0
      %1257 = vmatpush1.msra.mxu0 0.0
      %1258 = vmatprep.subr.mxu0 0.0
      %1259 = vmatpush1.msra.mxu0 0.0
      %1260 = vmatprep.subr.mxu0 0.0
      %1261 = vmatpush1.msra.mxu0 0.0
      %1262 = vmatprep.subr.mxu0 0.0
      %1263 = vmatpush1.msra.mxu0 0.0
      %1264 = vmatprep.subr.mxu0 0.0
      %1265 = vmatpush1.msra.mxu0 0.0
      %1266 = vmatprep.subr.mxu0 0.0
      %1267 = vmatpush1.msra.mxu0 0.0
      %1268 = vmatprep.subr.mxu0 0.0
      %1269 = vmatpush1.msra.mxu0 0.0
      %1270 = vmatprep.mubr.f32.mxu0 0.0
      %1271 = vmatmul.mubr.f32.gmra.mrb[0].mxu0 %v1201
      %v1272 = vpop.f32.mrb[0].mxu0
      %v1273 = vadd.f32 0.0, %v1272
      %v1274 = vpop.f32.mrb[0].mxu0
      %1275 = vmatprep.mubr.f32.mxu0 0.0
      %1276 = vmatmul.mubr.f32.gmra.mrb[0].mxu0 %v1204
      %v1277 = vpop.f32.mrb[0].mxu0
      %v1278 = vadd.f32 0.0, %v1277
      %v1279 = vpop.f32.mrb[0].mxu0
      %1280 = vdwg.mxu0
      %v1281 = vld [vmem:[#allocation3 + $0x8] sm:$0xff]
      %v1282 = vld [vmem:[#allocation3 + $0x30] sm:$0xff]
      %v1284 = vsel %vm224, %v1281, 0
      %v1287 = vsel %vm224, %v1282, 0
      %1289 = vmatprep.subr.mxu0 0.0
      %1290 = vmatpush1.msra.mxu0 %v1198
      %1291 = vmatprep.subr.mxu0 0.0
      %1292 = vmatpush1.msra.mxu0 %v1199
      %1293 = vmatprep.subr.mxu0 0.0
      %1294 = vmatpush1.msra.mxu0 0.0
      %1295 = vmatprep.subr.mxu0 0.0
      %1296 = vmatpush1.msra.mxu0 0.0
      %1297 = vmatprep.subr.mxu0 0.0
      %1298 = vmatpush1.msra.mxu0 0.0
      %1299 = vmatprep.subr.mxu0 0.0
      %1300 = vmatpush1.msra.mxu0 0.0
      %1301 = vmatprep.subr.mxu0 0.0
      %1302 = vmatpush1.msra.mxu0 0.0
      %1303 = vmatprep.subr.mxu0 0.0
      %1304 = vmatpush1.msra.mxu0 0.0
      %1305 = vmatprep.subr.mxu0 0.0
      %1306 = vmatpush1.msra.mxu0 0.0
      %1307 = vmatprep.subr.mxu0 0.0
      %1308 = vmatpush1.msra.mxu0 0.0
      %1309 = vmatprep.subr.mxu0 0.0
      %1310 = vmatpush1.msra.mxu0 0.0
      %1311 = vmatprep.subr.mxu0 0.0
      %1312 = vmatpush1.msra.mxu0 0.0
      %1313 = vmatprep.subr.mxu0 0.0
      %1314 = vmatpush1.msra.mxu0 0.0
      %1315 = vmatprep.subr.mxu0 0.0
      %1316 = vmatpush1.msra.mxu0 0.0
      %1317 = vmatprep.subr.mxu0 0.0
      %1318 = vmatpush1.msra.mxu0 0.0
      %1319 = vmatprep.subr.mxu0 0.0
      %1320 = vmatpush1.msra.mxu0 0.0
      %1321 = vmatprep.subr.mxu0 0.0
      %1322 = vmatpush1.msra.mxu0 0.0
      %1323 = vmatprep.subr.mxu0 0.0
      %1324 = vmatpush1.msra.mxu0 0.0
      %1325 = vmatprep.subr.mxu0 0.0
      %1326 = vmatpush1.msra.mxu0 0.0
      %1327 = vmatprep.subr.mxu0 0.0
      %1328 = vmatpush1.msra.mxu0 0.0
      %1329 = vmatprep.subr.mxu0 0.0
      %1330 = vmatpush1.msra.mxu0 0.0
      %1331 = vmatprep.subr.mxu0 0.0
      %1332 = vmatpush1.msra.mxu0 0.0
      %1333 = vmatprep.subr.mxu0 0.0
      %1334 = vmatpush1.msra.mxu0 0.0
      %1335 = vmatprep.subr.mxu0 0.0
      %1336 = vmatpush1.msra.mxu0 0.0
      %1337 = vmatprep.subr.mxu0 0.0
      %1338 = vmatpush1.msra.mxu0 0.0
      %1339 = vmatprep.subr.mxu0 0.0
      %1340 = vmatpush1.msra.mxu0 0.0
      %1341 = vmatprep.subr.mxu0 0.0
      %1342 = vmatpush1.msra.mxu0 0.0
      %1343 = vmatprep.subr.mxu0 0.0
      %1344 = vmatpush1.msra.mxu0 0.0
      %1345 = vmatprep.subr.mxu0 0.0
      %1346 = vmatpush1.msra.mxu0 0.0
      %1347 = vmatprep.subr.mxu0 0.0
      %1348 = vmatpush1.msra.mxu0 0.0
      %1349 = vmatprep.subr.mxu0 0.0
      %1350 = vmatpush1.msra.mxu0 0.0
      %1351 = vmatprep.subr.mxu0 0.0
      %1352 = vmatpush1.msra.mxu0 0.0
      %1353 = vmatprep.mubr.f32.mxu0 0.0
      %1354 = vmatmul.mubr.f32.gmra.mrb[0].mxu0 %v1284
      %v1355 = vpop.f32.mrb[0].mxu0
      %v1356 = vadd.f32 0.0, %v1355
      %v1357 = vpop.f32.mrb[0].mxu0
      %1358 = vmatprep.mubr.f32.mxu0 0.0
      %1359 = vmatmul.mubr.f32.gmra.mrb[0].mxu0 %v1287
      %v1360 = vpop.f32.mrb[0].mxu0
      %v1361 = vadd.f32 0.0, %v1360
      %v1362 = vpop.f32.mrb[0].mxu0
      %1363 = vdwg.mxu0
      %v1364 = vld [vmem:[#allocation3 + $0x10] sm:$0xff]
      %v1365 = vld [vmem:[#allocation3 + $0x38] sm:$0xff]
      %v1367 = vsel %vm224, %v1364, 0
      %v1370 = vsel %vm224, %v1365, 0
      %1372 = vmatprep.subr.mxu0 0.0
      %1373 = vmatpush1.msra.mxu0 %v1198
      %1374 = vmatprep.subr.mxu0 0.0
      %1375 = vmatpush1.msra.mxu0 %v1199
      %1376 = vmatprep.subr.mxu0 0.0
      %1377 = vmatpush1.msra.mxu0 0.0
      %1378 = vmatprep.subr.mxu0 0.0
      %1379 = vmatpush1.msra.mxu0 0.0
      %1380 = vmatprep.subr.mxu0 0.0
      %1381 = vmatpush1.msra.mxu0 0.0
      %1382 = vmatprep.subr.mxu0 0.0
      %1383 = vmatpush1.msra.mxu0 0.0
      %1384 = vmatprep.subr.mxu0 0.0
      %1385 = vmatpush1.msra.mxu0 0.0
      %1386 = vmatprep.subr.mxu0 0.0
      %1387 = vmatpush1.msra.mxu0 0.0
      %1388 = vmatprep.subr.mxu0 0.0
      %1389 = vmatpush1.msra.mxu0 0.0
      %1390 = vmatprep.subr.mxu0 0.0
      %1391 = vmatpush1.msra.mxu0 0.0
      %1392 = vmatprep.subr.mxu0 0.0
      %1393 = vmatpush1.msra.mxu0 0.0
      %1394 = vmatprep.subr.mxu0 0.0
      %1395 = vmatpush1.msra.mxu0 0.0
      %1396 = vmatprep.subr.mxu0 0.0
      %1397 = vmatpush1.msra.mxu0 0.0
      %1398 = vmatprep.subr.mxu0 0.0
      %1399 = vmatpush1.msra.mxu0 0.0
      %1400 = vmatprep.subr.mxu0 0.0
      %1401 = vmatpush1.msra.mxu0 0.0
      %1402 = vmatprep.subr.mxu0 0.0
      %1403 = vmatpush1.msra.mxu0 0.0
      %1404 = vmatprep.subr.mxu0 0.0
      %1405 = vmatpush1.msra.mxu0 0.0
      %1406 = vmatprep.subr.mxu0 0.0
      %1407 = vmatpush1.msra.mxu0 0.0
      %1408 = vmatprep.subr.mxu0 0.0
      %1409 = vmatpush1.msra.mxu0 0.0
      %1410 = vmatprep.subr.mxu0 0.0
      %1411 = vmatpush1.msra.mxu0 0.0
      %1412 = vmatprep.subr.mxu0 0.0
      %1413 = vmatpush1.msra.mxu0 0.0
      %1414 = vmatprep.subr.mxu0 0.0
      %1415 = vmatpush1.msra.mxu0 0.0
      %1416 = vmatprep.subr.mxu0 0.0
      %1417 = vmatpush1.msra.mxu0 0.0
      %1418 = vmatprep.subr.mxu0 0.0
      %1419 = vmatpush1.msra.mxu0 0.0
      %1420 = vmatprep.subr.mxu0 0.0
      %1421 = vmatpush1.msra.mxu0 0.0
      %1422 = vmatprep.subr.mxu0 0.0
      %1423 = vmatpush1.msra.mxu0 0.0
      %1424 = vmatprep.subr.mxu0 0.0
      %1425 = vmatpush1.msra.mxu0 0.0
      %1426 = vmatprep.subr.mxu0 0.0
      %1427 = vmatpush1.msra.mxu0 0.0
      %1428 = vmatprep.subr.mxu0 0.0
      %1429 = vmatpush1.msra.mxu0 0.0
      %1430 = vmatprep.subr.mxu0 0.0
      %1431 = vmatpush1.msra.mxu0 0.0
      %1432 = vmatprep.subr.mxu0 0.0
      %1433 = vmatpush1.msra.mxu0 0.0
      %1434 = vmatprep.subr.mxu0 0.0
      %1435 = vmatpush1.msra.mxu0 0.0
      %1436 = vmatprep.mubr.f32.mxu0 0.0
      %1437 = vmatmul.mubr.f32.gmra.mrb[0].mxu0 %v1367
      %v1438 = vpop.f32.mrb[0].mxu0
      %v1439 = vadd.f32 0.0, %v1438
      %v1440 = vpop.f32.mrb[0].mxu0
      %1441 = vmatprep.mubr.f32.mxu0 0.0
      %1442 = vmatmul.mubr.f32.gmra.mrb[0].mxu0 %v1370
      %v1443 = vpop.f32.mrb[0].mxu0
      %v1444 = vadd.f32 0.0, %v1443
      %v1445 = vpop.f32.mrb[0].mxu0
      %1446 = vdwg.mxu0
      %v1447 = vld [vmem:[#allocation3 + $0x18] sm:$0xff]
      %v1448 = vld [vmem:[#allocation3 + $0x40] sm:$0xff]
      %v1450 = vsel %vm224, %v1447, 0
      %v1453 = vsel %vm224, %v1448, 0
      %1455 = vmatprep.subr.mxu0 0.0
      %1456 = vmatpush1.msra.mxu0 %v1198
      %1457 = vmatprep.subr.mxu0 0.0
      %1458 = vmatpush1.msra.mxu0 %v1199
      %1459 = vmatprep.subr.mxu0 0.0
      %1460 = vmatpush1.msra.mxu0 0.0
      %1461 = vmatprep.subr.mxu0 0.0
      %1462 = vmatpush1.msra.mxu0 0.0
      %1463 = vmatprep.subr.mxu0 0.0
      %1464 = vmatpush1.msra.mxu0 0.0
      %1465 = vmatprep.subr.mxu0 0.0
      %1466 = vmatpush1.msra.mxu0 0.0
      %1467 = vmatprep.subr.mxu0 0.0
      %1468 = vmatpush1.msra.mxu0 0.0
      %1469 = vmatprep.subr.mxu0 0.0
      %1470 = vmatpush1.msra.mxu0 0.0
      %1471 = vmatprep.subr.mxu0 0.0
      %1472 = vmatpush1.msra.mxu0 0.0
      %1473 = vmatprep.subr.mxu0 0.0
      %1474 = vmatpush1.msra.mxu0 0.0
      %1475 = vmatprep.subr.mxu0 0.0
      %1476 = vmatpush1.msra.mxu0 0.0
      %1477 = vmatprep.subr.mxu0 0.0
      %1478 = vmatpush1.msra.mxu0 0.0
      %1479 = vmatprep.subr.mxu0 0.0
      %1480 = vmatpush1.msra.mxu0 0.0
      %1481 = vmatprep.subr.mxu0 0.0
      %1482 = vmatpush1.msra.mxu0 0.0
      %1483 = vmatprep.subr.mxu0 0.0
      %1484 = vmatpush1.msra.mxu0 0.0
      %1485 = vmatprep.subr.mxu0 0.0
      %1486 = vmatpush1.msra.mxu0 0.0
      %1487 = vmatprep.subr.mxu0 0.0
      %1488 = vmatpush1.msra.mxu0 0.0
      %1489 = vmatprep.subr.mxu0 0.0
      %1490 = vmatpush1.msra.mxu0 0.0
      %1491 = vmatprep.subr.mxu0 0.0
      %1492 = vmatpush1.msra.mxu0 0.0
      %1493 = vmatprep.subr.mxu0 0.0
      %1494 = vmatpush1.msra.mxu0 0.0
      %1495 = vmatprep.subr.mxu0 0.0
      %1496 = vmatpush1.msra.mxu0 0.0
      %1497 = vmatprep.subr.mxu0 0.0
      %1498 = vmatpush1.msra.mxu0 0.0
      %1499 = vmatprep.subr.mxu0 0.0
      %1500 = vmatpush1.msra.mxu0 0.0
      %1501 = vmatprep.subr.mxu0 0.0
      %1502 = vmatpush1.msra.mxu0 0.0
      %1503 = vmatprep.subr.mxu0 0.0
      %1504 = vmatpush1.msra.mxu0 0.0
      %1505 = vmatprep.subr.mxu0 0.0
      %1506 = vmatpush1.msra.mxu0 0.0
      %1507 = vmatprep.subr.mxu0 0.0
      %1508 = vmatpush1.msra.mxu0 0.0
      %1509 = vmatprep.subr.mxu0 0.0
      %1510 = vmatpush1.msra.mxu0 0.0
      %1511 = vmatprep.subr.mxu0 0.0
      %1512 = vmatpush1.msra.mxu0 0.0
      %1513 = vmatprep.subr.mxu0 0.0
      %1514 = vmatpush1.msra.mxu0 0.0
      %1515 = vmatprep.subr.mxu0 0.0
      %1516 = vmatpush1.msra.mxu0 0.0
      %1517 = vmatprep.subr.mxu0 0.0
      %1518 = vmatpush1.msra.mxu0 0.0
      %1519 = vmatprep.mubr.f32.mxu0 0.0
      %1520 = vmatmul.mubr.f32.gmra.mrb[0].mxu0 %v1450
      %v1521 = vpop.f32.mrb[0].mxu0
      %v1522 = vadd.f32 0.0, %v1521
      %v1523 = vpop.f32.mrb[0].mxu0
      %1524 = vmatprep.mubr.f32.mxu0 0.0
      %1525 = vmatmul.mubr.f32.gmra.mrb[0].mxu0 %v1453
      %v1526 = vpop.f32.mrb[0].mxu0
      %v1527 = vadd.f32 0.0, %v1526
      %v1528 = vpop.f32.mrb[0].mxu0
      %1529 = vdwg.mxu0
      %v1530 = vld [vmem:[#allocation3 + $0x20] sm:$0xff]
      %v1531 = vld [vmem:[#allocation3 + $0x48] sm:$0xff]
      %v1533 = vsel %vm224, %v1530, 0
      %v1536 = vsel %vm224, %v1531, 0
      %1538 = vmatprep.subr.mxu0 0.0
      %1539 = vmatpush1.msra.mxu0 %v1198
      %1540 = vmatprep.subr.mxu0 0.0
      %1541 = vmatpush1.msra.mxu0 %v1199
      %1542 = vmatprep.subr.mxu0 0.0
      %1543 = vmatpush1.msra.mxu0 0.0
      %1544 = vmatprep.subr.mxu0 0.0
      %1545 = vmatpush1.msra.mxu0 0.0
      %1546 = vmatprep.subr.mxu0 0.0
      %1547 = vmatpush1.msra.mxu0 0.0
      %1548 = vmatprep.subr.mxu0 0.0
      %1549 = vmatpush1.msra.mxu0 0.0
      %1550 = vmatprep.subr.mxu0 0.0
      %1551 = vmatpush1.msra.mxu0 0.0
      %1552 = vmatprep.subr.mxu0 0.0
      %1553 = vmatpush1.msra.mxu0 0.0
      %1554 = vmatprep.subr.mxu0 0.0
      %1555 = vmatpush1.msra.mxu0 0.0
      %1556 = vmatprep.subr.mxu0 0.0
      %1557 = vmatpush1.msra.mxu0 0.0
      %1558 = vmatprep.subr.mxu0 0.0
      %1559 = vmatpush1.msra.mxu0 0.0
      %1560 = vmatprep.subr.mxu0 0.0
      %1561 = vmatpush1.msra.mxu0 0.0
      %1562 = vmatprep.subr.mxu0 0.0
      %1563 = vmatpush1.msra.mxu0 0.0
      %1564 = vmatprep.subr.mxu0 0.0
      %1565 = vmatpush1.msra.mxu0 0.0
      %1566 = vmatprep.subr.mxu0 0.0
      %1567 = vmatpush1.msra.mxu0 0.0
      %1568 = vmatprep.subr.mxu0 0.0
      %1569 = vmatpush1.msra.mxu0 0.0
      %1570 = vmatprep.subr.mxu0 0.0
      %1571 = vmatpush1.msra.mxu0 0.0
      %1572 = vmatprep.subr.mxu0 0.0
      %1573 = vmatpush1.msra.mxu0 0.0
      %1574 = vmatprep.subr.mxu0 0.0
      %1575 = vmatpush1.msra.mxu0 0.0
      %1576 = vmatprep.subr.mxu0 0.0
      %1577 = vmatpush1.msra.mxu0 0.0
      %1578 = vmatprep.subr.mxu0 0.0
      %1579 = vmatpush1.msra.mxu0 0.0
      %1580 = vmatprep.subr.mxu0 0.0
      %1581 = vmatpush1.msra.mxu0 0.0
      %1582 = vmatprep.subr.mxu0 0.0
      %1583 = vmatpush1.msra.mxu0 0.0
      %1584 = vmatprep.subr.mxu0 0.0
      %1585 = vmatpush1.msra.mxu0 0.0
      %1586 = vmatprep.subr.mxu0 0.0
      %1587 = vmatpush1.msra.mxu0 0.0
      %1588 = vmatprep.subr.mxu0 0.0
      %1589 = vmatpush1.msra.mxu0 0.0
      %1590 = vmatprep.subr.mxu0 0.0
      %1591 = vmatpush1.msra.mxu0 0.0
      %1592 = vmatprep.subr.mxu0 0.0
      %1593 = vmatpush1.msra.mxu0 0.0
      %1594 = vmatprep.subr.mxu0 0.0
      %1595 = vmatpush1.msra.mxu0 0.0
      %1596 = vmatprep.subr.mxu0 0.0
      %1597 = vmatpush1.msra.mxu0 0.0
      %1598 = vmatprep.subr.mxu0 0.0
      %1599 = vmatpush1.msra.mxu0 0.0
      %1600 = vmatprep.subr.mxu0 0.0
      %1601 = vmatpush1.msra.mxu0 0.0
      %1602 = vmatprep.mubr.f32.mxu0 0.0
      %1603 = vmatmul.mubr.f32.gmra.mrb[0].mxu0 %v1533
      %v1604 = vpop.f32.mrb[0].mxu0
      %v1605 = vadd.f32 0.0, %v1604
      %v1606 = vpop.f32.mrb[0].mxu0
      %1607 = vmatprep.mubr.f32.mxu0 0.0
      %1608 = vmatmul.mubr.f32.gmra.mrb[0].mxu0 %v1536
      %v1609 = vpop.f32.mrb[0].mxu0
      %v1610 = vadd.f32 0.0, %v1609
      %v1611 = vpop.f32.mrb[0].mxu0
      %1612 = vdwg.mxu0
      %v1613 = vmul.f32 %v1273, %v1273
      %v1614 = vmul.f32 %v1278, %v1278
      %v1615 = vsub.f32 %v1439, %v1613
      %v1616 = vsub.f32 %v1444, %v1614
      %v1617 = vmul.f32 %v1356, %v1356
      %v1618 = vmul.f32 %v1361, %v1361
      %v1619 = vsub.f32 %v1522, %v1617
      %v1620 = vsub.f32 %v1527, %v1618
      %v1621 = vmul.f32 %v1273, %v1356
      %v1622 = vmul.f32 %v1278, %v1361
      %v1623 = vsub.f32 %v1605, %v1621
      %v1624 = vsub.f32 %v1610, %v1622
      %v1625 = vmul.f32 %v1623, 2.0
      %v1626 = vmul.f32 %v1624, 2.0
      %v1627 = vadd.f32 %v1625, 0.0009
      %v1628 = vadd.f32 %v1626, 0.0009
      %v1629 = vadd.f32 %v1615, %v1619
      %v1630 = vadd.f32 %v1616, %v1620
      %v1631 = vadd.f32 %v1629, 0.0009
      %v1632 = vadd.f32 %v1630, 0.0009
      %v1633 = vrcp.pop %v1631
      %v1634 = vrcp.pop %v1632
      %v1635 = vmul.f32 %v1627, %v1633
      %v1636 = vmul.f32 %v1628, %v1634
      %v1637 = vmul.f32 %v1635, %v1635
      %v1638 = vmul.f32 %v1636, %v1636
      %v1639 = vmul.f32 %v935, %v1637
      %v1640 = vmul.f32 %v936, %v1638
      %s1641 = scalar_lea.vmem %s205, 16
      %v1642 = vld [vmem:[%s1641] sm:$0xff]
      %v1643 = vld [vmem:[%s1641 + $0x8] sm:$0xff]
      %s1644 = scalar_lea.vmem %s210, 16
      %v1645 = vld [vmem:[%s1644] sm:$0xff]
      %v1646 = vld [vmem:[%s1644 + $0x8] sm:$0xff]
      %v1647 = vmul.f32 %v1642, %v1642
      %v1648 = vmul.f32 %v1643, %v1643
      %v1649 = vmul.f32 %v1645, %v1645
      %v1650 = vmul.f32 %v1646, %v1646
      %v1651 = vmul.f32 %v1642, %v1645
      %v1652 = vmul.f32 %v1643, %v1646
      %1653 = vst.msk [vmem:[#allocation2] sm:$0xff] %vm224, %v1642
      %1654 = vst.msk [vmem:[#allocation2 + $0x28] sm:$0xff] %vm224, %v1643
      %1655 = vst.msk [vmem:[#allocation2 + $0x8] sm:$0xff] %vm224, %v1645
      %1656 = vst.msk [vmem:[#allocation2 + $0x30] sm:$0xff] %vm224, %v1646
      %1657 = vst.msk [vmem:[#allocation2 + $0x10] sm:$0xff] %vm224, %v1647
      %1658 = vst.msk [vmem:[#allocation2 + $0x38] sm:$0xff] %vm224, %v1648
      %1659 = vst.msk [vmem:[#allocation2 + $0x18] sm:$0xff] %vm224, %v1649
      %1660 = vst.msk [vmem:[#allocation2 + $0x40] sm:$0xff] %vm224, %v1650
      %1661 = vst.msk [vmem:[#allocation2 + $0x20] sm:$0xff] %vm224, %v1651
      %1662 = vst.msk [vmem:[#allocation2 + $0x48] sm:$0xff] %vm224, %v1652
      %v1663 = vld [vmem:[%s937] sm:$0xff]
      %v1664 = vld [vmem:[%s937 + $0x8] sm:$0xff]
      %v1665 = vld [vmem:[#allocation2] sm:$0xff]
      %v1666 = vld [vmem:[#allocation2 + $0x8] sm:$0xff]
      %v1667 = vld [vmem:[#allocation2 + $0x10] sm:$0xff]
      %v1668 = vld [vmem:[#allocation2 + $0x18] sm:$0xff]
      %v1669 = vld [vmem:[#allocation2 + $0x20] sm:$0xff]
      %v1670 = vld [vmem:[#allocation2 + $0x28] sm:$0xff]
      %v1671 = vld [vmem:[#allocation2 + $0x30] sm:$0xff]
      %v1672 = vld [vmem:[#allocation2 + $0x38] sm:$0xff]
      %v1673 = vld [vmem:[#allocation2 + $0x40] sm:$0xff]
      %v1674 = vld [vmem:[#allocation2 + $0x48] sm:$0xff]
      %v1676 = vsel %vm224, %v1663, 0
      %v1679 = vsel %vm224, %v1664, 0
      %1681 = vmatprep.subr.mxu0 %v1666
      %1682 = vmatpush1.msra.mxu0 %v1665
      %1683 = vmatprep.subr.mxu0 %v1671
      %1684 = vmatpush1.msra.mxu0 %v1670
      %1685 = vmatprep.subr.mxu0 0.0
      %1686 = vmatpush1.msra.mxu0 0.0
      %1687 = vmatprep.subr.mxu0 0.0
      %1688 = vmatpush1.msra.mxu0 0.0
      %1689 = vmatprep.subr.mxu0 0.0
      %1690 = vmatpush1.msra.mxu0 0.0
      %1691 = vmatprep.subr.mxu0 0.0
      %1692 = vmatpush1.msra.mxu0 0.0
      %1693 = vmatprep.subr.mxu0 0.0
      %1694 = vmatpush1.msra.mxu0 0.0
      %1695 = vmatprep.subr.mxu0 0.0
      %1696 = vmatpush1.msra.mxu0 0.0
      %1697 = vmatprep.subr.mxu0 0.0
      %1698 = vmatpush1.msra.mxu0 0.0
      %1699 = vmatprep.subr.mxu0 0.0
      %1700 = vmatpush1.msra.mxu0 0.0
      %1701 = vmatprep.subr.mxu0 0.0
      %1702 = vmatpush1.msra.mxu0 0.0
      %1703 = vmatprep.subr.mxu0 0.0
      %1704 = vmatpush1.msra.mxu0 0.0
      %1705 = vmatprep.subr.mxu0 0.0
      %1706 = vmatpush1.msra.mxu0 0.0
      %1707 = vmatprep.subr.mxu0 0.0
      %1708 = vmatpush1.msra.mxu0 0.0
      %1709 = vmatprep.subr.mxu0 0.0
      %1710 = vmatpush1.msra.mxu0 0.0
      %1711 = vmatprep.subr.mxu0 0.0
      %1712 = vmatpush1.msra.mxu0 0.0
      %1713 = vmatprep.subr.mxu0 0.0
      %1714 = vmatpush1.msra.mxu0 0.0
      %1715 = vmatprep.subr.mxu0 0.0
      %1716 = vmatpush1.msra.mxu0 0.0
      %1717 = vmatprep.subr.mxu0 0.0
      %1718 = vmatpush1.msra.mxu0 0.0
      %1719 = vmatprep.subr.mxu0 0.0
      %1720 = vmatpush1.msra.mxu0 0.0
      %1721 = vmatprep.subr.mxu0 0.0
      %1722 = vmatpush1.msra.mxu0 0.0
      %1723 = vmatprep.subr.mxu0 0.0
      %1724 = vmatpush1.msra.mxu0 0.0
      %1725 = vmatprep.subr.mxu0 0.0
      %1726 = vmatpush1.msra.mxu0 0.0
      %1727 = vmatprep.subr.mxu0 0.0
      %1728 = vmatpush1.msra.mxu0 0.0
      %1729 = vmatprep.subr.mxu0 0.0
      %1730 = vmatpush1.msra.mxu0 0.0
      %1731 = vmatprep.subr.mxu0 0.0
      %1732 = vmatpush1.msra.mxu0 0.0
      %1733 = vmatprep.subr.mxu0 0.0
      %1734 = vmatpush1.msra.mxu0 0.0
      %1735 = vmatprep.subr.mxu0 0.0
      %1736 = vmatpush1.msra.mxu0 0.0
      %1737 = vmatprep.subr.mxu0 0.0
      %1738 = vmatpush1.msra.mxu0 0.0
      %1739 = vmatprep.subr.mxu0 0.0
      %1740 = vmatpush1.msra.mxu0 0.0
      %1741 = vmatprep.subr.mxu0 0.0
      %1742 = vmatpush1.msra.mxu0 0.0
      %1743 = vmatprep.subr.mxu0 0.0
      %1744 = vmatpush1.msra.mxu0 0.0
      %1745 = vmatprep.mubr.f32.mxu0 0.0
      %1746 = vmatmul.mubr.f32.gmra.mrb[0].mxu0 %v1676
      %v1747 = vpop.f32.mrb[0].mxu0
      %v1748 = vadd.f32 0.0, %v1747
      %v1749 = vpop.f32.mrb[0].mxu0
      %v1750 = vadd.f32 0.0, %v1749
      %1751 = vmatprep.mubr.f32.mxu0 0.0
      %1752 = vmatmul.mubr.f32.gmra.mrb[0].mxu0 %v1679
      %v1753 = vpop.f32.mrb[0].mxu0
      %v1754 = vadd.f32 0.0, %v1753
      %v1755 = vpop.f32.mrb[0].mxu0
      %v1756 = vadd.f32 0.0, %v1755
      %1757 = vdwg.mxu0
      %1758 = vmatprep.subr.mxu0 %v1668
      %1759 = vmatpush1.msra.mxu0 %v1667
      %1760 = vmatprep.subr.mxu0 %v1673
      %1761 = vmatpush1.msra.mxu0 %v1672
      %1762 = vmatprep.subr.mxu0 0.0
      %1763 = vmatpush1.msra.mxu0 0.0
      %1764 = vmatprep.subr.mxu0 0.0
      %1765 = vmatpush1.msra.mxu0 0.0
      %1766 = vmatprep.subr.mxu0 0.0
      %1767 = vmatpush1.msra.mxu0 0.0
      %1768 = vmatprep.subr.mxu0 0.0
      %1769 = vmatpush1.msra.mxu0 0.0
      %1770 = vmatprep.subr.mxu0 0.0
      %1771 = vmatpush1.msra.mxu0 0.0
      %1772 = vmatprep.subr.mxu0 0.0
      %1773 = vmatpush1.msra.mxu0 0.0
      %1774 = vmatprep.subr.mxu0 0.0
      %1775 = vmatpush1.msra.mxu0 0.0
      %1776 = vmatprep.subr.mxu0 0.0
      %1777 = vmatpush1.msra.mxu0 0.0
      %1778 = vmatprep.subr.mxu0 0.0
      %1779 = vmatpush1.msra.mxu0 0.0
      %1780 = vmatprep.subr.mxu0 0.0
      %1781 = vmatpush1.msra.mxu0 0.0
      %1782 = vmatprep.subr.mxu0 0.0
      %1783 = vmatpush1.msra.mxu0 0.0
      %1784 = vmatprep.subr.mxu0 0.0
      %1785 = vmatpush1.msra.mxu0 0.0
      %1786 = vmatprep.subr.mxu0 0.0
      %1787 = vmatpush1.msra.mxu0 0.0
      %1788 = vmatprep.subr.mxu0 0.0
      %1789 = vmatpush1.msra.mxu0 0.0
      %1790 = vmatprep.subr.mxu0 0.0
      %1791 = vmatpush1.msra.mxu0 0.0
      %1792 = vmatprep.subr.mxu0 0.0
      %1793 = vmatpush1.msra.mxu0 0.0
      %1794 = vmatprep.subr.mxu0 0.0
      %1795 = vmatpush1.msra.mxu0 0.0
      %1796 = vmatprep.subr.mxu0 0.0
      %1797 = vmatpush1.msra.mxu0 0.0
      %1798 = vmatprep.subr.mxu0 0.0
      %1799 = vmatpush1.msra.mxu0 0.0
      %1800 = vmatprep.subr.mxu0 0.0
      %1801 = vmatpush1.msra.mxu0 0.0
      %1802 = vmatprep.subr.mxu0 0.0
      %1803 = vmatpush1.msra.mxu0 0.0
      %1804 = vmatprep.subr.mxu0 0.0
      %1805 = vmatpush1.msra.mxu0 0.0
      %1806 = vmatprep.subr.mxu0 0.0
      %1807 = vmatpush1.msra.mxu0 0.0
      %1808 = vmatprep.subr.mxu0 0.0
      %1809 = vmatpush1.msra.mxu0 0.0
      %1810 = vmatprep.subr.mxu0 0.0
      %1811 = vmatpush1.msra.mxu0 0.0
      %1812 = vmatprep.subr.mxu0 0.0
      %1813 = vmatpush1.msra.mxu0 0.0
      %1814 = vmatprep.subr.mxu0 0.0
      %1815 = vmatpush1.msra.mxu0 0.0
      %1816 = vmatprep.subr.mxu0 0.0
      %1817 = vmatpush1.msra.mxu0 0.0
      %1818 = vmatprep.subr.mxu0 0.0
      %1819 = vmatpush1.msra.mxu0 0.0
      %1820 = vmatprep.subr.mxu0 0.0
      %1821 = vmatpush1.msra.mxu0 0.0
      %1822 = vmatprep.mubr.f32.mxu0 0.0
      %1823 = vmatmul.mubr.f32.gmra.mrb[0].mxu0 %v1676
      %v1824 = vpop.f32.mrb[0].mxu0
      %v1825 = vadd.f32 0.0, %v1824
      %v1826 = vpop.f32.mrb[0].mxu0
      %v1827 = vadd.f32 0.0, %v1826
      %1828 = vmatprep.mubr.f32.mxu0 0.0
      %1829 = vmatmul.mubr.f32.gmra.mrb[0].mxu0 %v1679
      %v1830 = vpop.f32.mrb[0].mxu0
      %v1831 = vadd.f32 0.0, %v1830
      %v1832 = vpop.f32.mrb[0].mxu0
      %v1833 = vadd.f32 0.0, %v1832
      %1834 = vdwg.mxu0
      %1835 = vmatprep.subr.mxu0 0.0
      %1836 = vmatpush1.msra.mxu0 %v1669
      %1837 = vmatprep.subr.mxu0 0.0
      %1838 = vmatpush1.msra.mxu0 %v1674
      %1839 = vmatprep.subr.mxu0 0.0
      %1840 = vmatpush1.msra.mxu0 0.0
      %1841 = vmatprep.subr.mxu0 0.0
      %1842 = vmatpush1.msra.mxu0 0.0
      %1843 = vmatprep.subr.mxu0 0.0
      %1844 = vmatpush1.msra.mxu0 0.0
      %1845 = vmatprep.subr.mxu0 0.0
      %1846 = vmatpush1.msra.mxu0 0.0
      %1847 = vmatprep.subr.mxu0 0.0
      %1848 = vmatpush1.msra.mxu0 0.0
      %1849 = vmatprep.subr.mxu0 0.0
      %1850 = vmatpush1.msra.mxu0 0.0
      %1851 = vmatprep.subr.mxu0 0.0
      %1852 = vmatpush1.msra.mxu0 0.0
      %1853 = vmatprep.subr.mxu0 0.0
      %1854 = vmatpush1.msra.mxu0 0.0
      %1855 = vmatprep.subr.mxu0 0.0
      %1856 = vmatpush1.msra.mxu0 0.0
      %1857 = vmatprep.subr.mxu0 0.0
      %1858 = vmatpush1.msra.mxu0 0.0
      %1859 = vmatprep.subr.mxu0 0.0
      %1860 = vmatpush1.msra.mxu0 0.0
      %1861 = vmatprep.subr.mxu0 0.0
      %1862 = vmatpush1.msra.mxu0 0.0
      %1863 = vmatprep.subr.mxu0 0.0
      %1864 = vmatpush1.msra.mxu0 0.0
      %1865 = vmatprep.subr.mxu0 0.0
      %1866 = vmatpush1.msra.mxu0 0.0
      %1867 = vmatprep.subr.mxu0 0.0
      %1868 = vmatpush1.msra.mxu0 0.0
      %1869 = vmatprep.subr.mxu0 0.0
      %1870 = vmatpush1.msra.mxu0 0.0
      %1871 = vmatprep.subr.mxu0 0.0
      %1872 = vmatpush1.msra.mxu0 0.0
      %1873 = vmatprep.subr.mxu0 0.0
      %1874 = vmatpush1.msra.mxu0 0.0
      %1875 = vmatprep.subr.mxu0 0.0
      %1876 = vmatpush1.msra.mxu0 0.0
      %1877 = vmatprep.subr.mxu0 0.0
      %1878 = vmatpush1.msra.mxu0 0.0
      %1879 = vmatprep.subr.mxu0 0.0
      %1880 = vmatpush1.msra.mxu0 0.0
      %1881 = vmatprep.subr.mxu0 0.0
      %1882 = vmatpush1.msra.mxu0 0.0
      %1883 = vmatprep.subr.mxu0 0.0
      %1884 = vmatpush1.msra.mxu0 0.0
      %1885 = vmatprep.subr.mxu0 0.0
      %1886 = vmatpush1.msra.mxu0 0.0
      %1887 = vmatprep.subr.mxu0 0.0
      %1888 = vmatpush1.msra.mxu0 0.0
      %1889 = vmatprep.subr.mxu0 0.0
      %1890 = vmatpush1.msra.mxu0 0.0
      %1891 = vmatprep.subr.mxu0 0.0
      %1892 = vmatpush1.msra.mxu0 0.0
      %1893 = vmatprep.subr.mxu0 0.0
      %1894 = vmatpush1.msra.mxu0 0.0
      %1895 = vmatprep.subr.mxu0 0.0
      %1896 = vmatpush1.msra.mxu0 0.0
      %1897 = vmatprep.subr.mxu0 0.0
      %1898 = vmatpush1.msra.mxu0 0.0
      %1899 = vmatprep.mubr.f32.mxu0 0.0
      %1900 = vmatmul.mubr.f32.gmra.mrb[0].mxu0 %v1676
      %v1901 = vpop.f32.mrb[0].mxu0
      %v1902 = vadd.f32 0.0, %v1901
      %v1903 = vpop.f32.mrb[0].mxu0
      %1904 = vmatprep.mubr.f32.mxu0 0.0
      %1905 = vmatmul.mubr.f32.gmra.mrb[0].mxu0 %v1679
      %v1906 = vpop.f32.mrb[0].mxu0
      %v1907 = vadd.f32 0.0, %v1906
      %v1908 = vpop.f32.mrb[0].mxu0
      %1909 = vdwg.mxu0
      %1910 = vst [vmem:[#allocation3] sm:$0xff] %v1748
      %1911 = vst [vmem:[#allocation3 + $0x8] sm:$0xff] %v1750
      %1912 = vst [vmem:[#allocation3 + $0x10] sm:$0xff] %v1825
      %1913 = vst [vmem:[#allocation3 + $0x18] sm:$0xff] %v1827
      %1914 = vst [vmem:[#allocation3 + $0x20] sm:$0xff] %v1902
      %1915 = vst [vmem:[#allocation3 + $0x28] sm:$0xff] %v1754
      %1916 = vst [vmem:[#allocation3 + $0x30] sm:$0xff] %v1756
      %1917 = vst [vmem:[#allocation3 + $0x38] sm:$0xff] %v1831
      %1918 = vst [vmem:[#allocation3 + $0x40] sm:$0xff] %v1833
      %1919 = vst [vmem:[#allocation3 + $0x48] sm:$0xff] %v1907
      %v1920 = vld [vmem:[#allocation3] sm:$0xff]
      %v1921 = vld [vmem:[#allocation3 + $0x28] sm:$0xff]
      %v1922 = vld [vmem:[%s1197] sm:$0xff]
      %v1923 = vld [vmem:[%s1197 + $0x8] sm:$0xff]
      %v1925 = vsel %vm224, %v1920, 0
      %v1928 = vsel %vm224, %v1921, 0
      %1930 = vmatprep.subr.mxu0 0.0
      %1931 = vmatpush1.msra.mxu0 %v1922
      %1932 = vmatprep.subr.mxu0 0.0
      %1933 = vmatpush1.msra.mxu0 %v1923
      %1934 = vmatprep.subr.mxu0 0.0
      %1935 = vmatpush1.msra.mxu0 0.0
      %1936 = vmatprep.subr.mxu0 0.0
      %1937 = vmatpush1.msra.mxu0 0.0
      %1938 = vmatprep.subr.mxu0 0.0
      %1939 = vmatpush1.msra.mxu0 0.0
      %1940 = vmatprep.subr.mxu0 0.0
      %1941 = vmatpush1.msra.mxu0 0.0
      %1942 = vmatprep.subr.mxu0 0.0
      %1943 = vmatpush1.msra.mxu0 0.0
      %1944 = vmatprep.subr.mxu0 0.0
      %1945 = vmatpush1.msra.mxu0 0.0
      %1946 = vmatprep.subr.mxu0 0.0
      %1947 = vmatpush1.msra.mxu0 0.0
      %1948 = vmatprep.subr.mxu0 0.0
      %1949 = vmatpush1.msra.mxu0 0.0
      %1950 = vmatprep.subr.mxu0 0.0
      %1951 = vmatpush1.msra.mxu0 0.0
      %1952 = vmatprep.subr.mxu0 0.0
      %1953 = vmatpush1.msra.mxu0 0.0
      %1954 = vmatprep.subr.mxu0 0.0
      %1955 = vmatpush1.msra.mxu0 0.0
      %1956 = vmatprep.subr.mxu0 0.0
      %1957 = vmatpush1.msra.mxu0 0.0
      %1958 = vmatprep.subr.mxu0 0.0
      %1959 = vmatpush1.msra.mxu0 0.0
      %1960 = vmatprep.subr.mxu0 0.0
      %1961 = vmatpush1.msra.mxu0 0.0
      %1962 = vmatprep.subr.mxu0 0.0
      %1963 = vmatpush1.msra.mxu0 0.0
      %1964 = vmatprep.subr.mxu0 0.0
      %1965 = vmatpush1.msra.mxu0 0.0
      %1966 = vmatprep.subr.mxu0 0.0
      %1967 = vmatpush1.msra.mxu0 0.0
      %1968 = vmatprep.subr.mxu0 0.0
      %1969 = vmatpush1.msra.mxu0 0.0
      %1970 = vmatprep.subr.mxu0 0.0
      %1971 = vmatpush1.msra.mxu0 0.0
      %1972 = vmatprep.subr.mxu0 0.0
      %1973 = vmatpush1.msra.mxu0 0.0
      %1974 = vmatprep.subr.mxu0 0.0
      %1975 = vmatpush1.msra.mxu0 0.0
      %1976 = vmatprep.subr.mxu0 0.0
      %1977 = vmatpush1.msra.mxu0 0.0
      %1978 = vmatprep.subr.mxu0 0.0
      %1979 = vmatpush1.msra.mxu0 0.0
      %1980 = vmatprep.subr.mxu0 0.0
      %1981 = vmatpush1.msra.mxu0 0.0
      %1982 = vmatprep.subr.mxu0 0.0
      %1983 = vmatpush1.msra.mxu0 0.0
      %1984 = vmatprep.subr.mxu0 0.0
      %1985 = vmatpush1.msra.mxu0 0.0
      %1986 = vmatprep.subr.mxu0 0.0
      %1987 = vmatpush1.msra.mxu0 0.0
      %1988 = vmatprep.subr.mxu0 0.0
      %1989 = vmatpush1.msra.mxu0 0.0
      %1990 = vmatprep.subr.mxu0 0.0
      %1991 = vmatpush1.msra.mxu0 0.0
      %1992 = vmatprep.subr.mxu0 0.0
      %1993 = vmatpush1.msra.mxu0 0.0
      %1994 = vmatprep.mubr.f32.mxu0 0.0
      %1995 = vmatmul.mubr.f32.gmra.mrb[0].mxu0 %v1925
      %v1996 = vpop.f32.mrb[0].mxu0
      %v1997 = vadd.f32 0.0, %v1996
      %v1998 = vpop.f32.mrb[0].mxu0
      %1999 = vmatprep.mubr.f32.mxu0 0.0
      %2000 = vmatmul.mubr.f32.gmra.mrb[0].mxu0 %v1928
      %v2001 = vpop.f32.mrb[0].mxu0
      %v2002 = vadd.f32 0.0, %v2001
      %v2003 = vpop.f32.mrb[0].mxu0
      %2004 = vdwg.mxu0
      %v2005 = vld [vmem:[#allocation3 + $0x8] sm:$0xff]
      %v2006 = vld [vmem:[#allocation3 + $0x30] sm:$0xff]
      %v2008 = vsel %vm224, %v2005, 0
      %v2011 = vsel %vm224, %v2006, 0
      %2013 = vmatprep.subr.mxu0 0.0
      %2014 = vmatpush1.msra.mxu0 %v1922
      %2015 = vmatprep.subr.mxu0 0.0
      %2016 = vmatpush1.msra.mxu0 %v1923
      %2017 = vmatprep.subr.mxu0 0.0
      %2018 = vmatpush1.msra.mxu0 0.0
      %2019 = vmatprep.subr.mxu0 0.0
      %2020 = vmatpush1.msra.mxu0 0.0
      %2021 = vmatprep.subr.mxu0 0.0
      %2022 = vmatpush1.msra.mxu0 0.0
      %2023 = vmatprep.subr.mxu0 0.0
      %2024 = vmatpush1.msra.mxu0 0.0
      %2025 = vmatprep.subr.mxu0 0.0
      %2026 = vmatpush1.msra.mxu0 0.0
      %2027 = vmatprep.subr.mxu0 0.0
      %2028 = vmatpush1.msra.mxu0 0.0
      %2029 = vmatprep.subr.mxu0 0.0
      %2030 = vmatpush1.msra.mxu0 0.0
      %2031 = vmatprep.subr.mxu0 0.0
      %2032 = vmatpush1.msra.mxu0 0.0
      %2033 = vmatprep.subr.mxu0 0.0
      %2034 = vmatpush1.msra.mxu0 0.0
      %2035 = vmatprep.subr.mxu0 0.0
      %2036 = vmatpush1.msra.mxu0 0.0
      %2037 = vmatprep.subr.mxu0 0.0
      %2038 = vmatpush1.msra.mxu0 0.0
      %2039 = vmatprep.subr.mxu0 0.0
      %2040 = vmatpush1.msra.mxu0 0.0
      %2041 = vmatprep.subr.mxu0 0.0
      %2042 = vmatpush1.msra.mxu0 0.0
      %2043 = vmatprep.subr.mxu0 0.0
      %2044 = vmatpush1.msra.mxu0 0.0
      %2045 = vmatprep.subr.mxu0 0.0
      %2046 = vmatpush1.msra.mxu0 0.0
      %2047 = vmatprep.subr.mxu0 0.0
      %2048 = vmatpush1.msra.mxu0 0.0
      %2049 = vmatprep.subr.mxu0 0.0
      %2050 = vmatpush1.msra.mxu0 0.0
      %2051 = vmatprep.subr.mxu0 0.0
      %2052 = vmatpush1.msra.mxu0 0.0
      %2053 = vmatprep.subr.mxu0 0.0
      %2054 = vmatpush1.msra.mxu0 0.0
      %2055 = vmatprep.subr.mxu0 0.0
      %2056 = vmatpush1.msra.mxu0 0.0
      %2057 = vmatprep.subr.mxu0 0.0
      %2058 = vmatpush1.msra.mxu0 0.0
      %2059 = vmatprep.subr.mxu0 0.0
      %2060 = vmatpush1.msra.mxu0 0.0
      %2061 = vmatprep.subr.mxu0 0.0
      %2062 = vmatpush1.msra.mxu0 0.0
      %2063 = vmatprep.subr.mxu0 0.0
      %2064 = vmatpush1.msra.mxu0 0.0
      %2065 = vmatprep.subr.mxu0 0.0
      %2066 = vmatpush1.msra.mxu0 0.0
      %2067 = vmatprep.subr.mxu0 0.0
      %2068 = vmatpush1.msra.mxu0 0.0
      %2069 = vmatprep.subr.mxu0 0.0
      %2070 = vmatpush1.msra.mxu0 0.0
      %2071 = vmatprep.subr.mxu0 0.0
      %2072 = vmatpush1.msra.mxu0 0.0
      %2073 = vmatprep.subr.mxu0 0.0
      %2074 = vmatpush1.msra.mxu0 0.0
      %2075 = vmatprep.subr.mxu0 0.0
      %2076 = vmatpush1.msra.mxu0 0.0
      %2077 = vmatprep.mubr.f32.mxu0 0.0
      %2078 = vmatmul.mubr.f32.gmra.mrb[0].mxu0 %v2008
      %v2079 = vpop.f32.mrb[0].mxu0
      %v2080 = vadd.f32 0.0, %v2079
      %v2081 = vpop.f32.mrb[0].mxu0
      %2082 = vmatprep.mubr.f32.mxu0 0.0
      %2083 = vmatmul.mubr.f32.gmra.mrb[0].mxu0 %v2011
      %v2084 = vpop.f32.mrb[0].mxu0
      %v2085 = vadd.f32 0.0, %v2084
      %v2086 = vpop.f32.mrb[0].mxu0
      %2087 = vdwg.mxu0
      %v2088 = vld [vmem:[#allocation3 + $0x10] sm:$0xff]
      %v2089 = vld [vmem:[#allocation3 + $0x38] sm:$0xff]
      %v2091 = vsel %vm224, %v2088, 0
      %v2094 = vsel %vm224, %v2089, 0
      %2096 = vmatprep.subr.mxu0 0.0
      %2097 = vmatpush1.msra.mxu0 %v1922
      %2098 = vmatprep.subr.mxu0 0.0
      %2099 = vmatpush1.msra.mxu0 %v1923
      %2100 = vmatprep.subr.mxu0 0.0
      %2101 = vmatpush1.msra.mxu0 0.0
      %2102 = vmatprep.subr.mxu0 0.0
      %2103 = vmatpush1.msra.mxu0 0.0
      %2104 = vmatprep.subr.mxu0 0.0
      %2105 = vmatpush1.msra.mxu0 0.0
      %2106 = vmatprep.subr.mxu0 0.0
      %2107 = vmatpush1.msra.mxu0 0.0
      %2108 = vmatprep.subr.mxu0 0.0
      %2109 = vmatpush1.msra.mxu0 0.0
      %2110 = vmatprep.subr.mxu0 0.0
      %2111 = vmatpush1.msra.mxu0 0.0
      %2112 = vmatprep.subr.mxu0 0.0
      %2113 = vmatpush1.msra.mxu0 0.0
      %2114 = vmatprep.subr.mxu0 0.0
      %2115 = vmatpush1.msra.mxu0 0.0
      %2116 = vmatprep.subr.mxu0 0.0
      %2117 = vmatpush1.msra.mxu0 0.0
      %2118 = vmatprep.subr.mxu0 0.0
      %2119 = vmatpush1.msra.mxu0 0.0
      %2120 = vmatprep.subr.mxu0 0.0
      %2121 = vmatpush1.msra.mxu0 0.0
      %2122 = vmatprep.subr.mxu0 0.0
      %2123 = vmatpush1.msra.mxu0 0.0
      %2124 = vmatprep.subr.mxu0 0.0
      %2125 = vmatpush1.msra.mxu0 0.0
      %2126 = vmatprep.subr.mxu0 0.0
      %2127 = vmatpush1.msra.mxu0 0.0
      %2128 = vmatprep.subr.mxu0 0.0
      %2129 = vmatpush1.msra.mxu0 0.0
      %2130 = vmatprep.subr.mxu0 0.0
      %2131 = vmatpush1.msra.mxu0 0.0
      %2132 = vmatprep.subr.mxu0 0.0
      %2133 = vmatpush1.msra.mxu0 0.0
      %2134 = vmatprep.subr.mxu0 0.0
      %2135 = vmatpush1.msra.mxu0 0.0
      %2136 = vmatprep.subr.mxu0 0.0
      %2137 = vmatpush1.msra.mxu0 0.0
      %2138 = vmatprep.subr.mxu0 0.0
      %2139 = vmatpush1.msra.mxu0 0.0
      %2140 = vmatprep.subr.mxu0 0.0
      %2141 = vmatpush1.msra.mxu0 0.0
      %2142 = vmatprep.subr.mxu0 0.0
      %2143 = vmatpush1.msra.mxu0 0.0
      %2144 = vmatprep.subr.mxu0 0.0
      %2145 = vmatpush1.msra.mxu0 0.0
      %2146 = vmatprep.subr.mxu0 0.0
      %2147 = vmatpush1.msra.mxu0 0.0
      %2148 = vmatprep.subr.mxu0 0.0
      %2149 = vmatpush1.msra.mxu0 0.0
      %2150 = vmatprep.subr.mxu0 0.0
      %2151 = vmatpush1.msra.mxu0 0.0
      %2152 = vmatprep.subr.mxu0 0.0
      %2153 = vmatpush1.msra.mxu0 0.0
      %2154 = vmatprep.subr.mxu0 0.0
      %2155 = vmatpush1.msra.mxu0 0.0
      %2156 = vmatprep.subr.mxu0 0.0
      %2157 = vmatpush1.msra.mxu0 0.0
      %2158 = vmatprep.subr.mxu0 0.0
      %2159 = vmatpush1.msra.mxu0 0.0
      %2160 = vmatprep.mubr.f32.mxu0 0.0
      %2161 = vmatmul.mubr.f32.gmra.mrb[0].mxu0 %v2091
      %v2162 = vpop.f32.mrb[0].mxu0
      %v2163 = vadd.f32 0.0, %v2162
      %v2164 = vpop.f32.mrb[0].mxu0
      %2165 = vmatprep.mubr.f32.mxu0 0.0
      %2166 = vmatmul.mubr.f32.gmra.mrb[0].mxu0 %v2094
      %v2167 = vpop.f32.mrb[0].mxu0
      %v2168 = vadd.f32 0.0, %v2167
      %v2169 = vpop.f32.mrb[0].mxu0
      %2170 = vdwg.mxu0
      %v2171 = vld [vmem:[#allocation3 + $0x18] sm:$0xff]
      %v2172 = vld [vmem:[#allocation3 + $0x40] sm:$0xff]
      %v2174 = vsel %vm224, %v2171, 0
      %v2177 = vsel %vm224, %v2172, 0
      %2179 = vmatprep.subr.mxu0 0.0
      %2180 = vmatpush1.msra.mxu0 %v1922
      %2181 = vmatprep.subr.mxu0 0.0
      %2182 = vmatpush1.msra.mxu0 %v1923
      %2183 = vmatprep.subr.mxu0 0.0
      %2184 = vmatpush1.msra.mxu0 0.0
      %2185 = vmatprep.subr.mxu0 0.0
      %2186 = vmatpush1.msra.mxu0 0.0
      %2187 = vmatprep.subr.mxu0 0.0
      %2188 = vmatpush1.msra.mxu0 0.0
      %2189 = vmatprep.subr.mxu0 0.0
      %2190 = vmatpush1.msra.mxu0 0.0
      %2191 = vmatprep.subr.mxu0 0.0
      %2192 = vmatpush1.msra.mxu0 0.0
      %2193 = vmatprep.subr.mxu0 0.0
      %2194 = vmatpush1.msra.mxu0 0.0
      %2195 = vmatprep.subr.mxu0 0.0
      %2196 = vmatpush1.msra.mxu0 0.0
      %2197 = vmatprep.subr.mxu0 0.0
      %2198 = vmatpush1.msra.mxu0 0.0
      %2199 = vmatprep.subr.mxu0 0.0
      %2200 = vmatpush1.msra.mxu0 0.0
      %2201 = vmatprep.subr.mxu0 0.0
      %2202 = vmatpush1.msra.mxu0 0.0
      %2203 = vmatprep.subr.mxu0 0.0
      %2204 = vmatpush1.msra.mxu0 0.0
      %2205 = vmatprep.subr.mxu0 0.0
      %2206 = vmatpush1.msra.mxu0 0.0
      %2207 = vmatprep.subr.mxu0 0.0
      %2208 = vmatpush1.msra.mxu0 0.0
      %2209 = vmatprep.subr.mxu0 0.0
      %2210 = vmatpush1.msra.mxu0 0.0
      %2211 = vmatprep.subr.mxu0 0.0
      %2212 = vmatpush1.msra.mxu0 0.0
      %2213 = vmatprep.subr.mxu0 0.0
      %2214 = vmatpush1.msra.mxu0 0.0
      %2215 = vmatprep.subr.mxu0 0.0
      %2216 = vmatpush1.msra.mxu0 0.0
      %2217 = vmatprep.subr.mxu0 0.0
      %2218 = vmatpush1.msra.mxu0 0.0
      %2219 = vmatprep.subr.mxu0 0.0
      %2220 = vmatpush1.msra.mxu0 0.0
      %2221 = vmatprep.subr.mxu0 0.0
      %2222 = vmatpush1.msra.mxu0 0.0
      %2223 = vmatprep.subr.mxu0 0.0
      %2224 = vmatpush1.msra.mxu0 0.0
      %2225 = vmatprep.subr.mxu0 0.0
      %2226 = vmatpush1.msra.mxu0 0.0
      %2227 = vmatprep.subr.mxu0 0.0
      %2228 = vmatpush1.msra.mxu0 0.0
      %2229 = vmatprep.subr.mxu0 0.0
      %2230 = vmatpush1.msra.mxu0 0.0
      %2231 = vmatprep.subr.mxu0 0.0
      %2232 = vmatpush1.msra.mxu0 0.0
      %2233 = vmatprep.subr.mxu0 0.0
      %2234 = vmatpush1.msra.mxu0 0.0
      %2235 = vmatprep.subr.mxu0 0.0
      %2236 = vmatpush1.msra.mxu0 0.0
      %2237 = vmatprep.subr.mxu0 0.0
      %2238 = vmatpush1.msra.mxu0 0.0
      %2239 = vmatprep.subr.mxu0 0.0
      %2240 = vmatpush1.msra.mxu0 0.0
      %2241 = vmatprep.subr.mxu0 0.0
      %2242 = vmatpush1.msra.mxu0 0.0
      %2243 = vmatprep.mubr.f32.mxu0 0.0
      %2244 = vmatmul.mubr.f32.gmra.mrb[0].mxu0 %v2174
      %v2245 = vpop.f32.mrb[0].mxu0
      %v2246 = vadd.f32 0.0, %v2245
      %v2247 = vpop.f32.mrb[0].mxu0
      %2248 = vmatprep.mubr.f32.mxu0 0.0
      %2249 = vmatmul.mubr.f32.gmra.mrb[0].mxu0 %v2177
      %v2250 = vpop.f32.mrb[0].mxu0
      %v2251 = vadd.f32 0.0, %v2250
      %v2252 = vpop.f32.mrb[0].mxu0
      %2253 = vdwg.mxu0
      %v2254 = vld [vmem:[#allocation3 + $0x20] sm:$0xff]
      %v2255 = vld [vmem:[#allocation3 + $0x48] sm:$0xff]
      %v2257 = vsel %vm224, %v2254, 0
      %v2260 = vsel %vm224, %v2255, 0
      %2262 = vmatprep.subr.mxu0 0.0
      %2263 = vmatpush1.msra.mxu0 %v1922
      %2264 = vmatprep.subr.mxu0 0.0
      %2265 = vmatpush1.msra.mxu0 %v1923
      %2266 = vmatprep.subr.mxu0 0.0
      %2267 = vmatpush1.msra.mxu0 0.0
      %2268 = vmatprep.subr.mxu0 0.0
      %2269 = vmatpush1.msra.mxu0 0.0
      %2270 = vmatprep.subr.mxu0 0.0
      %2271 = vmatpush1.msra.mxu0 0.0
      %2272 = vmatprep.subr.mxu0 0.0
      %2273 = vmatpush1.msra.mxu0 0.0
      %2274 = vmatprep.subr.mxu0 0.0
      %2275 = vmatpush1.msra.mxu0 0.0
      %2276 = vmatprep.subr.mxu0 0.0
      %2277 = vmatpush1.msra.mxu0 0.0
      %2278 = vmatprep.subr.mxu0 0.0
      %2279 = vmatpush1.msra.mxu0 0.0
      %2280 = vmatprep.subr.mxu0 0.0
      %2281 = vmatpush1.msra.mxu0 0.0
      %2282 = vmatprep.subr.mxu0 0.0
      %2283 = vmatpush1.msra.mxu0 0.0
      %2284 = vmatprep.subr.mxu0 0.0
      %2285 = vmatpush1.msra.mxu0 0.0
      %2286 = vmatprep.subr.mxu0 0.0
      %2287 = vmatpush1.msra.mxu0 0.0
      %2288 = vmatprep.subr.mxu0 0.0
      %2289 = vmatpush1.msra.mxu0 0.0
      %2290 = vmatprep.subr.mxu0 0.0
      %2291 = vmatpush1.msra.mxu0 0.0
      %2292 = vmatprep.subr.mxu0 0.0
      %2293 = vmatpush1.msra.mxu0 0.0
      %2294 = vmatprep.subr.mxu0 0.0
      %2295 = vmatpush1.msra.mxu0 0.0
      %2296 = vmatprep.subr.mxu0 0.0
      %2297 = vmatpush1.msra.mxu0 0.0
      %2298 = vmatprep.subr.mxu0 0.0
      %2299 = vmatpush1.msra.mxu0 0.0
      %2300 = vmatprep.subr.mxu0 0.0
      %2301 = vmatpush1.msra.mxu0 0.0
      %2302 = vmatprep.subr.mxu0 0.0
      %2303 = vmatpush1.msra.mxu0 0.0
      %2304 = vmatprep.subr.mxu0 0.0
      %2305 = vmatpush1.msra.mxu0 0.0
      %2306 = vmatprep.subr.mxu0 0.0
      %2307 = vmatpush1.msra.mxu0 0.0
      %2308 = vmatprep.subr.mxu0 0.0
      %2309 = vmatpush1.msra.mxu0 0.0
      %2310 = vmatprep.subr.mxu0 0.0
      %2311 = vmatpush1.msra.mxu0 0.0
      %2312 = vmatprep.subr.mxu0 0.0
      %2313 = vmatpush1.msra.mxu0 0.0
      %2314 = vmatprep.subr.mxu0 0.0
      %2315 = vmatpush1.msra.mxu0 0.0
      %2316 = vmatprep.subr.mxu0 0.0
      %2317 = vmatpush1.msra.mxu0 0.0
      %2318 = vmatprep.subr.mxu0 0.0
      %2319 = vmatpush1.msra.mxu0 0.0
      %2320 = vmatprep.subr.mxu0 0.0
      %2321 = vmatpush1.msra.mxu0 0.0
      %2322 = vmatprep.subr.mxu0 0.0
      %2323 = vmatpush1.msra.mxu0 0.0
      %2324 = vmatprep.subr.mxu0 0.0
      %2325 = vmatpush1.msra.mxu0 0.0
      %2326 = vmatprep.mubr.f32.mxu0 0.0
      %2327 = vmatmul.mubr.f32.gmra.mrb[0].mxu0 %v2257
      %v2328 = vpop.f32.mrb[0].mxu0
      %v2329 = vadd.f32 0.0, %v2328
      %v2330 = vpop.f32.mrb[0].mxu0
      %2331 = vmatprep.mubr.f32.mxu0 0.0
      %2332 = vmatmul.mubr.f32.gmra.mrb[0].mxu0 %v2260
      %v2333 = vpop.f32.mrb[0].mxu0
      %v2334 = vadd.f32 0.0, %v2333
      %v2335 = vpop.f32.mrb[0].mxu0
      %2336 = vdwg.mxu0
      %v2337 = vmul.f32 %v1997, %v1997
      %v2338 = vmul.f32 %v2002, %v2002
      %v2339 = vsub.f32 %v2163, %v2337
      %v2340 = vsub.f32 %v2168, %v2338
      %v2341 = vmul.f32 %v2080, %v2080
      %v2342 = vmul.f32 %v2085, %v2085
      %v2343 = vsub.f32 %v2246, %v2341
      %v2344 = vsub.f32 %v2251, %v2342
      %v2345 = vmul.f32 %v1997, %v2080
      %v2346 = vmul.f32 %v2002, %v2085
      %v2347 = vsub.f32 %v2329, %v2345
      %v2348 = vsub.f32 %v2334, %v2346
      %v2349 = vmul.f32 %v2347, 2.0
      %v2350 = vmul.f32 %v2348, 2.0
      %v2351 = vadd.f32 %v2349, 0.0009
      %v2352 = vadd.f32 %v2350, 0.0009
      %v2353 = vadd.f32 %v2339, %v2343
      %v2354 = vadd.f32 %v2340, %v2344
      %v2355 = vadd.f32 %v2353, 0.0009
      %v2356 = vadd.f32 %v2354, 0.0009
      %v2357 = vrcp.pop %v2355
      %v2358 = vrcp.pop %v2356
      %v2359 = vmul.f32 %v2351, %v2357
      %v2360 = vmul.f32 %v2352, %v2358
      %v2361 = vmul.f32 %v1639, %v2359
      %v2362 = vmul.f32 %v1640, %v2360
      %s2363 = scalar_lea.vmem %s2, 32
      %v2364 = vld [vmem:[%s2363] sm:$0xff]
      %v2365 = vld [vmem:[%s2363 + $0x8] sm:$0xff]
      %v2366 = vld [vmem:[#allocation2] sm:$0xff]
      %v2367 = vld [vmem:[#allocation2 + $0x8] sm:$0xff]
      %v2368 = vld [vmem:[#allocation2 + $0x10] sm:$0xff]
      %v2369 = vld [vmem:[#allocation2 + $0x18] sm:$0xff]
      %v2370 = vld [vmem:[#allocation2 + $0x20] sm:$0xff]
      %v2371 = vld [vmem:[#allocation2 + $0x28] sm:$0xff]
      %v2372 = vld [vmem:[#allocation2 + $0x30] sm:$0xff]
      %v2373 = vld [vmem:[#allocation2 + $0x38] sm:$0xff]
      %v2374 = vld [vmem:[#allocation2 + $0x40] sm:$0xff]
      %v2375 = vld [vmem:[#allocation2 + $0x48] sm:$0xff]
      %v2377 = vsel %vm224, %v2364, 0
      %v2380 = vsel %vm224, %v2365, 0
      %2382 = vmatprep.subr.mxu0 %v2367
      %2383 = vmatpush1.msra.mxu0 %v2366
      %2384 = vmatprep.subr.mxu0 %v2372
      %2385 = vmatpush1.msra.mxu0 %v2371
      %2386 = vmatprep.subr.mxu0 0.0
      %2387 = vmatpush1.msra.mxu0 0.0
      %2388 = vmatprep.subr.mxu0 0.0
      %2389 = vmatpush1.msra.mxu0 0.0
      %2390 = vmatprep.subr.mxu0 0.0
      %2391 = vmatpush1.msra.mxu0 0.0
      %2392 = vmatprep.subr.mxu0 0.0
      %2393 = vmatpush1.msra.mxu0 0.0
      %2394 = vmatprep.subr.mxu0 0.0
      %2395 = vmatpush1.msra.mxu0 0.0
      %2396 = vmatprep.subr.mxu0 0.0
      %2397 = vmatpush1.msra.mxu0 0.0
      %2398 = vmatprep.subr.mxu0 0.0
      %2399 = vmatpush1.msra.mxu0 0.0
      %2400 = vmatprep.subr.mxu0 0.0
      %2401 = vmatpush1.msra.mxu0 0.0
      %2402 = vmatprep.subr.mxu0 0.0
      %2403 = vmatpush1.msra.mxu0 0.0
      %2404 = vmatprep.subr.mxu0 0.0
      %2405 = vmatpush1.msra.mxu0 0.0
      %2406 = vmatprep.subr.mxu0 0.0
      %2407 = vmatpush1.msra.mxu0 0.0
      %2408 = vmatprep.subr.mxu0 0.0
      %2409 = vmatpush1.msra.mxu0 0.0
      %2410 = vmatprep.subr.mxu0 0.0
      %2411 = vmatpush1.msra.mxu0 0.0
      %2412 = vmatprep.subr.mxu0 0.0
      %2413 = vmatpush1.msra.mxu0 0.0
      %2414 = vmatprep.subr.mxu0 0.0
      %2415 = vmatpush1.msra.mxu0 0.0
      %2416 = vmatprep.subr.mxu0 0.0
      %2417 = vmatpush1.msra.mxu0 0.0
      %2418 = vmatprep.subr.mxu0 0.0
      %2419 = vmatpush1.msra.mxu0 0.0
      %2420 = vmatprep.subr.mxu0 0.0
      %2421 = vmatpush1.msra.mxu0 0.0
      %2422 = vmatprep.subr.mxu0 0.0
      %2423 = vmatpush1.msra.mxu0 0.0
      %2424 = vmatprep.subr.mxu0 0.0
      %2425 = vmatpush1.msra.mxu0 0.0
      %2426 = vmatprep.subr.mxu0 0.0
      %2427 = vmatpush1.msra.mxu0 0.0
      %2428 = vmatprep.subr.mxu0 0.0
      %2429 = vmatpush1.msra.mxu0 0.0
      %2430 = vmatprep.subr.mxu0 0.0
      %2431 = vmatpush1.msra.mxu0 0.0
      %2432 = vmatprep.subr.mxu0 0.0
      %2433 = vmatpush1.msra.mxu0 0.0
      %2434 = vmatprep.subr.mxu0 0.0
      %2435 = vmatpush1.msra.mxu0 0.0
      %2436 = vmatprep.subr.mxu0 0.0
      %2437 = vmatpush1.msra.mxu0 0.0
      %2438 = vmatprep.subr.mxu0 0.0
      %2439 = vmatpush1.msra.mxu0 0.0
      %2440 = vmatprep.subr.mxu0 0.0
      %2441 = vmatpush1.msra.mxu0 0.0
      %2442 = vmatprep.subr.mxu0 0.0
      %2443 = vmatpush1.msra.mxu0 0.0
      %2444 = vmatprep.subr.mxu0 0.0
      %2445 = vmatpush1.msra.mxu0 0.0
      %2446 = vmatprep.mubr.f32.mxu0 0.0
      %2447 = vmatmul.mubr.f32.gmra.mrb[0].mxu0 %v2377
      %v2448 = vpop.f32.mrb[0].mxu0
      %v2449 = vadd.f32 0.0, %v2448
      %v2450 = vpop.f32.mrb[0].mxu0
      %v2451 = vadd.f32 0.0, %v2450
      %2452 = vmatprep.mubr.f32.mxu0 0.0
      %2453 = vmatmul.mubr.f32.gmra.mrb[0].mxu0 %v2380
      %v2454 = vpop.f32.mrb[0].mxu0
      %v2455 = vadd.f32 0.0, %v2454
      %v2456 = vpop.f32.mrb[0].mxu0
      %v2457 = vadd.f32 0.0, %v2456
      %2458 = vdwg.mxu0
      %2459 = vmatprep.subr.mxu0 %v2369
      %2460 = vmatpush1.msra.mxu0 %v2368
      %2461 = vmatprep.subr.mxu0 %v2374
      %2462 = vmatpush1.msra.mxu0 %v2373
      %2463 = vmatprep.subr.mxu0 0.0
      %2464 = vmatpush1.msra.mxu0 0.0
      %2465 = vmatprep.subr.mxu0 0.0
      %2466 = vmatpush1.msra.mxu0 0.0
      %2467 = vmatprep.subr.mxu0 0.0
      %2468 = vmatpush1.msra.mxu0 0.0
      %2469 = vmatprep.subr.mxu0 0.0
      %2470 = vmatpush1.msra.mxu0 0.0
      %2471 = vmatprep.subr.mxu0 0.0
      %2472 = vmatpush1.msra.mxu0 0.0
      %2473 = vmatprep.subr.mxu0 0.0
      %2474 = vmatpush1.msra.mxu0 0.0
      %2475 = vmatprep.subr.mxu0 0.0
      %2476 = vmatpush1.msra.mxu0 0.0
      %2477 = vmatprep.subr.mxu0 0.0
      %2478 = vmatpush1.msra.mxu0 0.0
      %2479 = vmatprep.subr.mxu0 0.0
      %2480 = vmatpush1.msra.mxu0 0.0
      %2481 = vmatprep.subr.mxu0 0.0
      %2482 = vmatpush1.msra.mxu0 0.0
      %2483 = vmatprep.subr.mxu0 0.0
      %2484 = vmatpush1.msra.mxu0 0.0
      %2485 = vmatprep.subr.mxu0 0.0
      %2486 = vmatpush1.msra.mxu0 0.0
      %2487 = vmatprep.subr.mxu0 0.0
      %2488 = vmatpush1.msra.mxu0 0.0
      %2489 = vmatprep.subr.mxu0 0.0
      %2490 = vmatpush1.msra.mxu0 0.0
      %2491 = vmatprep.subr.mxu0 0.0
      %2492 = vmatpush1.msra.mxu0 0.0
      %2493 = vmatprep.subr.mxu0 0.0
      %2494 = vmatpush1.msra.mxu0 0.0
      %2495 = vmatprep.subr.mxu0 0.0
      %2496 = vmatpush1.msra.mxu0 0.0
      %2497 = vmatprep.subr.mxu0 0.0
      %2498 = vmatpush1.msra.mxu0 0.0
      %2499 = vmatprep.subr.mxu0 0.0
      %2500 = vmatpush1.msra.mxu0 0.0
      %2501 = vmatprep.subr.mxu0 0.0
      %2502 = vmatpush1.msra.mxu0 0.0
      %2503 = vmatprep.subr.mxu0 0.0
      %2504 = vmatpush1.msra.mxu0 0.0
      %2505 = vmatprep.subr.mxu0 0.0
      %2506 = vmatpush1.msra.mxu0 0.0
      %2507 = vmatprep.subr.mxu0 0.0
      %2508 = vmatpush1.msra.mxu0 0.0
      %2509 = vmatprep.subr.mxu0 0.0
      %2510 = vmatpush1.msra.mxu0 0.0
      %2511 = vmatprep.subr.mxu0 0.0
      %2512 = vmatpush1.msra.mxu0 0.0
      %2513 = vmatprep.subr.mxu0 0.0
      %2514 = vmatpush1.msra.mxu0 0.0
      %2515 = vmatprep.subr.mxu0 0.0
      %2516 = vmatpush1.msra.mxu0 0.0
      %2517 = vmatprep.subr.mxu0 0.0
      %2518 = vmatpush1.msra.mxu0 0.0
      %2519 = vmatprep.subr.mxu0 0.0
      %2520 = vmatpush1.msra.mxu0 0.0
      %2521 = vmatprep.subr.mxu0 0.0
      %2522 = vmatpush1.msra.mxu0 0.0
      %2523 = vmatprep.mubr.f32.mxu0 0.0
      %2524 = vmatmul.mubr.f32.gmra.mrb[0].mxu0 %v2377
      %v2525 = vpop.f32.mrb[0].mxu0
      %v2526 = vadd.f32 0.0, %v2525
      %v2527 = vpop.f32.mrb[0].mxu0
      %v2528 = vadd.f32 0.0, %v2527
      %2529 = vmatprep.mubr.f32.mxu0 0.0
      %2530 = vmatmul.mubr.f32.gmra.mrb[0].mxu0 %v2380
      %v2531 = vpop.f32.mrb[0].mxu0
      %v2532 = vadd.f32 0.0, %v2531
      %v2533 = vpop.f32.mrb[0].mxu0
      %v2534 = vadd.f32 0.0, %v2533
      %2535 = vdwg.mxu0
      %2536 = vmatprep.subr.mxu0 0.0
      %2537 = vmatpush1.msra.mxu0 %v2370
      %2538 = vmatprep.subr.mxu0 0.0
      %2539 = vmatpush1.msra.mxu0 %v2375
      %2540 = vmatprep.subr.mxu0 0.0
      %2541 = vmatpush1.msra.mxu0 0.0
      %2542 = vmatprep.subr.mxu0 0.0
      %2543 = vmatpush1.msra.mxu0 0.0
      %2544 = vmatprep.subr.mxu0 0.0
      %2545 = vmatpush1.msra.mxu0 0.0
      %2546 = vmatprep.subr.mxu0 0.0
      %2547 = vmatpush1.msra.mxu0 0.0
      %2548 = vmatprep.subr.mxu0 0.0
      %2549 = vmatpush1.msra.mxu0 0.0
      %2550 = vmatprep.subr.mxu0 0.0
      %2551 = vmatpush1.msra.mxu0 0.0
      %2552 = vmatprep.subr.mxu0 0.0
      %2553 = vmatpush1.msra.mxu0 0.0
      %2554 = vmatprep.subr.mxu0 0.0
      %2555 = vmatpush1.msra.mxu0 0.0
      %2556 = vmatprep.subr.mxu0 0.0
      %2557 = vmatpush1.msra.mxu0 0.0
      %2558 = vmatprep.subr.mxu0 0.0
      %2559 = vmatpush1.msra.mxu0 0.0
      %2560 = vmatprep.subr.mxu0 0.0
      %2561 = vmatpush1.msra.mxu0 0.0
      %2562 = vmatprep.subr.mxu0 0.0
      %2563 = vmatpush1.msra.mxu0 0.0
      %2564 = vmatprep.subr.mxu0 0.0
      %2565 = vmatpush1.msra.mxu0 0.0
      %2566 = vmatprep.subr.mxu0 0.0
      %2567 = vmatpush1.msra.mxu0 0.0
      %2568 = vmatprep.subr.mxu0 0.0
      %2569 = vmatpush1.msra.mxu0 0.0
      %2570 = vmatprep.subr.mxu0 0.0
      %2571 = vmatpush1.msra.mxu0 0.0
      %2572 = vmatprep.subr.mxu0 0.0
      %2573 = vmatpush1.msra.mxu0 0.0
      %2574 = vmatprep.subr.mxu0 0.0
      %2575 = vmatpush1.msra.mxu0 0.0
      %2576 = vmatprep.subr.mxu0 0.0
      %2577 = vmatpush1.msra.mxu0 0.0
      %2578 = vmatprep.subr.mxu0 0.0
      %2579 = vmatpush1.msra.mxu0 0.0
      %2580 = vmatprep.subr.mxu0 0.0
      %2581 = vmatpush1.msra.mxu0 0.0
      %2582 = vmatprep.subr.mxu0 0.0
      %2583 = vmatpush1.msra.mxu0 0.0
      %2584 = vmatprep.subr.mxu0 0.0
      %2585 = vmatpush1.msra.mxu0 0.0
      %2586 = vmatprep.subr.mxu0 0.0
      %2587 = vmatpush1.msra.mxu0 0.0
      %2588 = vmatprep.subr.mxu0 0.0
      %2589 = vmatpush1.msra.mxu0 0.0
      %2590 = vmatprep.subr.mxu0 0.0
      %2591 = vmatpush1.msra.mxu0 0.0
      %2592 = vmatprep.subr.mxu0 0.0
      %2593 = vmatpush1.msra.mxu0 0.0
      %2594 = vmatprep.subr.mxu0 0.0
      %2595 = vmatpush1.msra.mxu0 0.0
      %2596 = vmatprep.subr.mxu0 0.0
      %2597 = vmatpush1.msra.mxu0 0.0
      %2598 = vmatprep.subr.mxu0 0.0
      %2599 = vmatpush1.msra.mxu0 0.0
      %2600 = vmatprep.mubr.f32.mxu0 0.0
      %2601 = vmatmul.mubr.f32.gmra.mrb[0].mxu0 %v2377
      %v2602 = vpop.f32.mrb[0].mxu0
      %v2603 = vadd.f32 0.0, %v2602
      %v2604 = vpop.f32.mrb[0].mxu0
      %2605 = vmatprep.mubr.f32.mxu0 0.0
      %2606 = vmatmul.mubr.f32.gmra.mrb[0].mxu0 %v2380
      %v2607 = vpop.f32.mrb[0].mxu0
      %v2608 = vadd.f32 0.0, %v2607
      %v2609 = vpop.f32.mrb[0].mxu0
      %2610 = vdwg.mxu0
      %2611 = vst [vmem:[#allocation3] sm:$0xff] %v2449
      %2612 = vst [vmem:[#allocation3 + $0x8] sm:$0xff] %v2451
      %2613 = vst [vmem:[#allocation3 + $0x10] sm:$0xff] %v2526
      %2614 = vst [vmem:[#allocation3 + $0x18] sm:$0xff] %v2528
      %2615 = vst [vmem:[#allocation3 + $0x20] sm:$0xff] %v2603
      %2616 = vst [vmem:[#allocation3 + $0x28] sm:$0xff] %v2455
      %2617 = vst [vmem:[#allocation3 + $0x30] sm:$0xff] %v2457
      %2618 = vst [vmem:[#allocation3 + $0x38] sm:$0xff] %v2532
      %2619 = vst [vmem:[#allocation3 + $0x40] sm:$0xff] %v2534
      %2620 = vst [vmem:[#allocation3 + $0x48] sm:$0xff] %v2608
      %v2621 = vld [vmem:[#allocation3] sm:$0xff]
      %v2622 = vld [vmem:[#allocation3 + $0x28] sm:$0xff]
      %s2623 = scalar_lea.vmem %s3, 32
      %v2624 = vld [vmem:[%s2623] sm:$0xff]
      %v2625 = vld [vmem:[%s2623 + $0x8] sm:$0xff]
      %v2627 = vsel %vm224, %v2621, 0
      %v2630 = vsel %vm224, %v2622, 0
      %2632 = vmatprep.subr.mxu0 0.0
      %2633 = vmatpush1.msra.mxu0 %v2624
      %2634 = vmatprep.subr.mxu0 0.0
      %2635 = vmatpush1.msra.mxu0 %v2625
      %2636 = vmatprep.subr.mxu0 0.0
      %2637 = vmatpush1.msra.mxu0 0.0
      %2638 = vmatprep.subr.mxu0 0.0
      %2639 = vmatpush1.msra.mxu0 0.0
      %2640 = vmatprep.subr.mxu0 0.0
      %2641 = vmatpush1.msra.mxu0 0.0
      %2642 = vmatprep.subr.mxu0 0.0
      %2643 = vmatpush1.msra.mxu0 0.0
      %2644 = vmatprep.subr.mxu0 0.0
      %2645 = vmatpush1.msra.mxu0 0.0
      %2646 = vmatprep.subr.mxu0 0.0
      %2647 = vmatpush1.msra.mxu0 0.0
      %2648 = vmatprep.subr.mxu0 0.0
      %2649 = vmatpush1.msra.mxu0 0.0
      %2650 = vmatprep.subr.mxu0 0.0
      %2651 = vmatpush1.msra.mxu0 0.0
      %2652 = vmatprep.subr.mxu0 0.0
      %2653 = vmatpush1.msra.mxu0 0.0
      %2654 = vmatprep.subr.mxu0 0.0
      %2655 = vmatpush1.msra.mxu0 0.0
      %2656 = vmatprep.subr.mxu0 0.0
      %2657 = vmatpush1.msra.mxu0 0.0
      %2658 = vmatprep.subr.mxu0 0.0
      %2659 = vmatpush1.msra.mxu0 0.0
      %2660 = vmatprep.subr.mxu0 0.0
      %2661 = vmatpush1.msra.mxu0 0.0
      %2662 = vmatprep.subr.mxu0 0.0
      %2663 = vmatpush1.msra.mxu0 0.0
      %2664 = vmatprep.subr.mxu0 0.0
      %2665 = vmatpush1.msra.mxu0 0.0
      %2666 = vmatprep.subr.mxu0 0.0
      %2667 = vmatpush1.msra.mxu0 0.0
      %2668 = vmatprep.subr.mxu0 0.0
      %2669 = vmatpush1.msra.mxu0 0.0
      %2670 = vmatprep.subr.mxu0 0.0
      %2671 = vmatpush1.msra.mxu0 0.0
      %2672 = vmatprep.subr.mxu0 0.0
      %2673 = vmatpush1.msra.mxu0 0.0
      %2674 = vmatprep.subr.mxu0 0.0
      %2675 = vmatpush1.msra.mxu0 0.0
      %2676 = vmatprep.subr.mxu0 0.0
      %2677 = vmatpush1.msra.mxu0 0.0
      %2678 = vmatprep.subr.mxu0 0.0
      %2679 = vmatpush1.msra.mxu0 0.0
      %2680 = vmatprep.subr.mxu0 0.0
      %2681 = vmatpush1.msra.mxu0 0.0
      %2682 = vmatprep.subr.mxu0 0.0
      %2683 = vmatpush1.msra.mxu0 0.0
      %2684 = vmatprep.subr.mxu0 0.0
      %2685 = vmatpush1.msra.mxu0 0.0
      %2686 = vmatprep.subr.mxu0 0.0
      %2687 = vmatpush1.msra.mxu0 0.0
      %2688 = vmatprep.subr.mxu0 0.0
      %2689 = vmatpush1.msra.mxu0 0.0
      %2690 = vmatprep.subr.mxu0 0.0
      %2691 = vmatpush1.msra.mxu0 0.0
      %2692 = vmatprep.subr.mxu0 0.0
      %2693 = vmatpush1.msra.mxu0 0.0
      %2694 = vmatprep.subr.mxu0 0.0
      %2695 = vmatpush1.msra.mxu0 0.0
      %2696 = vmatprep.mubr.f32.mxu0 0.0
      %2697 = vmatmul.mubr.f32.gmra.mrb[0].mxu0 %v2627
      %v2698 = vpop.f32.mrb[0].mxu0
      %v2699 = vadd.f32 0.0, %v2698
      %v2700 = vpop.f32.mrb[0].mxu0
      %2701 = vmatprep.mubr.f32.mxu0 0.0
      %2702 = vmatmul.mubr.f32.gmra.mrb[0].mxu0 %v2630
      %v2703 = vpop.f32.mrb[0].mxu0
      %v2704 = vadd.f32 0.0, %v2703
      %v2705 = vpop.f32.mrb[0].mxu0
      %2706 = vdwg.mxu0
      %v2707 = vld [vmem:[#allocation3 + $0x8] sm:$0xff]
      %v2708 = vld [vmem:[#allocation3 + $0x30] sm:$0xff]
      %v2710 = vsel %vm224, %v2707, 0
      %v2713 = vsel %vm224, %v2708, 0
      %2715 = vmatprep.subr.mxu0 0.0
      %2716 = vmatpush1.msra.mxu0 %v2624
      %2717 = vmatprep.subr.mxu0 0.0
      %2718 = vmatpush1.msra.mxu0 %v2625
      %2719 = vmatprep.subr.mxu0 0.0
      %2720 = vmatpush1.msra.mxu0 0.0
      %2721 = vmatprep.subr.mxu0 0.0
      %2722 = vmatpush1.msra.mxu0 0.0
      %2723 = vmatprep.subr.mxu0 0.0
      %2724 = vmatpush1.msra.mxu0 0.0
      %2725 = vmatprep.subr.mxu0 0.0
      %2726 = vmatpush1.msra.mxu0 0.0
      %2727 = vmatprep.subr.mxu0 0.0
      %2728 = vmatpush1.msra.mxu0 0.0
      %2729 = vmatprep.subr.mxu0 0.0
      %2730 = vmatpush1.msra.mxu0 0.0
      %2731 = vmatprep.subr.mxu0 0.0
      %2732 = vmatpush1.msra.mxu0 0.0
      %2733 = vmatprep.subr.mxu0 0.0
      %2734 = vmatpush1.msra.mxu0 0.0
      %2735 = vmatprep.subr.mxu0 0.0
      %2736 = vmatpush1.msra.mxu0 0.0
      %2737 = vmatprep.subr.mxu0 0.0
      %2738 = vmatpush1.msra.mxu0 0.0
      %2739 = vmatprep.subr.mxu0 0.0
      %2740 = vmatpush1.msra.mxu0 0.0
      %2741 = vmatprep.subr.mxu0 0.0
      %2742 = vmatpush1.msra.mxu0 0.0
      %2743 = vmatprep.subr.mxu0 0.0
      %2744 = vmatpush1.msra.mxu0 0.0
      %2745 = vmatprep.subr.mxu0 0.0
      %2746 = vmatpush1.msra.mxu0 0.0
      %2747 = vmatprep.subr.mxu0 0.0
      %2748 = vmatpush1.msra.mxu0 0.0
      %2749 = vmatprep.subr.mxu0 0.0
      %2750 = vmatpush1.msra.mxu0 0.0
      %2751 = vmatprep.subr.mxu0 0.0
      %2752 = vmatpush1.msra.mxu0 0.0
      %2753 = vmatprep.subr.mxu0 0.0
      %2754 = vmatpush1.msra.mxu0 0.0
      %2755 = vmatprep.subr.mxu0 0.0
      %2756 = vmatpush1.msra.mxu0 0.0
      %2757 = vmatprep.subr.mxu0 0.0
      %2758 = vmatpush1.msra.mxu0 0.0
      %2759 = vmatprep.subr.mxu0 0.0
      %2760 = vmatpush1.msra.mxu0 0.0
      %2761 = vmatprep.subr.mxu0 0.0
      %2762 = vmatpush1.msra.mxu0 0.0
      %2763 = vmatprep.subr.mxu0 0.0
      %2764 = vmatpush1.msra.mxu0 0.0
      %2765 = vmatprep.subr.mxu0 0.0
      %2766 = vmatpush1.msra.mxu0 0.0
      %2767 = vmatprep.subr.mxu0 0.0
      %2768 = vmatpush1.msra.mxu0 0.0
      %2769 = vmatprep.subr.mxu0 0.0
      %2770 = vmatpush1.msra.mxu0 0.0
      %2771 = vmatprep.subr.mxu0 0.0
      %2772 = vmatpush1.msra.mxu0 0.0
      %2773 = vmatprep.subr.mxu0 0.0
      %2774 = vmatpush1.msra.mxu0 0.0
      %2775 = vmatprep.subr.mxu0 0.0
      %2776 = vmatpush1.msra.mxu0 0.0
      %2777 = vmatprep.subr.mxu0 0.0
      %2778 = vmatpush1.msra.mxu0 0.0
      %2779 = vmatprep.mubr.f32.mxu0 0.0
      %2780 = vmatmul.mubr.f32.gmra.mrb[0].mxu0 %v2710
      %v2781 = vpop.f32.mrb[0].mxu0
      %v2782 = vadd.f32 0.0, %v2781
      %v2783 = vpop.f32.mrb[0].mxu0
      %2784 = vmatprep.mubr.f32.mxu0 0.0
      %2785 = vmatmul.mubr.f32.gmra.mrb[0].mxu0 %v2713
      %v2786 = vpop.f32.mrb[0].mxu0
      %v2787 = vadd.f32 0.0, %v2786
      %v2788 = vpop.f32.mrb[0].mxu0
      %2789 = vdwg.mxu0
      %v2790 = vld [vmem:[#allocation3 + $0x10] sm:$0xff]
      %v2791 = vld [vmem:[#allocation3 + $0x38] sm:$0xff]
      %v2793 = vsel %vm224, %v2790, 0
      %v2796 = vsel %vm224, %v2791, 0
      %2798 = vmatprep.subr.mxu0 0.0
      %2799 = vmatpush1.msra.mxu0 %v2624
      %2800 = vmatprep.subr.mxu0 0.0
      %2801 = vmatpush1.msra.mxu0 %v2625
      %2802 = vmatprep.subr.mxu0 0.0
      %2803 = vmatpush1.msra.mxu0 0.0
      %2804 = vmatprep.subr.mxu0 0.0
      %2805 = vmatpush1.msra.mxu0 0.0
      %2806 = vmatprep.subr.mxu0 0.0
      %2807 = vmatpush1.msra.mxu0 0.0
      %2808 = vmatprep.subr.mxu0 0.0
      %2809 = vmatpush1.msra.mxu0 0.0
      %2810 = vmatprep.subr.mxu0 0.0
      %2811 = vmatpush1.msra.mxu0 0.0
      %2812 = vmatprep.subr.mxu0 0.0
      %2813 = vmatpush1.msra.mxu0 0.0
      %2814 = vmatprep.subr.mxu0 0.0
      %2815 = vmatpush1.msra.mxu0 0.0
      %2816 = vmatprep.subr.mxu0 0.0
      %2817 = vmatpush1.msra.mxu0 0.0
      %2818 = vmatprep.subr.mxu0 0.0
      %2819 = vmatpush1.msra.mxu0 0.0
      %2820 = vmatprep.subr.mxu0 0.0
      %2821 = vmatpush1.msra.mxu0 0.0
      %2822 = vmatprep.subr.mxu0 0.0
      %2823 = vmatpush1.msra.mxu0 0.0
      %2824 = vmatprep.subr.mxu0 0.0
      %2825 = vmatpush1.msra.mxu0 0.0
      %2826 = vmatprep.subr.mxu0 0.0
      %2827 = vmatpush1.msra.mxu0 0.0
      %2828 = vmatprep.subr.mxu0 0.0
      %2829 = vmatpush1.msra.mxu0 0.0
      %2830 = vmatprep.subr.mxu0 0.0
      %2831 = vmatpush1.msra.mxu0 0.0
      %2832 = vmatprep.subr.mxu0 0.0
      %2833 = vmatpush1.msra.mxu0 0.0
      %2834 = vmatprep.subr.mxu0 0.0
      %2835 = vmatpush1.msra.mxu0 0.0
      %2836 = vmatprep.subr.mxu0 0.0
      %2837 = vmatpush1.msra.mxu0 0.0
      %2838 = vmatprep.subr.mxu0 0.0
      %2839 = vmatpush1.msra.mxu0 0.0
      %2840 = vmatprep.subr.mxu0 0.0
      %2841 = vmatpush1.msra.mxu0 0.0
      %2842 = vmatprep.subr.mxu0 0.0
      %2843 = vmatpush1.msra.mxu0 0.0
      %2844 = vmatprep.subr.mxu0 0.0
      %2845 = vmatpush1.msra.mxu0 0.0
      %2846 = vmatprep.subr.mxu0 0.0
      %2847 = vmatpush1.msra.mxu0 0.0
      %2848 = vmatprep.subr.mxu0 0.0
      %2849 = vmatpush1.msra.mxu0 0.0
      %2850 = vmatprep.subr.mxu0 0.0
      %2851 = vmatpush1.msra.mxu0 0.0
      %2852 = vmatprep.subr.mxu0 0.0
      %2853 = vmatpush1.msra.mxu0 0.0
      %2854 = vmatprep.subr.mxu0 0.0
      %2855 = vmatpush1.msra.mxu0 0.0
      %2856 = vmatprep.subr.mxu0 0.0
      %2857 = vmatpush1.msra.mxu0 0.0
      %2858 = vmatprep.subr.mxu0 0.0
      %2859 = vmatpush1.msra.mxu0 0.0
      %2860 = vmatprep.subr.mxu0 0.0
      %2861 = vmatpush1.msra.mxu0 0.0
      %2862 = vmatprep.mubr.f32.mxu0 0.0
      %2863 = vmatmul.mubr.f32.gmra.mrb[0].mxu0 %v2793
      %v2864 = vpop.f32.mrb[0].mxu0
      %v2865 = vadd.f32 0.0, %v2864
      %v2866 = vpop.f32.mrb[0].mxu0
      %2867 = vmatprep.mubr.f32.mxu0 0.0
      %2868 = vmatmul.mubr.f32.gmra.mrb[0].mxu0 %v2796
      %v2869 = vpop.f32.mrb[0].mxu0
      %v2870 = vadd.f32 0.0, %v2869
      %v2871 = vpop.f32.mrb[0].mxu0
      %2872 = vdwg.mxu0
      %v2873 = vld [vmem:[#allocation3 + $0x18] sm:$0xff]
      %v2874 = vld [vmem:[#allocation3 + $0x40] sm:$0xff]
      %v2876 = vsel %vm224, %v2873, 0
      %v2879 = vsel %vm224, %v2874, 0
      %2881 = vmatprep.subr.mxu0 0.0
      %2882 = vmatpush1.msra.mxu0 %v2624
      %2883 = vmatprep.subr.mxu0 0.0
      %2884 = vmatpush1.msra.mxu0 %v2625
      %2885 = vmatprep.subr.mxu0 0.0
      %2886 = vmatpush1.msra.mxu0 0.0
      %2887 = vmatprep.subr.mxu0 0.0
      %2888 = vmatpush1.msra.mxu0 0.0
      %2889 = vmatprep.subr.mxu0 0.0
      %2890 = vmatpush1.msra.mxu0 0.0
      %2891 = vmatprep.subr.mxu0 0.0
      %2892 = vmatpush1.msra.mxu0 0.0
      %2893 = vmatprep.subr.mxu0 0.0
      %2894 = vmatpush1.msra.mxu0 0.0
      %2895 = vmatprep.subr.mxu0 0.0
      %2896 = vmatpush1.msra.mxu0 0.0
      %2897 = vmatprep.subr.mxu0 0.0
      %2898 = vmatpush1.msra.mxu0 0.0
      %2899 = vmatprep.subr.mxu0 0.0
      %2900 = vmatpush1.msra.mxu0 0.0
      %2901 = vmatprep.subr.mxu0 0.0
      %2902 = vmatpush1.msra.mxu0 0.0
      %2903 = vmatprep.subr.mxu0 0.0
      %2904 = vmatpush1.msra.mxu0 0.0
      %2905 = vmatprep.subr.mxu0 0.0
      %2906 = vmatpush1.msra.mxu0 0.0
      %2907 = vmatprep.subr.mxu0 0.0
      %2908 = vmatpush1.msra.mxu0 0.0
      %2909 = vmatprep.subr.mxu0 0.0
      %2910 = vmatpush1.msra.mxu0 0.0
      %2911 = vmatprep.subr.mxu0 0.0
      %2912 = vmatpush1.msra.mxu0 0.0
      %2913 = vmatprep.subr.mxu0 0.0
      %2914 = vmatpush1.msra.mxu0 0.0
      %2915 = vmatprep.subr.mxu0 0.0
      %2916 = vmatpush1.msra.mxu0 0.0
      %2917 = vmatprep.subr.mxu0 0.0
      %2918 = vmatpush1.msra.mxu0 0.0
      %2919 = vmatprep.subr.mxu0 0.0
      %2920 = vmatpush1.msra.mxu0 0.0
      %2921 = vmatprep.subr.mxu0 0.0
      %2922 = vmatpush1.msra.mxu0 0.0
      %2923 = vmatprep.subr.mxu0 0.0
      %2924 = vmatpush1.msra.mxu0 0.0
      %2925 = vmatprep.subr.mxu0 0.0
      %2926 = vmatpush1.msra.mxu0 0.0
      %2927 = vmatprep.subr.mxu0 0.0
      %2928 = vmatpush1.msra.mxu0 0.0
      %2929 = vmatprep.subr.mxu0 0.0
      %2930 = vmatpush1.msra.mxu0 0.0
      %2931 = vmatprep.subr.mxu0 0.0
      %2932 = vmatpush1.msra.mxu0 0.0
      %2933 = vmatprep.subr.mxu0 0.0
      %2934 = vmatpush1.msra.mxu0 0.0
      %2935 = vmatprep.subr.mxu0 0.0
      %2936 = vmatpush1.msra.mxu0 0.0
      %2937 = vmatprep.subr.mxu0 0.0
      %2938 = vmatpush1.msra.mxu0 0.0
      %2939 = vmatprep.subr.mxu0 0.0
      %2940 = vmatpush1.msra.mxu0 0.0
      %2941 = vmatprep.subr.mxu0 0.0
      %2942 = vmatpush1.msra.mxu0 0.0
      %2943 = vmatprep.subr.mxu0 0.0
      %2944 = vmatpush1.msra.mxu0 0.0
      %2945 = vmatprep.mubr.f32.mxu0 0.0
      %2946 = vmatmul.mubr.f32.gmra.mrb[0].mxu0 %v2876
      %v2947 = vpop.f32.mrb[0].mxu0
      %v2948 = vadd.f32 0.0, %v2947
      %v2949 = vpop.f32.mrb[0].mxu0
      %2950 = vmatprep.mubr.f32.mxu0 0.0
      %2951 = vmatmul.mubr.f32.gmra.mrb[0].mxu0 %v2879
      %v2952 = vpop.f32.mrb[0].mxu0
      %v2953 = vadd.f32 0.0, %v2952
      %v2954 = vpop.f32.mrb[0].mxu0
      %2955 = vdwg.mxu0
      %v2956 = vld [vmem:[#allocation3 + $0x20] sm:$0xff]
      %v2957 = vld [vmem:[#allocation3 + $0x48] sm:$0xff]
      %v2959 = vsel %vm224, %v2956, 0
      %v2962 = vsel %vm224, %v2957, 0
      %2964 = vmatprep.subr.mxu0 0.0
      %2965 = vmatpush1.msra.mxu0 %v2624
      %2966 = vmatprep.subr.mxu0 0.0
      %2967 = vmatpush1.msra.mxu0 %v2625
      %2968 = vmatprep.subr.mxu0 0.0
      %2969 = vmatpush1.msra.mxu0 0.0
      %2970 = vmatprep.subr.mxu0 0.0
      %2971 = vmatpush1.msra.mxu0 0.0
      %2972 = vmatprep.subr.mxu0 0.0
      %2973 = vmatpush1.msra.mxu0 0.0
      %2974 = vmatprep.subr.mxu0 0.0
      %2975 = vmatpush1.msra.mxu0 0.0
      %2976 = vmatprep.subr.mxu0 0.0
      %2977 = vmatpush1.msra.mxu0 0.0
      %2978 = vmatprep.subr.mxu0 0.0
      %2979 = vmatpush1.msra.mxu0 0.0
      %2980 = vmatprep.subr.mxu0 0.0
      %2981 = vmatpush1.msra.mxu0 0.0
      %2982 = vmatprep.subr.mxu0 0.0
      %2983 = vmatpush1.msra.mxu0 0.0
      %2984 = vmatprep.subr.mxu0 0.0
      %2985 = vmatpush1.msra.mxu0 0.0
      %2986 = vmatprep.subr.mxu0 0.0
      %2987 = vmatpush1.msra.mxu0 0.0
      %2988 = vmatprep.subr.mxu0 0.0
      %2989 = vmatpush1.msra.mxu0 0.0
      %2990 = vmatprep.subr.mxu0 0.0
      %2991 = vmatpush1.msra.mxu0 0.0
      %2992 = vmatprep.subr.mxu0 0.0
      %2993 = vmatpush1.msra.mxu0 0.0
      %2994 = vmatprep.subr.mxu0 0.0
      %2995 = vmatpush1.msra.mxu0 0.0
      %2996 = vmatprep.subr.mxu0 0.0
      %2997 = vmatpush1.msra.mxu0 0.0
      %2998 = vmatprep.subr.mxu0 0.0
      %2999 = vmatpush1.msra.mxu0 0.0
      %3000 = vmatprep.subr.mxu0 0.0
      %3001 = vmatpush1.msra.mxu0 0.0
      %3002 = vmatprep.subr.mxu0 0.0
      %3003 = vmatpush1.msra.mxu0 0.0
      %3004 = vmatprep.subr.mxu0 0.0
      %3005 = vmatpush1.msra.mxu0 0.0
      %3006 = vmatprep.subr.mxu0 0.0
      %3007 = vmatpush1.msra.mxu0 0.0
      %3008 = vmatprep.subr.mxu0 0.0
      %3009 = vmatpush1.msra.mxu0 0.0
      %3010 = vmatprep.subr.mxu0 0.0
      %3011 = vmatpush1.msra.mxu0 0.0
      %3012 = vmatprep.subr.mxu0 0.0
      %3013 = vmatpush1.msra.mxu0 0.0
      %3014 = vmatprep.subr.mxu0 0.0
      %3015 = vmatpush1.msra.mxu0 0.0
      %3016 = vmatprep.subr.mxu0 0.0
      %3017 = vmatpush1.msra.mxu0 0.0
      %3018 = vmatprep.subr.mxu0 0.0
      %3019 = vmatpush1.msra.mxu0 0.0
      %3020 = vmatprep.subr.mxu0 0.0
      %3021 = vmatpush1.msra.mxu0 0.0
      %3022 = vmatprep.subr.mxu0 0.0
      %3023 = vmatpush1.msra.mxu0 0.0
      %3024 = vmatprep.subr.mxu0 0.0
      %3025 = vmatpush1.msra.mxu0 0.0
      %3026 = vmatprep.subr.mxu0 0.0
      %3027 = vmatpush1.msra.mxu0 0.0
      %3028 = vmatprep.mubr.f32.mxu0 0.0
      %3029 = vmatmul.mubr.f32.gmra.mrb[0].mxu0 %v2959
      %v3030 = vpop.f32.mrb[0].mxu0
      %v3031 = vadd.f32 0.0, %v3030
      %v3032 = vpop.f32.mrb[0].mxu0
      %3033 = vmatprep.mubr.f32.mxu0 0.0
      %3034 = vmatmul.mubr.f32.gmra.mrb[0].mxu0 %v2962
      %v3035 = vpop.f32.mrb[0].mxu0
      %v3036 = vadd.f32 0.0, %v3035
      %v3037 = vpop.f32.mrb[0].mxu0
      %3038 = vdwg.mxu0
      %v3039 = vmul.f32 %v2699, %v2699
      %v3040 = vmul.f32 %v2704, %v2704
      %v3041 = vsub.f32 %v2865, %v3039
      %v3042 = vsub.f32 %v2870, %v3040
      %v3043 = vmul.f32 %v2782, %v2782
      %v3044 = vmul.f32 %v2787, %v2787
      %v3045 = vsub.f32 %v2948, %v3043
      %v3046 = vsub.f32 %v2953, %v3044
      %v3047 = vmul.f32 %v2699, %v2782
      %v3048 = vmul.f32 %v2704, %v2787
      %v3049 = vsub.f32 %v3031, %v3047
      %v3050 = vsub.f32 %v3036, %v3048
      %v3051 = vmul.f32 %v3049, 2.0
      %v3052 = vmul.f32 %v3050, 2.0
      %v3053 = vadd.f32 %v3051, 0.0009
      %v3054 = vadd.f32 %v3052, 0.0009
      %v3055 = vadd.f32 %v3041, %v3045
      %v3056 = vadd.f32 %v3042, %v3046
      %v3057 = vadd.f32 %v3055, 0.0009
      %v3058 = vadd.f32 %v3056, 0.0009
      %v3059 = vrcp.pop %v3057
      %v3060 = vrcp.pop %v3058
      %v3061 = vmul.f32 %v3053, %v3059
      %v3062 = vmul.f32 %v3054, %v3060
      %v3063 = vmul.f32 %v3061, %v3061
      %v3064 = vmul.f32 %v3062, %v3062
      %v3065 = vmul.f32 %v3063, %v3061
      %v3066 = vmul.f32 %v3064, %v3062
      %v3067 = vmul.f32 %v2361, %v3065
      %v3068 = vmul.f32 %v2362, %v3066
      %s3069 = scalar_lea.vmem %s2, 48
      %v3070 = vld [vmem:[%s3069] sm:$0xff]
      %v3071 = vld [vmem:[%s3069 + $0x8] sm:$0xff]
      %v3072 = vld [vmem:[#allocation2] sm:$0xff]
      %v3073 = vld [vmem:[#allocation2 + $0x8] sm:$0xff]
      %v3074 = vld [vmem:[#allocation2 + $0x10] sm:$0xff]
      %v3075 = vld [vmem:[#allocation2 + $0x18] sm:$0xff]
      %v3076 = vld [vmem:[#allocation2 + $0x20] sm:$0xff]
      %v3077 = vld [vmem:[#allocation2 + $0x28] sm:$0xff]
      %v3078 = vld [vmem:[#allocation2 + $0x30] sm:$0xff]
      %v3079 = vld [vmem:[#allocation2 + $0x38] sm:$0xff]
      %v3080 = vld [vmem:[#allocation2 + $0x40] sm:$0xff]
      %v3081 = vld [vmem:[#allocation2 + $0x48] sm:$0xff]
      %v3083 = vsel %vm224, %v3070, 0
      %v3086 = vsel %vm224, %v3071, 0
      %3088 = vmatprep.subr.mxu0 %v3073
      %3089 = vmatpush1.msra.mxu0 %v3072
      %3090 = vmatprep.subr.mxu0 %v3078
      %3091 = vmatpush1.msra.mxu0 %v3077
      %3092 = vmatprep.subr.mxu0 0.0
      %3093 = vmatpush1.msra.mxu0 0.0
      %3094 = vmatprep.subr.mxu0 0.0
      %3095 = vmatpush1.msra.mxu0 0.0
      %3096 = vmatprep.subr.mxu0 0.0
      %3097 = vmatpush1.msra.mxu0 0.0
      %3098 = vmatprep.subr.mxu0 0.0
      %3099 = vmatpush1.msra.mxu0 0.0
      %3100 = vmatprep.subr.mxu0 0.0
      %3101 = vmatpush1.msra.mxu0 0.0
      %3102 = vmatprep.subr.mxu0 0.0
      %3103 = vmatpush1.msra.mxu0 0.0
      %3104 = vmatprep.subr.mxu0 0.0
      %3105 = vmatpush1.msra.mxu0 0.0
      %3106 = vmatprep.subr.mxu0 0.0
      %3107 = vmatpush1.msra.mxu0 0.0
      %3108 = vmatprep.subr.mxu0 0.0
      %3109 = vmatpush1.msra.mxu0 0.0
      %3110 = vmatprep.subr.mxu0 0.0
      %3111 = vmatpush1.msra.mxu0 0.0
      %3112 = vmatprep.subr.mxu0 0.0
      %3113 = vmatpush1.msra.mxu0 0.0
      %3114 = vmatprep.subr.mxu0 0.0
      %3115 = vmatpush1.msra.mxu0 0.0
      %3116 = vmatprep.subr.mxu0 0.0
      %3117 = vmatpush1.msra.mxu0 0.0
      %3118 = vmatprep.subr.mxu0 0.0
      %3119 = vmatpush1.msra.mxu0 0.0
      %3120 = vmatprep.subr.mxu0 0.0
      %3121 = vmatpush1.msra.mxu0 0.0
      %3122 = vmatprep.subr.mxu0 0.0
      %3123 = vmatpush1.msra.mxu0 0.0
      %3124 = vmatprep.subr.mxu0 0.0
      %3125 = vmatpush1.msra.mxu0 0.0
      %3126 = vmatprep.subr.mxu0 0.0
      %3127 = vmatpush1.msra.mxu0 0.0
      %3128 = vmatprep.subr.mxu0 0.0
      %3129 = vmatpush1.msra.mxu0 0.0
      %3130 = vmatprep.subr.mxu0 0.0
      %3131 = vmatpush1.msra.mxu0 0.0
      %3132 = vmatprep.subr.mxu0 0.0
      %3133 = vmatpush1.msra.mxu0 0.0
      %3134 = vmatprep.subr.mxu0 0.0
      %3135 = vmatpush1.msra.mxu0 0.0
      %3136 = vmatprep.subr.mxu0 0.0
      %3137 = vmatpush1.msra.mxu0 0.0
      %3138 = vmatprep.subr.mxu0 0.0
      %3139 = vmatpush1.msra.mxu0 0.0
      %3140 = vmatprep.subr.mxu0 0.0
      %3141 = vmatpush1.msra.mxu0 0.0
      %3142 = vmatprep.subr.mxu0 0.0
      %3143 = vmatpush1.msra.mxu0 0.0
      %3144 = vmatprep.subr.mxu0 0.0
      %3145 = vmatpush1.msra.mxu0 0.0
      %3146 = vmatprep.subr.mxu0 0.0
      %3147 = vmatpush1.msra.mxu0 0.0
      %3148 = vmatprep.subr.mxu0 0.0
      %3149 = vmatpush1.msra.mxu0 0.0
      %3150 = vmatprep.subr.mxu0 0.0
      %3151 = vmatpush1.msra.mxu0 0.0
      %3152 = vmatprep.mubr.f32.mxu0 0.0
      %3153 = vmatmul.mubr.f32.gmra.mrb[0].mxu0 %v3083
      %v3154 = vpop.f32.mrb[0].mxu0
      %v3155 = vadd.f32 0.0, %v3154
      %v3156 = vpop.f32.mrb[0].mxu0
      %v3157 = vadd.f32 0.0, %v3156
      %3158 = vmatprep.mubr.f32.mxu0 0.0
      %3159 = vmatmul.mubr.f32.gmra.mrb[0].mxu0 %v3086
      %v3160 = vpop.f32.mrb[0].mxu0
      %v3161 = vadd.f32 0.0, %v3160
      %v3162 = vpop.f32.mrb[0].mxu0
      %v3163 = vadd.f32 0.0, %v3162
      %3164 = vdwg.mxu0
      %3165 = vmatprep.subr.mxu0 %v3075
      %3166 = vmatpush1.msra.mxu0 %v3074
      %3167 = vmatprep.subr.mxu0 %v3080
      %3168 = vmatpush1.msra.mxu0 %v3079
      %3169 = vmatprep.subr.mxu0 0.0
      %3170 = vmatpush1.msra.mxu0 0.0
      %3171 = vmatprep.subr.mxu0 0.0
      %3172 = vmatpush1.msra.mxu0 0.0
      %3173 = vmatprep.subr.mxu0 0.0
      %3174 = vmatpush1.msra.mxu0 0.0
      %3175 = vmatprep.subr.mxu0 0.0
      %3176 = vmatpush1.msra.mxu0 0.0
      %3177 = vmatprep.subr.mxu0 0.0
      %3178 = vmatpush1.msra.mxu0 0.0
      %3179 = vmatprep.subr.mxu0 0.0
      %3180 = vmatpush1.msra.mxu0 0.0
      %3181 = vmatprep.subr.mxu0 0.0
      %3182 = vmatpush1.msra.mxu0 0.0
      %3183 = vmatprep.subr.mxu0 0.0
      %3184 = vmatpush1.msra.mxu0 0.0
      %3185 = vmatprep.subr.mxu0 0.0
      %3186 = vmatpush1.msra.mxu0 0.0
      %3187 = vmatprep.subr.mxu0 0.0
      %3188 = vmatpush1.msra.mxu0 0.0
      %3189 = vmatprep.subr.mxu0 0.0
      %3190 = vmatpush1.msra.mxu0 0.0
      %3191 = vmatprep.subr.mxu0 0.0
      %3192 = vmatpush1.msra.mxu0 0.0
      %3193 = vmatprep.subr.mxu0 0.0
      %3194 = vmatpush1.msra.mxu0 0.0
      %3195 = vmatprep.subr.mxu0 0.0
      %3196 = vmatpush1.msra.mxu0 0.0
      %3197 = vmatprep.subr.mxu0 0.0
      %3198 = vmatpush1.msra.mxu0 0.0
      %3199 = vmatprep.subr.mxu0 0.0
      %3200 = vmatpush1.msra.mxu0 0.0
      %3201 = vmatprep.subr.mxu0 0.0
      %3202 = vmatpush1.msra.mxu0 0.0
      %3203 = vmatprep.subr.mxu0 0.0
      %3204 = vmatpush1.msra.mxu0 0.0
      %3205 = vmatprep.subr.mxu0 0.0
      %3206 = vmatpush1.msra.mxu0 0.0
      %3207 = vmatprep.subr.mxu0 0.0
      %3208 = vmatpush1.msra.mxu0 0.0
      %3209 = vmatprep.subr.mxu0 0.0
      %3210 = vmatpush1.msra.mxu0 0.0
      %3211 = vmatprep.subr.mxu0 0.0
      %3212 = vmatpush1.msra.mxu0 0.0
      %3213 = vmatprep.subr.mxu0 0.0
      %3214 = vmatpush1.msra.mxu0 0.0
      %3215 = vmatprep.subr.mxu0 0.0
      %3216 = vmatpush1.msra.mxu0 0.0
      %3217 = vmatprep.subr.mxu0 0.0
      %3218 = vmatpush1.msra.mxu0 0.0
      %3219 = vmatprep.subr.mxu0 0.0
      %3220 = vmatpush1.msra.mxu0 0.0
      %3221 = vmatprep.subr.mxu0 0.0
      %3222 = vmatpush1.msra.mxu0 0.0
      %3223 = vmatprep.subr.mxu0 0.0
      %3224 = vmatpush1.msra.mxu0 0.0
      %3225 = vmatprep.subr.mxu0 0.0
      %3226 = vmatpush1.msra.mxu0 0.0
      %3227 = vmatprep.subr.mxu0 0.0
      %3228 = vmatpush1.msra.mxu0 0.0
      %3229 = vmatprep.mubr.f32.mxu0 0.0
      %3230 = vmatmul.mubr.f32.gmra.mrb[0].mxu0 %v3083
      %v3231 = vpop.f32.mrb[0].mxu0
      %v3232 = vadd.f32 0.0, %v3231
      %v3233 = vpop.f32.mrb[0].mxu0
      %v3234 = vadd.f32 0.0, %v3233
      %3235 = vmatprep.mubr.f32.mxu0 0.0
      %3236 = vmatmul.mubr.f32.gmra.mrb[0].mxu0 %v3086
      %v3237 = vpop.f32.mrb[0].mxu0
      %v3238 = vadd.f32 0.0, %v3237
      %v3239 = vpop.f32.mrb[0].mxu0
      %v3240 = vadd.f32 0.0, %v3239
      %3241 = vdwg.mxu0
      %3242 = vmatprep.subr.mxu0 0.0
      %3243 = vmatpush1.msra.mxu0 %v3076
      %3244 = vmatprep.subr.mxu0 0.0
      %3245 = vmatpush1.msra.mxu0 %v3081
      %3246 = vmatprep.subr.mxu0 0.0
      %3247 = vmatpush1.msra.mxu0 0.0
      %3248 = vmatprep.subr.mxu0 0.0
      %3249 = vmatpush1.msra.mxu0 0.0
      %3250 = vmatprep.subr.mxu0 0.0
      %3251 = vmatpush1.msra.mxu0 0.0
      %3252 = vmatprep.subr.mxu0 0.0
      %3253 = vmatpush1.msra.mxu0 0.0
      %3254 = vmatprep.subr.mxu0 0.0
      %3255 = vmatpush1.msra.mxu0 0.0
      %3256 = vmatprep.subr.mxu0 0.0
      %3257 = vmatpush1.msra.mxu0 0.0
      %3258 = vmatprep.subr.mxu0 0.0
      %3259 = vmatpush1.msra.mxu0 0.0
      %3260 = vmatprep.subr.mxu0 0.0
      %3261 = vmatpush1.msra.mxu0 0.0
      %3262 = vmatprep.subr.mxu0 0.0
      %3263 = vmatpush1.msra.mxu0 0.0
      %3264 = vmatprep.subr.mxu0 0.0
      %3265 = vmatpush1.msra.mxu0 0.0
      %3266 = vmatprep.subr.mxu0 0.0
      %3267 = vmatpush1.msra.mxu0 0.0
      %3268 = vmatprep.subr.mxu0 0.0
      %3269 = vmatpush1.msra.mxu0 0.0
      %3270 = vmatprep.subr.mxu0 0.0
      %3271 = vmatpush1.msra.mxu0 0.0
      %3272 = vmatprep.subr.mxu0 0.0
      %3273 = vmatpush1.msra.mxu0 0.0
      %3274 = vmatprep.subr.mxu0 0.0
      %3275 = vmatpush1.msra.mxu0 0.0
      %3276 = vmatprep.subr.mxu0 0.0
      %3277 = vmatpush1.msra.mxu0 0.0
      %3278 = vmatprep.subr.mxu0 0.0
      %3279 = vmatpush1.msra.mxu0 0.0
      %3280 = vmatprep.subr.mxu0 0.0
      %3281 = vmatpush1.msra.mxu0 0.0
      %3282 = vmatprep.subr.mxu0 0.0
      %3283 = vmatpush1.msra.mxu0 0.0
      %3284 = vmatprep.subr.mxu0 0.0
      %3285 = vmatpush1.msra.mxu0 0.0
      %3286 = vmatprep.subr.mxu0 0.0
      %3287 = vmatpush1.msra.mxu0 0.0
      %3288 = vmatprep.subr.mxu0 0.0
      %3289 = vmatpush1.msra.mxu0 0.0
      %3290 = vmatprep.subr.mxu0 0.0
      %3291 = vmatpush1.msra.mxu0 0.0
      %3292 = vmatprep.subr.mxu0 0.0
      %3293 = vmatpush1.msra.mxu0 0.0
      %3294 = vmatprep.subr.mxu0 0.0
      %3295 = vmatpush1.msra.mxu0 0.0
      %3296 = vmatprep.subr.mxu0 0.0
      %3297 = vmatpush1.msra.mxu0 0.0
      %3298 = vmatprep.subr.mxu0 0.0
      %3299 = vmatpush1.msra.mxu0 0.0
      %3300 = vmatprep.subr.mxu0 0.0
      %3301 = vmatpush1.msra.mxu0 0.0
      %3302 = vmatprep.subr.mxu0 0.0
      %3303 = vmatpush1.msra.mxu0 0.0
      %3304 = vmatprep.subr.mxu0 0.0
      %3305 = vmatpush1.msra.mxu0 0.0
      %3306 = vmatprep.mubr.f32.mxu0 0.0
      %3307 = vmatmul.mubr.f32.gmra.mrb[0].mxu0 %v3083
      %v3308 = vpop.f32.mrb[0].mxu0
      %v3309 = vadd.f32 0.0, %v3308
      %v3310 = vpop.f32.mrb[0].mxu0
      %3311 = vmatprep.mubr.f32.mxu0 0.0
      %3312 = vmatmul.mubr.f32.gmra.mrb[0].mxu0 %v3086
      %v3313 = vpop.f32.mrb[0].mxu0
      %v3314 = vadd.f32 0.0, %v3313
      %v3315 = vpop.f32.mrb[0].mxu0
      %3316 = vdwg.mxu0
      %3317 = vst [vmem:[#allocation3] sm:$0xff] %v3155
      %3318 = vst [vmem:[#allocation3 + $0x8] sm:$0xff] %v3157
      %3319 = vst [vmem:[#allocation3 + $0x10] sm:$0xff] %v3232
      %3320 = vst [vmem:[#allocation3 + $0x18] sm:$0xff] %v3234
      %3321 = vst [vmem:[#allocation3 + $0x20] sm:$0xff] %v3309
      %3322 = vst [vmem:[#allocation3 + $0x28] sm:$0xff] %v3161
      %3323 = vst [vmem:[#allocation3 + $0x30] sm:$0xff] %v3163
      %3324 = vst [vmem:[#allocation3 + $0x38] sm:$0xff] %v3238
      %3325 = vst [vmem:[#allocation3 + $0x40] sm:$0xff] %v3240
      %3326 = vst [vmem:[#allocation3 + $0x48] sm:$0xff] %v3314
      %v3327 = vld [vmem:[#allocation3] sm:$0xff]
      %v3328 = vld [vmem:[#allocation3 + $0x28] sm:$0xff]
      %s3329 = scalar_lea.vmem %s3, 48
      %v3330 = vld [vmem:[%s3329] sm:$0xff]
      %v3331 = vld [vmem:[%s3329 + $0x8] sm:$0xff]
      %v3333 = vsel %vm224, %v3327, 0
      %v3336 = vsel %vm224, %v3328, 0
      %3338 = vmatprep.subr.mxu0 0.0
      %3339 = vmatpush1.msra.mxu0 %v3330
      %3340 = vmatprep.subr.mxu0 0.0
      %3341 = vmatpush1.msra.mxu0 %v3331
      %3342 = vmatprep.subr.mxu0 0.0
      %3343 = vmatpush1.msra.mxu0 0.0
      %3344 = vmatprep.subr.mxu0 0.0
      %3345 = vmatpush1.msra.mxu0 0.0
      %3346 = vmatprep.subr.mxu0 0.0
      %3347 = vmatpush1.msra.mxu0 0.0
      %3348 = vmatprep.subr.mxu0 0.0
      %3349 = vmatpush1.msra.mxu0 0.0
      %3350 = vmatprep.subr.mxu0 0.0
      %3351 = vmatpush1.msra.mxu0 0.0
      %3352 = vmatprep.subr.mxu0 0.0
      %3353 = vmatpush1.msra.mxu0 0.0
      %3354 = vmatprep.subr.mxu0 0.0
      %3355 = vmatpush1.msra.mxu0 0.0
      %3356 = vmatprep.subr.mxu0 0.0
      %3357 = vmatpush1.msra.mxu0 0.0
      %3358 = vmatprep.subr.mxu0 0.0
      %3359 = vmatpush1.msra.mxu0 0.0
      %3360 = vmatprep.subr.mxu0 0.0
      %3361 = vmatpush1.msra.mxu0 0.0
      %3362 = vmatprep.subr.mxu0 0.0
      %3363 = vmatpush1.msra.mxu0 0.0
      %3364 = vmatprep.subr.mxu0 0.0
      %3365 = vmatpush1.msra.mxu0 0.0
      %3366 = vmatprep.subr.mxu0 0.0
      %3367 = vmatpush1.msra.mxu0 0.0
      %3368 = vmatprep.subr.mxu0 0.0
      %3369 = vmatpush1.msra.mxu0 0.0
      %3370 = vmatprep.subr.mxu0 0.0
      %3371 = vmatpush1.msra.mxu0 0.0
      %3372 = vmatprep.subr.mxu0 0.0
      %3373 = vmatpush1.msra.mxu0 0.0
      %3374 = vmatprep.subr.mxu0 0.0
      %3375 = vmatpush1.msra.mxu0 0.0
      %3376 = vmatprep.subr.mxu0 0.0
      %3377 = vmatpush1.msra.mxu0 0.0
      %3378 = vmatprep.subr.mxu0 0.0
      %3379 = vmatpush1.msra.mxu0 0.0
      %3380 = vmatprep.subr.mxu0 0.0
      %3381 = vmatpush1.msra.mxu0 0.0
      %3382 = vmatprep.subr.mxu0 0.0
      %3383 = vmatpush1.msra.mxu0 0.0
      %3384 = vmatprep.subr.mxu0 0.0
      %3385 = vmatpush1.msra.mxu0 0.0
      %3386 = vmatprep.subr.mxu0 0.0
      %3387 = vmatpush1.msra.mxu0 0.0
      %3388 = vmatprep.subr.mxu0 0.0
      %3389 = vmatpush1.msra.mxu0 0.0
      %3390 = vmatprep.subr.mxu0 0.0
      %3391 = vmatpush1.msra.mxu0 0.0
      %3392 = vmatprep.subr.mxu0 0.0
      %3393 = vmatpush1.msra.mxu0 0.0
      %3394 = vmatprep.subr.mxu0 0.0
      %3395 = vmatpush1.msra.mxu0 0.0
      %3396 = vmatprep.subr.mxu0 0.0
      %3397 = vmatpush1.msra.mxu0 0.0
      %3398 = vmatprep.subr.mxu0 0.0
      %3399 = vmatpush1.msra.mxu0 0.0
      %3400 = vmatprep.subr.mxu0 0.0
      %3401 = vmatpush1.msra.mxu0 0.0
      %3402 = vmatprep.mubr.f32.mxu0 0.0
      %3403 = vmatmul.mubr.f32.gmra.mrb[0].mxu0 %v3333
      %v3404 = vpop.f32.mrb[0].mxu0
      %v3405 = vadd.f32 0.0, %v3404
      %v3406 = vpop.f32.mrb[0].mxu0
      %3407 = vmatprep.mubr.f32.mxu0 0.0
      %3408 = vmatmul.mubr.f32.gmra.mrb[0].mxu0 %v3336
      %v3409 = vpop.f32.mrb[0].mxu0
      %v3410 = vadd.f32 0.0, %v3409
      %v3411 = vpop.f32.mrb[0].mxu0
      %3412 = vdwg.mxu0
      %v3413 = vld [vmem:[#allocation3 + $0x8] sm:$0xff]
      %v3414 = vld [vmem:[#allocation3 + $0x30] sm:$0xff]
      %v3416 = vsel %vm224, %v3413, 0
      %v3419 = vsel %vm224, %v3414, 0
      %3421 = vmatprep.subr.mxu0 0.0
      %3422 = vmatpush1.msra.mxu0 %v3330
      %3423 = vmatprep.subr.mxu0 0.0
      %3424 = vmatpush1.msra.mxu0 %v3331
      %3425 = vmatprep.subr.mxu0 0.0
      %3426 = vmatpush1.msra.mxu0 0.0
      %3427 = vmatprep.subr.mxu0 0.0
      %3428 = vmatpush1.msra.mxu0 0.0
      %3429 = vmatprep.subr.mxu0 0.0
      %3430 = vmatpush1.msra.mxu0 0.0
      %3431 = vmatprep.subr.mxu0 0.0
      %3432 = vmatpush1.msra.mxu0 0.0
      %3433 = vmatprep.subr.mxu0 0.0
      %3434 = vmatpush1.msra.mxu0 0.0
      %3435 = vmatprep.subr.mxu0 0.0
      %3436 = vmatpush1.msra.mxu0 0.0
      %3437 = vmatprep.subr.mxu0 0.0
      %3438 = vmatpush1.msra.mxu0 0.0
      %3439 = vmatprep.subr.mxu0 0.0
      %3440 = vmatpush1.msra.mxu0 0.0
      %3441 = vmatprep.subr.mxu0 0.0
      %3442 = vmatpush1.msra.mxu0 0.0
      %3443 = vmatprep.subr.mxu0 0.0
      %3444 = vmatpush1.msra.mxu0 0.0
      %3445 = vmatprep.subr.mxu0 0.0
      %3446 = vmatpush1.msra.mxu0 0.0
      %3447 = vmatprep.subr.mxu0 0.0
      %3448 = vmatpush1.msra.mxu0 0.0
      %3449 = vmatprep.subr.mxu0 0.0
      %3450 = vmatpush1.msra.mxu0 0.0
      %3451 = vmatprep.subr.mxu0 0.0
      %3452 = vmatpush1.msra.mxu0 0.0
      %3453 = vmatprep.subr.mxu0 0.0
      %3454 = vmatpush1.msra.mxu0 0.0
      %3455 = vmatprep.subr.mxu0 0.0
      %3456 = vmatpush1.msra.mxu0 0.0
      %3457 = vmatprep.subr.mxu0 0.0
      %3458 = vmatpush1.msra.mxu0 0.0
      %3459 = vmatprep.subr.mxu0 0.0
      %3460 = vmatpush1.msra.mxu0 0.0
      %3461 = vmatprep.subr.mxu0 0.0
      %3462 = vmatpush1.msra.mxu0 0.0
      %3463 = vmatprep.subr.mxu0 0.0
      %3464 = vmatpush1.msra.mxu0 0.0
      %3465 = vmatprep.subr.mxu0 0.0
      %3466 = vmatpush1.msra.mxu0 0.0
      %3467 = vmatprep.subr.mxu0 0.0
      %3468 = vmatpush1.msra.mxu0 0.0
      %3469 = vmatprep.subr.mxu0 0.0
      %3470 = vmatpush1.msra.mxu0 0.0
      %3471 = vmatprep.subr.mxu0 0.0
      %3472 = vmatpush1.msra.mxu0 0.0
      %3473 = vmatprep.subr.mxu0 0.0
      %3474 = vmatpush1.msra.mxu0 0.0
      %3475 = vmatprep.subr.mxu0 0.0
      %3476 = vmatpush1.msra.mxu0 0.0
      %3477 = vmatprep.subr.mxu0 0.0
      %3478 = vmatpush1.msra.mxu0 0.0
      %3479 = vmatprep.subr.mxu0 0.0
      %3480 = vmatpush1.msra.mxu0 0.0
      %3481 = vmatprep.subr.mxu0 0.0
      %3482 = vmatpush1.msra.mxu0 0.0
      %3483 = vmatprep.subr.mxu0 0.0
      %3484 = vmatpush1.msra.mxu0 0.0
      %3485 = vmatprep.mubr.f32.mxu0 0.0
      %3486 = vmatmul.mubr.f32.gmra.mrb[0].mxu0 %v3416
      %v3487 = vpop.f32.mrb[0].mxu0
      %v3488 = vadd.f32 0.0, %v3487
      %v3489 = vpop.f32.mrb[0].mxu0
      %3490 = vmatprep.mubr.f32.mxu0 0.0
      %3491 = vmatmul.mubr.f32.gmra.mrb[0].mxu0 %v3419
      %v3492 = vpop.f32.mrb[0].mxu0
      %v3493 = vadd.f32 0.0, %v3492
      %v3494 = vpop.f32.mrb[0].mxu0
      %3495 = vdwg.mxu0
      %v3496 = vld [vmem:[#allocation3 + $0x10] sm:$0xff]
      %v3497 = vld [vmem:[#allocation3 + $0x38] sm:$0xff]
      %v3499 = vsel %vm224, %v3496, 0
      %v3502 = vsel %vm224, %v3497, 0
      %3504 = vmatprep.subr.mxu0 0.0
      %3505 = vmatpush1.msra.mxu0 %v3330
      %3506 = vmatprep.subr.mxu0 0.0
      %3507 = vmatpush1.msra.mxu0 %v3331
      %3508 = vmatprep.subr.mxu0 0.0
      %3509 = vmatpush1.msra.mxu0 0.0
      %3510 = vmatprep.subr.mxu0 0.0
      %3511 = vmatpush1.msra.mxu0 0.0
      %3512 = vmatprep.subr.mxu0 0.0
      %3513 = vmatpush1.msra.mxu0 0.0
      %3514 = vmatprep.subr.mxu0 0.0
      %3515 = vmatpush1.msra.mxu0 0.0
      %3516 = vmatprep.subr.mxu0 0.0
      %3517 = vmatpush1.msra.mxu0 0.0
      %3518 = vmatprep.subr.mxu0 0.0
      %3519 = vmatpush1.msra.mxu0 0.0
      %3520 = vmatprep.subr.mxu0 0.0
      %3521 = vmatpush1.msra.mxu0 0.0
      %3522 = vmatprep.subr.mxu0 0.0
      %3523 = vmatpush1.msra.mxu0 0.0
      %3524 = vmatprep.subr.mxu0 0.0
      %3525 = vmatpush1.msra.mxu0 0.0
      %3526 = vmatprep.subr.mxu0 0.0
      %3527 = vmatpush1.msra.mxu0 0.0
      %3528 = vmatprep.subr.mxu0 0.0
      %3529 = vmatpush1.msra.mxu0 0.0
      %3530 = vmatprep.subr.mxu0 0.0
      %3531 = vmatpush1.msra.mxu0 0.0
      %3532 = vmatprep.subr.mxu0 0.0
      %3533 = vmatpush1.msra.mxu0 0.0
      %3534 = vmatprep.subr.mxu0 0.0
      %3535 = vmatpush1.msra.mxu0 0.0
      %3536 = vmatprep.subr.mxu0 0.0
      %3537 = vmatpush1.msra.mxu0 0.0
      %3538 = vmatprep.subr.mxu0 0.0
      %3539 = vmatpush1.msra.mxu0 0.0
      %3540 = vmatprep.subr.mxu0 0.0
      %3541 = vmatpush1.msra.mxu0 0.0
      %3542 = vmatprep.subr.mxu0 0.0
      %3543 = vmatpush1.msra.mxu0 0.0
      %3544 = vmatprep.subr.mxu0 0.0
      %3545 = vmatpush1.msra.mxu0 0.0
      %3546 = vmatprep.subr.mxu0 0.0
      %3547 = vmatpush1.msra.mxu0 0.0
      %3548 = vmatprep.subr.mxu0 0.0
      %3549 = vmatpush1.msra.mxu0 0.0
      %3550 = vmatprep.subr.mxu0 0.0
      %3551 = vmatpush1.msra.mxu0 0.0
      %3552 = vmatprep.subr.mxu0 0.0
      %3553 = vmatpush1.msra.mxu0 0.0
      %3554 = vmatprep.subr.mxu0 0.0
      %3555 = vmatpush1.msra.mxu0 0.0
      %3556 = vmatprep.subr.mxu0 0.0
      %3557 = vmatpush1.msra.mxu0 0.0
      %3558 = vmatprep.subr.mxu0 0.0
      %3559 = vmatpush1.msra.mxu0 0.0
      %3560 = vmatprep.subr.mxu0 0.0
      %3561 = vmatpush1.msra.mxu0 0.0
      %3562 = vmatprep.subr.mxu0 0.0
      %3563 = vmatpush1.msra.mxu0 0.0
      %3564 = vmatprep.subr.mxu0 0.0
      %3565 = vmatpush1.msra.mxu0 0.0
      %3566 = vmatprep.subr.mxu0 0.0
      %3567 = vmatpush1.msra.mxu0 0.0
      %3568 = vmatprep.mubr.f32.mxu0 0.0
      %3569 = vmatmul.mubr.f32.gmra.mrb[0].mxu0 %v3499
      %v3570 = vpop.f32.mrb[0].mxu0
      %v3571 = vadd.f32 0.0, %v3570
      %v3572 = vpop.f32.mrb[0].mxu0
      %3573 = vmatprep.mubr.f32.mxu0 0.0
      %3574 = vmatmul.mubr.f32.gmra.mrb[0].mxu0 %v3502
      %v3575 = vpop.f32.mrb[0].mxu0
      %v3576 = vadd.f32 0.0, %v3575
      %v3577 = vpop.f32.mrb[0].mxu0
      %3578 = vdwg.mxu0
      %v3579 = vld [vmem:[#allocation3 + $0x18] sm:$0xff]
      %v3580 = vld [vmem:[#allocation3 + $0x40] sm:$0xff]
      %v3582 = vsel %vm224, %v3579, 0
      %v3585 = vsel %vm224, %v3580, 0
      %3587 = vmatprep.subr.mxu0 0.0
      %3588 = vmatpush1.msra.mxu0 %v3330
      %3589 = vmatprep.subr.mxu0 0.0
      %3590 = vmatpush1.msra.mxu0 %v3331
      %3591 = vmatprep.subr.mxu0 0.0
      %3592 = vmatpush1.msra.mxu0 0.0
      %3593 = vmatprep.subr.mxu0 0.0
      %3594 = vmatpush1.msra.mxu0 0.0
      %3595 = vmatprep.subr.mxu0 0.0
      %3596 = vmatpush1.msra.mxu0 0.0
      %3597 = vmatprep.subr.mxu0 0.0
      %3598 = vmatpush1.msra.mxu0 0.0
      %3599 = vmatprep.subr.mxu0 0.0
      %3600 = vmatpush1.msra.mxu0 0.0
      %3601 = vmatprep.subr.mxu0 0.0
      %3602 = vmatpush1.msra.mxu0 0.0
      %3603 = vmatprep.subr.mxu0 0.0
      %3604 = vmatpush1.msra.mxu0 0.0
      %3605 = vmatprep.subr.mxu0 0.0
      %3606 = vmatpush1.msra.mxu0 0.0
      %3607 = vmatprep.subr.mxu0 0.0
      %3608 = vmatpush1.msra.mxu0 0.0
      %3609 = vmatprep.subr.mxu0 0.0
      %3610 = vmatpush1.msra.mxu0 0.0
      %3611 = vmatprep.subr.mxu0 0.0
      %3612 = vmatpush1.msra.mxu0 0.0
      %3613 = vmatprep.subr.mxu0 0.0
      %3614 = vmatpush1.msra.mxu0 0.0
      %3615 = vmatprep.subr.mxu0 0.0
      %3616 = vmatpush1.msra.mxu0 0.0
      %3617 = vmatprep.subr.mxu0 0.0
      %3618 = vmatpush1.msra.mxu0 0.0
      %3619 = vmatprep.subr.mxu0 0.0
      %3620 = vmatpush1.msra.mxu0 0.0
      %3621 = vmatprep.subr.mxu0 0.0
      %3622 = vmatpush1.msra.mxu0 0.0
      %3623 = vmatprep.subr.mxu0 0.0
      %3624 = vmatpush1.msra.mxu0 0.0
      %3625 = vmatprep.subr.mxu0 0.0
      %3626 = vmatpush1.msra.mxu0 0.0
      %3627 = vmatprep.subr.mxu0 0.0
      %3628 = vmatpush1.msra.mxu0 0.0
      %3629 = vmatprep.subr.mxu0 0.0
      %3630 = vmatpush1.msra.mxu0 0.0
      %3631 = vmatprep.subr.mxu0 0.0
      %3632 = vmatpush1.msra.mxu0 0.0
      %3633 = vmatprep.subr.mxu0 0.0
      %3634 = vmatpush1.msra.mxu0 0.0
      %3635 = vmatprep.subr.mxu0 0.0
      %3636 = vmatpush1.msra.mxu0 0.0
      %3637 = vmatprep.subr.mxu0 0.0
      %3638 = vmatpush1.msra.mxu0 0.0
      %3639 = vmatprep.subr.mxu0 0.0
      %3640 = vmatpush1.msra.mxu0 0.0
      %3641 = vmatprep.subr.mxu0 0.0
      %3642 = vmatpush1.msra.mxu0 0.0
      %3643 = vmatprep.subr.mxu0 0.0
      %3644 = vmatpush1.msra.mxu0 0.0
      %3645 = vmatprep.subr.mxu0 0.0
      %3646 = vmatpush1.msra.mxu0 0.0
      %3647 = vmatprep.subr.mxu0 0.0
      %3648 = vmatpush1.msra.mxu0 0.0
      %3649 = vmatprep.subr.mxu0 0.0
      %3650 = vmatpush1.msra.mxu0 0.0
      %3651 = vmatprep.mubr.f32.mxu0 0.0
      %3652 = vmatmul.mubr.f32.gmra.mrb[0].mxu0 %v3582
      %v3653 = vpop.f32.mrb[0].mxu0
      %v3654 = vadd.f32 0.0, %v3653
      %v3655 = vpop.f32.mrb[0].mxu0
      %3656 = vmatprep.mubr.f32.mxu0 0.0
      %3657 = vmatmul.mubr.f32.gmra.mrb[0].mxu0 %v3585
      %v3658 = vpop.f32.mrb[0].mxu0
      %v3659 = vadd.f32 0.0, %v3658
      %v3660 = vpop.f32.mrb[0].mxu0
      %3661 = vdwg.mxu0
      %v3662 = vld [vmem:[#allocation3 + $0x20] sm:$0xff]
      %v3663 = vld [vmem:[#allocation3 + $0x48] sm:$0xff]
      %v3665 = vsel %vm224, %v3662, 0
      %v3668 = vsel %vm224, %v3663, 0
      %3670 = vmatprep.subr.mxu0 0.0
      %3671 = vmatpush1.msra.mxu0 %v3330
      %3672 = vmatprep.subr.mxu0 0.0
      %3673 = vmatpush1.msra.mxu0 %v3331
      %3674 = vmatprep.subr.mxu0 0.0
      %3675 = vmatpush1.msra.mxu0 0.0
      %3676 = vmatprep.subr.mxu0 0.0
      %3677 = vmatpush1.msra.mxu0 0.0
      %3678 = vmatprep.subr.mxu0 0.0
      %3679 = vmatpush1.msra.mxu0 0.0
      %3680 = vmatprep.subr.mxu0 0.0
      %3681 = vmatpush1.msra.mxu0 0.0
      %3682 = vmatprep.subr.mxu0 0.0
      %3683 = vmatpush1.msra.mxu0 0.0
      %3684 = vmatprep.subr.mxu0 0.0
      %3685 = vmatpush1.msra.mxu0 0.0
      %3686 = vmatprep.subr.mxu0 0.0
      %3687 = vmatpush1.msra.mxu0 0.0
      %3688 = vmatprep.subr.mxu0 0.0
      %3689 = vmatpush1.msra.mxu0 0.0
      %3690 = vmatprep.subr.mxu0 0.0
      %3691 = vmatpush1.msra.mxu0 0.0
      %3692 = vmatprep.subr.mxu0 0.0
      %3693 = vmatpush1.msra.mxu0 0.0
      %3694 = vmatprep.subr.mxu0 0.0
      %3695 = vmatpush1.msra.mxu0 0.0
      %3696 = vmatprep.subr.mxu0 0.0
      %3697 = vmatpush1.msra.mxu0 0.0
      %3698 = vmatprep.subr.mxu0 0.0
      %3699 = vmatpush1.msra.mxu0 0.0
      %3700 = vmatprep.subr.mxu0 0.0
      %3701 = vmatpush1.msra.mxu0 0.0
      %3702 = vmatprep.subr.mxu0 0.0
      %3703 = vmatpush1.msra.mxu0 0.0
      %3704 = vmatprep.subr.mxu0 0.0
      %3705 = vmatpush1.msra.mxu0 0.0
      %3706 = vmatprep.subr.mxu0 0.0
      %3707 = vmatpush1.msra.mxu0 0.0
      %3708 = vmatprep.subr.mxu0 0.0
      %3709 = vmatpush1.msra.mxu0 0.0
      %3710 = vmatprep.subr.mxu0 0.0
      %3711 = vmatpush1.msra.mxu0 0.0
      %3712 = vmatprep.subr.mxu0 0.0
      %3713 = vmatpush1.msra.mxu0 0.0
      %3714 = vmatprep.subr.mxu0 0.0
      %3715 = vmatpush1.msra.mxu0 0.0
      %3716 = vmatprep.subr.mxu0 0.0
      %3717 = vmatpush1.msra.mxu0 0.0
      %3718 = vmatprep.subr.mxu0 0.0
      %3719 = vmatpush1.msra.mxu0 0.0
      %3720 = vmatprep.subr.mxu0 0.0
      %3721 = vmatpush1.msra.mxu0 0.0
      %3722 = vmatprep.subr.mxu0 0.0
      %3723 = vmatpush1.msra.mxu0 0.0
      %3724 = vmatprep.subr.mxu0 0.0
      %3725 = vmatpush1.msra.mxu0 0.0
      %3726 = vmatprep.subr.mxu0 0.0
      %3727 = vmatpush1.msra.mxu0 0.0
      %3728 = vmatprep.subr.mxu0 0.0
      %3729 = vmatpush1.msra.mxu0 0.0
      %3730 = vmatprep.subr.mxu0 0.0
      %3731 = vmatpush1.msra.mxu0 0.0
      %3732 = vmatprep.subr.mxu0 0.0
      %3733 = vmatpush1.msra.mxu0 0.0
      %3734 = vmatprep.mubr.f32.mxu0 0.0
      %3735 = vmatmul.mubr.f32.gmra.mrb[0].mxu0 %v3665
      %v3736 = vpop.f32.mrb[0].mxu0
      %v3737 = vadd.f32 0.0, %v3736
      %v3738 = vpop.f32.mrb[0].mxu0
      %3739 = vmatprep.mubr.f32.mxu0 0.0
      %3740 = vmatmul.mubr.f32.gmra.mrb[0].mxu0 %v3668
      %v3741 = vpop.f32.mrb[0].mxu0
      %v3742 = vadd.f32 0.0, %v3741
      %v3743 = vpop.f32.mrb[0].mxu0
      %3744 = vdwg.mxu0
      %v3745 = vmul.f32 %v3405, %v3405
      %v3746 = vmul.f32 %v3410, %v3410
      %v3747 = vsub.f32 %v3571, %v3745
      %v3748 = vsub.f32 %v3576, %v3746
      %v3749 = vmul.f32 %v3488, %v3488
      %v3750 = vmul.f32 %v3493, %v3493
      %v3751 = vsub.f32 %v3654, %v3749
      %v3752 = vsub.f32 %v3659, %v3750
      %v3753 = vmul.f32 %v3405, %v3488
      %v3754 = vmul.f32 %v3410, %v3493
      %v3755 = vsub.f32 %v3737, %v3753
      %v3756 = vsub.f32 %v3742, %v3754
      %v3757 = vmul.f32 %v3755, 2.0
      %v3758 = vmul.f32 %v3756, 2.0
      %v3759 = vadd.f32 %v3757, 0.0009
      %v3760 = vadd.f32 %v3758, 0.0009
      %v3761 = vadd.f32 %v3747, %v3751
      %v3762 = vadd.f32 %v3748, %v3752
      %v3763 = vadd.f32 %v3761, 0.0009
      %v3764 = vadd.f32 %v3762, 0.0009
      %v3765 = vrcp.pop %v3763
      %v3766 = vrcp.pop %v3764
      %v3767 = vmul.f32 %v3759, %v3765
      %v3768 = vmul.f32 %v3760, %v3766
      %v3769 = vmul.f32 %v3067, %v3767
      %v3770 = vmul.f32 %v3068, %v3768
      %s3771 = scalar_lea.vmem %s205, 32
      %v3772 = vld [vmem:[%s3771] sm:$0xff]
      %v3773 = vld [vmem:[%s3771 + $0x8] sm:$0xff]
      %s3774 = scalar_lea.vmem %s210, 32
      %v3775 = vld [vmem:[%s3774] sm:$0xff]
      %v3776 = vld [vmem:[%s3774 + $0x8] sm:$0xff]
      %v3777 = vmul.f32 %v3772, %v3772
      %v3778 = vmul.f32 %v3773, %v3773
      %v3779 = vmul.f32 %v3775, %v3775
      %v3780 = vmul.f32 %v3776, %v3776
      %v3781 = vmul.f32 %v3772, %v3775
      %v3782 = vmul.f32 %v3773, %v3776
      %3783 = vst.msk [vmem:[#allocation2] sm:$0xff] %vm224, %v3772
      %3784 = vst.msk [vmem:[#allocation2 + $0x28] sm:$0xff] %vm224, %v3773
      %3785 = vst.msk [vmem:[#allocation2 + $0x8] sm:$0xff] %vm224, %v3775
      %3786 = vst.msk [vmem:[#allocation2 + $0x30] sm:$0xff] %vm224, %v3776
      %3787 = vst.msk [vmem:[#allocation2 + $0x10] sm:$0xff] %vm224, %v3777
      %3788 = vst.msk [vmem:[#allocation2 + $0x38] sm:$0xff] %vm224, %v3778
      %3789 = vst.msk [vmem:[#allocation2 + $0x18] sm:$0xff] %vm224, %v3779
      %3790 = vst.msk [vmem:[#allocation2 + $0x40] sm:$0xff] %vm224, %v3780
      %3791 = vst.msk [vmem:[#allocation2 + $0x20] sm:$0xff] %vm224, %v3781
      %3792 = vst.msk [vmem:[#allocation2 + $0x48] sm:$0xff] %vm224, %v3782
      %v3793 = vld [vmem:[%s3069] sm:$0xff]
      %v3794 = vld [vmem:[%s3069 + $0x8] sm:$0xff]
      %v3795 = vld [vmem:[#allocation2] sm:$0xff]
      %v3796 = vld [vmem:[#allocation2 + $0x8] sm:$0xff]
      %v3797 = vld [vmem:[#allocation2 + $0x10] sm:$0xff]
      %v3798 = vld [vmem:[#allocation2 + $0x18] sm:$0xff]
      %v3799 = vld [vmem:[#allocation2 + $0x20] sm:$0xff]
      %v3800 = vld [vmem:[#allocation2 + $0x28] sm:$0xff]
      %v3801 = vld [vmem:[#allocation2 + $0x30] sm:$0xff]
      %v3802 = vld [vmem:[#allocation2 + $0x38] sm:$0xff]
      %v3803 = vld [vmem:[#allocation2 + $0x40] sm:$0xff]
      %v3804 = vld [vmem:[#allocation2 + $0x48] sm:$0xff]
      %v3806 = vsel %vm224, %v3793, 0
      %v3809 = vsel %vm224, %v3794, 0
      %3811 = vmatprep.subr.mxu0 %v3796
      %3812 = vmatpush1.msra.mxu0 %v3795
      %3813 = vmatprep.subr.mxu0 %v3801
      %3814 = vmatpush1.msra.mxu0 %v3800
      %3815 = vmatprep.subr.mxu0 0.0
      %3816 = vmatpush1.msra.mxu0 0.0
      %3817 = vmatprep.subr.mxu0 0.0
      %3818 = vmatpush1.msra.mxu0 0.0
      %3819 = vmatprep.subr.mxu0 0.0
      %3820 = vmatpush1.msra.mxu0 0.0
      %3821 = vmatprep.subr.mxu0 0.0
      %3822 = vmatpush1.msra.mxu0 0.0
      %3823 = vmatprep.subr.mxu0 0.0
      %3824 = vmatpush1.msra.mxu0 0.0
      %3825 = vmatprep.subr.mxu0 0.0
      %3826 = vmatpush1.msra.mxu0 0.0
      %3827 = vmatprep.subr.mxu0 0.0
      %3828 = vmatpush1.msra.mxu0 0.0
      %3829 = vmatprep.subr.mxu0 0.0
      %3830 = vmatpush1.msra.mxu0 0.0
      %3831 = vmatprep.subr.mxu0 0.0
      %3832 = vmatpush1.msra.mxu0 0.0
      %3833 = vmatprep.subr.mxu0 0.0
      %3834 = vmatpush1.msra.mxu0 0.0
      %3835 = vmatprep.subr.mxu0 0.0
      %3836 = vmatpush1.msra.mxu0 0.0
      %3837 = vmatprep.subr.mxu0 0.0
      %3838 = vmatpush1.msra.mxu0 0.0
      %3839 = vmatprep.subr.mxu0 0.0
      %3840 = vmatpush1.msra.mxu0 0.0
      %3841 = vmatprep.subr.mxu0 0.0
      %3842 = vmatpush1.msra.mxu0 0.0
      %3843 = vmatprep.subr.mxu0 0.0
      %3844 = vmatpush1.msra.mxu0 0.0
      %3845 = vmatprep.subr.mxu0 0.0
      %3846 = vmatpush1.msra.mxu0 0.0
      %3847 = vmatprep.subr.mxu0 0.0
      %3848 = vmatpush1.msra.mxu0 0.0
      %3849 = vmatprep.subr.mxu0 0.0
      %3850 = vmatpush1.msra.mxu0 0.0
      %3851 = vmatprep.subr.mxu0 0.0
      %3852 = vmatpush1.msra.mxu0 0.0
      %3853 = vmatprep.subr.mxu0 0.0
      %3854 = vmatpush1.msra.mxu0 0.0
      %3855 = vmatprep.subr.mxu0 0.0
      %3856 = vmatpush1.msra.mxu0 0.0
      %3857 = vmatprep.subr.mxu0 0.0
      %3858 = vmatpush1.msra.mxu0 0.0
      %3859 = vmatprep.subr.mxu0 0.0
      %3860 = vmatpush1.msra.mxu0 0.0
      %3861 = vmatprep.subr.mxu0 0.0
      %3862 = vmatpush1.msra.mxu0 0.0
      %3863 = vmatprep.subr.mxu0 0.0
      %3864 = vmatpush1.msra.mxu0 0.0
      %3865 = vmatprep.subr.mxu0 0.0
      %3866 = vmatpush1.msra.mxu0 0.0
      %3867 = vmatprep.subr.mxu0 0.0
      %3868 = vmatpush1.msra.mxu0 0.0
      %3869 = vmatprep.subr.mxu0 0.0
      %3870 = vmatpush1.msra.mxu0 0.0
      %3871 = vmatprep.subr.mxu0 0.0
      %3872 = vmatpush1.msra.mxu0 0.0
      %3873 = vmatprep.subr.mxu0 0.0
      %3874 = vmatpush1.msra.mxu0 0.0
      %3875 = vmatprep.mubr.f32.mxu0 0.0
      %3876 = vmatmul.mubr.f32.gmra.mrb[0].mxu0 %v3806
      %v3877 = vpop.f32.mrb[0].mxu0
      %v3878 = vadd.f32 0.0, %v3877
      %v3879 = vpop.f32.mrb[0].mxu0
      %v3880 = vadd.f32 0.0, %v3879
      %3881 = vmatprep.mubr.f32.mxu0 0.0
      %3882 = vmatmul.mubr.f32.gmra.mrb[0].mxu0 %v3809
      %v3883 = vpop.f32.mrb[0].mxu0
      %v3884 = vadd.f32 0.0, %v3883
      %v3885 = vpop.f32.mrb[0].mxu0
      %v3886 = vadd.f32 0.0, %v3885
      %3887 = vdwg.mxu0
      %3888 = vmatprep.subr.mxu0 %v3798
      %3889 = vmatpush1.msra.mxu0 %v3797
      %3890 = vmatprep.subr.mxu0 %v3803
      %3891 = vmatpush1.msra.mxu0 %v3802
      %3892 = vmatprep.subr.mxu0 0.0
      %3893 = vmatpush1.msra.mxu0 0.0
      %3894 = vmatprep.subr.mxu0 0.0
      %3895 = vmatpush1.msra.mxu0 0.0
      %3896 = vmatprep.subr.mxu0 0.0
      %3897 = vmatpush1.msra.mxu0 0.0
      %3898 = vmatprep.subr.mxu0 0.0
      %3899 = vmatpush1.msra.mxu0 0.0
      %3900 = vmatprep.subr.mxu0 0.0
      %3901 = vmatpush1.msra.mxu0 0.0
      %3902 = vmatprep.subr.mxu0 0.0
      %3903 = vmatpush1.msra.mxu0 0.0
      %3904 = vmatprep.subr.mxu0 0.0
      %3905 = vmatpush1.msra.mxu0 0.0
      %3906 = vmatprep.subr.mxu0 0.0
      %3907 = vmatpush1.msra.mxu0 0.0
      %3908 = vmatprep.subr.mxu0 0.0
      %3909 = vmatpush1.msra.mxu0 0.0
      %3910 = vmatprep.subr.mxu0 0.0
      %3911 = vmatpush1.msra.mxu0 0.0
      %3912 = vmatprep.subr.mxu0 0.0
      %3913 = vmatpush1.msra.mxu0 0.0
      %3914 = vmatprep.subr.mxu0 0.0
      %3915 = vmatpush1.msra.mxu0 0.0
      %3916 = vmatprep.subr.mxu0 0.0
      %3917 = vmatpush1.msra.mxu0 0.0
      %3918 = vmatprep.subr.mxu0 0.0
      %3919 = vmatpush1.msra.mxu0 0.0
      %3920 = vmatprep.subr.mxu0 0.0
      %3921 = vmatpush1.msra.mxu0 0.0
      %3922 = vmatprep.subr.mxu0 0.0
      %3923 = vmatpush1.msra.mxu0 0.0
      %3924 = vmatprep.subr.mxu0 0.0
      %3925 = vmatpush1.msra.mxu0 0.0
      %3926 = vmatprep.subr.mxu0 0.0
      %3927 = vmatpush1.msra.mxu0 0.0
      %3928 = vmatprep.subr.mxu0 0.0
      %3929 = vmatpush1.msra.mxu0 0.0
      %3930 = vmatprep.subr.mxu0 0.0
      %3931 = vmatpush1.msra.mxu0 0.0
      %3932 = vmatprep.subr.mxu0 0.0
      %3933 = vmatpush1.msra.mxu0 0.0
      %3934 = vmatprep.subr.mxu0 0.0
      %3935 = vmatpush1.msra.mxu0 0.0
      %3936 = vmatprep.subr.mxu0 0.0
      %3937 = vmatpush1.msra.mxu0 0.0
      %3938 = vmatprep.subr.mxu0 0.0
      %3939 = vmatpush1.msra.mxu0 0.0
      %3940 = vmatprep.subr.mxu0 0.0
      %3941 = vmatpush1.msra.mxu0 0.0
      %3942 = vmatprep.subr.mxu0 0.0
      %3943 = vmatpush1.msra.mxu0 0.0
      %3944 = vmatprep.subr.mxu0 0.0
      %3945 = vmatpush1.msra.mxu0 0.0
      %3946 = vmatprep.subr.mxu0 0.0
      %3947 = vmatpush1.msra.mxu0 0.0
      %3948 = vmatprep.subr.mxu0 0.0
      %3949 = vmatpush1.msra.mxu0 0.0
      %3950 = vmatprep.subr.mxu0 0.0
      %3951 = vmatpush1.msra.mxu0 0.0
      %3952 = vmatprep.mubr.f32.mxu0 0.0
      %3953 = vmatmul.mubr.f32.gmra.mrb[0].mxu0 %v3806
      %v3954 = vpop.f32.mrb[0].mxu0
      %v3955 = vadd.f32 0.0, %v3954
      %v3956 = vpop.f32.mrb[0].mxu0
      %v3957 = vadd.f32 0.0, %v3956
      %3958 = vmatprep.mubr.f32.mxu0 0.0
      %3959 = vmatmul.mubr.f32.gmra.mrb[0].mxu0 %v3809
      %v3960 = vpop.f32.mrb[0].mxu0
      %v3961 = vadd.f32 0.0, %v3960
      %v3962 = vpop.f32.mrb[0].mxu0
      %v3963 = vadd.f32 0.0, %v3962
      %3964 = vdwg.mxu0
      %3965 = vmatprep.subr.mxu0 0.0
      %3966 = vmatpush1.msra.mxu0 %v3799
      %3967 = vmatprep.subr.mxu0 0.0
      %3968 = vmatpush1.msra.mxu0 %v3804
      %3969 = vmatprep.subr.mxu0 0.0
      %3970 = vmatpush1.msra.mxu0 0.0
      %3971 = vmatprep.subr.mxu0 0.0
      %3972 = vmatpush1.msra.mxu0 0.0
      %3973 = vmatprep.subr.mxu0 0.0
      %3974 = vmatpush1.msra.mxu0 0.0
      %3975 = vmatprep.subr.mxu0 0.0
      %3976 = vmatpush1.msra.mxu0 0.0
      %3977 = vmatprep.subr.mxu0 0.0
      %3978 = vmatpush1.msra.mxu0 0.0
      %3979 = vmatprep.subr.mxu0 0.0
      %3980 = vmatpush1.msra.mxu0 0.0
      %3981 = vmatprep.subr.mxu0 0.0
      %3982 = vmatpush1.msra.mxu0 0.0
      %3983 = vmatprep.subr.mxu0 0.0
      %3984 = vmatpush1.msra.mxu0 0.0
      %3985 = vmatprep.subr.mxu0 0.0
      %3986 = vmatpush1.msra.mxu0 0.0
      %3987 = vmatprep.subr.mxu0 0.0
      %3988 = vmatpush1.msra.mxu0 0.0
      %3989 = vmatprep.subr.mxu0 0.0
      %3990 = vmatpush1.msra.mxu0 0.0
      %3991 = vmatprep.subr.mxu0 0.0
      %3992 = vmatpush1.msra.mxu0 0.0
      %3993 = vmatprep.subr.mxu0 0.0
      %3994 = vmatpush1.msra.mxu0 0.0
      %3995 = vmatprep.subr.mxu0 0.0
      %3996 = vmatpush1.msra.mxu0 0.0
      %3997 = vmatprep.subr.mxu0 0.0
      %3998 = vmatpush1.msra.mxu0 0.0
      %3999 = vmatprep.subr.mxu0 0.0
      %4000 = vmatpush1.msra.mxu0 0.0
      %4001 = vmatprep.subr.mxu0 0.0
      %4002 = vmatpush1.msra.mxu0 0.0
      %4003 = vmatprep.subr.mxu0 0.0
      %4004 = vmatpush1.msra.mxu0 0.0
      %4005 = vmatprep.subr.mxu0 0.0
      %4006 = vmatpush1.msra.mxu0 0.0
      %4007 = vmatprep.subr.mxu0 0.0
      %4008 = vmatpush1.msra.mxu0 0.0
      %4009 = vmatprep.subr.mxu0 0.0
      %4010 = vmatpush1.msra.mxu0 0.0
      %4011 = vmatprep.subr.mxu0 0.0
      %4012 = vmatpush1.msra.mxu0 0.0
      %4013 = vmatprep.subr.mxu0 0.0
      %4014 = vmatpush1.msra.mxu0 0.0
      %4015 = vmatprep.subr.mxu0 0.0
      %4016 = vmatpush1.msra.mxu0 0.0
      %4017 = vmatprep.subr.mxu0 0.0
      %4018 = vmatpush1.msra.mxu0 0.0
      %4019 = vmatprep.subr.mxu0 0.0
      %4020 = vmatpush1.msra.mxu0 0.0
      %4021 = vmatprep.subr.mxu0 0.0
      %4022 = vmatpush1.msra.mxu0 0.0
      %4023 = vmatprep.subr.mxu0 0.0
      %4024 = vmatpush1.msra.mxu0 0.0
      %4025 = vmatprep.subr.mxu0 0.0
      %4026 = vmatpush1.msra.mxu0 0.0
      %4027 = vmatprep.subr.mxu0 0.0
      %4028 = vmatpush1.msra.mxu0 0.0
      %4029 = vmatprep.mubr.f32.mxu0 0.0
      %4030 = vmatmul.mubr.f32.gmra.mrb[0].mxu0 %v3806
      %v4031 = vpop.f32.mrb[0].mxu0
      %v4032 = vadd.f32 0.0, %v4031
      %v4033 = vpop.f32.mrb[0].mxu0
      %4034 = vmatprep.mubr.f32.mxu0 0.0
      %4035 = vmatmul.mubr.f32.gmra.mrb[0].mxu0 %v3809
      %v4036 = vpop.f32.mrb[0].mxu0
      %v4037 = vadd.f32 0.0, %v4036
      %v4038 = vpop.f32.mrb[0].mxu0
      %4039 = vdwg.mxu0
      %4040 = vst [vmem:[#allocation3] sm:$0xff] %v3878
      %4041 = vst [vmem:[#allocation3 + $0x8] sm:$0xff] %v3880
      %4042 = vst [vmem:[#allocation3 + $0x10] sm:$0xff] %v3955
      %4043 = vst [vmem:[#allocation3 + $0x18] sm:$0xff] %v3957
      %4044 = vst [vmem:[#allocation3 + $0x20] sm:$0xff] %v4032
      %4045 = vst [vmem:[#allocation3 + $0x28] sm:$0xff] %v3884
      %4046 = vst [vmem:[#allocation3 + $0x30] sm:$0xff] %v3886
      %4047 = vst [vmem:[#allocation3 + $0x38] sm:$0xff] %v3961
      %4048 = vst [vmem:[#allocation3 + $0x40] sm:$0xff] %v3963
      %4049 = vst [vmem:[#allocation3 + $0x48] sm:$0xff] %v4037
      %v4050 = vld [vmem:[#allocation3] sm:$0xff]
      %v4051 = vld [vmem:[#allocation3 + $0x28] sm:$0xff]
      %v4052 = vld [vmem:[%s3329] sm:$0xff]
      %v4053 = vld [vmem:[%s3329 + $0x8] sm:$0xff]
      %v4055 = vsel %vm224, %v4050, 0
      %v4058 = vsel %vm224, %v4051, 0
      %4060 = vmatprep.subr.mxu0 0.0
      %4061 = vmatpush1.msra.mxu0 %v4052
      %4062 = vmatprep.subr.mxu0 0.0
      %4063 = vmatpush1.msra.mxu0 %v4053
      %4064 = vmatprep.subr.mxu0 0.0
      %4065 = vmatpush1.msra.mxu0 0.0
      %4066 = vmatprep.subr.mxu0 0.0
      %4067 = vmatpush1.msra.mxu0 0.0
      %4068 = vmatprep.subr.mxu0 0.0
      %4069 = vmatpush1.msra.mxu0 0.0
      %4070 = vmatprep.subr.mxu0 0.0
      %4071 = vmatpush1.msra.mxu0 0.0
      %4072 = vmatprep.subr.mxu0 0.0
      %4073 = vmatpush1.msra.mxu0 0.0
      %4074 = vmatprep.subr.mxu0 0.0
      %4075 = vmatpush1.msra.mxu0 0.0
      %4076 = vmatprep.subr.mxu0 0.0
      %4077 = vmatpush1.msra.mxu0 0.0
      %4078 = vmatprep.subr.mxu0 0.0
      %4079 = vmatpush1.msra.mxu0 0.0
      %4080 = vmatprep.subr.mxu0 0.0
      %4081 = vmatpush1.msra.mxu0 0.0
      %4082 = vmatprep.subr.mxu0 0.0
      %4083 = vmatpush1.msra.mxu0 0.0
      %4084 = vmatprep.subr.mxu0 0.0
      %4085 = vmatpush1.msra.mxu0 0.0
      %4086 = vmatprep.subr.mxu0 0.0
      %4087 = vmatpush1.msra.mxu0 0.0
      %4088 = vmatprep.subr.mxu0 0.0
      %4089 = vmatpush1.msra.mxu0 0.0
      %4090 = vmatprep.subr.mxu0 0.0
      %4091 = vmatpush1.msra.mxu0 0.0
      %4092 = vmatprep.subr.mxu0 0.0
      %4093 = vmatpush1.msra.mxu0 0.0
      %4094 = vmatprep.subr.mxu0 0.0
      %4095 = vmatpush1.msra.mxu0 0.0
      %4096 = vmatprep.subr.mxu0 0.0
      %4097 = vmatpush1.msra.mxu0 0.0
      %4098 = vmatprep.subr.mxu0 0.0
      %4099 = vmatpush1.msra.mxu0 0.0
      %4100 = vmatprep.subr.mxu0 0.0
      %4101 = vmatpush1.msra.mxu0 0.0
      %4102 = vmatprep.subr.mxu0 0.0
      %4103 = vmatpush1.msra.mxu0 0.0
      %4104 = vmatprep.subr.mxu0 0.0
      %4105 = vmatpush1.msra.mxu0 0.0
      %4106 = vmatprep.subr.mxu0 0.0
      %4107 = vmatpush1.msra.mxu0 0.0
      %4108 = vmatprep.subr.mxu0 0.0
      %4109 = vmatpush1.msra.mxu0 0.0
      %4110 = vmatprep.subr.mxu0 0.0
      %4111 = vmatpush1.msra.mxu0 0.0
      %4112 = vmatprep.subr.mxu0 0.0
      %4113 = vmatpush1.msra.mxu0 0.0
      %4114 = vmatprep.subr.mxu0 0.0
      %4115 = vmatpush1.msra.mxu0 0.0
      %4116 = vmatprep.subr.mxu0 0.0
      %4117 = vmatpush1.msra.mxu0 0.0
      %4118 = vmatprep.subr.mxu0 0.0
      %4119 = vmatpush1.msra.mxu0 0.0
      %4120 = vmatprep.subr.mxu0 0.0
      %4121 = vmatpush1.msra.mxu0 0.0
      %4122 = vmatprep.subr.mxu0 0.0
      %4123 = vmatpush1.msra.mxu0 0.0
      %4124 = vmatprep.mubr.f32.mxu0 0.0
      %4125 = vmatmul.mubr.f32.gmra.mrb[0].mxu0 %v4055
      %v4126 = vpop.f32.mrb[0].mxu0
      %v4127 = vadd.f32 0.0, %v4126
      %v4128 = vpop.f32.mrb[0].mxu0
      %4129 = vmatprep.mubr.f32.mxu0 0.0
      %4130 = vmatmul.mubr.f32.gmra.mrb[0].mxu0 %v4058
      %v4131 = vpop.f32.mrb[0].mxu0
      %v4132 = vadd.f32 0.0, %v4131
      %v4133 = vpop.f32.mrb[0].mxu0
      %4134 = vdwg.mxu0
      %v4135 = vld [vmem:[#allocation3 + $0x8] sm:$0xff]
      %v4136 = vld [vmem:[#allocation3 + $0x30] sm:$0xff]
      %v4138 = vsel %vm224, %v4135, 0
      %v4141 = vsel %vm224, %v4136, 0
      %4143 = vmatprep.subr.mxu0 0.0
      %4144 = vmatpush1.msra.mxu0 %v4052
      %4145 = vmatprep.subr.mxu0 0.0
      %4146 = vmatpush1.msra.mxu0 %v4053
      %4147 = vmatprep.subr.mxu0 0.0
      %4148 = vmatpush1.msra.mxu0 0.0
      %4149 = vmatprep.subr.mxu0 0.0
      %4150 = vmatpush1.msra.mxu0 0.0
      %4151 = vmatprep.subr.mxu0 0.0
      %4152 = vmatpush1.msra.mxu0 0.0
      %4153 = vmatprep.subr.mxu0 0.0
      %4154 = vmatpush1.msra.mxu0 0.0
      %4155 = vmatprep.subr.mxu0 0.0
      %4156 = vmatpush1.msra.mxu0 0.0
      %4157 = vmatprep.subr.mxu0 0.0
      %4158 = vmatpush1.msra.mxu0 0.0
      %4159 = vmatprep.subr.mxu0 0.0
      %4160 = vmatpush1.msra.mxu0 0.0
      %4161 = vmatprep.subr.mxu0 0.0
      %4162 = vmatpush1.msra.mxu0 0.0
      %4163 = vmatprep.subr.mxu0 0.0
      %4164 = vmatpush1.msra.mxu0 0.0
      %4165 = vmatprep.subr.mxu0 0.0
      %4166 = vmatpush1.msra.mxu0 0.0
      %4167 = vmatprep.subr.mxu0 0.0
      %4168 = vmatpush1.msra.mxu0 0.0
      %4169 = vmatprep.subr.mxu0 0.0
      %4170 = vmatpush1.msra.mxu0 0.0
      %4171 = vmatprep.subr.mxu0 0.0
      %4172 = vmatpush1.msra.mxu0 0.0
      %4173 = vmatprep.subr.mxu0 0.0
      %4174 = vmatpush1.msra.mxu0 0.0
      %4175 = vmatprep.subr.mxu0 0.0
      %4176 = vmatpush1.msra.mxu0 0.0
      %4177 = vmatprep.subr.mxu0 0.0
      %4178 = vmatpush1.msra.mxu0 0.0
      %4179 = vmatprep.subr.mxu0 0.0
      %4180 = vmatpush1.msra.mxu0 0.0
      %4181 = vmatprep.subr.mxu0 0.0
      %4182 = vmatpush1.msra.mxu0 0.0
      %4183 = vmatprep.subr.mxu0 0.0
      %4184 = vmatpush1.msra.mxu0 0.0
      %4185 = vmatprep.subr.mxu0 0.0
      %4186 = vmatpush1.msra.mxu0 0.0
      %4187 = vmatprep.subr.mxu0 0.0
      %4188 = vmatpush1.msra.mxu0 0.0
      %4189 = vmatprep.subr.mxu0 0.0
      %4190 = vmatpush1.msra.mxu0 0.0
      %4191 = vmatprep.subr.mxu0 0.0
      %4192 = vmatpush1.msra.mxu0 0.0
      %4193 = vmatprep.subr.mxu0 0.0
      %4194 = vmatpush1.msra.mxu0 0.0
      %4195 = vmatprep.subr.mxu0 0.0
      %4196 = vmatpush1.msra.mxu0 0.0
      %4197 = vmatprep.subr.mxu0 0.0
      %4198 = vmatpush1.msra.mxu0 0.0
      %4199 = vmatprep.subr.mxu0 0.0
      %4200 = vmatpush1.msra.mxu0 0.0
      %4201 = vmatprep.subr.mxu0 0.0
      %4202 = vmatpush1.msra.mxu0 0.0
      %4203 = vmatprep.subr.mxu0 0.0
      %4204 = vmatpush1.msra.mxu0 0.0
      %4205 = vmatprep.subr.mxu0 0.0
      %4206 = vmatpush1.msra.mxu0 0.0
      %4207 = vmatprep.mubr.f32.mxu0 0.0
      %4208 = vmatmul.mubr.f32.gmra.mrb[0].mxu0 %v4138
      %v4209 = vpop.f32.mrb[0].mxu0
      %v4210 = vadd.f32 0.0, %v4209
      %v4211 = vpop.f32.mrb[0].mxu0
      %4212 = vmatprep.mubr.f32.mxu0 0.0
      %4213 = vmatmul.mubr.f32.gmra.mrb[0].mxu0 %v4141
      %v4214 = vpop.f32.mrb[0].mxu0
      %v4215 = vadd.f32 0.0, %v4214
      %v4216 = vpop.f32.mrb[0].mxu0
      %4217 = vdwg.mxu0
      %v4218 = vld [vmem:[#allocation3 + $0x10] sm:$0xff]
      %v4219 = vld [vmem:[#allocation3 + $0x38] sm:$0xff]
      %v4221 = vsel %vm224, %v4218, 0
      %v4224 = vsel %vm224, %v4219, 0
      %4226 = vmatprep.subr.mxu0 0.0
      %4227 = vmatpush1.msra.mxu0 %v4052
      %4228 = vmatprep.subr.mxu0 0.0
      %4229 = vmatpush1.msra.mxu0 %v4053
      %4230 = vmatprep.subr.mxu0 0.0
      %4231 = vmatpush1.msra.mxu0 0.0
      %4232 = vmatprep.subr.mxu0 0.0
      %4233 = vmatpush1.msra.mxu0 0.0
      %4234 = vmatprep.subr.mxu0 0.0
      %4235 = vmatpush1.msra.mxu0 0.0
      %4236 = vmatprep.subr.mxu0 0.0
      %4237 = vmatpush1.msra.mxu0 0.0
      %4238 = vmatprep.subr.mxu0 0.0
      %4239 = vmatpush1.msra.mxu0 0.0
      %4240 = vmatprep.subr.mxu0 0.0
      %4241 = vmatpush1.msra.mxu0 0.0
      %4242 = vmatprep.subr.mxu0 0.0
      %4243 = vmatpush1.msra.mxu0 0.0
      %4244 = vmatprep.subr.mxu0 0.0
      %4245 = vmatpush1.msra.mxu0 0.0
      %4246 = vmatprep.subr.mxu0 0.0
      %4247 = vmatpush1.msra.mxu0 0.0
      %4248 = vmatprep.subr.mxu0 0.0
      %4249 = vmatpush1.msra.mxu0 0.0
      %4250 = vmatprep.subr.mxu0 0.0
      %4251 = vmatpush1.msra.mxu0 0.0
      %4252 = vmatprep.subr.mxu0 0.0
      %4253 = vmatpush1.msra.mxu0 0.0
      %4254 = vmatprep.subr.mxu0 0.0
      %4255 = vmatpush1.msra.mxu0 0.0
      %4256 = vmatprep.subr.mxu0 0.0
      %4257 = vmatpush1.msra.mxu0 0.0
      %4258 = vmatprep.subr.mxu0 0.0
      %4259 = vmatpush1.msra.mxu0 0.0
      %4260 = vmatprep.subr.mxu0 0.0
      %4261 = vmatpush1.msra.mxu0 0.0
      %4262 = vmatprep.subr.mxu0 0.0
      %4263 = vmatpush1.msra.mxu0 0.0
      %4264 = vmatprep.subr.mxu0 0.0
      %4265 = vmatpush1.msra.mxu0 0.0
      %4266 = vmatprep.subr.mxu0 0.0
      %4267 = vmatpush1.msra.mxu0 0.0
      %4268 = vmatprep.subr.mxu0 0.0
      %4269 = vmatpush1.msra.mxu0 0.0
      %4270 = vmatprep.subr.mxu0 0.0
      %4271 = vmatpush1.msra.mxu0 0.0
      %4272 = vmatprep.subr.mxu0 0.0
      %4273 = vmatpush1.msra.mxu0 0.0
      %4274 = vmatprep.subr.mxu0 0.0
      %4275 = vmatpush1.msra.mxu0 0.0
      %4276 = vmatprep.subr.mxu0 0.0
      %4277 = vmatpush1.msra.mxu0 0.0
      %4278 = vmatprep.subr.mxu0 0.0
      %4279 = vmatpush1.msra.mxu0 0.0
      %4280 = vmatprep.subr.mxu0 0.0
      %4281 = vmatpush1.msra.mxu0 0.0
      %4282 = vmatprep.subr.mxu0 0.0
      %4283 = vmatpush1.msra.mxu0 0.0
      %4284 = vmatprep.subr.mxu0 0.0
      %4285 = vmatpush1.msra.mxu0 0.0
      %4286 = vmatprep.subr.mxu0 0.0
      %4287 = vmatpush1.msra.mxu0 0.0
      %4288 = vmatprep.subr.mxu0 0.0
      %4289 = vmatpush1.msra.mxu0 0.0
      %4290 = vmatprep.mubr.f32.mxu0 0.0
      %4291 = vmatmul.mubr.f32.gmra.mrb[0].mxu0 %v4221
      %v4292 = vpop.f32.mrb[0].mxu0
      %v4293 = vadd.f32 0.0, %v4292
      %v4294 = vpop.f32.mrb[0].mxu0
      %4295 = vmatprep.mubr.f32.mxu0 0.0
      %4296 = vmatmul.mubr.f32.gmra.mrb[0].mxu0 %v4224
      %v4297 = vpop.f32.mrb[0].mxu0
      %v4298 = vadd.f32 0.0, %v4297
      %v4299 = vpop.f32.mrb[0].mxu0
      %4300 = vdwg.mxu0
      %v4301 = vld [vmem:[#allocation3 + $0x18] sm:$0xff]
      %v4302 = vld [vmem:[#allocation3 + $0x40] sm:$0xff]
      %v4304 = vsel %vm224, %v4301, 0
      %v4307 = vsel %vm224, %v4302, 0
      %4309 = vmatprep.subr.mxu0 0.0
      %4310 = vmatpush1.msra.mxu0 %v4052
      %4311 = vmatprep.subr.mxu0 0.0
      %4312 = vmatpush1.msra.mxu0 %v4053
      %4313 = vmatprep.subr.mxu0 0.0
      %4314 = vmatpush1.msra.mxu0 0.0
      %4315 = vmatprep.subr.mxu0 0.0
      %4316 = vmatpush1.msra.mxu0 0.0
      %4317 = vmatprep.subr.mxu0 0.0
      %4318 = vmatpush1.msra.mxu0 0.0
      %4319 = vmatprep.subr.mxu0 0.0
      %4320 = vmatpush1.msra.mxu0 0.0
      %4321 = vmatprep.subr.mxu0 0.0
      %4322 = vmatpush1.msra.mxu0 0.0
      %4323 = vmatprep.subr.mxu0 0.0
      %4324 = vmatpush1.msra.mxu0 0.0
      %4325 = vmatprep.subr.mxu0 0.0
      %4326 = vmatpush1.msra.mxu0 0.0
      %4327 = vmatprep.subr.mxu0 0.0
      %4328 = vmatpush1.msra.mxu0 0.0
      %4329 = vmatprep.subr.mxu0 0.0
      %4330 = vmatpush1.msra.mxu0 0.0
      %4331 = vmatprep.subr.mxu0 0.0
      %4332 = vmatpush1.msra.mxu0 0.0
      %4333 = vmatprep.subr.mxu0 0.0
      %4334 = vmatpush1.msra.mxu0 0.0
      %4335 = vmatprep.subr.mxu0 0.0
      %4336 = vmatpush1.msra.mxu0 0.0
      %4337 = vmatprep.subr.mxu0 0.0
      %4338 = vmatpush1.msra.mxu0 0.0
      %4339 = vmatprep.subr.mxu0 0.0
      %4340 = vmatpush1.msra.mxu0 0.0
      %4341 = vmatprep.subr.mxu0 0.0
      %4342 = vmatpush1.msra.mxu0 0.0
      %4343 = vmatprep.subr.mxu0 0.0
      %4344 = vmatpush1.msra.mxu0 0.0
      %4345 = vmatprep.subr.mxu0 0.0
      %4346 = vmatpush1.msra.mxu0 0.0
      %4347 = vmatprep.subr.mxu0 0.0
      %4348 = vmatpush1.msra.mxu0 0.0
      %4349 = vmatprep.subr.mxu0 0.0
      %4350 = vmatpush1.msra.mxu0 0.0
      %4351 = vmatprep.subr.mxu0 0.0
      %4352 = vmatpush1.msra.mxu0 0.0
      %4353 = vmatprep.subr.mxu0 0.0
      %4354 = vmatpush1.msra.mxu0 0.0
      %4355 = vmatprep.subr.mxu0 0.0
      %4356 = vmatpush1.msra.mxu0 0.0
      %4357 = vmatprep.subr.mxu0 0.0
      %4358 = vmatpush1.msra.mxu0 0.0
      %4359 = vmatprep.subr.mxu0 0.0
      %4360 = vmatpush1.msra.mxu0 0.0
      %4361 = vmatprep.subr.mxu0 0.0
      %4362 = vmatpush1.msra.mxu0 0.0
      %4363 = vmatprep.subr.mxu0 0.0
      %4364 = vmatpush1.msra.mxu0 0.0
      %4365 = vmatprep.subr.mxu0 0.0
      %4366 = vmatpush1.msra.mxu0 0.0
      %4367 = vmatprep.subr.mxu0 0.0
      %4368 = vmatpush1.msra.mxu0 0.0
      %4369 = vmatprep.subr.mxu0 0.0
      %4370 = vmatpush1.msra.mxu0 0.0
      %4371 = vmatprep.subr.mxu0 0.0
      %4372 = vmatpush1.msra.mxu0 0.0
      %4373 = vmatprep.mubr.f32.mxu0 0.0
      %4374 = vmatmul.mubr.f32.gmra.mrb[0].mxu0 %v4304
      %v4375 = vpop.f32.mrb[0].mxu0
      %v4376 = vadd.f32 0.0, %v4375
      %v4377 = vpop.f32.mrb[0].mxu0
      %4378 = vmatprep.mubr.f32.mxu0 0.0
      %4379 = vmatmul.mubr.f32.gmra.mrb[0].mxu0 %v4307
      %v4380 = vpop.f32.mrb[0].mxu0
      %v4381 = vadd.f32 0.0, %v4380
      %v4382 = vpop.f32.mrb[0].mxu0
      %4383 = vdwg.mxu0
      %v4384 = vld [vmem:[#allocation3 + $0x20] sm:$0xff]
      %v4385 = vld [vmem:[#allocation3 + $0x48] sm:$0xff]
      %v4387 = vsel %vm224, %v4384, 0
      %v4390 = vsel %vm224, %v4385, 0
      %4392 = vmatprep.subr.mxu0 0.0
      %4393 = vmatpush1.msra.mxu0 %v4052
      %4394 = vmatprep.subr.mxu0 0.0
      %4395 = vmatpush1.msra.mxu0 %v4053
      %4396 = vmatprep.subr.mxu0 0.0
      %4397 = vmatpush1.msra.mxu0 0.0
      %4398 = vmatprep.subr.mxu0 0.0
      %4399 = vmatpush1.msra.mxu0 0.0
      %4400 = vmatprep.subr.mxu0 0.0
      %4401 = vmatpush1.msra.mxu0 0.0
      %4402 = vmatprep.subr.mxu0 0.0
      %4403 = vmatpush1.msra.mxu0 0.0
      %4404 = vmatprep.subr.mxu0 0.0
      %4405 = vmatpush1.msra.mxu0 0.0
      %4406 = vmatprep.subr.mxu0 0.0
      %4407 = vmatpush1.msra.mxu0 0.0
      %4408 = vmatprep.subr.mxu0 0.0
      %4409 = vmatpush1.msra.mxu0 0.0
      %4410 = vmatprep.subr.mxu0 0.0
      %4411 = vmatpush1.msra.mxu0 0.0
      %4412 = vmatprep.subr.mxu0 0.0
      %4413 = vmatpush1.msra.mxu0 0.0
      %4414 = vmatprep.subr.mxu0 0.0
      %4415 = vmatpush1.msra.mxu0 0.0
      %4416 = vmatprep.subr.mxu0 0.0
      %4417 = vmatpush1.msra.mxu0 0.0
      %4418 = vmatprep.subr.mxu0 0.0
      %4419 = vmatpush1.msra.mxu0 0.0
      %4420 = vmatprep.subr.mxu0 0.0
      %4421 = vmatpush1.msra.mxu0 0.0
      %4422 = vmatprep.subr.mxu0 0.0
      %4423 = vmatpush1.msra.mxu0 0.0
      %4424 = vmatprep.subr.mxu0 0.0
      %4425 = vmatpush1.msra.mxu0 0.0
      %4426 = vmatprep.subr.mxu0 0.0
      %4427 = vmatpush1.msra.mxu0 0.0
      %4428 = vmatprep.subr.mxu0 0.0
      %4429 = vmatpush1.msra.mxu0 0.0
      %4430 = vmatprep.subr.mxu0 0.0
      %4431 = vmatpush1.msra.mxu0 0.0
      %4432 = vmatprep.subr.mxu0 0.0
      %4433 = vmatpush1.msra.mxu0 0.0
      %4434 = vmatprep.subr.mxu0 0.0
      %4435 = vmatpush1.msra.mxu0 0.0
      %4436 = vmatprep.subr.mxu0 0.0
      %4437 = vmatpush1.msra.mxu0 0.0
      %4438 = vmatprep.subr.mxu0 0.0
      %4439 = vmatpush1.msra.mxu0 0.0
      %4440 = vmatprep.subr.mxu0 0.0
      %4441 = vmatpush1.msra.mxu0 0.0
      %4442 = vmatprep.subr.mxu0 0.0
      %4443 = vmatpush1.msra.mxu0 0.0
      %4444 = vmatprep.subr.mxu0 0.0
      %4445 = vmatpush1.msra.mxu0 0.0
      %4446 = vmatprep.subr.mxu0 0.0
      %4447 = vmatpush1.msra.mxu0 0.0
      %4448 = vmatprep.subr.mxu0 0.0
      %4449 = vmatpush1.msra.mxu0 0.0
      %4450 = vmatprep.subr.mxu0 0.0
      %4451 = vmatpush1.msra.mxu0 0.0
      %4452 = vmatprep.subr.mxu0 0.0
      %4453 = vmatpush1.msra.mxu0 0.0
      %4454 = vmatprep.subr.mxu0 0.0
      %4455 = vmatpush1.msra.mxu0 0.0
      %4456 = vmatprep.mubr.f32.mxu0 0.0
      %4457 = vmatmul.mubr.f32.gmra.mrb[0].mxu0 %v4387
      %v4458 = vpop.f32.mrb[0].mxu0
      %v4459 = vadd.f32 0.0, %v4458
      %v4460 = vpop.f32.mrb[0].mxu0
      %4461 = vmatprep.mubr.f32.mxu0 0.0
      %4462 = vmatmul.mubr.f32.gmra.mrb[0].mxu0 %v4390
      %v4463 = vpop.f32.mrb[0].mxu0
      %v4464 = vadd.f32 0.0, %v4463
      %v4465 = vpop.f32.mrb[0].mxu0
      %4466 = vdwg.mxu0
      %v4467 = vmul.f32 %v4127, %v4127
      %v4468 = vmul.f32 %v4132, %v4132
      %v4469 = vsub.f32 %v4293, %v4467
      %v4470 = vsub.f32 %v4298, %v4468
      %v4471 = vmul.f32 %v4210, %v4210
      %v4472 = vmul.f32 %v4215, %v4215
      %v4473 = vsub.f32 %v4376, %v4471
      %v4474 = vsub.f32 %v4381, %v4472
      %v4475 = vmul.f32 %v4127, %v4210
      %v4476 = vmul.f32 %v4132, %v4215
      %v4477 = vsub.f32 %v4459, %v4475
      %v4478 = vsub.f32 %v4464, %v4476
      %v4479 = vmul.f32 %v4477, 2.0
      %v4480 = vmul.f32 %v4478, 2.0
      %v4481 = vadd.f32 %v4479, 0.0009
      %v4482 = vadd.f32 %v4480, 0.0009
      %v4483 = vadd.f32 %v4469, %v4473
      %v4484 = vadd.f32 %v4470, %v4474
      %v4485 = vadd.f32 %v4483, 0.0009
      %v4486 = vadd.f32 %v4484, 0.0009
      %v4487 = vrcp.pop %v4485
      %v4488 = vrcp.pop %v4486
      %v4489 = vmul.f32 %v4481, %v4487
      %v4490 = vmul.f32 %v4482, %v4488
      %v4491 = vmul.f32 %v4489, %v4489
      %v4492 = vmul.f32 %v4490, %v4490
      %v4493 = vmul.f32 %v3769, %v4491
      %v4494 = vmul.f32 %v3770, %v4492
      %s4495 = scalar_lea.vmem %s2, 64
      %v4496 = vld [vmem:[%s4495] sm:$0xff]
      %v4497 = vld [vmem:[%s4495 + $0x8] sm:$0xff]
      %v4498 = vld [vmem:[#allocation2] sm:$0xff]
      %v4499 = vld [vmem:[#allocation2 + $0x8] sm:$0xff]
      %v4500 = vld [vmem:[#allocation2 + $0x10] sm:$0xff]
      %v4501 = vld [vmem:[#allocation2 + $0x18] sm:$0xff]
      %v4502 = vld [vmem:[#allocation2 + $0x20] sm:$0xff]
      %v4503 = vld [vmem:[#allocation2 + $0x28] sm:$0xff]
      %v4504 = vld [vmem:[#allocation2 + $0x30] sm:$0xff]
      %v4505 = vld [vmem:[#allocation2 + $0x38] sm:$0xff]
      %v4506 = vld [vmem:[#allocation2 + $0x40] sm:$0xff]
      %v4507 = vld [vmem:[#allocation2 + $0x48] sm:$0xff]
      %v4509 = vsel %vm224, %v4496, 0
      %v4512 = vsel %vm224, %v4497, 0
      %4514 = vmatprep.subr.mxu0 %v4499
      %4515 = vmatpush1.msra.mxu0 %v4498
      %4516 = vmatprep.subr.mxu0 %v4504
      %4517 = vmatpush1.msra.mxu0 %v4503
      %4518 = vmatprep.subr.mxu0 0.0
      %4519 = vmatpush1.msra.mxu0 0.0
      %4520 = vmatprep.subr.mxu0 0.0
      %4521 = vmatpush1.msra.mxu0 0.0
      %4522 = vmatprep.subr.mxu0 0.0
      %4523 = vmatpush1.msra.mxu0 0.0
      %4524 = vmatprep.subr.mxu0 0.0
      %4525 = vmatpush1.msra.mxu0 0.0
      %4526 = vmatprep.subr.mxu0 0.0
      %4527 = vmatpush1.msra.mxu0 0.0
      %4528 = vmatprep.subr.mxu0 0.0
      %4529 = vmatpush1.msra.mxu0 0.0
      %4530 = vmatprep.subr.mxu0 0.0
      %4531 = vmatpush1.msra.mxu0 0.0
      %4532 = vmatprep.subr.mxu0 0.0
      %4533 = vmatpush1.msra.mxu0 0.0
      %4534 = vmatprep.subr.mxu0 0.0
      %4535 = vmatpush1.msra.mxu0 0.0
      %4536 = vmatprep.subr.mxu0 0.0
      %4537 = vmatpush1.msra.mxu0 0.0
      %4538 = vmatprep.subr.mxu0 0.0
      %4539 = vmatpush1.msra.mxu0 0.0
      %4540 = vmatprep.subr.mxu0 0.0
      %4541 = vmatpush1.msra.mxu0 0.0
      %4542 = vmatprep.subr.mxu0 0.0
      %4543 = vmatpush1.msra.mxu0 0.0
      %4544 = vmatprep.subr.mxu0 0.0
      %4545 = vmatpush1.msra.mxu0 0.0
      %4546 = vmatprep.subr.mxu0 0.0
      %4547 = vmatpush1.msra.mxu0 0.0
      %4548 = vmatprep.subr.mxu0 0.0
      %4549 = vmatpush1.msra.mxu0 0.0
      %4550 = vmatprep.subr.mxu0 0.0
      %4551 = vmatpush1.msra.mxu0 0.0
      %4552 = vmatprep.subr.mxu0 0.0
      %4553 = vmatpush1.msra.mxu0 0.0
      %4554 = vmatprep.subr.mxu0 0.0
      %4555 = vmatpush1.msra.mxu0 0.0
      %4556 = vmatprep.subr.mxu0 0.0
      %4557 = vmatpush1.msra.mxu0 0.0
      %4558 = vmatprep.subr.mxu0 0.0
      %4559 = vmatpush1.msra.mxu0 0.0
      %4560 = vmatprep.subr.mxu0 0.0
      %4561 = vmatpush1.msra.mxu0 0.0
      %4562 = vmatprep.subr.mxu0 0.0
      %4563 = vmatpush1.msra.mxu0 0.0
      %4564 = vmatprep.subr.mxu0 0.0
      %4565 = vmatpush1.msra.mxu0 0.0
      %4566 = vmatprep.subr.mxu0 0.0
      %4567 = vmatpush1.msra.mxu0 0.0
      %4568 = vmatprep.subr.mxu0 0.0
      %4569 = vmatpush1.msra.mxu0 0.0
      %4570 = vmatprep.subr.mxu0 0.0
      %4571 = vmatpush1.msra.mxu0 0.0
      %4572 = vmatprep.subr.mxu0 0.0
      %4573 = vmatpush1.msra.mxu0 0.0
      %4574 = vmatprep.subr.mxu0 0.0
      %4575 = vmatpush1.msra.mxu0 0.0
      %4576 = vmatprep.subr.mxu0 0.0
      %4577 = vmatpush1.msra.mxu0 0.0
      %4578 = vmatprep.mubr.f32.mxu0 0.0
      %4579 = vmatmul.mubr.f32.gmra.mrb[0].mxu0 %v4509
      %v4580 = vpop.f32.mrb[0].mxu0
      %v4581 = vadd.f32 0.0, %v4580
      %v4582 = vpop.f32.mrb[0].mxu0
      %v4583 = vadd.f32 0.0, %v4582
      %4584 = vmatprep.mubr.f32.mxu0 0.0
      %4585 = vmatmul.mubr.f32.gmra.mrb[0].mxu0 %v4512
      %v4586 = vpop.f32.mrb[0].mxu0
      %v4587 = vadd.f32 0.0, %v4586
      %v4588 = vpop.f32.mrb[0].mxu0
      %v4589 = vadd.f32 0.0, %v4588
      %4590 = vdwg.mxu0
      %4591 = vmatprep.subr.mxu0 %v4501
      %4592 = vmatpush1.msra.mxu0 %v4500
      %4593 = vmatprep.subr.mxu0 %v4506
      %4594 = vmatpush1.msra.mxu0 %v4505
      %4595 = vmatprep.subr.mxu0 0.0
      %4596 = vmatpush1.msra.mxu0 0.0
      %4597 = vmatprep.subr.mxu0 0.0
      %4598 = vmatpush1.msra.mxu0 0.0
      %4599 = vmatprep.subr.mxu0 0.0
      %4600 = vmatpush1.msra.mxu0 0.0
      %4601 = vmatprep.subr.mxu0 0.0
      %4602 = vmatpush1.msra.mxu0 0.0
      %4603 = vmatprep.subr.mxu0 0.0
      %4604 = vmatpush1.msra.mxu0 0.0
      %4605 = vmatprep.subr.mxu0 0.0
      %4606 = vmatpush1.msra.mxu0 0.0
      %4607 = vmatprep.subr.mxu0 0.0
      %4608 = vmatpush1.msra.mxu0 0.0
      %4609 = vmatprep.subr.mxu0 0.0
      %4610 = vmatpush1.msra.mxu0 0.0
      %4611 = vmatprep.subr.mxu0 0.0
      %4612 = vmatpush1.msra.mxu0 0.0
      %4613 = vmatprep.subr.mxu0 0.0
      %4614 = vmatpush1.msra.mxu0 0.0
      %4615 = vmatprep.subr.mxu0 0.0
      %4616 = vmatpush1.msra.mxu0 0.0
      %4617 = vmatprep.subr.mxu0 0.0
      %4618 = vmatpush1.msra.mxu0 0.0
      %4619 = vmatprep.subr.mxu0 0.0
      %4620 = vmatpush1.msra.mxu0 0.0
      %4621 = vmatprep.subr.mxu0 0.0
      %4622 = vmatpush1.msra.mxu0 0.0
      %4623 = vmatprep.subr.mxu0 0.0
      %4624 = vmatpush1.msra.mxu0 0.0
      %4625 = vmatprep.subr.mxu0 0.0
      %4626 = vmatpush1.msra.mxu0 0.0
      %4627 = vmatprep.subr.mxu0 0.0
      %4628 = vmatpush1.msra.mxu0 0.0
      %4629 = vmatprep.subr.mxu0 0.0
      %4630 = vmatpush1.msra.mxu0 0.0
      %4631 = vmatprep.subr.mxu0 0.0
      %4632 = vmatpush1.msra.mxu0 0.0
      %4633 = vmatprep.subr.mxu0 0.0
      %4634 = vmatpush1.msra.mxu0 0.0
      %4635 = vmatprep.subr.mxu0 0.0
      %4636 = vmatpush1.msra.mxu0 0.0
      %4637 = vmatprep.subr.mxu0 0.0
      %4638 = vmatpush1.msra.mxu0 0.0
      %4639 = vmatprep.subr.mxu0 0.0
      %4640 = vmatpush1.msra.mxu0 0.0
      %4641 = vmatprep.subr.mxu0 0.0
      %4642 = vmatpush1.msra.mxu0 0.0
      %4643 = vmatprep.subr.mxu0 0.0
      %4644 = vmatpush1.msra.mxu0 0.0
      %4645 = vmatprep.subr.mxu0 0.0
      %4646 = vmatpush1.msra.mxu0 0.0
      %4647 = vmatprep.subr.mxu0 0.0
      %4648 = vmatpush1.msra.mxu0 0.0
      %4649 = vmatprep.subr.mxu0 0.0
      %4650 = vmatpush1.msra.mxu0 0.0
      %4651 = vmatprep.subr.mxu0 0.0
      %4652 = vmatpush1.msra.mxu0 0.0
      %4653 = vmatprep.subr.mxu0 0.0
      %4654 = vmatpush1.msra.mxu0 0.0
      %4655 = vmatprep.mubr.f32.mxu0 0.0
      %4656 = vmatmul.mubr.f32.gmra.mrb[0].mxu0 %v4509
      %v4657 = vpop.f32.mrb[0].mxu0
      %v4658 = vadd.f32 0.0, %v4657
      %v4659 = vpop.f32.mrb[0].mxu0
      %v4660 = vadd.f32 0.0, %v4659
      %4661 = vmatprep.mubr.f32.mxu0 0.0
      %4662 = vmatmul.mubr.f32.gmra.mrb[0].mxu0 %v4512
      %v4663 = vpop.f32.mrb[0].mxu0
      %v4664 = vadd.f32 0.0, %v4663
      %v4665 = vpop.f32.mrb[0].mxu0
      %v4666 = vadd.f32 0.0, %v4665
      %4667 = vdwg.mxu0
      %4668 = vmatprep.subr.mxu0 0.0
      %4669 = vmatpush1.msra.mxu0 %v4502
      %4670 = vmatprep.subr.mxu0 0.0
      %4671 = vmatpush1.msra.mxu0 %v4507
      %4672 = vmatprep.subr.mxu0 0.0
      %4673 = vmatpush1.msra.mxu0 0.0
      %4674 = vmatprep.subr.mxu0 0.0
      %4675 = vmatpush1.msra.mxu0 0.0
      %4676 = vmatprep.subr.mxu0 0.0
      %4677 = vmatpush1.msra.mxu0 0.0
      %4678 = vmatprep.subr.mxu0 0.0
      %4679 = vmatpush1.msra.mxu0 0.0
      %4680 = vmatprep.subr.mxu0 0.0
      %4681 = vmatpush1.msra.mxu0 0.0
      %4682 = vmatprep.subr.mxu0 0.0
      %4683 = vmatpush1.msra.mxu0 0.0
      %4684 = vmatprep.subr.mxu0 0.0
      %4685 = vmatpush1.msra.mxu0 0.0
      %4686 = vmatprep.subr.mxu0 0.0
      %4687 = vmatpush1.msra.mxu0 0.0
      %4688 = vmatprep.subr.mxu0 0.0
      %4689 = vmatpush1.msra.mxu0 0.0
      %4690 = vmatprep.subr.mxu0 0.0
      %4691 = vmatpush1.msra.mxu0 0.0
      %4692 = vmatprep.subr.mxu0 0.0
      %4693 = vmatpush1.msra.mxu0 0.0
      %4694 = vmatprep.subr.mxu0 0.0
      %4695 = vmatpush1.msra.mxu0 0.0
      %4696 = vmatprep.subr.mxu0 0.0
      %4697 = vmatpush1.msra.mxu0 0.0
      %4698 = vmatprep.subr.mxu0 0.0
      %4699 = vmatpush1.msra.mxu0 0.0
      %4700 = vmatprep.subr.mxu0 0.0
      %4701 = vmatpush1.msra.mxu0 0.0
      %4702 = vmatprep.subr.mxu0 0.0
      %4703 = vmatpush1.msra.mxu0 0.0
      %4704 = vmatprep.subr.mxu0 0.0
      %4705 = vmatpush1.msra.mxu0 0.0
      %4706 = vmatprep.subr.mxu0 0.0
      %4707 = vmatpush1.msra.mxu0 0.0
      %4708 = vmatprep.subr.mxu0 0.0
      %4709 = vmatpush1.msra.mxu0 0.0
      %4710 = vmatprep.subr.mxu0 0.0
      %4711 = vmatpush1.msra.mxu0 0.0
      %4712 = vmatprep.subr.mxu0 0.0
      %4713 = vmatpush1.msra.mxu0 0.0
      %4714 = vmatprep.subr.mxu0 0.0
      %4715 = vmatpush1.msra.mxu0 0.0
      %4716 = vmatprep.subr.mxu0 0.0
      %4717 = vmatpush1.msra.mxu0 0.0
      %4718 = vmatprep.subr.mxu0 0.0
      %4719 = vmatpush1.msra.mxu0 0.0
      %4720 = vmatprep.subr.mxu0 0.0
      %4721 = vmatpush1.msra.mxu0 0.0
      %4722 = vmatprep.subr.mxu0 0.0
      %4723 = vmatpush1.msra.mxu0 0.0
      %4724 = vmatprep.subr.mxu0 0.0
      %4725 = vmatpush1.msra.mxu0 0.0
      %4726 = vmatprep.subr.mxu0 0.0
      %4727 = vmatpush1.msra.mxu0 0.0
      %4728 = vmatprep.subr.mxu0 0.0
      %4729 = vmatpush1.msra.mxu0 0.0
      %4730 = vmatprep.subr.mxu0 0.0
      %4731 = vmatpush1.msra.mxu0 0.0
      %4732 = vmatprep.mubr.f32.mxu0 0.0
      %4733 = vmatmul.mubr.f32.gmra.mrb[0].mxu0 %v4509
      %v4734 = vpop.f32.mrb[0].mxu0
      %v4735 = vadd.f32 0.0, %v4734
      %v4736 = vpop.f32.mrb[0].mxu0
      %4737 = vmatprep.mubr.f32.mxu0 0.0
      %4738 = vmatmul.mubr.f32.gmra.mrb[0].mxu0 %v4512
      %v4739 = vpop.f32.mrb[0].mxu0
      %v4740 = vadd.f32 0.0, %v4739
      %v4741 = vpop.f32.mrb[0].mxu0
      %4742 = vdwg.mxu0
      %4743 = vst [vmem:[#allocation3] sm:$0xff] %v4581
      %4744 = vst [vmem:[#allocation3 + $0x8] sm:$0xff] %v4583
      %4745 = vst [vmem:[#allocation3 + $0x10] sm:$0xff] %v4658
      %4746 = vst [vmem:[#allocation3 + $0x18] sm:$0xff] %v4660
      %4747 = vst [vmem:[#allocation3 + $0x20] sm:$0xff] %v4735
      %4748 = vst [vmem:[#allocation3 + $0x28] sm:$0xff] %v4587
      %4749 = vst [vmem:[#allocation3 + $0x30] sm:$0xff] %v4589
      %4750 = vst [vmem:[#allocation3 + $0x38] sm:$0xff] %v4664
      %4751 = vst [vmem:[#allocation3 + $0x40] sm:$0xff] %v4666
      %4752 = vst [vmem:[#allocation3 + $0x48] sm:$0xff] %v4740
      %v4753 = vld [vmem:[#allocation3] sm:$0xff]
      %v4754 = vld [vmem:[#allocation3 + $0x28] sm:$0xff]
      %s4755 = scalar_lea.vmem %s3, 64
      %v4756 = vld [vmem:[%s4755] sm:$0xff]
      %v4757 = vld [vmem:[%s4755 + $0x8] sm:$0xff]
      %v4759 = vsel %vm224, %v4753, 0
      %v4762 = vsel %vm224, %v4754, 0
      %4764 = vmatprep.subr.mxu0 0.0
      %4765 = vmatpush1.msra.mxu0 %v4756
      %4766 = vmatprep.subr.mxu0 0.0
      %4767 = vmatpush1.msra.mxu0 %v4757
      %4768 = vmatprep.subr.mxu0 0.0
      %4769 = vmatpush1.msra.mxu0 0.0
      %4770 = vmatprep.subr.mxu0 0.0
      %4771 = vmatpush1.msra.mxu0 0.0
      %4772 = vmatprep.subr.mxu0 0.0
      %4773 = vmatpush1.msra.mxu0 0.0
      %4774 = vmatprep.subr.mxu0 0.0
      %4775 = vmatpush1.msra.mxu0 0.0
      %4776 = vmatprep.subr.mxu0 0.0
      %4777 = vmatpush1.msra.mxu0 0.0
      %4778 = vmatprep.subr.mxu0 0.0
      %4779 = vmatpush1.msra.mxu0 0.0
      %4780 = vmatprep.subr.mxu0 0.0
      %4781 = vmatpush1.msra.mxu0 0.0
      %4782 = vmatprep.subr.mxu0 0.0
      %4783 = vmatpush1.msra.mxu0 0.0
      %4784 = vmatprep.subr.mxu0 0.0
      %4785 = vmatpush1.msra.mxu0 0.0
      %4786 = vmatprep.subr.mxu0 0.0
      %4787 = vmatpush1.msra.mxu0 0.0
      %4788 = vmatprep.subr.mxu0 0.0
      %4789 = vmatpush1.msra.mxu0 0.0
      %4790 = vmatprep.subr.mxu0 0.0
      %4791 = vmatpush1.msra.mxu0 0.0
      %4792 = vmatprep.subr.mxu0 0.0
      %4793 = vmatpush1.msra.mxu0 0.0
      %4794 = vmatprep.subr.mxu0 0.0
      %4795 = vmatpush1.msra.mxu0 0.0
      %4796 = vmatprep.subr.mxu0 0.0
      %4797 = vmatpush1.msra.mxu0 0.0
      %4798 = vmatprep.subr.mxu0 0.0
      %4799 = vmatpush1.msra.mxu0 0.0
      %4800 = vmatprep.subr.mxu0 0.0
      %4801 = vmatpush1.msra.mxu0 0.0
      %4802 = vmatprep.subr.mxu0 0.0
      %4803 = vmatpush1.msra.mxu0 0.0
      %4804 = vmatprep.subr.mxu0 0.0
      %4805 = vmatpush1.msra.mxu0 0.0
      %4806 = vmatprep.subr.mxu0 0.0
      %4807 = vmatpush1.msra.mxu0 0.0
      %4808 = vmatprep.subr.mxu0 0.0
      %4809 = vmatpush1.msra.mxu0 0.0
      %4810 = vmatprep.subr.mxu0 0.0
      %4811 = vmatpush1.msra.mxu0 0.0
      %4812 = vmatprep.subr.mxu0 0.0
      %4813 = vmatpush1.msra.mxu0 0.0
      %4814 = vmatprep.subr.mxu0 0.0
      %4815 = vmatpush1.msra.mxu0 0.0
      %4816 = vmatprep.subr.mxu0 0.0
      %4817 = vmatpush1.msra.mxu0 0.0
      %4818 = vmatprep.subr.mxu0 0.0
      %4819 = vmatpush1.msra.mxu0 0.0
      %4820 = vmatprep.subr.mxu0 0.0
      %4821 = vmatpush1.msra.mxu0 0.0
      %4822 = vmatprep.subr.mxu0 0.0
      %4823 = vmatpush1.msra.mxu0 0.0
      %4824 = vmatprep.subr.mxu0 0.0
      %4825 = vmatpush1.msra.mxu0 0.0
      %4826 = vmatprep.subr.mxu0 0.0
      %4827 = vmatpush1.msra.mxu0 0.0
      %4828 = vmatprep.mubr.f32.mxu0 0.0
      %4829 = vmatmul.mubr.f32.gmra.mrb[0].mxu0 %v4759
      %v4830 = vpop.f32.mrb[0].mxu0
      %v4831 = vadd.f32 0.0, %v4830
      %v4832 = vpop.f32.mrb[0].mxu0
      %4833 = vmatprep.mubr.f32.mxu0 0.0
      %4834 = vmatmul.mubr.f32.gmra.mrb[0].mxu0 %v4762
      %v4835 = vpop.f32.mrb[0].mxu0
      %v4836 = vadd.f32 0.0, %v4835
      %v4837 = vpop.f32.mrb[0].mxu0
      %4838 = vdwg.mxu0
      %v4839 = vld [vmem:[#allocation3 + $0x8] sm:$0xff]
      %v4840 = vld [vmem:[#allocation3 + $0x30] sm:$0xff]
      %v4842 = vsel %vm224, %v4839, 0
      %v4845 = vsel %vm224, %v4840, 0
      %4847 = vmatprep.subr.mxu0 0.0
      %4848 = vmatpush1.msra.mxu0 %v4756
      %4849 = vmatprep.subr.mxu0 0.0
      %4850 = vmatpush1.msra.mxu0 %v4757
      %4851 = vmatprep.subr.mxu0 0.0
      %4852 = vmatpush1.msra.mxu0 0.0
      %4853 = vmatprep.subr.mxu0 0.0
      %4854 = vmatpush1.msra.mxu0 0.0
      %4855 = vmatprep.subr.mxu0 0.0
      %4856 = vmatpush1.msra.mxu0 0.0
      %4857 = vmatprep.subr.mxu0 0.0
      %4858 = vmatpush1.msra.mxu0 0.0
      %4859 = vmatprep.subr.mxu0 0.0
      %4860 = vmatpush1.msra.mxu0 0.0
      %4861 = vmatprep.subr.mxu0 0.0
      %4862 = vmatpush1.msra.mxu0 0.0
      %4863 = vmatprep.subr.mxu0 0.0
      %4864 = vmatpush1.msra.mxu0 0.0
      %4865 = vmatprep.subr.mxu0 0.0
      %4866 = vmatpush1.msra.mxu0 0.0
      %4867 = vmatprep.subr.mxu0 0.0
      %4868 = vmatpush1.msra.mxu0 0.0
      %4869 = vmatprep.subr.mxu0 0.0
      %4870 = vmatpush1.msra.mxu0 0.0
      %4871 = vmatprep.subr.mxu0 0.0
      %4872 = vmatpush1.msra.mxu0 0.0
      %4873 = vmatprep.subr.mxu0 0.0
      %4874 = vmatpush1.msra.mxu0 0.0
      %4875 = vmatprep.subr.mxu0 0.0
      %4876 = vmatpush1.msra.mxu0 0.0
      %4877 = vmatprep.subr.mxu0 0.0
      %4878 = vmatpush1.msra.mxu0 0.0
      %4879 = vmatprep.subr.mxu0 0.0
      %4880 = vmatpush1.msra.mxu0 0.0
      %4881 = vmatprep.subr.mxu0 0.0
      %4882 = vmatpush1.msra.mxu0 0.0
      %4883 = vmatprep.subr.mxu0 0.0
      %4884 = vmatpush1.msra.mxu0 0.0
      %4885 = vmatprep.subr.mxu0 0.0
      %4886 = vmatpush1.msra.mxu0 0.0
      %4887 = vmatprep.subr.mxu0 0.0
      %4888 = vmatpush1.msra.mxu0 0.0
      %4889 = vmatprep.subr.mxu0 0.0
      %4890 = vmatpush1.msra.mxu0 0.0
      %4891 = vmatprep.subr.mxu0 0.0
      %4892 = vmatpush1.msra.mxu0 0.0
      %4893 = vmatprep.subr.mxu0 0.0
      %4894 = vmatpush1.msra.mxu0 0.0
      %4895 = vmatprep.subr.mxu0 0.0
      %4896 = vmatpush1.msra.mxu0 0.0
      %4897 = vmatprep.subr.mxu0 0.0
      %4898 = vmatpush1.msra.mxu0 0.0
      %4899 = vmatprep.subr.mxu0 0.0
      %4900 = vmatpush1.msra.mxu0 0.0
      %4901 = vmatprep.subr.mxu0 0.0
      %4902 = vmatpush1.msra.mxu0 0.0
      %4903 = vmatprep.subr.mxu0 0.0
      %4904 = vmatpush1.msra.mxu0 0.0
      %4905 = vmatprep.subr.mxu0 0.0
      %4906 = vmatpush1.msra.mxu0 0.0
      %4907 = vmatprep.subr.mxu0 0.0
      %4908 = vmatpush1.msra.mxu0 0.0
      %4909 = vmatprep.subr.mxu0 0.0
      %4910 = vmatpush1.msra.mxu0 0.0
      %4911 = vmatprep.mubr.f32.mxu0 0.0
      %4912 = vmatmul.mubr.f32.gmra.mrb[0].mxu0 %v4842
      %v4913 = vpop.f32.mrb[0].mxu0
      %v4914 = vadd.f32 0.0, %v4913
      %v4915 = vpop.f32.mrb[0].mxu0
      %4916 = vmatprep.mubr.f32.mxu0 0.0
      %4917 = vmatmul.mubr.f32.gmra.mrb[0].mxu0 %v4845
      %v4918 = vpop.f32.mrb[0].mxu0
      %v4919 = vadd.f32 0.0, %v4918
      %v4920 = vpop.f32.mrb[0].mxu0
      %4921 = vdwg.mxu0
      %v4922 = vld [vmem:[#allocation3 + $0x10] sm:$0xff]
      %v4923 = vld [vmem:[#allocation3 + $0x38] sm:$0xff]
      %v4925 = vsel %vm224, %v4922, 0
      %v4928 = vsel %vm224, %v4923, 0
      %4930 = vmatprep.subr.mxu0 0.0
      %4931 = vmatpush1.msra.mxu0 %v4756
      %4932 = vmatprep.subr.mxu0 0.0
      %4933 = vmatpush1.msra.mxu0 %v4757
      %4934 = vmatprep.subr.mxu0 0.0
      %4935 = vmatpush1.msra.mxu0 0.0
      %4936 = vmatprep.subr.mxu0 0.0
      %4937 = vmatpush1.msra.mxu0 0.0
      %4938 = vmatprep.subr.mxu0 0.0
      %4939 = vmatpush1.msra.mxu0 0.0
      %4940 = vmatprep.subr.mxu0 0.0
      %4941 = vmatpush1.msra.mxu0 0.0
      %4942 = vmatprep.subr.mxu0 0.0
      %4943 = vmatpush1.msra.mxu0 0.0
      %4944 = vmatprep.subr.mxu0 0.0
      %4945 = vmatpush1.msra.mxu0 0.0
      %4946 = vmatprep.subr.mxu0 0.0
      %4947 = vmatpush1.msra.mxu0 0.0
      %4948 = vmatprep.subr.mxu0 0.0
      %4949 = vmatpush1.msra.mxu0 0.0
      %4950 = vmatprep.subr.mxu0 0.0
      %4951 = vmatpush1.msra.mxu0 0.0
      %4952 = vmatprep.subr.mxu0 0.0
      %4953 = vmatpush1.msra.mxu0 0.0
      %4954 = vmatprep.subr.mxu0 0.0
      %4955 = vmatpush1.msra.mxu0 0.0
      %4956 = vmatprep.subr.mxu0 0.0
      %4957 = vmatpush1.msra.mxu0 0.0
      %4958 = vmatprep.subr.mxu0 0.0
      %4959 = vmatpush1.msra.mxu0 0.0
      %4960 = vmatprep.subr.mxu0 0.0
      %4961 = vmatpush1.msra.mxu0 0.0
      %4962 = vmatprep.subr.mxu0 0.0
      %4963 = vmatpush1.msra.mxu0 0.0
      %4964 = vmatprep.subr.mxu0 0.0
      %4965 = vmatpush1.msra.mxu0 0.0
      %4966 = vmatprep.subr.mxu0 0.0
      %4967 = vmatpush1.msra.mxu0 0.0
      %4968 = vmatprep.subr.mxu0 0.0
      %4969 = vmatpush1.msra.mxu0 0.0
      %4970 = vmatprep.subr.mxu0 0.0
      %4971 = vmatpush1.msra.mxu0 0.0
      %4972 = vmatprep.subr.mxu0 0.0
      %4973 = vmatpush1.msra.mxu0 0.0
      %4974 = vmatprep.subr.mxu0 0.0
      %4975 = vmatpush1.msra.mxu0 0.0
      %4976 = vmatprep.subr.mxu0 0.0
      %4977 = vmatpush1.msra.mxu0 0.0
      %4978 = vmatprep.subr.mxu0 0.0
      %4979 = vmatpush1.msra.mxu0 0.0
      %4980 = vmatprep.subr.mxu0 0.0
      %4981 = vmatpush1.msra.mxu0 0.0
      %4982 = vmatprep.subr.mxu0 0.0
      %4983 = vmatpush1.msra.mxu0 0.0
      %4984 = vmatprep.subr.mxu0 0.0
      %4985 = vmatpush1.msra.mxu0 0.0
      %4986 = vmatprep.subr.mxu0 0.0
      %4987 = vmatpush1.msra.mxu0 0.0
      %4988 = vmatprep.subr.mxu0 0.0
      %4989 = vmatpush1.msra.mxu0 0.0
      %4990 = vmatprep.subr.mxu0 0.0
      %4991 = vmatpush1.msra.mxu0 0.0
      %4992 = vmatprep.subr.mxu0 0.0
      %4993 = vmatpush1.msra.mxu0 0.0
      %4994 = vmatprep.mubr.f32.mxu0 0.0
      %4995 = vmatmul.mubr.f32.gmra.mrb[0].mxu0 %v4925
      %v4996 = vpop.f32.mrb[0].mxu0
      %v4997 = vadd.f32 0.0, %v4996
      %v4998 = vpop.f32.mrb[0].mxu0
      %4999 = vmatprep.mubr.f32.mxu0 0.0
      %5000 = vmatmul.mubr.f32.gmra.mrb[0].mxu0 %v4928
      %v5001 = vpop.f32.mrb[0].mxu0
      %v5002 = vadd.f32 0.0, %v5001
      %v5003 = vpop.f32.mrb[0].mxu0
      %5004 = vdwg.mxu0
      %v5005 = vld [vmem:[#allocation3 + $0x18] sm:$0xff]
      %v5006 = vld [vmem:[#allocation3 + $0x40] sm:$0xff]
      %v5008 = vsel %vm224, %v5005, 0
      %v5011 = vsel %vm224, %v5006, 0
      %5013 = vmatprep.subr.mxu0 0.0
      %5014 = vmatpush1.msra.mxu0 %v4756
      %5015 = vmatprep.subr.mxu0 0.0
      %5016 = vmatpush1.msra.mxu0 %v4757
      %5017 = vmatprep.subr.mxu0 0.0
      %5018 = vmatpush1.msra.mxu0 0.0
      %5019 = vmatprep.subr.mxu0 0.0
      %5020 = vmatpush1.msra.mxu0 0.0
      %5021 = vmatprep.subr.mxu0 0.0
      %5022 = vmatpush1.msra.mxu0 0.0
      %5023 = vmatprep.subr.mxu0 0.0
      %5024 = vmatpush1.msra.mxu0 0.0
      %5025 = vmatprep.subr.mxu0 0.0
      %5026 = vmatpush1.msra.mxu0 0.0
      %5027 = vmatprep.subr.mxu0 0.0
      %5028 = vmatpush1.msra.mxu0 0.0
      %5029 = vmatprep.subr.mxu0 0.0
      %5030 = vmatpush1.msra.mxu0 0.0
      %5031 = vmatprep.subr.mxu0 0.0
      %5032 = vmatpush1.msra.mxu0 0.0
      %5033 = vmatprep.subr.mxu0 0.0
      %5034 = vmatpush1.msra.mxu0 0.0
      %5035 = vmatprep.subr.mxu0 0.0
      %5036 = vmatpush1.msra.mxu0 0.0
      %5037 = vmatprep.subr.mxu0 0.0
      %5038 = vmatpush1.msra.mxu0 0.0
      %5039 = vmatprep.subr.mxu0 0.0
      %5040 = vmatpush1.msra.mxu0 0.0
      %5041 = vmatprep.subr.mxu0 0.0
      %5042 = vmatpush1.msra.mxu0 0.0
      %5043 = vmatprep.subr.mxu0 0.0
      %5044 = vmatpush1.msra.mxu0 0.0
      %5045 = vmatprep.subr.mxu0 0.0
      %5046 = vmatpush1.msra.mxu0 0.0
      %5047 = vmatprep.subr.mxu0 0.0
      %5048 = vmatpush1.msra.mxu0 0.0
      %5049 = vmatprep.subr.mxu0 0.0
      %5050 = vmatpush1.msra.mxu0 0.0
      %5051 = vmatprep.subr.mxu0 0.0
      %5052 = vmatpush1.msra.mxu0 0.0
      %5053 = vmatprep.subr.mxu0 0.0
      %5054 = vmatpush1.msra.mxu0 0.0
      %5055 = vmatprep.subr.mxu0 0.0
      %5056 = vmatpush1.msra.mxu0 0.0
      %5057 = vmatprep.subr.mxu0 0.0
      %5058 = vmatpush1.msra.mxu0 0.0
      %5059 = vmatprep.subr.mxu0 0.0
      %5060 = vmatpush1.msra.mxu0 0.0
      %5061 = vmatprep.subr.mxu0 0.0
      %5062 = vmatpush1.msra.mxu0 0.0
      %5063 = vmatprep.subr.mxu0 0.0
      %5064 = vmatpush1.msra.mxu0 0.0
      %5065 = vmatprep.subr.mxu0 0.0
      %5066 = vmatpush1.msra.mxu0 0.0
      %5067 = vmatprep.subr.mxu0 0.0
      %5068 = vmatpush1.msra.mxu0 0.0
      %5069 = vmatprep.subr.mxu0 0.0
      %5070 = vmatpush1.msra.mxu0 0.0
      %5071 = vmatprep.subr.mxu0 0.0
      %5072 = vmatpush1.msra.mxu0 0.0
      %5073 = vmatprep.subr.mxu0 0.0
      %5074 = vmatpush1.msra.mxu0 0.0
      %5075 = vmatprep.subr.mxu0 0.0
      %5076 = vmatpush1.msra.mxu0 0.0
      %5077 = vmatprep.mubr.f32.mxu0 0.0
      %5078 = vmatmul.mubr.f32.gmra.mrb[0].mxu0 %v5008
      %v5079 = vpop.f32.mrb[0].mxu0
      %v5080 = vadd.f32 0.0, %v5079
      %v5081 = vpop.f32.mrb[0].mxu0
      %5082 = vmatprep.mubr.f32.mxu0 0.0
      %5083 = vmatmul.mubr.f32.gmra.mrb[0].mxu0 %v5011
      %v5084 = vpop.f32.mrb[0].mxu0
      %v5085 = vadd.f32 0.0, %v5084
      %v5086 = vpop.f32.mrb[0].mxu0
      %5087 = vdwg.mxu0
      %v5088 = vld [vmem:[#allocation3 + $0x20] sm:$0xff]
      %v5089 = vld [vmem:[#allocation3 + $0x48] sm:$0xff]
      %v5091 = vsel %vm224, %v5088, 0
      %v5094 = vsel %vm224, %v5089, 0
      %5096 = vmatprep.subr.mxu0 0.0
      %5097 = vmatpush1.msra.mxu0 %v4756
      %5098 = vmatprep.subr.mxu0 0.0
      %5099 = vmatpush1.msra.mxu0 %v4757
      %5100 = vmatprep.subr.mxu0 0.0
      %5101 = vmatpush1.msra.mxu0 0.0
      %5102 = vmatprep.subr.mxu0 0.0
      %5103 = vmatpush1.msra.mxu0 0.0
      %5104 = vmatprep.subr.mxu0 0.0
      %5105 = vmatpush1.msra.mxu0 0.0
      %5106 = vmatprep.subr.mxu0 0.0
      %5107 = vmatpush1.msra.mxu0 0.0
      %5108 = vmatprep.subr.mxu0 0.0
      %5109 = vmatpush1.msra.mxu0 0.0
      %5110 = vmatprep.subr.mxu0 0.0
      %5111 = vmatpush1.msra.mxu0 0.0
      %5112 = vmatprep.subr.mxu0 0.0
      %5113 = vmatpush1.msra.mxu0 0.0
      %5114 = vmatprep.subr.mxu0 0.0
      %5115 = vmatpush1.msra.mxu0 0.0
      %5116 = vmatprep.subr.mxu0 0.0
      %5117 = vmatpush1.msra.mxu0 0.0
      %5118 = vmatprep.subr.mxu0 0.0
      %5119 = vmatpush1.msra.mxu0 0.0
      %5120 = vmatprep.subr.mxu0 0.0
      %5121 = vmatpush1.msra.mxu0 0.0
      %5122 = vmatprep.subr.mxu0 0.0
      %5123 = vmatpush1.msra.mxu0 0.0
      %5124 = vmatprep.subr.mxu0 0.0
      %5125 = vmatpush1.msra.mxu0 0.0
      %5126 = vmatprep.subr.mxu0 0.0
      %5127 = vmatpush1.msra.mxu0 0.0
      %5128 = vmatprep.subr.mxu0 0.0
      %5129 = vmatpush1.msra.mxu0 0.0
      %5130 = vmatprep.subr.mxu0 0.0
      %5131 = vmatpush1.msra.mxu0 0.0
      %5132 = vmatprep.subr.mxu0 0.0
      %5133 = vmatpush1.msra.mxu0 0.0
      %5134 = vmatprep.subr.mxu0 0.0
      %5135 = vmatpush1.msra.mxu0 0.0
      %5136 = vmatprep.subr.mxu0 0.0
      %5137 = vmatpush1.msra.mxu0 0.0
      %5138 = vmatprep.subr.mxu0 0.0
      %5139 = vmatpush1.msra.mxu0 0.0
      %5140 = vmatprep.subr.mxu0 0.0
      %5141 = vmatpush1.msra.mxu0 0.0
      %5142 = vmatprep.subr.mxu0 0.0
      %5143 = vmatpush1.msra.mxu0 0.0
      %5144 = vmatprep.subr.mxu0 0.0
      %5145 = vmatpush1.msra.mxu0 0.0
      %5146 = vmatprep.subr.mxu0 0.0
      %5147 = vmatpush1.msra.mxu0 0.0
      %5148 = vmatprep.subr.mxu0 0.0
      %5149 = vmatpush1.msra.mxu0 0.0
      %5150 = vmatprep.subr.mxu0 0.0
      %5151 = vmatpush1.msra.mxu0 0.0
      %5152 = vmatprep.subr.mxu0 0.0
      %5153 = vmatpush1.msra.mxu0 0.0
      %5154 = vmatprep.subr.mxu0 0.0
      %5155 = vmatpush1.msra.mxu0 0.0
      %5156 = vmatprep.subr.mxu0 0.0
      %5157 = vmatpush1.msra.mxu0 0.0
      %5158 = vmatprep.subr.mxu0 0.0
      %5159 = vmatpush1.msra.mxu0 0.0
      %5160 = vmatprep.mubr.f32.mxu0 0.0
      %5161 = vmatmul.mubr.f32.gmra.mrb[0].mxu0 %v5091
      %v5162 = vpop.f32.mrb[0].mxu0
      %v5163 = vadd.f32 0.0, %v5162
      %v5164 = vpop.f32.mrb[0].mxu0
      %5165 = vmatprep.mubr.f32.mxu0 0.0
      %5166 = vmatmul.mubr.f32.gmra.mrb[0].mxu0 %v5094
      %v5167 = vpop.f32.mrb[0].mxu0
      %v5168 = vadd.f32 0.0, %v5167
      %v5169 = vpop.f32.mrb[0].mxu0
      %5170 = vdwg.mxu0
      %v5171 = vmul.f32 %v4831, %v4831
      %v5172 = vmul.f32 %v4836, %v4836
      %v5173 = vsub.f32 %v4997, %v5171
      %v5174 = vsub.f32 %v5002, %v5172
      %v5175 = vmul.f32 %v4914, %v4914
      %v5176 = vmul.f32 %v4919, %v4919
      %v5177 = vsub.f32 %v5080, %v5175
      %v5178 = vsub.f32 %v5085, %v5176
      %v5179 = vmul.f32 %v4831, %v4914
      %v5180 = vmul.f32 %v4836, %v4919
      %v5181 = vsub.f32 %v5163, %v5179
      %v5182 = vsub.f32 %v5168, %v5180
      %v5183 = vmul.f32 %v4831, 2.0
      %v5184 = vmul.f32 %v4836, 2.0
      %v5185 = vmul.f32 %v5183, %v4914
      %v5186 = vmul.f32 %v5184, %v4919
      %v5187 = vadd.f32 %v5185, 0.0001
      %v5188 = vadd.f32 %v5186, 0.0001
      %v5189 = vadd.f32 %v5171, %v5175
      %v5190 = vadd.f32 %v5172, %v5176
      %v5191 = vadd.f32 %v5189, 0.0001
      %v5192 = vadd.f32 %v5190, 0.0001
      %v5193 = vrcp.pop %v5191
      %v5194 = vrcp.pop %v5192
      %v5195 = vmul.f32 %v5187, %v5193
      %v5196 = vmul.f32 %v5188, %v5194
      %v5197 = vmul.f32 %v5181, 2.0
      %v5198 = vmul.f32 %v5182, 2.0
      %v5199 = vadd.f32 %v5197, 0.0009
      %v5200 = vadd.f32 %v5198, 0.0009
      %v5201 = vadd.f32 %v5173, %v5177
      %v5202 = vadd.f32 %v5174, %v5178
      %v5203 = vadd.f32 %v5201, 0.0009
      %v5204 = vadd.f32 %v5202, 0.0009
      %v5205 = vrcp.pop %v5203
      %v5206 = vrcp.pop %v5204
      %v5207 = vmul.f32 %v5199, %v5205
      %v5208 = vmul.f32 %v5200, %v5206
      %v5209 = vmul.f32 %v5207, %v5207
      %v5210 = vmul.f32 %v5208, %v5208
      %v5211 = vmul.f32 %v5209, %v5207
      %v5212 = vmul.f32 %v5210, %v5208
      %v5213 = vmul.f32 %v4493, %v5211
      %v5214 = vmul.f32 %v4494, %v5212
      %v5215 = vmul.f32 %v5195, %v5195
      %v5216 = vmul.f32 %v5196, %v5196
      %v5217 = vmul.f32 %v5215, %v5195
      %v5218 = vmul.f32 %v5216, %v5196
      %v5219 = vmul.f32 %v5217, %v5213
      %v5220 = vmul.f32 %v5218, %v5214
      %v5221 = vsub.f32 1.0, %v5219
      %v5222 = vsub.f32 1.0, %v5220
      %v5223 = vld [vmem:[%s205] sm:$0xff]
      %v5224 = vld [vmem:[%s205 + $0x8] sm:$0xff]
      %v5225 = vld [vmem:[%s210] sm:$0xff]
      %v5226 = vld [vmem:[%s210 + $0x8] sm:$0xff]
      %v5227 = vsub.f32 %v5223, %v5225
      %v5228 = vsub.f32 %v5224, %v5226
      %v5229 = vand.u32 2147483647, %v5227
      %v5230 = vand.u32 2147483647, %v5228
      %v5231 = vld [vmem:[%s1641] sm:$0xff]
      %v5232 = vld [vmem:[%s1641 + $0x8] sm:$0xff]
      %v5233 = vld [vmem:[%s1644] sm:$0xff]
      %v5234 = vld [vmem:[%s1644 + $0x8] sm:$0xff]
      %v5235 = vsub.f32 %v5231, %v5233
      %v5236 = vsub.f32 %v5232, %v5234
      %v5237 = vand.u32 2147483647, %v5235
      %v5238 = vand.u32 2147483647, %v5236
      %v5239 = vld [vmem:[%s3771] sm:$0xff]
      %v5240 = vld [vmem:[%s3771 + $0x8] sm:$0xff]
      %v5241 = vld [vmem:[%s3774] sm:$0xff]
      %v5242 = vld [vmem:[%s3774 + $0x8] sm:$0xff]
      %v5243 = vsub.f32 %v5239, %v5241
      %v5244 = vsub.f32 %v5240, %v5242
      %v5245 = vand.u32 2147483647, %v5243
      %v5246 = vand.u32 2147483647, %v5244
      %5247 = vst.msk [vmem:[#allocation2] sm:$0xff] %vm224, %v5229
      %5248 = vst.msk [vmem:[#allocation2 + $0x28] sm:$0xff] %vm224, %v5230
      %5249 = vst.msk [vmem:[#allocation2 + $0x8] sm:$0xff] %vm224, %v5237
      %5250 = vst.msk [vmem:[#allocation2 + $0x30] sm:$0xff] %vm224, %v5238
      %5251 = vst.msk [vmem:[#allocation2 + $0x10] sm:$0xff] %vm224, %v5245
      %5252 = vst.msk [vmem:[#allocation2 + $0x38] sm:$0xff] %vm224, %v5246
      %v5253 = vld [vmem:[%s4495] sm:$0xff]
      %v5254 = vld [vmem:[%s4495 + $0x8] sm:$0xff]
      %v5255 = vld [vmem:[#allocation2] sm:$0xff]
      %v5256 = vld [vmem:[#allocation2 + $0x8] sm:$0xff]
      %v5257 = vld [vmem:[#allocation2 + $0x10] sm:$0xff]
      %v5258 = vld [vmem:[#allocation2 + $0x28] sm:$0xff]
      %v5259 = vld [vmem:[#allocation2 + $0x30] sm:$0xff]
      %v5260 = vld [vmem:[#allocation2 + $0x38] sm:$0xff]
      %v5262 = vsel %vm224, %v5253, 0
      %v5265 = vsel %vm224, %v5254, 0
      %5267 = vmatprep.subr.mxu0 %v5256
      %5268 = vmatpush1.msra.mxu0 %v5255
      %5269 = vmatprep.subr.mxu0 %v5259
      %5270 = vmatpush1.msra.mxu0 %v5258
      %5271 = vmatprep.subr.mxu0 0.0
      %5272 = vmatpush1.msra.mxu0 0.0
      %5273 = vmatprep.subr.mxu0 0.0
      %5274 = vmatpush1.msra.mxu0 0.0
      %5275 = vmatprep.subr.mxu0 0.0
      %5276 = vmatpush1.msra.mxu0 0.0
      %5277 = vmatprep.subr.mxu0 0.0
      %5278 = vmatpush1.msra.mxu0 0.0
      %5279 = vmatprep.subr.mxu0 0.0
      %5280 = vmatpush1.msra.mxu0 0.0
      %5281 = vmatprep.subr.mxu0 0.0
      %5282 = vmatpush1.msra.mxu0 0.0
      %5283 = vmatprep.subr.mxu0 0.0
      %5284 = vmatpush1.msra.mxu0 0.0
      %5285 = vmatprep.subr.mxu0 0.0
      %5286 = vmatpush1.msra.mxu0 0.0
      %5287 = vmatprep.subr.mxu0 0.0
      %5288 = vmatpush1.msra.mxu0 0.0
      %5289 = vmatprep.subr.mxu0 0.0
      %5290 = vmatpush1.msra.mxu0 0.0
      %5291 = vmatprep.subr.mxu0 0.0
      %5292 = vmatpush1.msra.mxu0 0.0
      %5293 = vmatprep.subr.mxu0 0.0
      %5294 = vmatpush1.msra.mxu0 0.0
      %5295 = vmatprep.subr.mxu0 0.0
      %5296 = vmatpush1.msra.mxu0 0.0
      %5297 = vmatprep.subr.mxu0 0.0
      %5298 = vmatpush1.msra.mxu0 0.0
      %5299 = vmatprep.subr.mxu0 0.0
      %5300 = vmatpush1.msra.mxu0 0.0
      %5301 = vmatprep.subr.mxu0 0.0
      %5302 = vmatpush1.msra.mxu0 0.0
      %5303 = vmatprep.subr.mxu0 0.0
      %5304 = vmatpush1.msra.mxu0 0.0
      %5305 = vmatprep.subr.mxu0 0.0
      %5306 = vmatpush1.msra.mxu0 0.0
      %5307 = vmatprep.subr.mxu0 0.0
      %5308 = vmatpush1.msra.mxu0 0.0
      %5309 = vmatprep.subr.mxu0 0.0
      %5310 = vmatpush1.msra.mxu0 0.0
      %5311 = vmatprep.subr.mxu0 0.0
      %5312 = vmatpush1.msra.mxu0 0.0
      %5313 = vmatprep.subr.mxu0 0.0
      %5314 = vmatpush1.msra.mxu0 0.0
      %5315 = vmatprep.subr.mxu0 0.0
      %5316 = vmatpush1.msra.mxu0 0.0
      %5317 = vmatprep.subr.mxu0 0.0
      %5318 = vmatpush1.msra.mxu0 0.0
      %5319 = vmatprep.subr.mxu0 0.0
      %5320 = vmatpush1.msra.mxu0 0.0
      %5321 = vmatprep.subr.mxu0 0.0
      %5322 = vmatpush1.msra.mxu0 0.0
      %5323 = vmatprep.subr.mxu0 0.0
      %5324 = vmatpush1.msra.mxu0 0.0
      %5325 = vmatprep.subr.mxu0 0.0
      %5326 = vmatpush1.msra.mxu0 0.0
      %5327 = vmatprep.subr.mxu0 0.0
      %5328 = vmatpush1.msra.mxu0 0.0
      %5329 = vmatprep.subr.mxu0 0.0
      %5330 = vmatpush1.msra.mxu0 0.0
      %5331 = vmatprep.mubr.f32.mxu0 0.0
      %5332 = vmatmul.mubr.f32.gmra.mrb[0].mxu0 %v5262
      %v5333 = vpop.f32.mrb[0].mxu0
      %v5334 = vadd.f32 0.0, %v5333
      %v5335 = vpop.f32.mrb[0].mxu0
      %v5336 = vadd.f32 0.0, %v5335
      %5337 = vmatprep.mubr.f32.mxu0 0.0
      %5338 = vmatmul.mubr.f32.gmra.mrb[0].mxu0 %v5265
      %v5339 = vpop.f32.mrb[0].mxu0
      %v5340 = vadd.f32 0.0, %v5339
      %v5341 = vpop.f32.mrb[0].mxu0
      %v5342 = vadd.f32 0.0, %v5341
      %5343 = vdwg.mxu0
      %5344 = vmatprep.subr.mxu0 0.0
      %5345 = vmatpush1.msra.mxu0 %v5257
      %5346 = vmatprep.subr.mxu0 0.0
      %5347 = vmatpush1.msra.mxu0 %v5260
      %5348 = vmatprep.subr.mxu0 0.0
      %5349 = vmatpush1.msra.mxu0 0.0
      %5350 = vmatprep.subr.mxu0 0.0
      %5351 = vmatpush1.msra.mxu0 0.0
      %5352 = vmatprep.subr.mxu0 0.0
      %5353 = vmatpush1.msra.mxu0 0.0
      %5354 = vmatprep.subr.mxu0 0.0
      %5355 = vmatpush1.msra.mxu0 0.0
      %5356 = vmatprep.subr.mxu0 0.0
      %5357 = vmatpush1.msra.mxu0 0.0
      %5358 = vmatprep.subr.mxu0 0.0
      %5359 = vmatpush1.msra.mxu0 0.0
      %5360 = vmatprep.subr.mxu0 0.0
      %5361 = vmatpush1.msra.mxu0 0.0
      %5362 = vmatprep.subr.mxu0 0.0
      %5363 = vmatpush1.msra.mxu0 0.0
      %5364 = vmatprep.subr.mxu0 0.0
      %5365 = vmatpush1.msra.mxu0 0.0
      %5366 = vmatprep.subr.mxu0 0.0
      %5367 = vmatpush1.msra.mxu0 0.0
      %5368 = vmatprep.subr.mxu0 0.0
      %5369 = vmatpush1.msra.mxu0 0.0
      %5370 = vmatprep.subr.mxu0 0.0
      %5371 = vmatpush1.msra.mxu0 0.0
      %5372 = vmatprep.subr.mxu0 0.0
      %5373 = vmatpush1.msra.mxu0 0.0
      %5374 = vmatprep.subr.mxu0 0.0
      %5375 = vmatpush1.msra.mxu0 0.0
      %5376 = vmatprep.subr.mxu0 0.0
      %5377 = vmatpush1.msra.mxu0 0.0
      %5378 = vmatprep.subr.mxu0 0.0
      %5379 = vmatpush1.msra.mxu0 0.0
      %5380 = vmatprep.subr.mxu0 0.0
      %5381 = vmatpush1.msra.mxu0 0.0
      %5382 = vmatprep.subr.mxu0 0.0
      %5383 = vmatpush1.msra.mxu0 0.0
      %5384 = vmatprep.subr.mxu0 0.0
      %5385 = vmatpush1.msra.mxu0 0.0
      %5386 = vmatprep.subr.mxu0 0.0
      %5387 = vmatpush1.msra.mxu0 0.0
      %5388 = vmatprep.subr.mxu0 0.0
      %5389 = vmatpush1.msra.mxu0 0.0
      %5390 = vmatprep.subr.mxu0 0.0
      %5391 = vmatpush1.msra.mxu0 0.0
      %5392 = vmatprep.subr.mxu0 0.0
      %5393 = vmatpush1.msra.mxu0 0.0
      %5394 = vmatprep.subr.mxu0 0.0
      %5395 = vmatpush1.msra.mxu0 0.0
      %5396 = vmatprep.subr.mxu0 0.0
      %5397 = vmatpush1.msra.mxu0 0.0
      %5398 = vmatprep.subr.mxu0 0.0
      %5399 = vmatpush1.msra.mxu0 0.0
      %5400 = vmatprep.subr.mxu0 0.0
      %5401 = vmatpush1.msra.mxu0 0.0
      %5402 = vmatprep.subr.mxu0 0.0
      %5403 = vmatpush1.msra.mxu0 0.0
      %5404 = vmatprep.subr.mxu0 0.0
      %5405 = vmatpush1.msra.mxu0 0.0
      %5406 = vmatprep.subr.mxu0 0.0
      %5407 = vmatpush1.msra.mxu0 0.0
      %5408 = vmatprep.mubr.f32.mxu0 0.0
      %5409 = vmatmul.mubr.f32.gmra.mrb[0].mxu0 %v5262
      %v5410 = vpop.f32.mrb[0].mxu0
      %v5411 = vadd.f32 0.0, %v5410
      %v5412 = vpop.f32.mrb[0].mxu0
      %5413 = vmatprep.mubr.f32.mxu0 0.0
      %5414 = vmatmul.mubr.f32.gmra.mrb[0].mxu0 %v5265
      %v5415 = vpop.f32.mrb[0].mxu0
      %v5416 = vadd.f32 0.0, %v5415
      %v5417 = vpop.f32.mrb[0].mxu0
      %5418 = vdwg.mxu0
      %5419 = vst [vmem:[#allocation3] sm:$0xff] %v5334
      %5420 = vst [vmem:[#allocation3 + $0x8] sm:$0xff] %v5336
      %5421 = vst [vmem:[#allocation3 + $0x10] sm:$0xff] %v5411
      %5422 = vst [vmem:[#allocation3 + $0x28] sm:$0xff] %v5340
      %5423 = vst [vmem:[#allocation3 + $0x30] sm:$0xff] %v5342
      %5424 = vst [vmem:[#allocation3 + $0x38] sm:$0xff] %v5416
      %v5425 = vld [vmem:[#allocation3] sm:$0xff]
      %v5426 = vld [vmem:[#allocation3 + $0x28] sm:$0xff]
      %v5427 = vld [vmem:[%s4755] sm:$0xff]
      %v5428 = vld [vmem:[%s4755 + $0x8] sm:$0xff]
      %v5429 = vld [vmem:[#allocation3 + $0x8] sm:$0xff]
      %v5430 = vld [vmem:[#allocation3 + $0x30] sm:$0xff]
      %v5432 = vsel %vm224, %v5429, 0
      %v5435 = vsel %vm224, %v5430, 0
      %5437 = vmatprep.subr.mxu0 0.0
      %5438 = vmatpush1.msra.mxu0 %v5427
      %5439 = vmatprep.subr.mxu0 0.0
      %5440 = vmatpush1.msra.mxu0 %v5428
      %5441 = vmatprep.subr.mxu0 0.0
      %5442 = vmatpush1.msra.mxu0 0.0
      %5443 = vmatprep.subr.mxu0 0.0
      %5444 = vmatpush1.msra.mxu0 0.0
      %5445 = vmatprep.subr.mxu0 0.0
      %5446 = vmatpush1.msra.mxu0 0.0
      %5447 = vmatprep.subr.mxu0 0.0
      %5448 = vmatpush1.msra.mxu0 0.0
      %5449 = vmatprep.subr.mxu0 0.0
      %5450 = vmatpush1.msra.mxu0 0.0
      %5451 = vmatprep.subr.mxu0 0.0
      %5452 = vmatpush1.msra.mxu0 0.0
      %5453 = vmatprep.subr.mxu0 0.0
      %5454 = vmatpush1.msra.mxu0 0.0
      %5455 = vmatprep.subr.mxu0 0.0
      %5456 = vmatpush1.msra.mxu0 0.0
      %5457 = vmatprep.subr.mxu0 0.0
      %5458 = vmatpush1.msra.mxu0 0.0
      %5459 = vmatprep.subr.mxu0 0.0
      %5460 = vmatpush1.msra.mxu0 0.0
      %5461 = vmatprep.subr.mxu0 0.0
      %5462 = vmatpush1.msra.mxu0 0.0
      %5463 = vmatprep.subr.mxu0 0.0
      %5464 = vmatpush1.msra.mxu0 0.0
      %5465 = vmatprep.subr.mxu0 0.0
      %5466 = vmatpush1.msra.mxu0 0.0
      %5467 = vmatprep.subr.mxu0 0.0
      %5468 = vmatpush1.msra.mxu0 0.0
      %5469 = vmatprep.subr.mxu0 0.0
      %5470 = vmatpush1.msra.mxu0 0.0
      %5471 = vmatprep.subr.mxu0 0.0
      %5472 = vmatpush1.msra.mxu0 0.0
      %5473 = vmatprep.subr.mxu0 0.0
      %5474 = vmatpush1.msra.mxu0 0.0
      %5475 = vmatprep.subr.mxu0 0.0
      %5476 = vmatpush1.msra.mxu0 0.0
      %5477 = vmatprep.subr.mxu0 0.0
      %5478 = vmatpush1.msra.mxu0 0.0
      %5479 = vmatprep.subr.mxu0 0.0
      %5480 = vmatpush1.msra.mxu0 0.0
      %5481 = vmatprep.subr.mxu0 0.0
      %5482 = vmatpush1.msra.mxu0 0.0
      %5483 = vmatprep.subr.mxu0 0.0
      %5484 = vmatpush1.msra.mxu0 0.0
      %5485 = vmatprep.subr.mxu0 0.0
      %5486 = vmatpush1.msra.mxu0 0.0
      %5487 = vmatprep.subr.mxu0 0.0
      %5488 = vmatpush1.msra.mxu0 0.0
      %5489 = vmatprep.subr.mxu0 0.0
      %5490 = vmatpush1.msra.mxu0 0.0
      %5491 = vmatprep.subr.mxu0 0.0
      %5492 = vmatpush1.msra.mxu0 0.0
      %5493 = vmatprep.subr.mxu0 0.0
      %5494 = vmatpush1.msra.mxu0 0.0
      %5495 = vmatprep.subr.mxu0 0.0
      %5496 = vmatpush1.msra.mxu0 0.0
      %5497 = vmatprep.subr.mxu0 0.0
      %5498 = vmatpush1.msra.mxu0 0.0
      %5499 = vmatprep.subr.mxu0 0.0
      %5500 = vmatpush1.msra.mxu0 0.0
      %5501 = vmatprep.mubr.f32.mxu0 0.0
      %5502 = vmatmul.mubr.f32.gmra.mrb[0].mxu0 %v5432
      %v5503 = vpop.f32.mrb[0].mxu0
      %v5504 = vadd.f32 0.0, %v5503
      %v5505 = vpop.f32.mrb[0].mxu0
      %5506 = vmatprep.mubr.f32.mxu0 0.0
      %5507 = vmatmul.mubr.f32.gmra.mrb[0].mxu0 %v5435
      %v5508 = vpop.f32.mrb[0].mxu0
      %v5509 = vadd.f32 0.0, %v5508
      %v5510 = vpop.f32.mrb[0].mxu0
      %5511 = vdwg.mxu0
      %v5512 = vld [vmem:[#allocation3 + $0x10] sm:$0xff]
      %v5513 = vld [vmem:[#allocation3 + $0x38] sm:$0xff]
      %v5515 = vsel %vm224, %v5512, 0
      %v5518 = vsel %vm224, %v5513, 0
      %5520 = vmatprep.subr.mxu0 0.0
      %5521 = vmatpush1.msra.mxu0 %v5427
      %5522 = vmatprep.subr.mxu0 0.0
      %5523 = vmatpush1.msra.mxu0 %v5428
      %5524 = vmatprep.subr.mxu0 0.0
      %5525 = vmatpush1.msra.mxu0 0.0
      %5526 = vmatprep.subr.mxu0 0.0
      %5527 = vmatpush1.msra.mxu0 0.0
      %5528 = vmatprep.subr.mxu0 0.0
      %5529 = vmatpush1.msra.mxu0 0.0
      %5530 = vmatprep.subr.mxu0 0.0
      %5531 = vmatpush1.msra.mxu0 0.0
      %5532 = vmatprep.subr.mxu0 0.0
      %5533 = vmatpush1.msra.mxu0 0.0
      %5534 = vmatprep.subr.mxu0 0.0
      %5535 = vmatpush1.msra.mxu0 0.0
      %5536 = vmatprep.subr.mxu0 0.0
      %5537 = vmatpush1.msra.mxu0 0.0
      %5538 = vmatprep.subr.mxu0 0.0
      %5539 = vmatpush1.msra.mxu0 0.0
      %5540 = vmatprep.subr.mxu0 0.0
      %5541 = vmatpush1.msra.mxu0 0.0
      %5542 = vmatprep.subr.mxu0 0.0
      %5543 = vmatpush1.msra.mxu0 0.0
      %5544 = vmatprep.subr.mxu0 0.0
      %5545 = vmatpush1.msra.mxu0 0.0
      %5546 = vmatprep.subr.mxu0 0.0
      %5547 = vmatpush1.msra.mxu0 0.0
      %5548 = vmatprep.subr.mxu0 0.0
      %5549 = vmatpush1.msra.mxu0 0.0
      %5550 = vmatprep.subr.mxu0 0.0
      %5551 = vmatpush1.msra.mxu0 0.0
      %5552 = vmatprep.subr.mxu0 0.0
      %5553 = vmatpush1.msra.mxu0 0.0
      %5554 = vmatprep.subr.mxu0 0.0
      %5555 = vmatpush1.msra.mxu0 0.0
      %5556 = vmatprep.subr.mxu0 0.0
      %5557 = vmatpush1.msra.mxu0 0.0
      %5558 = vmatprep.subr.mxu0 0.0
      %5559 = vmatpush1.msra.mxu0 0.0
      %5560 = vmatprep.subr.mxu0 0.0
      %5561 = vmatpush1.msra.mxu0 0.0
      %5562 = vmatprep.subr.mxu0 0.0
      %5563 = vmatpush1.msra.mxu0 0.0
      %5564 = vmatprep.subr.mxu0 0.0
      %5565 = vmatpush1.msra.mxu0 0.0
      %5566 = vmatprep.subr.mxu0 0.0
      %5567 = vmatpush1.msra.mxu0 0.0
      %5568 = vmatprep.subr.mxu0 0.0
      %5569 = vmatpush1.msra.mxu0 0.0
      %5570 = vmatprep.subr.mxu0 0.0
      %5571 = vmatpush1.msra.mxu0 0.0
      %5572 = vmatprep.subr.mxu0 0.0
      %5573 = vmatpush1.msra.mxu0 0.0
      %5574 = vmatprep.subr.mxu0 0.0
      %5575 = vmatpush1.msra.mxu0 0.0
      %5576 = vmatprep.subr.mxu0 0.0
      %5577 = vmatpush1.msra.mxu0 0.0
      %5578 = vmatprep.subr.mxu0 0.0
      %5579 = vmatpush1.msra.mxu0 0.0
      %5580 = vmatprep.subr.mxu0 0.0
      %5581 = vmatpush1.msra.mxu0 0.0
      %5582 = vmatprep.subr.mxu0 0.0
      %5583 = vmatpush1.msra.mxu0 0.0
      %5584 = vmatprep.mubr.f32.mxu0 0.0
      %5585 = vmatmul.mubr.f32.gmra.mrb[0].mxu0 %v5515
      %v5586 = vpop.f32.mrb[0].mxu0
      %v5587 = vadd.f32 0.0, %v5586
      %v5588 = vpop.f32.mrb[0].mxu0
      %5589 = vmatprep.mubr.f32.mxu0 0.0
      %5590 = vmatmul.mubr.f32.gmra.mrb[0].mxu0 %v5518
      %v5591 = vpop.f32.mrb[0].mxu0
      %v5592 = vadd.f32 0.0, %v5591
      %v5593 = vpop.f32.mrb[0].mxu0
      %5594 = vdwg.mxu0
      %v5596 = vsel %vm224, %v5425, 0
      %v5599 = vsel %vm224, %v5426, 0
      %5601 = vmatprep.subr.mxu0 0.0
      %5602 = vmatpush1.msra.mxu0 %v5427
      %5603 = vmatprep.subr.mxu0 0.0
      %5604 = vmatpush1.msra.mxu0 %v5428
      %5605 = vmatprep.subr.mxu0 0.0
      %5606 = vmatpush1.msra.mxu0 0.0
      %5607 = vmatprep.subr.mxu0 0.0
      %5608 = vmatpush1.msra.mxu0 0.0
      %5609 = vmatprep.subr.mxu0 0.0
      %5610 = vmatpush1.msra.mxu0 0.0
      %5611 = vmatprep.subr.mxu0 0.0
      %5612 = vmatpush1.msra.mxu0 0.0
      %5613 = vmatprep.subr.mxu0 0.0
      %5614 = vmatpush1.msra.mxu0 0.0
      %5615 = vmatprep.subr.mxu0 0.0
      %5616 = vmatpush1.msra.mxu0 0.0
      %5617 = vmatprep.subr.mxu0 0.0
      %5618 = vmatpush1.msra.mxu0 0.0
      %5619 = vmatprep.subr.mxu0 0.0
      %5620 = vmatpush1.msra.mxu0 0.0
      %5621 = vmatprep.subr.mxu0 0.0
      %5622 = vmatpush1.msra.mxu0 0.0
      %5623 = vmatprep.subr.mxu0 0.0
      %5624 = vmatpush1.msra.mxu0 0.0
      %5625 = vmatprep.subr.mxu0 0.0
      %5626 = vmatpush1.msra.mxu0 0.0
      %5627 = vmatprep.subr.mxu0 0.0
      %5628 = vmatpush1.msra.mxu0 0.0
      %5629 = vmatprep.subr.mxu0 0.0
      %5630 = vmatpush1.msra.mxu0 0.0
      %5631 = vmatprep.subr.mxu0 0.0
      %5632 = vmatpush1.msra.mxu0 0.0
      %5633 = vmatprep.subr.mxu0 0.0
      %5634 = vmatpush1.msra.mxu0 0.0
      %5635 = vmatprep.subr.mxu0 0.0
      %5636 = vmatpush1.msra.mxu0 0.0
      %5637 = vmatprep.subr.mxu0 0.0
      %5638 = vmatpush1.msra.mxu0 0.0
      %5639 = vmatprep.subr.mxu0 0.0
      %5640 = vmatpush1.msra.mxu0 0.0
      %5641 = vmatprep.subr.mxu0 0.0
      %5642 = vmatpush1.msra.mxu0 0.0
      %5643 = vmatprep.subr.mxu0 0.0
      %5644 = vmatpush1.msra.mxu0 0.0
      %5645 = vmatprep.subr.mxu0 0.0
      %5646 = vmatpush1.msra.mxu0 0.0
      %5647 = vmatprep.subr.mxu0 0.0
      %5648 = vmatpush1.msra.mxu0 0.0
      %5649 = vmatprep.subr.mxu0 0.0
      %5650 = vmatpush1.msra.mxu0 0.0
      %5651 = vmatprep.subr.mxu0 0.0
      %5652 = vmatpush1.msra.mxu0 0.0
      %5653 = vmatprep.subr.mxu0 0.0
      %5654 = vmatpush1.msra.mxu0 0.0
      %5655 = vmatprep.subr.mxu0 0.0
      %5656 = vmatpush1.msra.mxu0 0.0
      %5657 = vmatprep.subr.mxu0 0.0
      %5658 = vmatpush1.msra.mxu0 0.0
      %5659 = vmatprep.subr.mxu0 0.0
      %5660 = vmatpush1.msra.mxu0 0.0
      %5661 = vmatprep.subr.mxu0 0.0
      %5662 = vmatpush1.msra.mxu0 0.0
      %5663 = vmatprep.subr.mxu0 0.0
      %5664 = vmatpush1.msra.mxu0 0.0
      %5665 = vmatprep.mubr.f32.mxu0 0.0
      %5666 = vmatmul.mubr.f32.gmra.mrb[0].mxu0 %v5596
      %v5667 = vpop.f32.mrb[0].mxu0
      %v5668 = vadd.f32 %v5504, %v5667
      %v5669 = vpop.f32.mrb[0].mxu0
      %5670 = vmatprep.mubr.f32.mxu0 0.0
      %5671 = vmatmul.mubr.f32.gmra.mrb[0].mxu0 %v5599
      %v5672 = vpop.f32.mrb[0].mxu0
      %v5673 = vadd.f32 %v5509, %v5672
      %v5674 = vpop.f32.mrb[0].mxu0
      %5675 = vdwg.mxu0
      %v5676 = vadd.f32 %v5668, %v5587
      %v5677 = vadd.f32 %v5673, %v5592
      %v5678 = vmul.f32 %v5676, 0.33333334
      %v5679 = vmul.f32 %v5677, 0.33333334
      %v5680 = vmul.f32 %v5221, 0.84
      %v5681 = vmul.f32 %v5222, 0.84
      %v5682 = vmul.f32 %v5678, 0.16
      %v5683 = vmul.f32 %v5679, 0.16
      %v5684 = vadd.f32 %v5680, %v5682
      %v5685 = vadd.f32 %v5681, %v5683
      %v5686 = vsel %vm224, %v5684, 0.0
      %5687 = vadd.xlane.f32.xlu0 %v5686
      %v5688 = vpop.xlane.xlu0 %5687
      %v5689 = vsel %vm224, %v5685, 0.0
      %5690 = vadd.xlane.f32.xlu0 %v5689
      %v5691 = vpop.xlane.xlu0 %5690
      %v5692 = vadd.f32 %v5688, %v5691
      %v5693 = vrot.slane %v5692, 4
      %v5694 = vadd.f32 %v5692, %v5693
      %v5695 = vrot.slane %v5694, 2
      %v5696 = vadd.f32 %v5694, %v5695
      %v5697 = vrot.slane %v5696, 1
      %v5698 = vadd.f32 %v5696, %v5697
      %vm5699 = vcmask 0
      %5700 = vst.msk [vmem:[%s213] sm:$0x1] %vm5699, %v5698
      %p5701 = scmp.lt.s32.totalorder %s15, 1
      %s5702 = scalar_select %p5701, %s15, 1
      %s5703 = scalar_lea.vmem %s4, %s5702
      // Predicated region
      $region37: #{ms_ssim_l1_loss.1} parent=35 // pred_check
        %p5704 = pneg %p127
      $region38: #{ms_ssim_l1_loss.1} parent=35 // pred_check_branch
        %5706 = sbr.rel (%p5704) target = $region40
      $region39: #{ms_ssim_l1_loss.1} parent=35 // pred_region
        _
      $region40: #{ms_ssim_l1_loss.1} parent=35 // pred_fallthru
        _
    $region36: #{ms_ssim_l1_loss.1} parent=5 // pred_fallthru
      _
    %p5707 = scmp.le.s32.totalorder 2, %s10
    // Predicated region
    $region41: #{ms_ssim_l1_loss.1} parent=5 // pred_check
      %p5708 = pneg %p5707
    $region42: #{ms_ssim_l1_loss.1} parent=5 // pred_check_branch
      %5710 = sbr.rel (%p5708) target = $region44
    $region43: #{ms_ssim_l1_loss.1} parent=5 // pred_region
      %s5711 = ssub.s32 %s10, 2
      // Predicated region
      $region45: #{ms_ssim_l1_loss.1} parent=43 // pred_check
        %p5712 = pneg %p133
      $region46: #{ms_ssim_l1_loss.1} parent=43 // pred_check_branch
        %5714 = sbr.rel (%p5712) target = $region48
      $region47: #{ms_ssim_l1_loss.1} parent=43 // pred_region
        %p5715 = scmp.lt.s32.totalorder %s16, 1
        %s5716 = scalar_select %p5715, %s16, 1
        %s5717 = scalar_lea.vmem %s4, %s5716
      $region48: #{ms_ssim_l1_loss.1} parent=43 // pred_fallthru
        _
    $region44: #{ms_ssim_l1_loss.1} parent=5 // pred_fallthru
      _
  $region6: #{ms_ssim_l1_loss.1} parent=0 // loop_footer
    %s14 = sadd.s32 1, %s10
  $region7: #{ms_ssim_l1_loss.1} parent=0 // loop_footer_branch
    %9 = sbr.rel target = $region3
  $region8: #{ms_ssim_l1_loss.1} parent=0 // loop_exit
    _

</llo_original>
